<compile_context>
chip_gen: v5e
topology: v5e:2x2
jax: 0.10.0
libtpu: 0.0.40
codegen_flags: <defaults>
</compile_context>

<pallas_src>
import math
import functools

import jax
import jax.numpy as jnp
from jax import lax
from jax.experimental import pallas as pl
from jax.experimental.pallas import tpu as pltpu

NEG_INF = -1e9
LN_EPS = 1e-5
VMEM_LIMIT = 32 * 1024 * 1024  # safe on v5e/v6e (128 MiB phys) and v7x (64 MiB phys)


# ----------------------------- in-kernel helpers -----------------------------

def _layer_norm(y, g, b, eps=LN_EPS):
    """Row LayerNorm in f32. y: [M, D], g/b: [1, D]."""
    mu = jnp.mean(y, axis=-1, keepdims=True)
    var = jnp.mean((y - mu) ** 2, axis=-1, keepdims=True)
    return (y - mu) * lax.rsqrt(var + eps) * g + b


def _softmax_rows(s):
    """Numerically-stable row softmax; reciprocal on the EUP."""
    m = jnp.max(s, axis=-1, keepdims=True)
    p = jnp.exp(s - m)
    denom = jnp.sum(p, axis=-1, keepdims=True)
    return p * pl.reciprocal(denom, approx=True)


# ------------------- fused multi-head attention (+ residual + LN) -------------------

def _mha_kernel(x_ref, kv_ref, bias_ref,
                wq_ref, wk_ref, wv_ref, bq_ref, bk_ref, bv_ref,
                wo_ref, bo_ref, g_ref, beta_ref, o_ref,
                *, nhead, scale):
    x = x_ref[0]            # [Sq, D] f32 (query source / residual)
    kv = kv_ref[0]          # [Sk, D] f32 (key/value source)
    bias = bias_ref[0]      # [Sq, Sk] f32 additive mask (shared across heads)

    x_bf = x.astype(jnp.bfloat16)
    kv_bf = kv.astype(jnp.bfloat16)

    acc = jnp.zeros(x.shape, jnp.float32)            # [Sq, D] projected attention output
    for h in range(nhead):                           # static unroll; major-dim ref indexing only
        qh = jnp.dot(x_bf, wq_ref[h], preferred_element_type=jnp.float32) + bq_ref[h]
        kh = jnp.dot(kv_bf, wk_ref[h], preferred_element_type=jnp.float32) + bk_ref[h]
        vh = jnp.dot(kv_bf, wv_ref[h], preferred_element_type=jnp.float32) + bv_ref[h]
        # scores contract the head dim directly (no .T / in-kernel transpose)
        s = lax.dot_general((qh * scale).astype(jnp.bfloat16), kh.astype(jnp.bfloat16),
                            (((1,), (1,)), ((), ())),
                            preferred_element_type=jnp.float32)             # [Sq, Sk]
        p = _softmax_rows(s + bias)
        oh = jnp.dot(p.astype(jnp.bfloat16), vh.astype(jnp.bfloat16),
                     preferred_element_type=jnp.float32)                    # [Sq, dh]
        # fold the output projection in per head: attn @ Wo == sum_h oh @ Wo[h]
        acc = acc + jnp.dot(oh.astype(jnp.bfloat16), wo_ref[h],
                            preferred_element_type=jnp.float32)             # [Sq, D]

    y = x + acc + bo_ref[...]                        # residual + out-proj bias
    o_ref[0] = _layer_norm(y, g_ref[...], beta_ref[...]).astype(o_ref.dtype)


def pallas_mha(x, kv, bias, p, gamma, beta, nhead):
    """x: [B,Sq,D], kv: [B,Sk,D], bias: [B,Sq,Sk] additive. Returns LN(x + MHA(x, kv))."""
    B, Sq, D = x.shape
    Sk = kv.shape[1]
    dh = D // nhead
    scale = 1.0 / math.sqrt(dh)
    kernel = functools.partial(_mha_kernel, nhead=nhead, scale=scale)
    return pl.pallas_call(
        kernel,
        out_shape=jax.ShapeDtypeStruct((B, Sq, D), jnp.float32),
        grid=(B,),
        in_specs=[
            pl.BlockSpec((1, Sq, D), lambda b: (b, 0, 0)),        # x
            pl.BlockSpec((1, Sk, D), lambda b: (b, 0, 0)),        # kv
            pl.BlockSpec((1, Sq, Sk), lambda b: (b, 0, 0)),       # additive mask
            pl.BlockSpec((nhead, D, dh), lambda b: (0, 0, 0)),    # wq (bf16, head-blocked)
            pl.BlockSpec((nhead, D, dh), lambda b: (0, 0, 0)),    # wk
            pl.BlockSpec((nhead, D, dh), lambda b: (0, 0, 0)),    # wv
            pl.BlockSpec((nhead, 1, dh), lambda b: (0, 0, 0)),    # bq
            pl.BlockSpec((nhead, 1, dh), lambda b: (0, 0, 0)),    # bk
            pl.BlockSpec((nhead, 1, dh), lambda b: (0, 0, 0)),    # bv
            pl.BlockSpec((nhead, dh, D), lambda b: (0, 0, 0)),    # wo (bf16, head-blocked)
            pl.BlockSpec((1, D), lambda b: (0, 0)),               # bo
            pl.BlockSpec((1, D), lambda b: (0, 0)),               # LN gamma
            pl.BlockSpec((1, D), lambda b: (0, 0)),               # LN beta
        ],
        out_specs=pl.BlockSpec((1, Sq, D), lambda b: (b, 0, 0)),
        compiler_params=pltpu.CompilerParams(
            dimension_semantics=("parallel",),
            vmem_limit_bytes=VMEM_LIMIT),
    )(x, kv, bias, p["wq"], p["wk"], p["wv"], p["bq"], p["bk"], p["bv"],
      p["wo"], p["bo"], gamma, beta)


# --------------------- fused FFN (+ residual + LN), row tiled ---------------------

def _ffn_kernel(x_ref, w1_ref, b1_ref, w2_ref, b2_ref, g_ref, beta_ref, o_ref):
    x = x_ref[...]                                                 # [TM, D] f32
    h = jnp.dot(x.astype(jnp.bfloat16), w1_ref[...],
                preferred_element_type=jnp.float32) + b1_ref[...]  # [TM, dff]
    h = jnp.maximum(h, 0.0)                                        # ReLU (f32, VPU)
    y = jnp.dot(h.astype(jnp.bfloat16), w2_ref[...],
                preferred_element_type=jnp.float32) + b2_ref[...]  # [TM, D]
    y = x + y                                                      # residual
    o_ref[...] = _layer_norm(y, g_ref[...], beta_ref[...]).astype(o_ref.dtype)


def _pick_row_tile(M, target=256):
    """Largest multiple-of-8 divisor of M that is <= target (full M if none / M small)."""
    if M <= target:
        return M
    tm = (target // 8) * 8
    while tm >= 8:
        if M % tm == 0:
            return tm
        tm -= 8
    return M


def pallas_ffn_ln(x2, w1, b1, w2, b2, gamma, beta):
    """x2: [M, D]. Returns LN(x2 + W2 @ relu(W1 @ x2))."""
    M, D = x2.shape
    dff = w1.shape[1]
    tm = _pick_row_tile(M)
    return pl.pallas_call(
        _ffn_kernel,
        out_shape=jax.ShapeDtypeStruct((M, D), jnp.float32),
        grid=(M // tm,),
        in_specs=[
            pl.BlockSpec((tm, D), lambda i: (i, 0)),
            pl.BlockSpec((D, dff), lambda i: (0, 0)),   # bf16 weight, pinned across tiles
            pl.BlockSpec((1, dff), lambda i: (0, 0)),
            pl.BlockSpec((dff, D), lambda i: (0, 0)),   # bf16 weight, pinned across tiles
            pl.BlockSpec((1, D), lambda i: (0, 0)),
            pl.BlockSpec((1, D), lambda i: (0, 0)),
            pl.BlockSpec((1, D), lambda i: (0, 0)),
        ],
        out_specs=pl.BlockSpec((tm, D), lambda i: (i, 0)),
        compiler_params=pltpu.CompilerParams(
            dimension_semantics=("parallel",),
            vmem_limit_bytes=VMEM_LIMIT),
    )(x2, w1, b1, w2, b2, gamma, beta)


# ------------------ fused final-LayerNorm + candidate-score kernel ------------------

def _score_kernel(x_ref, g_ref, beta_ref, w_ref, novar_ref, var_ref,
                  o_novar_ref, o_var_ref):
    x = x_ref[0]                                                   # [S2, H] f32
    xn = _layer_norm(x, g_ref[...], beta_ref[...])                 # final decoder LayerNorm
    h = jnp.dot(xn.astype(jnp.bfloat16), w_ref[...],
                preferred_element_type=jnp.float32)                # [S2, E]
    h_bf = h.astype(jnp.bfloat16)
    # fixed-vocab candidates (shared table) and copied-variable candidates (per batch);
    # both contract E directly (no in-kernel transpose / concat).
    o_novar_ref[0] = lax.dot_general(
        h_bf, novar_ref[...], (((1,), (1,)), ((), ())),
        preferred_element_type=jnp.float32).astype(o_novar_ref.dtype)   # [S2, var_start]
    o_var_ref[0] = lax.dot_general(
        h_bf, var_ref[0].astype(jnp.bfloat16), (((1,), (1,)), ((), ())),
        preferred_element_type=jnp.float32).astype(o_var_ref.dtype)     # [S2, S3]


def pallas_score(x, gamma, beta, w, emb_novar_bf, emb_var):
    """x: [B,S2,H]; emb_novar_bf: [var_start,E] (bf16, shared); emb_var: [B,S3,E] (f32)."""
    B, S2, H = x.shape
    E = w.shape[1]
    V0 = emb_novar_bf.shape[0]
    S3 = emb_var.shape[1]
    return pl.pallas_call(
        _score_kernel,
        out_shape=(jax.ShapeDtypeStruct((B, S2, V0), jnp.float32),
                   jax.ShapeDtypeStruct((B, S2, S3), jnp.float32)),
        grid=(B,),
        in_specs=[
            pl.BlockSpec((1, S2, H), lambda b: (b, 0, 0)),
            pl.BlockSpec((1, H), lambda b: (0, 0)),
            pl.BlockSpec((1, H), lambda b: (0, 0)),
            pl.BlockSpec((H, E), lambda b: (0, 0)),
            pl.BlockSpec((V0, E), lambda b: (0, 0)),      # shared fixed-vocab table (no broadcast)
            pl.BlockSpec((1, S3, E), lambda b: (b, 0, 0)),
        ],
        out_specs=(pl.BlockSpec((1, S2, V0), lambda b: (b, 0, 0)),
                   pl.BlockSpec((1, S2, S3), lambda b: (b, 0, 0))),
        compiler_params=pltpu.CompilerParams(
            dimension_semantics=("parallel",),
            vmem_limit_bytes=VMEM_LIMIT),
    )(x, gamma, beta, w, emb_novar_bf, emb_var)


# ------------------------------- JAX glue -----------------------------------

def sequence_mask(lengths, maxlen):
    return jnp.arange(maxlen)[None, :] < lengths[:, None]


def positional_encoding(seq_len, d_model):
    pos = jnp.arange(seq_len, dtype=jnp.float32)[:, None]
    div = jnp.exp(jnp.arange(0, d_model, 2, dtype=jnp.float32)
                  * (-math.log(10000.0) / d_model))
    pe = jnp.zeros((seq_len, d_model), jnp.float32)
    pe = pe.at[:, 0::2].set(jnp.sin(pos * div))
    pe = pe.at[:, 1::2].set(jnp.cos(pos * div))
    return pe


def transformer_decoder_forward(params, memory, len_src, tgt, len_tgt,
                                var_pos, len_var, cfg):
    """Equivalent of TransformerDecoder.forward(..., is_train=True) in eval mode."""
    B, S1, H = memory.shape
    S2 = tgt.shape[1]
    S3 = var_pos.shape[1]
    var_start = cfg["var_start"]
    nhead = cfg["nhead"]
    E = cfg["decoder_embedding_size"]

    # get_var_encoder_outputs: gather variable encodings from memory
    embedding_var = jnp.take_along_axis(memory, var_pos[:, :, None], axis=1)   # [B,S3,H]
    candi_mask = sequence_mask(var_start + len_var, var_start + S3)            # [B, V]
    mem_pad = ~sequence_mask(len_src, S1)                                      # True = pad

    # mixed embedding: fixed vocab tokens vs. copied variable encodings
    tgt_novar_id = jnp.clip(tgt, None, var_start - 1)
    novar_emb = jnp.take(params["embedding_tgt"], tgt_novar_id, axis=0)        # [B,S2,E]
    tgt_var_id = jnp.clip(tgt - var_start, 0)
    var_emb = jnp.take_along_axis(embedding_var, tgt_var_id[:, :, None], axis=1)
    choose = (tgt < var_start)[:, :, None]
    emb_tgt = jnp.where(choose, novar_emb, var_emb)

    # PositionalEncoding (dropout == identity in eval mode)
    emb_tgt = emb_tgt + positional_encoding(S2, E)[None]

    # per-batch additive attention biases (built once, shared across heads & layers)
    causal = jnp.triu(jnp.ones((S2, S2), dtype=bool), k=1)                     # True = masked
    tgt_pad = ~sequence_mask(len_tgt, S2)
    self_mask = causal[None, :, :] | tgt_pad[:, None, :]
    self_bias = jnp.where(self_mask, NEG_INF, 0.0).astype(jnp.float32)         # [B,S2,S2]
    cross_bias = jnp.broadcast_to(
        jnp.where(mem_pad[:, None, :], NEG_INF, 0.0).astype(jnp.float32),
        (B, S2, S1))                                                           # [B,S2,S1]

    # nn.TransformerDecoder: stacked post-norm decoder layers (3 fused kernels per layer)
    x = emb_tgt
    for lp in params["layers"]:
        x = pallas_mha(x, x, self_bias, lp["self"], lp["n1g"], lp["n1b"], nhead)
        x = pallas_mha(x, memory, cross_bias, lp["cross"], lp["n2g"], lp["n2b"], nhead)
        x = pallas_ffn_ln(x.reshape(B * S2, H), lp["w1"], lp["b1"],
                          lp["w2"], lp["b2"], lp["n3g"], lp["n3b"]).reshape(B, S2, H)

    # candidate scores: final LayerNorm + bilinear score fused in one kernel.
    # TODO(synk): Score_Multi source is unavailable; implemented as a masked
    # bilinear score (norm(output) @ W) @ emb_all^T with -1e9 on invalid candidates.
    s_novar, s_var = pallas_score(x, params["final_g"], params["final_b"],
                                  params["score_w"],
                                  params["embedding_tgt"].astype(jnp.bfloat16),
                                  embedding_var)
    candi_score = jnp.concatenate([s_novar, s_var], axis=-1)                   # [B,S2,V]
    candi_score = candi_score + jnp.where(candi_mask, 0.0, NEG_INF)[:, None, :]
    return candi_score[:, :-1, :]


# ------------------------------ parameters ----------------------------------

def _xavier(k, shape):
    fan_in, fan_out = shape
    lim = math.sqrt(6.0 / (fan_in + fan_out))
    return jax.random.uniform(k, shape, jnp.float32, -lim, lim)


def _attn_params(keys, d_model, nhead):
    dh = d_model // nhead
    wq = _xavier(next(keys), (d_model, d_model))
    wk = _xavier(next(keys), (d_model, d_model))
    wv = _xavier(next(keys), (d_model, d_model))
    wo = _xavier(next(keys), (d_model, d_model))
    # head-blocked, MXU-ready (bf16) layout: w{q,k,v}: [nhead, D, dh]; wo: [nhead, dh, D]
    def to_heads_in(w):
        return w.reshape(d_model, nhead, dh).transpose(1, 0, 2).astype(jnp.bfloat16)
    return dict(
        wq=to_heads_in(wq), wk=to_heads_in(wk), wv=to_heads_in(wv),
        bq=jnp.zeros((nhead, 1, dh), jnp.float32),
        bk=jnp.zeros((nhead, 1, dh), jnp.float32),
        bv=jnp.zeros((nhead, 1, dh), jnp.float32),
        wo=wo.reshape(nhead, dh, d_model).astype(jnp.bfloat16),
        bo=jnp.zeros((1, d_model), jnp.float32),
    )


def init_params(key, d_model, nhead, nlayers, dff, var_start):
    keys = iter(jax.random.split(key, 16 * nlayers + 8))
    layers = []
    for _ in range(nlayers):
        layers.append(dict(
            self=_attn_params(keys, d_model, nhead),
            cross=_attn_params(keys, d_model, nhead),
            w1=_xavier(next(keys), (d_model, dff)).astype(jnp.bfloat16),
            b1=jnp.zeros((1, dff), jnp.float32),
            w2=_xavier(next(keys), (dff, d_model)).astype(jnp.bfloat16),
            b2=jnp.zeros((1, d_model), jnp.float32),
            n1g=jnp.ones((1, d_model), jnp.float32), n1b=jnp.zeros((1, d_model), jnp.float32),
            n2g=jnp.ones((1, d_model), jnp.float32), n2b=jnp.zeros((1, d_model), jnp.float32),
            n3g=jnp.ones((1, d_model), jnp.float32), n3b=jnp.zeros((1, d_model), jnp.float32),
        ))
    return dict(
        layers=layers,
        final_g=jnp.ones((1, d_model), jnp.float32),
        final_b=jnp.zeros((1, d_model), jnp.float32),
        embedding_tgt=_xavier(next(keys), (var_start, d_model)),   # f32 lookup table
        score_w=_xavier(next(keys), (d_model, d_model)).astype(jnp.bfloat16),
    )


# --------------------------------- main --------------------------------------

if __name__ == "__main__":
    # small shapes consistent with the module
    B, S1, S2, S3 = 2, 16, 8, 4
    d_model, nhead, nlayers, dff = 32, 4, 2, 64
    var_start = 6
    cfg = dict(var_start=var_start, nhead=nhead, decoder_embedding_size=d_model)

    key = jax.random.PRNGKey(0)
    kp, km = jax.random.split(key)
    params = init_params(kp, d_model, nhead, nlayers, dff, var_start)

    memory = jax.random.normal(km, (B, S1, d_model), jnp.float32)
    len_src = jnp.array([16, 12], jnp.int32)
    len_tgt = jnp.array([8, 6], jnp.int32)
    len_var = jnp.array([4, 3], jnp.int32)
    var_pos = jnp.array([[0, 2, 5, 7], [1, 3, 4, 0]], jnp.int32)
    # ids >= var_start (=6) reference copied variables 0..3
    tgt = jnp.array([[1, 2, 7, 3, 8, 4, 0, 0],
                     [1, 5, 6, 9, 2, 0, 0, 0]], jnp.int32)

    fwd = jax.jit(lambda mem, ls, tg, lt, vp, lv:
                  transformer_decoder_forward(params, mem, ls, tg, lt, vp, lv, cfg))
    out = fwd(memory, len_src, tgt, len_tgt, var_pos, len_var)
    jax.block_until_ready(out)

    assert out.shape == (B, S2 - 1, var_start + S3), out.shape
    assert bool(jnp.all(jnp.isfinite(out)))
    print("KERNEL_OK")
</pallas_src>

<mosaic_0001>
module attributes {stable_mosaic.version = 11 : i64} {
  func.func @_mha_kernel(%arg0: i32, %arg1: memref<1x8x32xf32, #tpu.memory_space<vmem>>, %arg2: memref<1x8x32xf32, #tpu.memory_space<vmem>>, %arg3: memref<1x8x8xf32, #tpu.memory_space<vmem>>, %arg4: memref<4x32x8xbf16, #tpu.memory_space<vmem>>, %arg5: memref<4x32x8xbf16, #tpu.memory_space<vmem>>, %arg6: memref<4x32x8xbf16, #tpu.memory_space<vmem>>, %arg7: memref<4x1x8xf32, #tpu.memory_space<vmem>>, %arg8: memref<4x1x8xf32, #tpu.memory_space<vmem>>, %arg9: memref<4x1x8xf32, #tpu.memory_space<vmem>>, %arg10: memref<4x8x32xbf16, #tpu.memory_space<vmem>>, %arg11: memref<1x32xf32, #tpu.memory_space<vmem>>, %arg12: memref<1x32xf32, #tpu.memory_space<vmem>>, %arg13: memref<1x32xf32, #tpu.memory_space<vmem>>, %arg14: memref<1x8x32xf32, #tpu.memory_space<vmem>>) attributes {dimension_semantics = [#tpu.dimension_semantics<parallel>], iteration_bounds = array<i64: 2>, scalar_prefetch = 0 : i64, scratch_operands = 0 : i64, tpu.core_type = #tpu.core_type<tc>, window_params = [{transform_indices = @transform_0, window_bounds = array<i64: 1, 8, 32>}, {transform_indices = @transform_1, window_bounds = array<i64: 1, 8, 32>}, {transform_indices = @transform_2, window_bounds = array<i64: 1, 8, 8>}, {pipeline_mode = #tpu.pipeline_mode<synchronous>, transform_indices = @transform_3, window_bounds = array<i64: 4, 32, 8>}, {pipeline_mode = #tpu.pipeline_mode<synchronous>, transform_indices = @transform_4, window_bounds = array<i64: 4, 32, 8>}, {pipeline_mode = #tpu.pipeline_mode<synchronous>, transform_indices = @transform_5, window_bounds = array<i64: 4, 32, 8>}, {pipeline_mode = #tpu.pipeline_mode<synchronous>, transform_indices = @transform_6, window_bounds = array<i64: 4, 1, 8>}, {pipeline_mode = #tpu.pipeline_mode<synchronous>, transform_indices = @transform_7, window_bounds = array<i64: 4, 1, 8>}, {pipeline_mode = #tpu.pipeline_mode<synchronous>, transform_indices = @transform_8, window_bounds = array<i64: 4, 1, 8>}, {pipeline_mode = #tpu.pipeline_mode<synchronous>, transform_indices = @transform_9, window_bounds = array<i64: 4, 8, 32>}, {pipeline_mode = #tpu.pipeline_mode<synchronous>, transform_indices = @transform_10, window_bounds = array<i64: 1, 32>}, {pipeline_mode = #tpu.pipeline_mode<synchronous>, transform_indices = @transform_11, window_bounds = array<i64: 1, 32>}, {pipeline_mode = #tpu.pipeline_mode<synchronous>, transform_indices = @transform_12, window_bounds = array<i64: 1, 32>}, {transform_indices = @transform_13, window_bounds = array<i64: 1, 8, 32>}]} {
    %c0 = arith.constant 0 : index
    %c0_0 = arith.constant 0 : index
    %c0_1 = arith.constant 0 : index
    %0 = vector.load %arg1[%c0, %c0_0, %c0_1] : memref<1x8x32xf32, #tpu.memory_space<vmem>>, vector<1x8x32xf32>
    %1 = vector.shape_cast %0 : vector<1x8x32xf32> to vector<8x32xf32>
    %c0_2 = arith.constant 0 : index
    %c0_3 = arith.constant 0 : index
    %c0_4 = arith.constant 0 : index
    %2 = vector.load %arg2[%c0_2, %c0_3, %c0_4] : memref<1x8x32xf32, #tpu.memory_space<vmem>>, vector<1x8x32xf32>
    %3 = vector.shape_cast %2 : vector<1x8x32xf32> to vector<8x32xf32>
    %c0_5 = arith.constant 0 : index
    %c0_6 = arith.constant 0 : index
    %c0_7 = arith.constant 0 : index
    %4 = vector.load %arg3[%c0_5, %c0_6, %c0_7] : memref<1x8x8xf32, #tpu.memory_space<vmem>>, vector<1x8x8xf32>
    %5 = vector.shape_cast %4 : vector<1x8x8xf32> to vector<8x8xf32>
    %6 = arith.truncf %1 : vector<8x32xf32> to vector<8x32xbf16>
    %7 = arith.truncf %3 : vector<8x32xf32> to vector<8x32xbf16>
    %cst = arith.constant 0.000000e+00 : f32
    %8 = vector.broadcast %cst : f32 to vector<8x32xf32>
    %c0_8 = arith.constant 0 : index
    %c0_9 = arith.constant 0 : index
    %c0_10 = arith.constant 0 : index
    %9 = vector.load %arg4[%c0_8, %c0_9, %c0_10] : memref<4x32x8xbf16, #tpu.memory_space<vmem>>, vector<1x32x8xbf16>
    %10 = vector.shape_cast %9 : vector<1x32x8xbf16> to vector<32x8xbf16>
    %cst_11 = arith.constant dense<0.000000e+00> : vector<8x8xf32>
    %11 = tpu.matmul %6, %10, %cst_11 {dimension_numbers = #tpu.dot_dimension_numbers<[1], [0], [0], [1], [0, 0, 1, 1], [], []>} : vector<8x32xbf16>, vector<32x8xbf16>, vector<8x8xf32> -> vector<8x8xf32>
    %c0_12 = arith.constant 0 : index
    %c0_13 = arith.constant 0 : index
    %c0_14 = arith.constant 0 : index
    %12 = vector.load %arg7[%c0_12, %c0_13, %c0_14] : memref<4x1x8xf32, #tpu.memory_space<vmem>>, vector<1x1x8xf32>
    %13 = vector.shape_cast %12 : vector<1x1x8xf32> to vector<1x8xf32>
    %14 = vector.broadcast %13 : vector<1x8xf32> to vector<8x8xf32>
    %15 = arith.addf %11, %14 : vector<8x8xf32>
    %c0_15 = arith.constant 0 : index
    %c0_16 = arith.constant 0 : index
    %c0_17 = arith.constant 0 : index
    %16 = vector.load %arg5[%c0_15, %c0_16, %c0_17] : memref<4x32x8xbf16, #tpu.memory_space<vmem>>, vector<1x32x8xbf16>
    %17 = vector.shape_cast %16 : vector<1x32x8xbf16> to vector<32x8xbf16>
    %cst_18 = arith.constant dense<0.000000e+00> : vector<8x8xf32>
    %18 = tpu.matmul %7, %17, %cst_18 {dimension_numbers = #tpu.dot_dimension_numbers<[1], [0], [0], [1], [0, 0, 1, 1], [], []>} : vector<8x32xbf16>, vector<32x8xbf16>, vector<8x8xf32> -> vector<8x8xf32>
    %c0_19 = arith.constant 0 : index
    %c0_20 = arith.constant 0 : index
    %c0_21 = arith.constant 0 : index
    %19 = vector.load %arg8[%c0_19, %c0_20, %c0_21] : memref<4x1x8xf32, #tpu.memory_space<vmem>>, vector<1x1x8xf32>
    %20 = vector.shape_cast %19 : vector<1x1x8xf32> to vector<1x8xf32>
    %21 = vector.broadcast %20 : vector<1x8xf32> to vector<8x8xf32>
    %22 = arith.addf %18, %21 : vector<8x8xf32>
    %c0_22 = arith.constant 0 : index
    %c0_23 = arith.constant 0 : index
    %c0_24 = arith.constant 0 : index
    %23 = vector.load %arg6[%c0_22, %c0_23, %c0_24] : memref<4x32x8xbf16, #tpu.memory_space<vmem>>, vector<1x32x8xbf16>
    %24 = vector.shape_cast %23 : vector<1x32x8xbf16> to vector<32x8xbf16>
    %cst_25 = arith.constant dense<0.000000e+00> : vector<8x8xf32>
    %25 = tpu.matmul %7, %24, %cst_25 {dimension_numbers = #tpu.dot_dimension_numbers<[1], [0], [0], [1], [0, 0, 1, 1], [], []>} : vector<8x32xbf16>, vector<32x8xbf16>, vector<8x8xf32> -> vector<8x8xf32>
    %c0_26 = arith.constant 0 : index
    %c0_27 = arith.constant 0 : index
    %c0_28 = arith.constant 0 : index
    %26 = vector.load %arg9[%c0_26, %c0_27, %c0_28] : memref<4x1x8xf32, #tpu.memory_space<vmem>>, vector<1x1x8xf32>
    %27 = vector.shape_cast %26 : vector<1x1x8xf32> to vector<1x8xf32>
    %28 = vector.broadcast %27 : vector<1x8xf32> to vector<8x8xf32>
    %29 = arith.addf %25, %28 : vector<8x8xf32>
    %cst_29 = arith.constant 0.353553385 : f32
    %30 = vector.broadcast %cst_29 : f32 to vector<8x8xf32>
    %31 = arith.mulf %15, %30 : vector<8x8xf32>
    %32 = arith.truncf %31 : vector<8x8xf32> to vector<8x8xbf16>
    %33 = arith.truncf %22 : vector<8x8xf32> to vector<8x8xbf16>
    %cst_30 = arith.constant dense<0.000000e+00> : vector<8x8xf32>
    %34 = tpu.matmul %32, %33, %cst_30 {dimension_numbers = #tpu.dot_dimension_numbers<[1], [1], [0], [0], [0, 0, 1, 0], [], []>} : vector<8x8xbf16>, vector<8x8xbf16>, vector<8x8xf32> -> vector<8x8xf32>
    %35 = arith.addf %34, %5 : vector<8x8xf32>
    %cst_31 = arith.constant dense<0xFF800000> : vector<8xf32>
    %36 = vector.multi_reduction <maximumf>, %35, %cst_31 [1] : vector<8x8xf32> to vector<8xf32>
    %37 = vector.shape_cast %36 : vector<8xf32> to vector<8x1xf32>
    %38 = vector.broadcast %37 : vector<8x1xf32> to vector<8x8xf32>
    %39 = arith.subf %35, %38 : vector<8x8xf32>
    %40 = math.exp %39 : vector<8x8xf32>
    %cst_32 = arith.constant dense<0.000000e+00> : vector<8xf32>
    %41 = vector.multi_reduction <add>, %40, %cst_32 [1] : vector<8x8xf32> to vector<8xf32>
    %42 = vector.shape_cast %41 : vector<8xf32> to vector<8x1xf32>
    %43 = tpu.reciprocal %42 {approx = true} : vector<8x1xf32> -> vector<8x1xf32>
    %44 = vector.broadcast %43 : vector<8x1xf32> to vector<8x8xf32>
    %45 = arith.mulf %40, %44 : vector<8x8xf32>
    %46 = arith.truncf %45 : vector<8x8xf32> to vector<8x8xbf16>
    %47 = arith.truncf %29 : vector<8x8xf32> to vector<8x8xbf16>
    %cst_33 = arith.constant dense<0.000000e+00> : vector<8x8xf32>
    %48 = tpu.matmul %46, %47, %cst_33 {dimension_numbers = #tpu.dot_dimension_numbers<[1], [0], [0], [1], [0, 0, 1, 1], [], []>} : vector<8x8xbf16>, vector<8x8xbf16>, vector<8x8xf32> -> vector<8x8xf32>
    %49 = arith.truncf %48 : vector<8x8xf32> to vector<8x8xbf16>
    %c0_34 = arith.constant 0 : index
    %c0_35 = arith.constant 0 : index
    %c0_36 = arith.constant 0 : index
    %50 = vector.load %arg10[%c0_34, %c0_35, %c0_36] : memref<4x8x32xbf16, #tpu.memory_space<vmem>>, vector<1x8x32xbf16>
    %51 = vector.shape_cast %50 : vector<1x8x32xbf16> to vector<8x32xbf16>
    %cst_37 = arith.constant dense<0.000000e+00> : vector<8x32xf32>
    %52 = tpu.matmul %49, %51, %cst_37 {dimension_numbers = #tpu.dot_dimension_numbers<[1], [0], [0], [1], [0, 0, 1, 1], [], []>} : vector<8x8xbf16>, vector<8x32xbf16>, vector<8x32xf32> -> vector<8x32xf32>
    %53 = arith.addf %8, %52 : vector<8x32xf32>
    %c1 = arith.constant 1 : index
    %c0_38 = arith.constant 0 : index
    %c0_39 = arith.constant 0 : index
    %54 = vector.load %arg4[%c1, %c0_38, %c0_39] : memref<4x32x8xbf16, #tpu.memory_space<vmem>>, vector<1x32x8xbf16>
    %55 = vector.shape_cast %54 : vector<1x32x8xbf16> to vector<32x8xbf16>
    %cst_40 = arith.constant dense<0.000000e+00> : vector<8x8xf32>
    %56 = tpu.matmul %6, %55, %cst_40 {dimension_numbers = #tpu.dot_dimension_numbers<[1], [0], [0], [1], [0, 0, 1, 1], [], []>} : vector<8x32xbf16>, vector<32x8xbf16>, vector<8x8xf32> -> vector<8x8xf32>
    %c1_41 = arith.constant 1 : index
    %c0_42 = arith.constant 0 : index
    %c0_43 = arith.constant 0 : index
    %57 = vector.load %arg7[%c1_41, %c0_42, %c0_43] : memref<4x1x8xf32, #tpu.memory_space<vmem>>, vector<1x1x8xf32>
    %58 = vector.shape_cast %57 : vector<1x1x8xf32> to vector<1x8xf32>
    %59 = vector.broadcast %58 : vector<1x8xf32> to vector<8x8xf32>
    %60 = arith.addf %56, %59 : vector<8x8xf32>
    %c1_44 = arith.constant 1 : index
    %c0_45 = arith.constant 0 : index
    %c0_46 = arith.constant 0 : index
    %61 = vector.load %arg5[%c1_44, %c0_45, %c0_46] : memref<4x32x8xbf16, #tpu.memory_space<vmem>>, vector<1x32x8xbf16>
    %62 = vector.shape_cast %61 : vector<1x32x8xbf16> to vector<32x8xbf16>
    %cst_47 = arith.constant dense<0.000000e+00> : vector<8x8xf32>
    %63 = tpu.matmul %7, %62, %cst_47 {dimension_numbers = #tpu.dot_dimension_numbers<[1], [0], [0], [1], [0, 0, 1, 1], [], []>} : vector<8x32xbf16>, vector<32x8xbf16>, vector<8x8xf32> -> vector<8x8xf32>
    %c1_48 = arith.constant 1 : index
    %c0_49 = arith.constant 0 : index
    %c0_50 = arith.constant 0 : index
    %64 = vector.load %arg8[%c1_48, %c0_49, %c0_50] : memref<4x1x8xf32, #tpu.memory_space<vmem>>, vector<1x1x8xf32>
    %65 = vector.shape_cast %64 : vector<1x1x8xf32> to vector<1x8xf32>
    %66 = vector.broadcast %65 : vector<1x8xf32> to vector<8x8xf32>
    %67 = arith.addf %63, %66 : vector<8x8xf32>
    %c1_51 = arith.constant 1 : index
    %c0_52 = arith.constant 0 : index
    %c0_53 = arith.constant 0 : index
    %68 = vector.load %arg6[%c1_51, %c0_52, %c0_53] : memref<4x32x8xbf16, #tpu.memory_space<vmem>>, vector<1x32x8xbf16>
    %69 = vector.shape_cast %68 : vector<1x32x8xbf16> to vector<32x8xbf16>
    %cst_54 = arith.constant dense<0.000000e+00> : vector<8x8xf32>
    %70 = tpu.matmul %7, %69, %cst_54 {dimension_numbers = #tpu.dot_dimension_numbers<[1], [0], [0], [1], [0, 0, 1, 1], [], []>} : vector<8x32xbf16>, vector<32x8xbf16>, vector<8x8xf32> -> vector<8x8xf32>
    %c1_55 = arith.constant 1 : index
    %c0_56 = arith.constant 0 : index
    %c0_57 = arith.constant 0 : index
    %71 = vector.load %arg9[%c1_55, %c0_56, %c0_57] : memref<4x1x8xf32, #tpu.memory_space<vmem>>, vector<1x1x8xf32>
    %72 = vector.shape_cast %71 : vector<1x1x8xf32> to vector<1x8xf32>
    %73 = vector.broadcast %72 : vector<1x8xf32> to vector<8x8xf32>
    %74 = arith.addf %70, %73 : vector<8x8xf32>
    %cst_58 = arith.constant 0.353553385 : f32
    %75 = vector.broadcast %cst_58 : f32 to vector<8x8xf32>
    %76 = arith.mulf %60, %75 : vector<8x8xf32>
    %77 = arith.truncf %76 : vector<8x8xf32> to vector<8x8xbf16>
    %78 = arith.truncf %67 : vector<8x8xf32> to vector<8x8xbf16>
    %cst_59 = arith.constant dense<0.000000e+00> : vector<8x8xf32>
    %79 = tpu.matmul %77, %78, %cst_59 {dimension_numbers = #tpu.dot_dimension_numbers<[1], [1], [0], [0], [0, 0, 1, 0], [], []>} : vector<8x8xbf16>, vector<8x8xbf16>, vector<8x8xf32> -> vector<8x8xf32>
    %80 = arith.addf %79, %5 : vector<8x8xf32>
    %cst_60 = arith.constant dense<0xFF800000> : vector<8xf32>
    %81 = vector.multi_reduction <maximumf>, %80, %cst_60 [1] : vector<8x8xf32> to vector<8xf32>
    %82 = vector.shape_cast %81 : vector<8xf32> to vector<8x1xf32>
    %83 = vector.broadcast %82 : vector<8x1xf32> to vector<8x8xf32>
    %84 = arith.subf %80, %83 : vector<8x8xf32>
    %85 = math.exp %84 : vector<8x8xf32>
    %cst_61 = arith.constant dense<0.000000e+00> : vector<8xf32>
    %86 = vector.multi_reduction <add>, %85, %cst_61 [1] : vector<8x8xf32> to vector<8xf32>
    %87 = vector.shape_cast %86 : vector<8xf32> to vector<8x1xf32>
    %88 = tpu.reciprocal %87 {approx = true} : vector<8x1xf32> -> vector<8x1xf32>
    %89 = vector.broadcast %88 : vector<8x1xf32> to vector<8x8xf32>
    %90 = arith.mulf %85, %89 : vector<8x8xf32>
    %91 = arith.truncf %90 : vector<8x8xf32> to vector<8x8xbf16>
    %92 = arith.truncf %74 : vector<8x8xf32> to vector<8x8xbf16>
    %cst_62 = arith.constant dense<0.000000e+00> : vector<8x8xf32>
    %93 = tpu.matmul %91, %92, %cst_62 {dimension_numbers = #tpu.dot_dimension_numbers<[1], [0], [0], [1], [0, 0, 1, 1], [], []>} : vector<8x8xbf16>, vector<8x8xbf16>, vector<8x8xf32> -> vector<8x8xf32>
    %94 = arith.truncf %93 : vector<8x8xf32> to vector<8x8xbf16>
    %c1_63 = arith.constant 1 : index
    %c0_64 = arith.constant 0 : index
    %c0_65 = arith.constant 0 : index
    %95 = vector.load %arg10[%c1_63, %c0_64, %c0_65] : memref<4x8x32xbf16, #tpu.memory_space<vmem>>, vector<1x8x32xbf16>
    %96 = vector.shape_cast %95 : vector<1x8x32xbf16> to vector<8x32xbf16>
    %cst_66 = arith.constant dense<0.000000e+00> : vector<8x32xf32>
    %97 = tpu.matmul %94, %96, %cst_66 {dimension_numbers = #tpu.dot_dimension_numbers<[1], [0], [0], [1], [0, 0, 1, 1], [], []>} : vector<8x8xbf16>, vector<8x32xbf16>, vector<8x32xf32> -> vector<8x32xf32>
    %98 = arith.addf %53, %97 : vector<8x32xf32>
    %c2 = arith.constant 2 : index
    %c0_67 = arith.constant 0 : index
    %c0_68 = arith.constant 0 : index
    %99 = vector.load %arg4[%c2, %c0_67, %c0_68] : memref<4x32x8xbf16, #tpu.memory_space<vmem>>, vector<1x32x8xbf16>
    %100 = vector.shape_cast %99 : vector<1x32x8xbf16> to vector<32x8xbf16>
    %cst_69 = arith.constant dense<0.000000e+00> : vector<8x8xf32>
    %101 = tpu.matmul %6, %100, %cst_69 {dimension_numbers = #tpu.dot_dimension_numbers<[1], [0], [0], [1], [0, 0, 1, 1], [], []>} : vector<8x32xbf16>, vector<32x8xbf16>, vector<8x8xf32> -> vector<8x8xf32>
    %c2_70 = arith.constant 2 : index
    %c0_71 = arith.constant 0 : index
    %c0_72 = arith.constant 0 : index
    %102 = vector.load %arg7[%c2_70, %c0_71, %c0_72] : memref<4x1x8xf32, #tpu.memory_space<vmem>>, vector<1x1x8xf32>
    %103 = vector.shape_cast %102 : vector<1x1x8xf32> to vector<1x8xf32>
    %104 = vector.broadcast %103 : vector<1x8xf32> to vector<8x8xf32>
    %105 = arith.addf %101, %104 : vector<8x8xf32>
    %c2_73 = arith.constant 2 : index
    %c0_74 = arith.constant 0 : index
    %c0_75 = arith.constant 0 : index
    %106 = vector.load %arg5[%c2_73, %c0_74, %c0_75] : memref<4x32x8xbf16, #tpu.memory_space<vmem>>, vector<1x32x8xbf16>
    %107 = vector.shape_cast %106 : vector<1x32x8xbf16> to vector<32x8xbf16>
    %cst_76 = arith.constant dense<0.000000e+00> : vector<8x8xf32>
    %108 = tpu.matmul %7, %107, %cst_76 {dimension_numbers = #tpu.dot_dimension_numbers<[1], [0], [0], [1], [0, 0, 1, 1], [], []>} : vector<8x32xbf16>, vector<32x8xbf16>, vector<8x8xf32> -> vector<8x8xf32>
    %c2_77 = arith.constant 2 : index
    %c0_78 = arith.constant 0 : index
    %c0_79 = arith.constant 0 : index
    %109 = vector.load %arg8[%c2_77, %c0_78, %c0_79] : memref<4x1x8xf32, #tpu.memory_space<vmem>>, vector<1x1x8xf32>
    %110 = vector.shape_cast %109 : vector<1x1x8xf32> to vector<1x8xf32>
    %111 = vector.broadcast %110 : vector<1x8xf32> to vector<8x8xf32>
    %112 = arith.addf %108, %111 : vector<8x8xf32>
    %c2_80 = arith.constant 2 : index
    %c0_81 = arith.constant 0 : index
    %c0_82 = arith.constant 0 : index
    %113 = vector.load %arg6[%c2_80, %c0_81, %c0_82] : memref<4x32x8xbf16, #tpu.memory_space<vmem>>, vector<1x32x8xbf16>
    %114 = vector.shape_cast %113 : vector<1x32x8xbf16> to vector<32x8xbf16>
    %cst_83 = arith.constant dense<0.000000e+00> : vector<8x8xf32>
    %115 = tpu.matmul %7, %114, %cst_83 {dimension_numbers = #tpu.dot_dimension_numbers<[1], [0], [0], [1], [0, 0, 1, 1], [], []>} : vector<8x32xbf16>, vector<32x8xbf16>, vector<8x8xf32> -> vector<8x8xf32>
    %c2_84 = arith.constant 2 : index
    %c0_85 = arith.constant 0 : index
    %c0_86 = arith.constant 0 : index
    %116 = vector.load %arg9[%c2_84, %c0_85, %c0_86] : memref<4x1x8xf32, #tpu.memory_space<vmem>>, vector<1x1x8xf32>
    %117 = vector.shape_cast %116 : vector<1x1x8xf32> to vector<1x8xf32>
    %118 = vector.broadcast %117 : vector<1x8xf32> to vector<8x8xf32>
    %119 = arith.addf %115, %118 : vector<8x8xf32>
    %cst_87 = arith.constant 0.353553385 : f32
    %120 = vector.broadcast %cst_87 : f32 to vector<8x8xf32>
    %121 = arith.mulf %105, %120 : vector<8x8xf32>
    %122 = arith.truncf %121 : vector<8x8xf32> to vector<8x8xbf16>
    %123 = arith.truncf %112 : vector<8x8xf32> to vector<8x8xbf16>
    %cst_88 = arith.constant dense<0.000000e+00> : vector<8x8xf32>
    %124 = tpu.matmul %122, %123, %cst_88 {dimension_numbers = #tpu.dot_dimension_numbers<[1], [1], [0], [0], [0, 0, 1, 0], [], []>} : vector<8x8xbf16>, vector<8x8xbf16>, vector<8x8xf32> -> vector<8x8xf32>
    %125 = arith.addf %124, %5 : vector<8x8xf32>
    %cst_89 = arith.constant dense<0xFF800000> : vector<8xf32>
    %126 = vector.multi_reduction <maximumf>, %125, %cst_89 [1] : vector<8x8xf32> to vector<8xf32>
    %127 = vector.shape_cast %126 : vector<8xf32> to vector<8x1xf32>
    %128 = vector.broadcast %127 : vector<8x1xf32> to vector<8x8xf32>
    %129 = arith.subf %125, %128 : vector<8x8xf32>
    %130 = math.exp %129 : vector<8x8xf32>
    %cst_90 = arith.constant dense<0.000000e+00> : vector<8xf32>
    %131 = vector.multi_reduction <add>, %130, %cst_90 [1] : vector<8x8xf32> to vector<8xf32>
    %132 = vector.shape_cast %131 : vector<8xf32> to vector<8x1xf32>
    %133 = tpu.reciprocal %132 {approx = true} : vector<8x1xf32> -> vector<8x1xf32>
    %134 = vector.broadcast %133 : vector<8x1xf32> to vector<8x8xf32>
    %135 = arith.mulf %130, %134 : vector<8x8xf32>
    %136 = arith.truncf %135 : vector<8x8xf32> to vector<8x8xbf16>
    %137 = arith.truncf %119 : vector<8x8xf32> to vector<8x8xbf16>
    %cst_91 = arith.constant dense<0.000000e+00> : vector<8x8xf32>
    %138 = tpu.matmul %136, %137, %cst_91 {dimension_numbers = #tpu.dot_dimension_numbers<[1], [0], [0], [1], [0, 0, 1, 1], [], []>} : vector<8x8xbf16>, vector<8x8xbf16>, vector<8x8xf32> -> vector<8x8xf32>
    %139 = arith.truncf %138 : vector<8x8xf32> to vector<8x8xbf16>
    %c2_92 = arith.constant 2 : index
    %c0_93 = arith.constant 0 : index
    %c0_94 = arith.constant 0 : index
    %140 = vector.load %arg10[%c2_92, %c0_93, %c0_94] : memref<4x8x32xbf16, #tpu.memory_space<vmem>>, vector<1x8x32xbf16>
    %141 = vector.shape_cast %140 : vector<1x8x32xbf16> to vector<8x32xbf16>
    %cst_95 = arith.constant dense<0.000000e+00> : vector<8x32xf32>
    %142 = tpu.matmul %139, %141, %cst_95 {dimension_numbers = #tpu.dot_dimension_numbers<[1], [0], [0], [1], [0, 0, 1, 1], [], []>} : vector<8x8xbf16>, vector<8x32xbf16>, vector<8x32xf32> -> vector<8x32xf32>
    %143 = arith.addf %98, %142 : vector<8x32xf32>
    %c3 = arith.constant 3 : index
    %c0_96 = arith.constant 0 : index
    %c0_97 = arith.constant 0 : index
    %144 = vector.load %arg4[%c3, %c0_96, %c0_97] : memref<4x32x8xbf16, #tpu.memory_space<vmem>>, vector<1x32x8xbf16>
    %145 = vector.shape_cast %144 : vector<1x32x8xbf16> to vector<32x8xbf16>
    %cst_98 = arith.constant dense<0.000000e+00> : vector<8x8xf32>
    %146 = tpu.matmul %6, %145, %cst_98 {dimension_numbers = #tpu.dot_dimension_numbers<[1], [0], [0], [1], [0, 0, 1, 1], [], []>} : vector<8x32xbf16>, vector<32x8xbf16>, vector<8x8xf32> -> vector<8x8xf32>
    %c3_99 = arith.constant 3 : index
    %c0_100 = arith.constant 0 : index
    %c0_101 = arith.constant 0 : index
    %147 = vector.load %arg7[%c3_99, %c0_100, %c0_101] : memref<4x1x8xf32, #tpu.memory_space<vmem>>, vector<1x1x8xf32>
    %148 = vector.shape_cast %147 : vector<1x1x8xf32> to vector<1x8xf32>
    %149 = vector.broadcast %148 : vector<1x8xf32> to vector<8x8xf32>
    %150 = arith.addf %146, %149 : vector<8x8xf32>
    %c3_102 = arith.constant 3 : index
    %c0_103 = arith.constant 0 : index
    %c0_104 = arith.constant 0 : index
    %151 = vector.load %arg5[%c3_102, %c0_103, %c0_104] : memref<4x32x8xbf16, #tpu.memory_space<vmem>>, vector<1x32x8xbf16>
    %152 = vector.shape_cast %151 : vector<1x32x8xbf16> to vector<32x8xbf16>
    %cst_105 = arith.constant dense<0.000000e+00> : vector<8x8xf32>
    %153 = tpu.matmul %7, %152, %cst_105 {dimension_numbers = #tpu.dot_dimension_numbers<[1], [0], [0], [1], [0, 0, 1, 1], [], []>} : vector<8x32xbf16>, vector<32x8xbf16>, vector<8x8xf32> -> vector<8x8xf32>
    %c3_106 = arith.constant 3 : index
    %c0_107 = arith.constant 0 : index
    %c0_108 = arith.constant 0 : index
    %154 = vector.load %arg8[%c3_106, %c0_107, %c0_108] : memref<4x1x8xf32, #tpu.memory_space<vmem>>, vector<1x1x8xf32>
    %155 = vector.shape_cast %154 : vector<1x1x8xf32> to vector<1x8xf32>
    %156 = vector.broadcast %155 : vector<1x8xf32> to vector<8x8xf32>
    %157 = arith.addf %153, %156 : vector<8x8xf32>
    %c3_109 = arith.constant 3 : index
    %c0_110 = arith.constant 0 : index
    %c0_111 = arith.constant 0 : index
    %158 = vector.load %arg6[%c3_109, %c0_110, %c0_111] : memref<4x32x8xbf16, #tpu.memory_space<vmem>>, vector<1x32x8xbf16>
    %159 = vector.shape_cast %158 : vector<1x32x8xbf16> to vector<32x8xbf16>
    %cst_112 = arith.constant dense<0.000000e+00> : vector<8x8xf32>
    %160 = tpu.matmul %7, %159, %cst_112 {dimension_numbers = #tpu.dot_dimension_numbers<[1], [0], [0], [1], [0, 0, 1, 1], [], []>} : vector<8x32xbf16>, vector<32x8xbf16>, vector<8x8xf32> -> vector<8x8xf32>
    %c3_113 = arith.constant 3 : index
    %c0_114 = arith.constant 0 : index
    %c0_115 = arith.constant 0 : index
    %161 = vector.load %arg9[%c3_113, %c0_114, %c0_115] : memref<4x1x8xf32, #tpu.memory_space<vmem>>, vector<1x1x8xf32>
    %162 = vector.shape_cast %161 : vector<1x1x8xf32> to vector<1x8xf32>
    %163 = vector.broadcast %162 : vector<1x8xf32> to vector<8x8xf32>
    %164 = arith.addf %160, %163 : vector<8x8xf32>
    %cst_116 = arith.constant 0.353553385 : f32
    %165 = vector.broadcast %cst_116 : f32 to vector<8x8xf32>
    %166 = arith.mulf %150, %165 : vector<8x8xf32>
    %167 = arith.truncf %166 : vector<8x8xf32> to vector<8x8xbf16>
    %168 = arith.truncf %157 : vector<8x8xf32> to vector<8x8xbf16>
    %cst_117 = arith.constant dense<0.000000e+00> : vector<8x8xf32>
    %169 = tpu.matmul %167, %168, %cst_117 {dimension_numbers = #tpu.dot_dimension_numbers<[1], [1], [0], [0], [0, 0, 1, 0], [], []>} : vector<8x8xbf16>, vector<8x8xbf16>, vector<8x8xf32> -> vector<8x8xf32>
    %170 = arith.addf %169, %5 : vector<8x8xf32>
    %cst_118 = arith.constant dense<0xFF800000> : vector<8xf32>
    %171 = vector.multi_reduction <maximumf>, %170, %cst_118 [1] : vector<8x8xf32> to vector<8xf32>
    %172 = vector.shape_cast %171 : vector<8xf32> to vector<8x1xf32>
    %173 = vector.broadcast %172 : vector<8x1xf32> to vector<8x8xf32>
    %174 = arith.subf %170, %173 : vector<8x8xf32>
    %175 = math.exp %174 : vector<8x8xf32>
    %cst_119 = arith.constant dense<0.000000e+00> : vector<8xf32>
    %176 = vector.multi_reduction <add>, %175, %cst_119 [1] : vector<8x8xf32> to vector<8xf32>
    %177 = vector.shape_cast %176 : vector<8xf32> to vector<8x1xf32>
    %178 = tpu.reciprocal %177 {approx = true} : vector<8x1xf32> -> vector<8x1xf32>
    %179 = vector.broadcast %178 : vector<8x1xf32> to vector<8x8xf32>
    %180 = arith.mulf %175, %179 : vector<8x8xf32>
    %181 = arith.truncf %180 : vector<8x8xf32> to vector<8x8xbf16>
    %182 = arith.truncf %164 : vector<8x8xf32> to vector<8x8xbf16>
    %cst_120 = arith.constant dense<0.000000e+00> : vector<8x8xf32>
    %183 = tpu.matmul %181, %182, %cst_120 {dimension_numbers = #tpu.dot_dimension_numbers<[1], [0], [0], [1], [0, 0, 1, 1], [], []>} : vector<8x8xbf16>, vector<8x8xbf16>, vector<8x8xf32> -> vector<8x8xf32>
    %184 = arith.truncf %183 : vector<8x8xf32> to vector<8x8xbf16>
    %c3_121 = arith.constant 3 : index
    %c0_122 = arith.constant 0 : index
    %c0_123 = arith.constant 0 : index
    %185 = vector.load %arg10[%c3_121, %c0_122, %c0_123] : memref<4x8x32xbf16, #tpu.memory_space<vmem>>, vector<1x8x32xbf16>
    %186 = vector.shape_cast %185 : vector<1x8x32xbf16> to vector<8x32xbf16>
    %cst_124 = arith.constant dense<0.000000e+00> : vector<8x32xf32>
    %187 = tpu.matmul %184, %186, %cst_124 {dimension_numbers = #tpu.dot_dimension_numbers<[1], [0], [0], [1], [0, 0, 1, 1], [], []>} : vector<8x8xbf16>, vector<8x32xbf16>, vector<8x32xf32> -> vector<8x32xf32>
    %188 = arith.addf %143, %187 : vector<8x32xf32>
    %189 = arith.addf %1, %188 : vector<8x32xf32>
    %c0_125 = arith.constant 0 : index
    %c0_126 = arith.constant 0 : index
    %190 = vector.load %arg11[%c0_125, %c0_126] : memref<1x32xf32, #tpu.memory_space<vmem>>, vector<1x32xf32>
    %191 = vector.broadcast %190 : vector<1x32xf32> to vector<8x32xf32>
    %192 = arith.addf %189, %191 : vector<8x32xf32>
    %c0_127 = arith.constant 0 : index
    %c0_128 = arith.constant 0 : index
    %193 = vector.load %arg12[%c0_127, %c0_128] : memref<1x32xf32, #tpu.memory_space<vmem>>, vector<1x32xf32>
    %c0_129 = arith.constant 0 : index
    %c0_130 = arith.constant 0 : index
    %194 = vector.load %arg13[%c0_129, %c0_130] : memref<1x32xf32, #tpu.memory_space<vmem>>, vector<1x32xf32>
    %cst_131 = arith.constant dense<0.000000e+00> : vector<8xf32>
    %195 = vector.multi_reduction <add>, %192, %cst_131 [1] : vector<8x32xf32> to vector<8xf32>
    %196 = vector.shape_cast %195 : vector<8xf32> to vector<8x1xf32>
    %cst_132 = arith.constant 3.200000e+01 : f32
    %197 = vector.broadcast %cst_132 : f32 to vector<8x1xf32>
    %198 = arith.divf %196, %197 : vector<8x1xf32>
    %199 = vector.broadcast %198 : vector<8x1xf32> to vector<8x32xf32>
    %200 = arith.subf %192, %199 : vector<8x32xf32>
    %201 = arith.mulf %200, %200 : vector<8x32xf32>
    %cst_133 = arith.constant dense<0.000000e+00> : vector<8xf32>
    %202 = vector.multi_reduction <add>, %201, %cst_133 [1] : vector<8x32xf32> to vector<8xf32>
    %203 = vector.shape_cast %202 : vector<8xf32> to vector<8x1xf32>
    %cst_134 = arith.constant 3.200000e+01 : f32
    %204 = vector.broadcast %cst_134 : f32 to vector<8x1xf32>
    %205 = arith.divf %203, %204 : vector<8x1xf32>
    %206 = vector.broadcast %198 : vector<8x1xf32> to vector<8x32xf32>
    %207 = arith.subf %192, %206 : vector<8x32xf32>
    %cst_135 = arith.constant 9.99999974E-6 : f32
    %208 = vector.broadcast %cst_135 : f32 to vector<8x1xf32>
    %209 = arith.addf %205, %208 : vector<8x1xf32>
    %210 = math.rsqrt %209 : vector<8x1xf32>
    %211 = vector.broadcast %210 : vector<8x1xf32> to vector<8x32xf32>
    %212 = arith.mulf %207, %211 : vector<8x32xf32>
    %213 = vector.broadcast %193 : vector<1x32xf32> to vector<8x32xf32>
    %214 = arith.mulf %212, %213 : vector<8x32xf32>
    %215 = vector.broadcast %194 : vector<1x32xf32> to vector<8x32xf32>
    %216 = arith.addf %214, %215 : vector<8x32xf32>
    %c0_136 = arith.constant 0 : index
    %c0_137 = arith.constant 0 : index
    %c0_138 = arith.constant 0 : index
    %217 = vector.load %arg14[%c0_136, %c0_137, %c0_138] : memref<1x8x32xf32, #tpu.memory_space<vmem>>, vector<1x8x32xf32>
    %218 = vector.shape_cast %217 : vector<1x8x32xf32> to vector<8x32xf32>
    %219 = vector.shape_cast %216 : vector<8x32xf32> to vector<1x8x32xf32>
    tpu.vector_store %arg14[%c0_136, %c0_137, %c0_138], %219 {strides = array<i32>} : memref<1x8x32xf32, #tpu.memory_space<vmem>>, vector<1x8x32xf32>,
    return
  }
  func.func @transform_0(%arg0: i32) -> (i32, i32, i32) {
    %c0_i32 = arith.constant 0 : i32
    %c0_i32_0 = arith.constant 0 : i32
    %c0_i32_1 = arith.constant 0 : i32
    return %arg0, %c0_i32, %c0_i32_0 : i32, i32, i32
  }
  func.func @transform_1(%arg0: i32) -> (i32, i32, i32) {
    %c0_i32 = arith.constant 0 : i32
    %c0_i32_0 = arith.constant 0 : i32
    %c0_i32_1 = arith.constant 0 : i32
    return %arg0, %c0_i32, %c0_i32_0 : i32, i32, i32
  }
  func.func @transform_2(%arg0: i32) -> (i32, i32, i32) {
    %c0_i32 = arith.constant 0 : i32
    %c0_i32_0 = arith.constant 0 : i32
    %c0_i32_1 = arith.constant 0 : i32
    return %arg0, %c0_i32, %c0_i32_0 : i32, i32, i32
  }
  func.func @transform_3(%arg0: i32) -> (i32, i32, i32) {
    %c0_i32 = arith.constant 0 : i32
    %c0_i32_0 = arith.constant 0 : i32
    %c0_i32_1 = arith.constant 0 : i32
    %c0_i32_2 = arith.constant 0 : i32
    return %c0_i32, %c0_i32_0, %c0_i32_1 : i32, i32, i32
  }
  func.func @transform_4(%arg0: i32) -> (i32, i32, i32) {
    %c0_i32 = arith.constant 0 : i32
    %c0_i32_0 = arith.constant 0 : i32
    %c0_i32_1 = arith.constant 0 : i32
    %c0_i32_2 = arith.constant 0 : i32
    return %c0_i32, %c0_i32_0, %c0_i32_1 : i32, i32, i32
  }
  func.func @transform_5(%arg0: i32) -> (i32, i32, i32) {
    %c0_i32 = arith.constant 0 : i32
    %c0_i32_0 = arith.constant 0 : i32
    %c0_i32_1 = arith.constant 0 : i32
    %c0_i32_2 = arith.constant 0 : i32
    return %c0_i32, %c0_i32_0, %c0_i32_1 : i32, i32, i32
  }
  func.func @transform_6(%arg0: i32) -> (i32, i32, i32) {
    %c0_i32 = arith.constant 0 : i32
    %c0_i32_0 = arith.constant 0 : i32
    %c0_i32_1 = arith.constant 0 : i32
    %c0_i32_2 = arith.constant 0 : i32
    return %c0_i32, %c0_i32_0, %c0_i32_1 : i32, i32, i32
  }
  func.func @transform_7(%arg0: i32) -> (i32, i32, i32) {
    %c0_i32 = arith.constant 0 : i32
    %c0_i32_0 = arith.constant 0 : i32
    %c0_i32_1 = arith.constant 0 : i32
    %c0_i32_2 = arith.constant 0 : i32
    return %c0_i32, %c0_i32_0, %c0_i32_1 : i32, i32, i32
  }
  func.func @transform_8(%arg0: i32) -> (i32, i32, i32) {
    %c0_i32 = arith.constant 0 : i32
    %c0_i32_0 = arith.constant 0 : i32
    %c0_i32_1 = arith.constant 0 : i32
    %c0_i32_2 = arith.constant 0 : i32
    return %c0_i32, %c0_i32_0, %c0_i32_1 : i32, i32, i32
  }
  func.func @transform_9(%arg0: i32) -> (i32, i32, i32) {
    %c0_i32 = arith.constant 0 : i32
    %c0_i32_0 = arith.constant 0 : i32
    %c0_i32_1 = arith.constant 0 : i32
    %c0_i32_2 = arith.constant 0 : i32
    return %c0_i32, %c0_i32_0, %c0_i32_1 : i32, i32, i32
  }
  func.func @transform_10(%arg0: i32) -> (i32, i32) {
    %c0_i32 = arith.constant 0 : i32
    %c0_i32_0 = arith.constant 0 : i32
    %c0_i32_1 = arith.constant 0 : i32
    return %c0_i32, %c0_i32_0 : i32, i32
  }
  func.func @transform_11(%arg0: i32) -> (i32, i32) {
    %c0_i32 = arith.constant 0 : i32
    %c0_i32_0 = arith.constant 0 : i32
    %c0_i32_1 = arith.constant 0 : i32
    return %c0_i32, %c0_i32_0 : i32, i32
  }
  func.func @transform_12(%arg0: i32) -> (i32, i32) {
    %c0_i32 = arith.constant 0 : i32
    %c0_i32_0 = arith.constant 0 : i32
    %c0_i32_1 = arith.constant 0 : i32
    return %c0_i32, %c0_i32_0 : i32, i32
  }
  func.func @transform_13(%arg0: i32) -> (i32, i32, i32) {
    %c0_i32 = arith.constant 0 : i32
    %c0_i32_0 = arith.constant 0 : i32
    %c0_i32_1 = arith.constant 0 : i32
    return %arg0, %c0_i32, %c0_i32_0 : i32, i32, i32
  }
}

module attributes {stable_mosaic.version = 11 : i64} {
  func.func @_ffn_kernel(%arg0: i32, %arg1: memref<16x32xf32, #tpu.memory_space<vmem>>, %arg2: memref<32x64xbf16, #tpu.memory_space<vmem>>, %arg3: memref<1x64xf32, #tpu.memory_space<vmem>>, %arg4: memref<64x32xbf16, #tpu.memory_space<vmem>>, %arg5: memref<1x32xf32, #tpu.memory_space<vmem>>, %arg6: memref<1x32xf32, #tpu.memory_space<vmem>>, %arg7: memref<1x32xf32, #tpu.memory_space<vmem>>, %arg8: memref<16x32xf32, #tpu.memory_space<vmem>>) attributes {dimension_semantics = [#tpu.dimension_semantics<parallel>], iteration_bounds = array<i64: 1>, scalar_prefetch = 0 : i64, scratch_operands = 0 : i64, tpu.core_type = #tpu.core_type<tc>, window_params = [{transform_indices = @transform_0, window_bounds = array<i64: 16, 32>}, {pipeline_mode = #tpu.pipeline_mode<synchronous>, transform_indices = @transform_1, window_bounds = array<i64: 32, 64>}, {pipeline_mode = #tpu.pipeline_mode<synchronous>, transform_indices = @transform_2, window_bounds = array<i64: 1, 64>}, {pipeline_mode = #tpu.pipeline_mode<synchronous>, transform_indices = @transform_3, window_bounds = array<i64: 64, 32>}, {pipeline_mode = #tpu.pipeline_mode<synchronous>, transform_indices = @transform_4, window_bounds = array<i64: 1, 32>}, {pipeline_mode = #tpu.pipeline_mode<synchronous>, transform_indices = @transform_5, window_bounds = array<i64: 1, 32>}, {pipeline_mode = #tpu.pipeline_mode<synchronous>, transform_indices = @transform_6, window_bounds = array<i64: 1, 32>}, {transform_indices = @transform_7, window_bounds = array<i64: 16, 32>}]} {
    %c0 = arith.constant 0 : index
    %c0_0 = arith.constant 0 : index
    %0 = vector.load %arg1[%c0, %c0_0] : memref<16x32xf32, #tpu.memory_space<vmem>>, vector<16x32xf32>
    %1 = arith.truncf %0 : vector<16x32xf32> to vector<16x32xbf16>
    %c0_1 = arith.constant 0 : index
    %c0_2 = arith.constant 0 : index
    %2 = vector.load %arg2[%c0_1, %c0_2] : memref<32x64xbf16, #tpu.memory_space<vmem>>, vector<32x64xbf16>
    %cst = arith.constant dense<0.000000e+00> : vector<16x64xf32>
    %3 = tpu.matmul %1, %2, %cst {dimension_numbers = #tpu.dot_dimension_numbers<[1], [0], [0], [1], [0, 0, 1, 1], [], []>} : vector<16x32xbf16>, vector<32x64xbf16>, vector<16x64xf32> -> vector<16x64xf32>
    %c0_3 = arith.constant 0 : index
    %c0_4 = arith.constant 0 : index
    %4 = vector.load %arg3[%c0_3, %c0_4] : memref<1x64xf32, #tpu.memory_space<vmem>>, vector<1x64xf32>
    %5 = vector.broadcast %4 : vector<1x64xf32> to vector<16x64xf32>
    %6 = arith.addf %3, %5 : vector<16x64xf32>
    %cst_5 = arith.constant 0.000000e+00 : f32
    %7 = vector.broadcast %cst_5 : f32 to vector<16x64xf32>
    %8 = arith.maximumf %6, %7 : vector<16x64xf32>
    %9 = arith.truncf %8 : vector<16x64xf32> to vector<16x64xbf16>
    %c0_6 = arith.constant 0 : index
    %c0_7 = arith.constant 0 : index
    %10 = vector.load %arg4[%c0_6, %c0_7] : memref<64x32xbf16, #tpu.memory_space<vmem>>, vector<64x32xbf16>
    %cst_8 = arith.constant dense<0.000000e+00> : vector<16x32xf32>
    %11 = tpu.matmul %9, %10, %cst_8 {dimension_numbers = #tpu.dot_dimension_numbers<[1], [0], [0], [1], [0, 0, 1, 1], [], []>} : vector<16x64xbf16>, vector<64x32xbf16>, vector<16x32xf32> -> vector<16x32xf32>
    %c0_9 = arith.constant 0 : index
    %c0_10 = arith.constant 0 : index
    %12 = vector.load %arg5[%c0_9, %c0_10] : memref<1x32xf32, #tpu.memory_space<vmem>>, vector<1x32xf32>
    %13 = vector.broadcast %12 : vector<1x32xf32> to vector<16x32xf32>
    %14 = arith.addf %11, %13 : vector<16x32xf32>
    %15 = arith.addf %0, %14 : vector<16x32xf32>
    %c0_11 = arith.constant 0 : index
    %c0_12 = arith.constant 0 : index
    %16 = vector.load %arg6[%c0_11, %c0_12] : memref<1x32xf32, #tpu.memory_space<vmem>>, vector<1x32xf32>
    %c0_13 = arith.constant 0 : index
    %c0_14 = arith.constant 0 : index
    %17 = vector.load %arg7[%c0_13, %c0_14] : memref<1x32xf32, #tpu.memory_space<vmem>>, vector<1x32xf32>
    %cst_15 = arith.constant dense<0.000000e+00> : vector<16xf32>
    %18 = vector.multi_reduction <add>, %15, %cst_15 [1] : vector<16x32xf32> to vector<16xf32>
    %19 = vector.shape_cast %18 : vector<16xf32> to vector<16x1xf32>
    %cst_16 = arith.constant 3.200000e+01 : f32
    %20 = vector.broadcast %cst_16 : f32 to vector<16x1xf32>
    %21 = arith.divf %19, %20 : vector<16x1xf32>
    %22 = vector.broadcast %21 : vector<16x1xf32> to vector<16x32xf32>
    %23 = arith.subf %15, %22 : vector<16x32xf32>
    %24 = arith.mulf %23, %23 : vector<16x32xf32>
    %cst_17 = arith.constant dense<0.000000e+00> : vector<16xf32>
    %25 = vector.multi_reduction <add>, %24, %cst_17 [1] : vector<16x32xf32> to vector<16xf32>
    %26 = vector.shape_cast %25 : vector<16xf32> to vector<16x1xf32>
    %cst_18 = arith.constant 3.200000e+01 : f32
    %27 = vector.broadcast %cst_18 : f32 to vector<16x1xf32>
    %28 = arith.divf %26, %27 : vector<16x1xf32>
    %29 = vector.broadcast %21 : vector<16x1xf32> to vector<16x32xf32>
    %30 = arith.subf %15, %29 : vector<16x32xf32>
    %cst_19 = arith.constant 9.99999974E-6 : f32
    %31 = vector.broadcast %cst_19 : f32 to vector<16x1xf32>
    %32 = arith.addf %28, %31 : vector<16x1xf32>
    %33 = math.rsqrt %32 : vector<16x1xf32>
    %34 = vector.broadcast %33 : vector<16x1xf32> to vector<16x32xf32>
    %35 = arith.mulf %30, %34 : vector<16x32xf32>
    %36 = vector.broadcast %16 : vector<1x32xf32> to vector<16x32xf32>
    %37 = arith.mulf %35, %36 : vector<16x32xf32>
    %38 = vector.broadcast %17 : vector<1x32xf32> to vector<16x32xf32>
    %39 = arith.addf %37, %38 : vector<16x32xf32>
    %c0_20 = arith.constant 0 : index
    %c0_21 = arith.constant 0 : index
    %40 = vector.load %arg8[%c0_20, %c0_21] : memref<16x32xf32, #tpu.memory_space<vmem>>, vector<16x32xf32>
    tpu.vector_store %arg8[%c0_20, %c0_21], %39 {strides = array<i32>} : memref<16x32xf32, #tpu.memory_space<vmem>>, vector<16x32xf32>,
    return
  }
  func.func @transform_0(%arg0: i32) -> (i32, i32) {
    %c0_i32 = arith.constant 0 : i32
    %c0_i32_0 = arith.constant 0 : i32
    return %arg0, %c0_i32 : i32, i32
  }
  func.func @transform_1(%arg0: i32) -> (i32, i32) {
    %c0_i32 = arith.constant 0 : i32
    %c0_i32_0 = arith.constant 0 : i32
    %c0_i32_1 = arith.constant 0 : i32
    return %c0_i32, %c0_i32_0 : i32, i32
  }
  func.func @transform_2(%arg0: i32) -> (i32, i32) {
    %c0_i32 = arith.constant 0 : i32
    %c0_i32_0 = arith.constant 0 : i32
    %c0_i32_1 = arith.constant 0 : i32
    return %c0_i32, %c0_i32_0 : i32, i32
  }
  func.func @transform_3(%arg0: i32) -> (i32, i32) {
    %c0_i32 = arith.constant 0 : i32
    %c0_i32_0 = arith.constant 0 : i32
    %c0_i32_1 = arith.constant 0 : i32
    return %c0_i32, %c0_i32_0 : i32, i32
  }
  func.func @transform_4(%arg0: i32) -> (i32, i32) {
    %c0_i32 = arith.constant 0 : i32
    %c0_i32_0 = arith.constant 0 : i32
    %c0_i32_1 = arith.constant 0 : i32
    return %c0_i32, %c0_i32_0 : i32, i32
  }
  func.func @transform_5(%arg0: i32) -> (i32, i32) {
    %c0_i32 = arith.constant 0 : i32
    %c0_i32_0 = arith.constant 0 : i32
    %c0_i32_1 = arith.constant 0 : i32
    return %c0_i32, %c0_i32_0 : i32, i32
  }
  func.func @transform_6(%arg0: i32) -> (i32, i32) {
    %c0_i32 = arith.constant 0 : i32
    %c0_i32_0 = arith.constant 0 : i32
    %c0_i32_1 = arith.constant 0 : i32
    return %c0_i32, %c0_i32_0 : i32, i32
  }
  func.func @transform_7(%arg0: i32) -> (i32, i32) {
    %c0_i32 = arith.constant 0 : i32
    %c0_i32_0 = arith.constant 0 : i32
    return %arg0, %c0_i32 : i32, i32
  }
}

module attributes {stable_mosaic.version = 11 : i64} {
  func.func @_mha_kernel(%arg0: i32, %arg1: memref<1x8x32xf32, #tpu.memory_space<vmem>>, %arg2: memref<1x8x32xf32, #tpu.memory_space<vmem>>, %arg3: memref<1x8x8xf32, #tpu.memory_space<vmem>>, %arg4: memref<4x32x8xbf16, #tpu.memory_space<vmem>>, %arg5: memref<4x32x8xbf16, #tpu.memory_space<vmem>>, %arg6: memref<4x32x8xbf16, #tpu.memory_space<vmem>>, %arg7: memref<4x1x8xf32, #tpu.memory_space<vmem>>, %arg8: memref<4x1x8xf32, #tpu.memory_space<vmem>>, %arg9: memref<4x1x8xf32, #tpu.memory_space<vmem>>, %arg10: memref<4x8x32xbf16, #tpu.memory_space<vmem>>, %arg11: memref<1x32xf32, #tpu.memory_space<vmem>>, %arg12: memref<1x32xf32, #tpu.memory_space<vmem>>, %arg13: memref<1x32xf32, #tpu.memory_space<vmem>>, %arg14: memref<1x8x32xf32, #tpu.memory_space<vmem>>) attributes {dimension_semantics = [#tpu.dimension_semantics<parallel>], iteration_bounds = array<i64: 2>, scalar_prefetch = 0 : i64, scratch_operands = 0 : i64, tpu.core_type = #tpu.core_type<tc>, window_params = [{transform_indices = @transform_0, window_bounds = array<i64: 1, 8, 32>}, {transform_indices = @transform_1, window_bounds = array<i64: 1, 8, 32>}, {transform_indices = @transform_2, window_bounds = array<i64: 1, 8, 8>}, {pipeline_mode = #tpu.pipeline_mode<synchronous>, transform_indices = @transform_3, window_bounds = array<i64: 4, 32, 8>}, {pipeline_mode = #tpu.pipeline_mode<synchronous>, transform_indices = @transform_4, window_bounds = array<i64: 4, 32, 8>}, {pipeline_mode = #tpu.pipeline_mode<synchronous>, transform_indices = @transform_5, window_bounds = array<i64: 4, 32, 8>}, {pipeline_mode = #tpu.pipeline_mode<synchronous>, transform_indices = @transform_6, window_bounds = array<i64: 4, 1, 8>}, {pipeline_mode = #tpu.pipeline_mode<synchronous>, transform_indices = @transform_7, window_bounds = array<i64: 4, 1, 8>}, {pipeline_mode = #tpu.pipeline_mode<synchronous>, transform_indices = @transform_8, window_bounds = array<i64: 4, 1, 8>}, {pipeline_mode = #tpu.pipeline_mode<synchronous>, transform_indices = @transform_9, window_bounds = array<i64: 4, 8, 32>}, {pipeline_mode = #tpu.pipeline_mode<synchronous>, transform_indices = @transform_10, window_bounds = array<i64: 1, 32>}, {pipeline_mode = #tpu.pipeline_mode<synchronous>, transform_indices = @transform_11, window_bounds = array<i64: 1, 32>}, {pipeline_mode = #tpu.pipeline_mode<synchronous>, transform_indices = @transform_12, window_bounds = array<i64: 1, 32>}, {transform_indices = @transform_13, window_bounds = array<i64: 1, 8, 32>}]} {
    %c0 = arith.constant 0 : index
    %c0_0 = arith.constant 0 : index
    %c0_1 = arith.constant 0 : index
    %0 = vector.load %arg1[%c0, %c0_0, %c0_1] : memref<1x8x32xf32, #tpu.memory_space<vmem>>, vector<1x8x32xf32>
    %1 = vector.shape_cast %0 : vector<1x8x32xf32> to vector<8x32xf32>
    %c0_2 = arith.constant 0 : index
    %c0_3 = arith.constant 0 : index
    %c0_4 = arith.constant 0 : index
    %2 = vector.load %arg2[%c0_2, %c0_3, %c0_4] : memref<1x8x32xf32, #tpu.memory_space<vmem>>, vector<1x8x32xf32>
    %3 = vector.shape_cast %2 : vector<1x8x32xf32> to vector<8x32xf32>
    %c0_5 = arith.constant 0 : index
    %c0_6 = arith.constant 0 : index
    %c0_7 = arith.constant 0 : index
    %4 = vector.load %arg3[%c0_5, %c0_6, %c0_7] : memref<1x8x8xf32, #tpu.memory_space<vmem>>, vector<1x8x8xf32>
    %5 = vector.shape_cast %4 : vector<1x8x8xf32> to vector<8x8xf32>
    %6 = arith.truncf %1 : vector<8x32xf32> to vector<8x32xbf16>
    %7 = arith.truncf %3 : vector<8x32xf32> to vector<8x32xbf16>
    %cst = arith.constant 0.000000e+00 : f32
    %8 = vector.broadcast %cst : f32 to vector<8x32xf32>
    %c0_8 = arith.constant 0 : index
    %c0_9 = arith.constant 0 : index
    %c0_10 = arith.constant 0 : index
    %9 = vector.load %arg4[%c0_8, %c0_9, %c0_10] : memref<4x32x8xbf16, #tpu.memory_space<vmem>>, vector<1x32x8xbf16>
    %10 = vector.shape_cast %9 : vector<1x32x8xbf16> to vector<32x8xbf16>
    %cst_11 = arith.constant dense<0.000000e+00> : vector<8x8xf32>
    %11 = tpu.matmul %6, %10, %cst_11 {dimension_numbers = #tpu.dot_dimension_numbers<[1], [0], [0], [1], [0, 0, 1, 1], [], []>} : vector<8x32xbf16>, vector<32x8xbf16>, vector<8x8xf32> -> vector<8x8xf32>
    %c0_12 = arith.constant 0 : index
    %c0_13 = arith.constant 0 : index
    %c0_14 = arith.constant 0 : index
    %12 = vector.load %arg7[%c0_12, %c0_13, %c0_14] : memref<4x1x8xf32, #tpu.memory_space<vmem>>, vector<1x1x8xf32>
    %13 = vector.shape_cast %12 : vector<1x1x8xf32> to vector<1x8xf32>
    %14 = vector.broadcast %13 : vector<1x8xf32> to vector<8x8xf32>
    %15 = arith.addf %11, %14 : vector<8x8xf32>
    %c0_15 = arith.constant 0 : index
    %c0_16 = arith.constant 0 : index
    %c0_17 = arith.constant 0 : index
    %16 = vector.load %arg5[%c0_15, %c0_16, %c0_17] : memref<4x32x8xbf16, #tpu.memory_space<vmem>>, vector<1x32x8xbf16>
    %17 = vector.shape_cast %16 : vector<1x32x8xbf16> to vector<32x8xbf16>
    %cst_18 = arith.constant dense<0.000000e+00> : vector<8x8xf32>
    %18 = tpu.matmul %7, %17, %cst_18 {dimension_numbers = #tpu.dot_dimension_numbers<[1], [0], [0], [1], [0, 0, 1, 1], [], []>} : vector<8x32xbf16>, vector<32x8xbf16>, vector<8x8xf32> -> vector<8x8xf32>
    %c0_19 = arith.constant 0 : index
    %c0_20 = arith.constant 0 : index
    %c0_21 = arith.constant 0 : index
    %19 = vector.load %arg8[%c0_19, %c0_20, %c0_21] : memref<4x1x8xf32, #tpu.memory_space<vmem>>, vector<1x1x8xf32>
    %20 = vector.shape_cast %19 : vector<1x1x8xf32> to vector<1x8xf32>
    %21 = vector.broadcast %20 : vector<1x8xf32> to vector<8x8xf32>
    %22 = arith.addf %18, %21 : vector<8x8xf32>
    %c0_22 = arith.constant 0 : index
    %c0_23 = arith.constant 0 : index
    %c0_24 = arith.constant 0 : index
    %23 = vector.load %arg6[%c0_22, %c0_23, %c0_24] : memref<4x32x8xbf16, #tpu.memory_space<vmem>>, vector<1x32x8xbf16>
    %24 = vector.shape_cast %23 : vector<1x32x8xbf16> to vector<32x8xbf16>
    %cst_25 = arith.constant dense<0.000000e+00> : vector<8x8xf32>
    %25 = tpu.matmul %7, %24, %cst_25 {dimension_numbers = #tpu.dot_dimension_numbers<[1], [0], [0], [1], [0, 0, 1, 1], [], []>} : vector<8x32xbf16>, vector<32x8xbf16>, vector<8x8xf32> -> vector<8x8xf32>
    %c0_26 = arith.constant 0 : index
    %c0_27 = arith.constant 0 : index
    %c0_28 = arith.constant 0 : index
    %26 = vector.load %arg9[%c0_26, %c0_27, %c0_28] : memref<4x1x8xf32, #tpu.memory_space<vmem>>, vector<1x1x8xf32>
    %27 = vector.shape_cast %26 : vector<1x1x8xf32> to vector<1x8xf32>
    %28 = vector.broadcast %27 : vector<1x8xf32> to vector<8x8xf32>
    %29 = arith.addf %25, %28 : vector<8x8xf32>
    %cst_29 = arith.constant 0.353553385 : f32
    %30 = vector.broadcast %cst_29 : f32 to vector<8x8xf32>
    %31 = arith.mulf %15, %30 : vector<8x8xf32>
    %32 = arith.truncf %31 : vector<8x8xf32> to vector<8x8xbf16>
    %33 = arith.truncf %22 : vector<8x8xf32> to vector<8x8xbf16>
    %cst_30 = arith.constant dense<0.000000e+00> : vector<8x8xf32>
    %34 = tpu.matmul %32, %33, %cst_30 {dimension_numbers = #tpu.dot_dimension_numbers<[1], [1], [0], [0], [0, 0, 1, 0], [], []>} : vector<8x8xbf16>, vector<8x8xbf16>, vector<8x8xf32> -> vector<8x8xf32>
    %35 = arith.addf %34, %5 : vector<8x8xf32>
    %cst_31 = arith.constant dense<0xFF800000> : vector<8xf32>
    %36 = vector.multi_reduction <maximumf>, %35, %cst_31 [1] : vector<8x8xf32> to vector<8xf32>
    %37 = vector.shape_cast %36 : vector<8xf32> to vector<8x1xf32>
    %38 = vector.broadcast %37 : vector<8x1xf32> to vector<8x8xf32>
    %39 = arith.subf %35, %38 : vector<8x8xf32>
    %40 = math.exp %39 : vector<8x8xf32>
    %cst_32 = arith.constant dense<0.000000e+00> : vector<8xf32>
    %41 = vector.multi_reduction <add>, %40, %cst_32 [1] : vector<8x8xf32> to vector<8xf32>
    %42 = vector.shape_cast %41 : vector<8xf32> to vector<8x1xf32>
    %43 = tpu.reciprocal %42 {approx = true} : vector<8x1xf32> -> vector<8x1xf32>
    %44 = vector.broadcast %43 : vector<8x1xf32> to vector<8x8xf32>
    %45 = arith.mulf %40, %44 : vector<8x8xf32>
    %46 = arith.truncf %45 : vector<8x8xf32> to vector<8x8xbf16>
    %47 = arith.truncf %29 : vector<8x8xf32> to vector<8x8xbf16>
    %cst_33 = arith.constant dense<0.000000e+00> : vector<8x8xf32>
    %48 = tpu.matmul %46, %47, %cst_33 {dimension_numbers = #tpu.dot_dimension_numbers<[1], [0], [0], [1], [0, 0, 1, 1], [], []>} : vector<8x8xbf16>, vector<8x8xbf16>, vector<8x8xf32> -> vector<8x8xf32>
    %49 = arith.truncf %48 : vector<8x8xf32> to vector<8x8xbf16>
    %c0_34 = arith.constant 0 : index
    %c0_35 = arith.constant 0 : index
    %c0_36 = arith.constant 0 : index
    %50 = vector.load %arg10[%c0_34, %c0_35, %c0_36] : memref<4x8x32xbf16, #tpu.memory_space<vmem>>, vector<1x8x32xbf16>
    %51 = vector.shape_cast %50 : vector<1x8x32xbf16> to vector<8x32xbf16>
    %cst_37 = arith.constant dense<0.000000e+00> : vector<8x32xf32>
    %52 = tpu.matmul %49, %51, %cst_37 {dimension_numbers = #tpu.dot_dimension_numbers<[1], [0], [0], [1], [0, 0, 1, 1], [], []>} : vector<8x8xbf16>, vector<8x32xbf16>, vector<8x32xf32> -> vector<8x32xf32>
    %53 = arith.addf %8, %52 : vector<8x32xf32>
    %c1 = arith.constant 1 : index
    %c0_38 = arith.constant 0 : index
    %c0_39 = arith.constant 0 : index
    %54 = vector.load %arg4[%c1, %c0_38, %c0_39] : memref<4x32x8xbf16, #tpu.memory_space<vmem>>, vector<1x32x8xbf16>
    %55 = vector.shape_cast %54 : vector<1x32x8xbf16> to vector<32x8xbf16>
    %cst_40 = arith.constant dense<0.000000e+00> : vector<8x8xf32>
    %56 = tpu.matmul %6, %55, %cst_40 {dimension_numbers = #tpu.dot_dimension_numbers<[1], [0], [0], [1], [0, 0, 1, 1], [], []>} : vector<8x32xbf16>, vector<32x8xbf16>, vector<8x8xf32> -> vector<8x8xf32>
    %c1_41 = arith.constant 1 : index
    %c0_42 = arith.constant 0 : index
    %c0_43 = arith.constant 0 : index
    %57 = vector.load %arg7[%c1_41, %c0_42, %c0_43] : memref<4x1x8xf32, #tpu.memory_space<vmem>>, vector<1x1x8xf32>
    %58 = vector.shape_cast %57 : vector<1x1x8xf32> to vector<1x8xf32>
    %59 = vector.broadcast %58 : vector<1x8xf32> to vector<8x8xf32>
    %60 = arith.addf %56, %59 : vector<8x8xf32>
    %c1_44 = arith.constant 1 : index
    %c0_45 = arith.constant 0 : index
    %c0_46 = arith.constant 0 : index
    %61 = vector.load %arg5[%c1_44, %c0_45, %c0_46] : memref<4x32x8xbf16, #tpu.memory_space<vmem>>, vector<1x32x8xbf16>
    %62 = vector.shape_cast %61 : vector<1x32x8xbf16> to vector<32x8xbf16>
    %cst_47 = arith.constant dense<0.000000e+00> : vector<8x8xf32>
    %63 = tpu.matmul %7, %62, %cst_47 {dimension_numbers = #tpu.dot_dimension_numbers<[1], [0], [0], [1], [0, 0, 1, 1], [], []>} : vector<8x32xbf16>, vector<32x8xbf16>, vector<8x8xf32> -> vector<8x8xf32>
    %c1_48 = arith.constant 1 : index
    %c0_49 = arith.constant 0 : index
    %c0_50 = arith.constant 0 : index
    %64 = vector.load %arg8[%c1_48, %c0_49, %c0_50] : memref<4x1x8xf32, #tpu.memory_space<vmem>>, vector<1x1x8xf32>
    %65 = vector.shape_cast %64 : vector<1x1x8xf32> to vector<1x8xf32>
    %66 = vector.broadcast %65 : vector<1x8xf32> to vector<8x8xf32>
    %67 = arith.addf %63, %66 : vector<8x8xf32>
    %c1_51 = arith.constant 1 : index
    %c0_52 = arith.constant 0 : index
    %c0_53 = arith.constant 0 : index
    %68 = vector.load %arg6[%c1_51, %c0_52, %c0_53] : memref<4x32x8xbf16, #tpu.memory_space<vmem>>, vector<1x32x8xbf16>
    %69 = vector.shape_cast %68 : vector<1x32x8xbf16> to vector<32x8xbf16>
    %cst_54 = arith.constant dense<0.000000e+00> : vector<8x8xf32>
    %70 = tpu.matmul %7, %69, %cst_54 {dimension_numbers = #tpu.dot_dimension_numbers<[1], [0], [0], [1], [0, 0, 1, 1], [], []>} : vector<8x32xbf16>, vector<32x8xbf16>, vector<8x8xf32> -> vector<8x8xf32>
    %c1_55 = arith.constant 1 : index
    %c0_56 = arith.constant 0 : index
    %c0_57 = arith.constant 0 : index
    %71 = vector.load %arg9[%c1_55, %c0_56, %c0_57] : memref<4x1x8xf32, #tpu.memory_space<vmem>>, vector<1x1x8xf32>
    %72 = vector.shape_cast %71 : vector<1x1x8xf32> to vector<1x8xf32>
    %73 = vector.broadcast %72 : vector<1x8xf32> to vector<8x8xf32>
    %74 = arith.addf %70, %73 : vector<8x8xf32>
    %cst_58 = arith.constant 0.353553385 : f32
    %75 = vector.broadcast %cst_58 : f32 to vector<8x8xf32>
    %76 = arith.mulf %60, %75 : vector<8x8xf32>
    %77 = arith.truncf %76 : vector<8x8xf32> to vector<8x8xbf16>
    %78 = arith.truncf %67 : vector<8x8xf32> to vector<8x8xbf16>
    %cst_59 = arith.constant dense<0.000000e+00> : vector<8x8xf32>
    %79 = tpu.matmul %77, %78, %cst_59 {dimension_numbers = #tpu.dot_dimension_numbers<[1], [1], [0], [0], [0, 0, 1, 0], [], []>} : vector<8x8xbf16>, vector<8x8xbf16>, vector<8x8xf32> -> vector<8x8xf32>
    %80 = arith.addf %79, %5 : vector<8x8xf32>
    %cst_60 = arith.constant dense<0xFF800000> : vector<8xf32>
    %81 = vector.multi_reduction <maximumf>, %80, %cst_60 [1] : vector<8x8xf32> to vector<8xf32>
    %82 = vector.shape_cast %81 : vector<8xf32> to vector<8x1xf32>
    %83 = vector.broadcast %82 : vector<8x1xf32> to vector<8x8xf32>
    %84 = arith.subf %80, %83 : vector<8x8xf32>
    %85 = math.exp %84 : vector<8x8xf32>
    %cst_61 = arith.constant dense<0.000000e+00> : vector<8xf32>
    %86 = vector.multi_reduction <add>, %85, %cst_61 [1] : vector<8x8xf32> to vector<8xf32>
    %87 = vector.shape_cast %86 : vector<8xf32> to vector<8x1xf32>
    %88 = tpu.reciprocal %87 {approx = true} : vector<8x1xf32> -> vector<8x1xf32>
    %89 = vector.broadcast %88 : vector<8x1xf32> to vector<8x8xf32>
    %90 = arith.mulf %85, %89 : vector<8x8xf32>
    %91 = arith.truncf %90 : vector<8x8xf32> to vector<8x8xbf16>
    %92 = arith.truncf %74 : vector<8x8xf32> to vector<8x8xbf16>
    %cst_62 = arith.constant dense<0.000000e+00> : vector<8x8xf32>
    %93 = tpu.matmul %91, %92, %cst_62 {dimension_numbers = #tpu.dot_dimension_numbers<[1], [0], [0], [1], [0, 0, 1, 1], [], []>} : vector<8x8xbf16>, vector<8x8xbf16>, vector<8x8xf32> -> vector<8x8xf32>
    %94 = arith.truncf %93 : vector<8x8xf32> to vector<8x8xbf16>
    %c1_63 = arith.constant 1 : index
    %c0_64 = arith.constant 0 : index
    %c0_65 = arith.constant 0 : index
    %95 = vector.load %arg10[%c1_63, %c0_64, %c0_65] : memref<4x8x32xbf16, #tpu.memory_space<vmem>>, vector<1x8x32xbf16>
    %96 = vector.shape_cast %95 : vector<1x8x32xbf16> to vector<8x32xbf16>
    %cst_66 = arith.constant dense<0.000000e+00> : vector<8x32xf32>
    %97 = tpu.matmul %94, %96, %cst_66 {dimension_numbers = #tpu.dot_dimension_numbers<[1], [0], [0], [1], [0, 0, 1, 1], [], []>} : vector<8x8xbf16>, vector<8x32xbf16>, vector<8x32xf32> -> vector<8x32xf32>
    %98 = arith.addf %53, %97 : vector<8x32xf32>
    %c2 = arith.constant 2 : index
    %c0_67 = arith.constant 0 : index
    %c0_68 = arith.constant 0 : index
    %99 = vector.load %arg4[%c2, %c0_67, %c0_68] : memref<4x32x8xbf16, #tpu.memory_space<vmem>>, vector<1x32x8xbf16>
    %100 = vector.shape_cast %99 : vector<1x32x8xbf16> to vector<32x8xbf16>
    %cst_69 = arith.constant dense<0.000000e+00> : vector<8x8xf32>
    %101 = tpu.matmul %6, %100, %cst_69 {dimension_numbers = #tpu.dot_dimension_numbers<[1], [0], [0], [1], [0, 0, 1, 1], [], []>} : vector<8x32xbf16>, vector<32x8xbf16>, vector<8x8xf32> -> vector<8x8xf32>
    %c2_70 = arith.constant 2 : index
    %c0_71 = arith.constant 0 : index
    %c0_72 = arith.constant 0 : index
    %102 = vector.load %arg7[%c2_70, %c0_71, %c0_72] : memref<4x1x8xf32, #tpu.memory_space<vmem>>, vector<1x1x8xf32>
    %103 = vector.shape_cast %102 : vector<1x1x8xf32> to vector<1x8xf32>
    %104 = vector.broadcast %103 : vector<1x8xf32> to vector<8x8xf32>
    %105 = arith.addf %101, %104 : vector<8x8xf32>
    %c2_73 = arith.constant 2 : index
    %c0_74 = arith.constant 0 : index
    %c0_75 = arith.constant 0 : index
    %106 = vector.load %arg5[%c2_73, %c0_74, %c0_75] : memref<4x32x8xbf16, #tpu.memory_space<vmem>>, vector<1x32x8xbf16>
    %107 = vector.shape_cast %106 : vector<1x32x8xbf16> to vector<32x8xbf16>
    %cst_76 = arith.constant dense<0.000000e+00> : vector<8x8xf32>
    %108 = tpu.matmul %7, %107, %cst_76 {dimension_numbers = #tpu.dot_dimension_numbers<[1], [0], [0], [1], [0, 0, 1, 1], [], []>} : vector<8x32xbf16>, vector<32x8xbf16>, vector<8x8xf32> -> vector<8x8xf32>
    %c2_77 = arith.constant 2 : index
    %c0_78 = arith.constant 0 : index
    %c0_79 = arith.constant 0 : index
    %109 = vector.load %arg8[%c2_77, %c0_78, %c0_79] : memref<4x1x8xf32, #tpu.memory_space<vmem>>, vector<1x1x8xf32>
    %110 = vector.shape_cast %109 : vector<1x1x8xf32> to vector<1x8xf32>
    %111 = vector.broadcast %110 : vector<1x8xf32> to vector<8x8xf32>
    %112 = arith.addf %108, %111 : vector<8x8xf32>
    %c2_80 = arith.constant 2 : index
    %c0_81 = arith.constant 0 : index
    %c0_82 = arith.constant 0 : index
    %113 = vector.load %arg6[%c2_80, %c0_81, %c0_82] : memref<4x32x8xbf16, #tpu.memory_space<vmem>>, vector<1x32x8xbf16>
    %114 = vector.shape_cast %113 : vector<1x32x8xbf16> to vector<32x8xbf16>
    %cst_83 = arith.constant dense<0.000000e+00> : vector<8x8xf32>
    %115 = tpu.matmul %7, %114, %cst_83 {dimension_numbers = #tpu.dot_dimension_numbers<[1], [0], [0], [1], [0, 0, 1, 1], [], []>} : vector<8x32xbf16>, vector<32x8xbf16>, vector<8x8xf32> -> vector<8x8xf32>
    %c2_84 = arith.constant 2 : index
    %c0_85 = arith.constant 0 : index
    %c0_86 = arith.constant 0 : index
    %116 = vector.load %arg9[%c2_84, %c0_85, %c0_86] : memref<4x1x8xf32, #tpu.memory_space<vmem>>, vector<1x1x8xf32>
    %117 = vector.shape_cast %116 : vector<1x1x8xf32> to vector<1x8xf32>
    %118 = vector.broadcast %117 : vector<1x8xf32> to vector<8x8xf32>
    %119 = arith.addf %115, %118 : vector<8x8xf32>
    %cst_87 = arith.constant 0.353553385 : f32
    %120 = vector.broadcast %cst_87 : f32 to vector<8x8xf32>
    %121 = arith.mulf %105, %120 : vector<8x8xf32>
    %122 = arith.truncf %121 : vector<8x8xf32> to vector<8x8xbf16>
    %123 = arith.truncf %112 : vector<8x8xf32> to vector<8x8xbf16>
    %cst_88 = arith.constant dense<0.000000e+00> : vector<8x8xf32>
    %124 = tpu.matmul %122, %123, %cst_88 {dimension_numbers = #tpu.dot_dimension_numbers<[1], [1], [0], [0], [0, 0, 1, 0], [], []>} : vector<8x8xbf16>, vector<8x8xbf16>, vector<8x8xf32> -> vector<8x8xf32>
    %125 = arith.addf %124, %5 : vector<8x8xf32>
    %cst_89 = arith.constant dense<0xFF800000> : vector<8xf32>
    %126 = vector.multi_reduction <maximumf>, %125, %cst_89 [1] : vector<8x8xf32> to vector<8xf32>
    %127 = vector.shape_cast %126 : vector<8xf32> to vector<8x1xf32>
    %128 = vector.broadcast %127 : vector<8x1xf32> to vector<8x8xf32>
    %129 = arith.subf %125, %128 : vector<8x8xf32>
    %130 = math.exp %129 : vector<8x8xf32>
    %cst_90 = arith.constant dense<0.000000e+00> : vector<8xf32>
    %131 = vector.multi_reduction <add>, %130, %cst_90 [1] : vector<8x8xf32> to vector<8xf32>
    %132 = vector.shape_cast %131 : vector<8xf32> to vector<8x1xf32>
    %133 = tpu.reciprocal %132 {approx = true} : vector<8x1xf32> -> vector<8x1xf32>
    %134 = vector.broadcast %133 : vector<8x1xf32> to vector<8x8xf32>
    %135 = arith.mulf %130, %134 : vector<8x8xf32>
    %136 = arith.truncf %135 : vector<8x8xf32> to vector<8x8xbf16>
    %137 = arith.truncf %119 : vector<8x8xf32> to vector<8x8xbf16>
    %cst_91 = arith.constant dense<0.000000e+00> : vector<8x8xf32>
    %138 = tpu.matmul %136, %137, %cst_91 {dimension_numbers = #tpu.dot_dimension_numbers<[1], [0], [0], [1], [0, 0, 1, 1], [], []>} : vector<8x8xbf16>, vector<8x8xbf16>, vector<8x8xf32> -> vector<8x8xf32>
    %139 = arith.truncf %138 : vector<8x8xf32> to vector<8x8xbf16>
    %c2_92 = arith.constant 2 : index
    %c0_93 = arith.constant 0 : index
    %c0_94 = arith.constant 0 : index
    %140 = vector.load %arg10[%c2_92, %c0_93, %c0_94] : memref<4x8x32xbf16, #tpu.memory_space<vmem>>, vector<1x8x32xbf16>
    %141 = vector.shape_cast %140 : vector<1x8x32xbf16> to vector<8x32xbf16>
    %cst_95 = arith.constant dense<0.000000e+00> : vector<8x32xf32>
    %142 = tpu.matmul %139, %141, %cst_95 {dimension_numbers = #tpu.dot_dimension_numbers<[1], [0], [0], [1], [0, 0, 1, 1], [], []>} : vector<8x8xbf16>, vector<8x32xbf16>, vector<8x32xf32> -> vector<8x32xf32>
    %143 = arith.addf %98, %142 : vector<8x32xf32>
    %c3 = arith.constant 3 : index
    %c0_96 = arith.constant 0 : index
    %c0_97 = arith.constant 0 : index
    %144 = vector.load %arg4[%c3, %c0_96, %c0_97] : memref<4x32x8xbf16, #tpu.memory_space<vmem>>, vector<1x32x8xbf16>
    %145 = vector.shape_cast %144 : vector<1x32x8xbf16> to vector<32x8xbf16>
    %cst_98 = arith.constant dense<0.000000e+00> : vector<8x8xf32>
    %146 = tpu.matmul %6, %145, %cst_98 {dimension_numbers = #tpu.dot_dimension_numbers<[1], [0], [0], [1], [0, 0, 1, 1], [], []>} : vector<8x32xbf16>, vector<32x8xbf16>, vector<8x8xf32> -> vector<8x8xf32>
    %c3_99 = arith.constant 3 : index
    %c0_100 = arith.constant 0 : index
    %c0_101 = arith.constant 0 : index
    %147 = vector.load %arg7[%c3_99, %c0_100, %c0_101] : memref<4x1x8xf32, #tpu.memory_space<vmem>>, vector<1x1x8xf32>
    %148 = vector.shape_cast %147 : vector<1x1x8xf32> to vector<1x8xf32>
    %149 = vector.broadcast %148 : vector<1x8xf32> to vector<8x8xf32>
    %150 = arith.addf %146, %149 : vector<8x8xf32>
    %c3_102 = arith.constant 3 : index
    %c0_103 = arith.constant 0 : index
    %c0_104 = arith.constant 0 : index
    %151 = vector.load %arg5[%c3_102, %c0_103, %c0_104] : memref<4x32x8xbf16, #tpu.memory_space<vmem>>, vector<1x32x8xbf16>
    %152 = vector.shape_cast %151 : vector<1x32x8xbf16> to vector<32x8xbf16>
    %cst_105 = arith.constant dense<0.000000e+00> : vector<8x8xf32>
    %153 = tpu.matmul %7, %152, %cst_105 {dimension_numbers = #tpu.dot_dimension_numbers<[1], [0], [0], [1], [0, 0, 1, 1], [], []>} : vector<8x32xbf16>, vector<32x8xbf16>, vector<8x8xf32> -> vector<8x8xf32>
    %c3_106 = arith.constant 3 : index
    %c0_107 = arith.constant 0 : index
    %c0_108 = arith.constant 0 : index
    %154 = vector.load %arg8[%c3_106, %c0_107, %c0_108] : memref<4x1x8xf32, #tpu.memory_space<vmem>>, vector<1x1x8xf32>
    %155 = vector.shape_cast %154 : vector<1x1x8xf32> to vector<1x8xf32>
    %156 = vector.broadcast %155 : vector<1x8xf32> to vector<8x8xf32>
    %157 = arith.addf %153, %156 : vector<8x8xf32>
    %c3_109 = arith.constant 3 : index
    %c0_110 = arith.constant 0 : index
    %c0_111 = arith.constant 0 : index
    %158 = vector.load %arg6[%c3_109, %c0_110, %c0_111] : memref<4x32x8xbf16, #tpu.memory_space<vmem>>, vector<1x32x8xbf16>
    %159 = vector.shape_cast %158 : vector<1x32x8xbf16> to vector<32x8xbf16>
    %cst_112 = arith.constant dense<0.000000e+00> : vector<8x8xf32>
    %160 = tpu.matmul %7, %159, %cst_112 {dimension_numbers = #tpu.dot_dimension_numbers<[1], [0], [0], [1], [0, 0, 1, 1], [], []>} : vector<8x32xbf16>, vector<32x8xbf16>, vector<8x8xf32> -> vector<8x8xf32>
    %c3_113 = arith.constant 3 : index
    %c0_114 = arith.constant 0 : index
    %c0_115 = arith.constant 0 : index
    %161 = vector.load %arg9[%c3_113, %c0_114, %c0_115] : memref<4x1x8xf32, #tpu.memory_space<vmem>>, vector<1x1x8xf32>
    %162 = vector.shape_cast %161 : vector<1x1x8xf32> to vector<1x8xf32>
    %163 = vector.broadcast %162 : vector<1x8xf32> to vector<8x8xf32>
    %164 = arith.addf %160, %163 : vector<8x8xf32>
    %cst_116 = arith.constant 0.353553385 : f32
    %165 = vector.broadcast %cst_116 : f32 to vector<8x8xf32>
    %166 = arith.mulf %150, %165 : vector<8x8xf32>
    %167 = arith.truncf %166 : vector<8x8xf32> to vector<8x8xbf16>
    %168 = arith.truncf %157 : vector<8x8xf32> to vector<8x8xbf16>
    %cst_117 = arith.constant dense<0.000000e+00> : vector<8x8xf32>
    %169 = tpu.matmul %167, %168, %cst_117 {dimension_numbers = #tpu.dot_dimension_numbers<[1], [1], [0], [0], [0, 0, 1, 0], [], []>} : vector<8x8xbf16>, vector<8x8xbf16>, vector<8x8xf32> -> vector<8x8xf32>
    %170 = arith.addf %169, %5 : vector<8x8xf32>
    %cst_118 = arith.constant dense<0xFF800000> : vector<8xf32>
    %171 = vector.multi_reduction <maximumf>, %170, %cst_118 [1] : vector<8x8xf32> to vector<8xf32>
    %172 = vector.shape_cast %171 : vector<8xf32> to vector<8x1xf32>
    %173 = vector.broadcast %172 : vector<8x1xf32> to vector<8x8xf32>
    %174 = arith.subf %170, %173 : vector<8x8xf32>
    %175 = math.exp %174 : vector<8x8xf32>
    %cst_119 = arith.constant dense<0.000000e+00> : vector<8xf32>
    %176 = vector.multi_reduction <add>, %175, %cst_119 [1] : vector<8x8xf32> to vector<8xf32>
    %177 = vector.shape_cast %176 : vector<8xf32> to vector<8x1xf32>
    %178 = tpu.reciprocal %177 {approx = true} : vector<8x1xf32> -> vector<8x1xf32>
    %179 = vector.broadcast %178 : vector<8x1xf32> to vector<8x8xf32>
    %180 = arith.mulf %175, %179 : vector<8x8xf32>
    %181 = arith.truncf %180 : vector<8x8xf32> to vector<8x8xbf16>
    %182 = arith.truncf %164 : vector<8x8xf32> to vector<8x8xbf16>
    %cst_120 = arith.constant dense<0.000000e+00> : vector<8x8xf32>
    %183 = tpu.matmul %181, %182, %cst_120 {dimension_numbers = #tpu.dot_dimension_numbers<[1], [0], [0], [1], [0, 0, 1, 1], [], []>} : vector<8x8xbf16>, vector<8x8xbf16>, vector<8x8xf32> -> vector<8x8xf32>
    %184 = arith.truncf %183 : vector<8x8xf32> to vector<8x8xbf16>
    %c3_121 = arith.constant 3 : index
    %c0_122 = arith.constant 0 : index
    %c0_123 = arith.constant 0 : index
    %185 = vector.load %arg10[%c3_121, %c0_122, %c0_123] : memref<4x8x32xbf16, #tpu.memory_space<vmem>>, vector<1x8x32xbf16>
    %186 = vector.shape_cast %185 : vector<1x8x32xbf16> to vector<8x32xbf16>
    %cst_124 = arith.constant dense<0.000000e+00> : vector<8x32xf32>
    %187 = tpu.matmul %184, %186, %cst_124 {dimension_numbers = #tpu.dot_dimension_numbers<[1], [0], [0], [1], [0, 0, 1, 1], [], []>} : vector<8x8xbf16>, vector<8x32xbf16>, vector<8x32xf32> -> vector<8x32xf32>
    %188 = arith.addf %143, %187 : vector<8x32xf32>
    %189 = arith.addf %1, %188 : vector<8x32xf32>
    %c0_125 = arith.constant 0 : index
    %c0_126 = arith.constant 0 : index
    %190 = vector.load %arg11[%c0_125, %c0_126] : memref<1x32xf32, #tpu.memory_space<vmem>>, vector<1x32xf32>
    %191 = vector.broadcast %190 : vector<1x32xf32> to vector<8x32xf32>
    %192 = arith.addf %189, %191 : vector<8x32xf32>
    %c0_127 = arith.constant 0 : index
    %c0_128 = arith.constant 0 : index
    %193 = vector.load %arg12[%c0_127, %c0_128] : memref<1x32xf32, #tpu.memory_space<vmem>>, vector<1x32xf32>
    %c0_129 = arith.constant 0 : index
    %c0_130 = arith.constant 0 : index
    %194 = vector.load %arg13[%c0_129, %c0_130] : memref<1x32xf32, #tpu.memory_space<vmem>>, vector<1x32xf32>
    %cst_131 = arith.constant dense<0.000000e+00> : vector<8xf32>
    %195 = vector.multi_reduction <add>, %192, %cst_131 [1] : vector<8x32xf32> to vector<8xf32>
    %196 = vector.shape_cast %195 : vector<8xf32> to vector<8x1xf32>
    %cst_132 = arith.constant 3.200000e+01 : f32
    %197 = vector.broadcast %cst_132 : f32 to vector<8x1xf32>
    %198 = arith.divf %196, %197 : vector<8x1xf32>
    %199 = vector.broadcast %198 : vector<8x1xf32> to vector<8x32xf32>
    %200 = arith.subf %192, %199 : vector<8x32xf32>
    %201 = arith.mulf %200, %200 : vector<8x32xf32>
    %cst_133 = arith.constant dense<0.000000e+00> : vector<8xf32>
    %202 = vector.multi_reduction <add>, %201, %cst_133 [1] : vector<8x32xf32> to vector<8xf32>
    %203 = vector.shape_cast %202 : vector<8xf32> to vector<8x1xf32>
    %cst_134 = arith.constant 3.200000e+01 : f32
    %204 = vector.broadcast %cst_134 : f32 to vector<8x1xf32>
    %205 = arith.divf %203, %204 : vector<8x1xf32>
    %206 = vector.broadcast %198 : vector<8x1xf32> to vector<8x32xf32>
    %207 = arith.subf %192, %206 : vector<8x32xf32>
    %cst_135 = arith.constant 9.99999974E-6 : f32
    %208 = vector.broadcast %cst_135 : f32 to vector<8x1xf32>
    %209 = arith.addf %205, %208 : vector<8x1xf32>
    %210 = math.rsqrt %209 : vector<8x1xf32>
    %211 = vector.broadcast %210 : vector<8x1xf32> to vector<8x32xf32>
    %212 = arith.mulf %207, %211 : vector<8x32xf32>
    %213 = vector.broadcast %193 : vector<1x32xf32> to vector<8x32xf32>
    %214 = arith.mulf %212, %213 : vector<8x32xf32>
    %215 = vector.broadcast %194 : vector<1x32xf32> to vector<8x32xf32>
    %216 = arith.addf %214, %215 : vector<8x32xf32>
    %c0_136 = arith.constant 0 : index
    %c0_137 = arith.constant 0 : index
    %c0_138 = arith.constant 0 : index
    %217 = vector.load %arg14[%c0_136, %c0_137, %c0_138] : memref<1x8x32xf32, #tpu.memory_space<vmem>>, vector<1x8x32xf32>
    %218 = vector.shape_cast %217 : vector<1x8x32xf32> to vector<8x32xf32>
    %219 = vector.shape_cast %216 : vector<8x32xf32> to vector<1x8x32xf32>
    tpu.vector_store %arg14[%c0_136, %c0_137, %c0_138], %219 {strides = array<i32>} : memref<1x8x32xf32, #tpu.memory_space<vmem>>, vector<1x8x32xf32>,
    return
  }
  func.func @transform_0(%arg0: i32) -> (i32, i32, i32) {
    %c0_i32 = arith.constant 0 : i32
    %c0_i32_0 = arith.constant 0 : i32
    %c0_i32_1 = arith.constant 0 : i32
    return %arg0, %c0_i32, %c0_i32_0 : i32, i32, i32
  }
  func.func @transform_1(%arg0: i32) -> (i32, i32, i32) {
    %c0_i32 = arith.constant 0 : i32
    %c0_i32_0 = arith.constant 0 : i32
    %c0_i32_1 = arith.constant 0 : i32
    return %arg0, %c0_i32, %c0_i32_0 : i32, i32, i32
  }
  func.func @transform_2(%arg0: i32) -> (i32, i32, i32) {
    %c0_i32 = arith.constant 0 : i32
    %c0_i32_0 = arith.constant 0 : i32
    %c0_i32_1 = arith.constant 0 : i32
    return %arg0, %c0_i32, %c0_i32_0 : i32, i32, i32
  }
  func.func @transform_3(%arg0: i32) -> (i32, i32, i32) {
    %c0_i32 = arith.constant 0 : i32
    %c0_i32_0 = arith.constant 0 : i32
    %c0_i32_1 = arith.constant 0 : i32
    %c0_i32_2 = arith.constant 0 : i32
    return %c0_i32, %c0_i32_0, %c0_i32_1 : i32, i32, i32
  }
  func.func @transform_4(%arg0: i32) -> (i32, i32, i32) {
    %c0_i32 = arith.constant 0 : i32
    %c0_i32_0 = arith.constant 0 : i32
    %c0_i32_1 = arith.constant 0 : i32
    %c0_i32_2 = arith.constant 0 : i32
    return %c0_i32, %c0_i32_0, %c0_i32_1 : i32, i32, i32
  }
  func.func @transform_5(%arg0: i32) -> (i32, i32, i32) {
    %c0_i32 = arith.constant 0 : i32
    %c0_i32_0 = arith.constant 0 : i32
    %c0_i32_1 = arith.constant 0 : i32
    %c0_i32_2 = arith.constant 0 : i32
    return %c0_i32, %c0_i32_0, %c0_i32_1 : i32, i32, i32
  }
  func.func @transform_6(%arg0: i32) -> (i32, i32, i32) {
    %c0_i32 = arith.constant 0 : i32
    %c0_i32_0 = arith.constant 0 : i32
    %c0_i32_1 = arith.constant 0 : i32
    %c0_i32_2 = arith.constant 0 : i32
    return %c0_i32, %c0_i32_0, %c0_i32_1 : i32, i32, i32
  }
  func.func @transform_7(%arg0: i32) -> (i32, i32, i32) {
    %c0_i32 = arith.constant 0 : i32
    %c0_i32_0 = arith.constant 0 : i32
    %c0_i32_1 = arith.constant 0 : i32
    %c0_i32_2 = arith.constant 0 : i32
    return %c0_i32, %c0_i32_0, %c0_i32_1 : i32, i32, i32
  }
  func.func @transform_8(%arg0: i32) -> (i32, i32, i32) {
    %c0_i32 = arith.constant 0 : i32
    %c0_i32_0 = arith.constant 0 : i32
    %c0_i32_1 = arith.constant 0 : i32
    %c0_i32_2 = arith.constant 0 : i32
    return %c0_i32, %c0_i32_0, %c0_i32_1 : i32, i32, i32
  }
  func.func @transform_9(%arg0: i32) -> (i32, i32, i32) {
    %c0_i32 = arith.constant 0 : i32
    %c0_i32_0 = arith.constant 0 : i32
    %c0_i32_1 = arith.constant 0 : i32
    %c0_i32_2 = arith.constant 0 : i32
    return %c0_i32, %c0_i32_0, %c0_i32_1 : i32, i32, i32
  }
  func.func @transform_10(%arg0: i32) -> (i32, i32) {
    %c0_i32 = arith.constant 0 : i32
    %c0_i32_0 = arith.constant 0 : i32
    %c0_i32_1 = arith.constant 0 : i32
    return %c0_i32, %c0_i32_0 : i32, i32
  }
  func.func @transform_11(%arg0: i32) -> (i32, i32) {
    %c0_i32 = arith.constant 0 : i32
    %c0_i32_0 = arith.constant 0 : i32
    %c0_i32_1 = arith.constant 0 : i32
    return %c0_i32, %c0_i32_0 : i32, i32
  }
  func.func @transform_12(%arg0: i32) -> (i32, i32) {
    %c0_i32 = arith.constant 0 : i32
    %c0_i32_0 = arith.constant 0 : i32
    %c0_i32_1 = arith.constant 0 : i32
    return %c0_i32, %c0_i32_0 : i32, i32
  }
  func.func @transform_13(%arg0: i32) -> (i32, i32, i32) {
    %c0_i32 = arith.constant 0 : i32
    %c0_i32_0 = arith.constant 0 : i32
    %c0_i32_1 = arith.constant 0 : i32
    return %arg0, %c0_i32, %c0_i32_0 : i32, i32, i32
  }
}

module attributes {stable_mosaic.version = 11 : i64} {
  func.func @_mha_kernel(%arg0: i32, %arg1: memref<1x8x32xf32, #tpu.memory_space<vmem>>, %arg2: memref<1x16x32xf32, #tpu.memory_space<vmem>>, %arg3: memref<1x8x16xf32, #tpu.memory_space<vmem>>, %arg4: memref<4x32x8xbf16, #tpu.memory_space<vmem>>, %arg5: memref<4x32x8xbf16, #tpu.memory_space<vmem>>, %arg6: memref<4x32x8xbf16, #tpu.memory_space<vmem>>, %arg7: memref<4x1x8xf32, #tpu.memory_space<vmem>>, %arg8: memref<4x1x8xf32, #tpu.memory_space<vmem>>, %arg9: memref<4x1x8xf32, #tpu.memory_space<vmem>>, %arg10: memref<4x8x32xbf16, #tpu.memory_space<vmem>>, %arg11: memref<1x32xf32, #tpu.memory_space<vmem>>, %arg12: memref<1x32xf32, #tpu.memory_space<vmem>>, %arg13: memref<1x32xf32, #tpu.memory_space<vmem>>, %arg14: memref<1x8x32xf32, #tpu.memory_space<vmem>>) attributes {dimension_semantics = [#tpu.dimension_semantics<parallel>], iteration_bounds = array<i64: 2>, scalar_prefetch = 0 : i64, scratch_operands = 0 : i64, tpu.core_type = #tpu.core_type<tc>, window_params = [{transform_indices = @transform_0, window_bounds = array<i64: 1, 8, 32>}, {transform_indices = @transform_1, window_bounds = array<i64: 1, 16, 32>}, {transform_indices = @transform_2, window_bounds = array<i64: 1, 8, 16>}, {pipeline_mode = #tpu.pipeline_mode<synchronous>, transform_indices = @transform_3, window_bounds = array<i64: 4, 32, 8>}, {pipeline_mode = #tpu.pipeline_mode<synchronous>, transform_indices = @transform_4, window_bounds = array<i64: 4, 32, 8>}, {pipeline_mode = #tpu.pipeline_mode<synchronous>, transform_indices = @transform_5, window_bounds = array<i64: 4, 32, 8>}, {pipeline_mode = #tpu.pipeline_mode<synchronous>, transform_indices = @transform_6, window_bounds = array<i64: 4, 1, 8>}, {pipeline_mode = #tpu.pipeline_mode<synchronous>, transform_indices = @transform_7, window_bounds = array<i64: 4, 1, 8>}, {pipeline_mode = #tpu.pipeline_mode<synchronous>, transform_indices = @transform_8, window_bounds = array<i64: 4, 1, 8>}, {pipeline_mode = #tpu.pipeline_mode<synchronous>, transform_indices = @transform_9, window_bounds = array<i64: 4, 8, 32>}, {pipeline_mode = #tpu.pipeline_mode<synchronous>, transform_indices = @transform_10, window_bounds = array<i64: 1, 32>}, {pipeline_mode = #tpu.pipeline_mode<synchronous>, transform_indices = @transform_11, window_bounds = array<i64: 1, 32>}, {pipeline_mode = #tpu.pipeline_mode<synchronous>, transform_indices = @transform_12, window_bounds = array<i64: 1, 32>}, {transform_indices = @transform_13, window_bounds = array<i64: 1, 8, 32>}]} {
    %c0 = arith.constant 0 : index
    %c0_0 = arith.constant 0 : index
    %c0_1 = arith.constant 0 : index
    %0 = vector.load %arg1[%c0, %c0_0, %c0_1] : memref<1x8x32xf32, #tpu.memory_space<vmem>>, vector<1x8x32xf32>
    %1 = vector.shape_cast %0 : vector<1x8x32xf32> to vector<8x32xf32>
    %c0_2 = arith.constant 0 : index
    %c0_3 = arith.constant 0 : index
    %c0_4 = arith.constant 0 : index
    %2 = vector.load %arg2[%c0_2, %c0_3, %c0_4] : memref<1x16x32xf32, #tpu.memory_space<vmem>>, vector<1x16x32xf32>
    %3 = vector.shape_cast %2 : vector<1x16x32xf32> to vector<16x32xf32>
    %c0_5 = arith.constant 0 : index
    %c0_6 = arith.constant 0 : index
    %c0_7 = arith.constant 0 : index
    %4 = vector.load %arg3[%c0_5, %c0_6, %c0_7] : memref<1x8x16xf32, #tpu.memory_space<vmem>>, vector<1x8x16xf32>
    %5 = vector.shape_cast %4 : vector<1x8x16xf32> to vector<8x16xf32>
    %6 = arith.truncf %1 : vector<8x32xf32> to vector<8x32xbf16>
    %7 = arith.truncf %3 : vector<16x32xf32> to vector<16x32xbf16>
    %cst = arith.constant 0.000000e+00 : f32
    %8 = vector.broadcast %cst : f32 to vector<8x32xf32>
    %c0_8 = arith.constant 0 : index
    %c0_9 = arith.constant 0 : index
    %c0_10 = arith.constant 0 : index
    %9 = vector.load %arg4[%c0_8, %c0_9, %c0_10] : memref<4x32x8xbf16, #tpu.memory_space<vmem>>, vector<1x32x8xbf16>
    %10 = vector.shape_cast %9 : vector<1x32x8xbf16> to vector<32x8xbf16>
    %cst_11 = arith.constant dense<0.000000e+00> : vector<8x8xf32>
    %11 = tpu.matmul %6, %10, %cst_11 {dimension_numbers = #tpu.dot_dimension_numbers<[1], [0], [0], [1], [0, 0, 1, 1], [], []>} : vector<8x32xbf16>, vector<32x8xbf16>, vector<8x8xf32> -> vector<8x8xf32>
    %c0_12 = arith.constant 0 : index
    %c0_13 = arith.constant 0 : index
    %c0_14 = arith.constant 0 : index
    %12 = vector.load %arg7[%c0_12, %c0_13, %c0_14] : memref<4x1x8xf32, #tpu.memory_space<vmem>>, vector<1x1x8xf32>
    %13 = vector.shape_cast %12 : vector<1x1x8xf32> to vector<1x8xf32>
    %14 = vector.broadcast %13 : vector<1x8xf32> to vector<8x8xf32>
    %15 = arith.addf %11, %14 : vector<8x8xf32>
    %c0_15 = arith.constant 0 : index
    %c0_16 = arith.constant 0 : index
    %c0_17 = arith.constant 0 : index
    %16 = vector.load %arg5[%c0_15, %c0_16, %c0_17] : memref<4x32x8xbf16, #tpu.memory_space<vmem>>, vector<1x32x8xbf16>
    %17 = vector.shape_cast %16 : vector<1x32x8xbf16> to vector<32x8xbf16>
    %cst_18 = arith.constant dense<0.000000e+00> : vector<16x8xf32>
    %18 = tpu.matmul %7, %17, %cst_18 {dimension_numbers = #tpu.dot_dimension_numbers<[1], [0], [0], [1], [0, 0, 1, 1], [], []>} : vector<16x32xbf16>, vector<32x8xbf16>, vector<16x8xf32> -> vector<16x8xf32>
    %c0_19 = arith.constant 0 : index
    %c0_20 = arith.constant 0 : index
    %c0_21 = arith.constant 0 : index
    %19 = vector.load %arg8[%c0_19, %c0_20, %c0_21] : memref<4x1x8xf32, #tpu.memory_space<vmem>>, vector<1x1x8xf32>
    %20 = vector.shape_cast %19 : vector<1x1x8xf32> to vector<1x8xf32>
    %21 = vector.broadcast %20 : vector<1x8xf32> to vector<16x8xf32>
    %22 = arith.addf %18, %21 : vector<16x8xf32>
    %c0_22 = arith.constant 0 : index
    %c0_23 = arith.constant 0 : index
    %c0_24 = arith.constant 0 : index
    %23 = vector.load %arg6[%c0_22, %c0_23, %c0_24] : memref<4x32x8xbf16, #tpu.memory_space<vmem>>, vector<1x32x8xbf16>
    %24 = vector.shape_cast %23 : vector<1x32x8xbf16> to vector<32x8xbf16>
    %cst_25 = arith.constant dense<0.000000e+00> : vector<16x8xf32>
    %25 = tpu.matmul %7, %24, %cst_25 {dimension_numbers = #tpu.dot_dimension_numbers<[1], [0], [0], [1], [0, 0, 1, 1], [], []>} : vector<16x32xbf16>, vector<32x8xbf16>, vector<16x8xf32> -> vector<16x8xf32>
    %c0_26 = arith.constant 0 : index
    %c0_27 = arith.constant 0 : index
    %c0_28 = arith.constant 0 : index
    %26 = vector.load %arg9[%c0_26, %c0_27, %c0_28] : memref<4x1x8xf32, #tpu.memory_space<vmem>>, vector<1x1x8xf32>
    %27 = vector.shape_cast %26 : vector<1x1x8xf32> to vector<1x8xf32>
    %28 = vector.broadcast %27 : vector<1x8xf32> to vector<16x8xf32>
    %29 = arith.addf %25, %28 : vector<16x8xf32>
    %cst_29 = arith.constant 0.353553385 : f32
    %30 = vector.broadcast %cst_29 : f32 to vector<8x8xf32>
    %31 = arith.mulf %15, %30 : vector<8x8xf32>
    %32 = arith.truncf %31 : vector<8x8xf32> to vector<8x8xbf16>
    %33 = arith.truncf %22 : vector<16x8xf32> to vector<16x8xbf16>
    %cst_30 = arith.constant dense<0.000000e+00> : vector<8x16xf32>
    %34 = tpu.matmul %32, %33, %cst_30 {dimension_numbers = #tpu.dot_dimension_numbers<[1], [1], [0], [0], [0, 0, 1, 0], [], []>} : vector<8x8xbf16>, vector<16x8xbf16>, vector<8x16xf32> -> vector<8x16xf32>
    %35 = arith.addf %34, %5 : vector<8x16xf32>
    %cst_31 = arith.constant dense<0xFF800000> : vector<8xf32>
    %36 = vector.multi_reduction <maximumf>, %35, %cst_31 [1] : vector<8x16xf32> to vector<8xf32>
    %37 = vector.shape_cast %36 : vector<8xf32> to vector<8x1xf32>
    %38 = vector.broadcast %37 : vector<8x1xf32> to vector<8x16xf32>
    %39 = arith.subf %35, %38 : vector<8x16xf32>
    %40 = math.exp %39 : vector<8x16xf32>
    %cst_32 = arith.constant dense<0.000000e+00> : vector<8xf32>
    %41 = vector.multi_reduction <add>, %40, %cst_32 [1] : vector<8x16xf32> to vector<8xf32>
    %42 = vector.shape_cast %41 : vector<8xf32> to vector<8x1xf32>
    %43 = tpu.reciprocal %42 {approx = true} : vector<8x1xf32> -> vector<8x1xf32>
    %44 = vector.broadcast %43 : vector<8x1xf32> to vector<8x16xf32>
    %45 = arith.mulf %40, %44 : vector<8x16xf32>
    %46 = arith.truncf %45 : vector<8x16xf32> to vector<8x16xbf16>
    %47 = arith.truncf %29 : vector<16x8xf32> to vector<16x8xbf16>
    %cst_33 = arith.constant dense<0.000000e+00> : vector<8x8xf32>
    %48 = tpu.matmul %46, %47, %cst_33 {dimension_numbers = #tpu.dot_dimension_numbers<[1], [0], [0], [1], [0, 0, 1, 1], [], []>} : vector<8x16xbf16>, vector<16x8xbf16>, vector<8x8xf32> -> vector<8x8xf32>
    %49 = arith.truncf %48 : vector<8x8xf32> to vector<8x8xbf16>
    %c0_34 = arith.constant 0 : index
    %c0_35 = arith.constant 0 : index
    %c0_36 = arith.constant 0 : index
    %50 = vector.load %arg10[%c0_34, %c0_35, %c0_36] : memref<4x8x32xbf16, #tpu.memory_space<vmem>>, vector<1x8x32xbf16>
    %51 = vector.shape_cast %50 : vector<1x8x32xbf16> to vector<8x32xbf16>
    %cst_37 = arith.constant dense<0.000000e+00> : vector<8x32xf32>
    %52 = tpu.matmul %49, %51, %cst_37 {dimension_numbers = #tpu.dot_dimension_numbers<[1], [0], [0], [1], [0, 0, 1, 1], [], []>} : vector<8x8xbf16>, vector<8x32xbf16>, vector<8x32xf32> -> vector<8x32xf32>
    %53 = arith.addf %8, %52 : vector<8x32xf32>
    %c1 = arith.constant 1 : index
    %c0_38 = arith.constant 0 : index
    %c0_39 = arith.constant 0 : index
    %54 = vector.load %arg4[%c1, %c0_38, %c0_39] : memref<4x32x8xbf16, #tpu.memory_space<vmem>>, vector<1x32x8xbf16>
    %55 = vector.shape_cast %54 : vector<1x32x8xbf16> to vector<32x8xbf16>
    %cst_40 = arith.constant dense<0.000000e+00> : vector<8x8xf32>
    %56 = tpu.matmul %6, %55, %cst_40 {dimension_numbers = #tpu.dot_dimension_numbers<[1], [0], [0], [1], [0, 0, 1, 1], [], []>} : vector<8x32xbf16>, vector<32x8xbf16>, vector<8x8xf32> -> vector<8x8xf32>
    %c1_41 = arith.constant 1 : index
    %c0_42 = arith.constant 0 : index
    %c0_43 = arith.constant 0 : index
    %57 = vector.load %arg7[%c1_41, %c0_42, %c0_43] : memref<4x1x8xf32, #tpu.memory_space<vmem>>, vector<1x1x8xf32>
    %58 = vector.shape_cast %57 : vector<1x1x8xf32> to vector<1x8xf32>
    %59 = vector.broadcast %58 : vector<1x8xf32> to vector<8x8xf32>
    %60 = arith.addf %56, %59 : vector<8x8xf32>
    %c1_44 = arith.constant 1 : index
    %c0_45 = arith.constant 0 : index
    %c0_46 = arith.constant 0 : index
    %61 = vector.load %arg5[%c1_44, %c0_45, %c0_46] : memref<4x32x8xbf16, #tpu.memory_space<vmem>>, vector<1x32x8xbf16>
    %62 = vector.shape_cast %61 : vector<1x32x8xbf16> to vector<32x8xbf16>
    %cst_47 = arith.constant dense<0.000000e+00> : vector<16x8xf32>
    %63 = tpu.matmul %7, %62, %cst_47 {dimension_numbers = #tpu.dot_dimension_numbers<[1], [0], [0], [1], [0, 0, 1, 1], [], []>} : vector<16x32xbf16>, vector<32x8xbf16>, vector<16x8xf32> -> vector<16x8xf32>
    %c1_48 = arith.constant 1 : index
    %c0_49 = arith.constant 0 : index
    %c0_50 = arith.constant 0 : index
    %64 = vector.load %arg8[%c1_48, %c0_49, %c0_50] : memref<4x1x8xf32, #tpu.memory_space<vmem>>, vector<1x1x8xf32>
    %65 = vector.shape_cast %64 : vector<1x1x8xf32> to vector<1x8xf32>
    %66 = vector.broadcast %65 : vector<1x8xf32> to vector<16x8xf32>
    %67 = arith.addf %63, %66 : vector<16x8xf32>
    %c1_51 = arith.constant 1 : index
    %c0_52 = arith.constant 0 : index
    %c0_53 = arith.constant 0 : index
    %68 = vector.load %arg6[%c1_51, %c0_52, %c0_53] : memref<4x32x8xbf16, #tpu.memory_space<vmem>>, vector<1x32x8xbf16>
    %69 = vector.shape_cast %68 : vector<1x32x8xbf16> to vector<32x8xbf16>
    %cst_54 = arith.constant dense<0.000000e+00> : vector<16x8xf32>
    %70 = tpu.matmul %7, %69, %cst_54 {dimension_numbers = #tpu.dot_dimension_numbers<[1], [0], [0], [1], [0, 0, 1, 1], [], []>} : vector<16x32xbf16>, vector<32x8xbf16>, vector<16x8xf32> -> vector<16x8xf32>
    %c1_55 = arith.constant 1 : index
    %c0_56 = arith.constant 0 : index
    %c0_57 = arith.constant 0 : index
    %71 = vector.load %arg9[%c1_55, %c0_56, %c0_57] : memref<4x1x8xf32, #tpu.memory_space<vmem>>, vector<1x1x8xf32>
    %72 = vector.shape_cast %71 : vector<1x1x8xf32> to vector<1x8xf32>
    %73 = vector.broadcast %72 : vector<1x8xf32> to vector<16x8xf32>
    %74 = arith.addf %70, %73 : vector<16x8xf32>
    %cst_58 = arith.constant 0.353553385 : f32
    %75 = vector.broadcast %cst_58 : f32 to vector<8x8xf32>
    %76 = arith.mulf %60, %75 : vector<8x8xf32>
    %77 = arith.truncf %76 : vector<8x8xf32> to vector<8x8xbf16>
    %78 = arith.truncf %67 : vector<16x8xf32> to vector<16x8xbf16>
    %cst_59 = arith.constant dense<0.000000e+00> : vector<8x16xf32>
    %79 = tpu.matmul %77, %78, %cst_59 {dimension_numbers = #tpu.dot_dimension_numbers<[1], [1], [0], [0], [0, 0, 1, 0], [], []>} : vector<8x8xbf16>, vector<16x8xbf16>, vector<8x16xf32> -> vector<8x16xf32>
    %80 = arith.addf %79, %5 : vector<8x16xf32>
    %cst_60 = arith.constant dense<0xFF800000> : vector<8xf32>
    %81 = vector.multi_reduction <maximumf>, %80, %cst_60 [1] : vector<8x16xf32> to vector<8xf32>
    %82 = vector.shape_cast %81 : vector<8xf32> to vector<8x1xf32>
    %83 = vector.broadcast %82 : vector<8x1xf32> to vector<8x16xf32>
    %84 = arith.subf %80, %83 : vector<8x16xf32>
    %85 = math.exp %84 : vector<8x16xf32>
    %cst_61 = arith.constant dense<0.000000e+00> : vector<8xf32>
    %86 = vector.multi_reduction <add>, %85, %cst_61 [1] : vector<8x16xf32> to vector<8xf32>
    %87 = vector.shape_cast %86 : vector<8xf32> to vector<8x1xf32>
    %88 = tpu.reciprocal %87 {approx = true} : vector<8x1xf32> -> vector<8x1xf32>
    %89 = vector.broadcast %88 : vector<8x1xf32> to vector<8x16xf32>
    %90 = arith.mulf %85, %89 : vector<8x16xf32>
    %91 = arith.truncf %90 : vector<8x16xf32> to vector<8x16xbf16>
    %92 = arith.truncf %74 : vector<16x8xf32> to vector<16x8xbf16>
    %cst_62 = arith.constant dense<0.000000e+00> : vector<8x8xf32>
    %93 = tpu.matmul %91, %92, %cst_62 {dimension_numbers = #tpu.dot_dimension_numbers<[1], [0], [0], [1], [0, 0, 1, 1], [], []>} : vector<8x16xbf16>, vector<16x8xbf16>, vector<8x8xf32> -> vector<8x8xf32>
    %94 = arith.truncf %93 : vector<8x8xf32> to vector<8x8xbf16>
    %c1_63 = arith.constant 1 : index
    %c0_64 = arith.constant 0 : index
    %c0_65 = arith.constant 0 : index
    %95 = vector.load %arg10[%c1_63, %c0_64, %c0_65] : memref<4x8x32xbf16, #tpu.memory_space<vmem>>, vector<1x8x32xbf16>
    %96 = vector.shape_cast %95 : vector<1x8x32xbf16> to vector<8x32xbf16>
    %cst_66 = arith.constant dense<0.000000e+00> : vector<8x32xf32>
    %97 = tpu.matmul %94, %96, %cst_66 {dimension_numbers = #tpu.dot_dimension_numbers<[1], [0], [0], [1], [0, 0, 1, 1], [], []>} : vector<8x8xbf16>, vector<8x32xbf16>, vector<8x32xf32> -> vector<8x32xf32>
    %98 = arith.addf %53, %97 : vector<8x32xf32>
    %c2 = arith.constant 2 : index
    %c0_67 = arith.constant 0 : index
    %c0_68 = arith.constant 0 : index
    %99 = vector.load %arg4[%c2, %c0_67, %c0_68] : memref<4x32x8xbf16, #tpu.memory_space<vmem>>, vector<1x32x8xbf16>
    %100 = vector.shape_cast %99 : vector<1x32x8xbf16> to vector<32x8xbf16>
    %cst_69 = arith.constant dense<0.000000e+00> : vector<8x8xf32>
    %101 = tpu.matmul %6, %100, %cst_69 {dimension_numbers = #tpu.dot_dimension_numbers<[1], [0], [0], [1], [0, 0, 1, 1], [], []>} : vector<8x32xbf16>, vector<32x8xbf16>, vector<8x8xf32> -> vector<8x8xf32>
    %c2_70 = arith.constant 2 : index
    %c0_71 = arith.constant 0 : index
    %c0_72 = arith.constant 0 : index
    %102 = vector.load %arg7[%c2_70, %c0_71, %c0_72] : memref<4x1x8xf32, #tpu.memory_space<vmem>>, vector<1x1x8xf32>
    %103 = vector.shape_cast %102 : vector<1x1x8xf32> to vector<1x8xf32>
    %104 = vector.broadcast %103 : vector<1x8xf32> to vector<8x8xf32>
    %105 = arith.addf %101, %104 : vector<8x8xf32>
    %c2_73 = arith.constant 2 : index
    %c0_74 = arith.constant 0 : index
    %c0_75 = arith.constant 0 : index
    %106 = vector.load %arg5[%c2_73, %c0_74, %c0_75] : memref<4x32x8xbf16, #tpu.memory_space<vmem>>, vector<1x32x8xbf16>
    %107 = vector.shape_cast %106 : vector<1x32x8xbf16> to vector<32x8xbf16>
    %cst_76 = arith.constant dense<0.000000e+00> : vector<16x8xf32>
    %108 = tpu.matmul %7, %107, %cst_76 {dimension_numbers = #tpu.dot_dimension_numbers<[1], [0], [0], [1], [0, 0, 1, 1], [], []>} : vector<16x32xbf16>, vector<32x8xbf16>, vector<16x8xf32> -> vector<16x8xf32>
    %c2_77 = arith.constant 2 : index
    %c0_78 = arith.constant 0 : index
    %c0_79 = arith.constant 0 : index
    %109 = vector.load %arg8[%c2_77, %c0_78, %c0_79] : memref<4x1x8xf32, #tpu.memory_space<vmem>>, vector<1x1x8xf32>
    %110 = vector.shape_cast %109 : vector<1x1x8xf32> to vector<1x8xf32>
    %111 = vector.broadcast %110 : vector<1x8xf32> to vector<16x8xf32>
    %112 = arith.addf %108, %111 : vector<16x8xf32>
    %c2_80 = arith.constant 2 : index
    %c0_81 = arith.constant 0 : index
    %c0_82 = arith.constant 0 : index
    %113 = vector.load %arg6[%c2_80, %c0_81, %c0_82] : memref<4x32x8xbf16, #tpu.memory_space<vmem>>, vector<1x32x8xbf16>
    %114 = vector.shape_cast %113 : vector<1x32x8xbf16> to vector<32x8xbf16>
    %cst_83 = arith.constant dense<0.000000e+00> : vector<16x8xf32>
    %115 = tpu.matmul %7, %114, %cst_83 {dimension_numbers = #tpu.dot_dimension_numbers<[1], [0], [0], [1], [0, 0, 1, 1], [], []>} : vector<16x32xbf16>, vector<32x8xbf16>, vector<16x8xf32> -> vector<16x8xf32>
    %c2_84 = arith.constant 2 : index
    %c0_85 = arith.constant 0 : index
    %c0_86 = arith.constant 0 : index
    %116 = vector.load %arg9[%c2_84, %c0_85, %c0_86] : memref<4x1x8xf32, #tpu.memory_space<vmem>>, vector<1x1x8xf32>
    %117 = vector.shape_cast %116 : vector<1x1x8xf32> to vector<1x8xf32>
    %118 = vector.broadcast %117 : vector<1x8xf32> to vector<16x8xf32>
    %119 = arith.addf %115, %118 : vector<16x8xf32>
    %cst_87 = arith.constant 0.353553385 : f32
    %120 = vector.broadcast %cst_87 : f32 to vector<8x8xf32>
    %121 = arith.mulf %105, %120 : vector<8x8xf32>
    %122 = arith.truncf %121 : vector<8x8xf32> to vector<8x8xbf16>
    %123 = arith.truncf %112 : vector<16x8xf32> to vector<16x8xbf16>
    %cst_88 = arith.constant dense<0.000000e+00> : vector<8x16xf32>
    %124 = tpu.matmul %122, %123, %cst_88 {dimension_numbers = #tpu.dot_dimension_numbers<[1], [1], [0], [0], [0, 0, 1, 0], [], []>} : vector<8x8xbf16>, vector<16x8xbf16>, vector<8x16xf32> -> vector<8x16xf32>
    %125 = arith.addf %124, %5 : vector<8x16xf32>
    %cst_89 = arith.constant dense<0xFF800000> : vector<8xf32>
    %126 = vector.multi_reduction <maximumf>, %125, %cst_89 [1] : vector<8x16xf32> to vector<8xf32>
    %127 = vector.shape_cast %126 : vector<8xf32> to vector<8x1xf32>
    %128 = vector.broadcast %127 : vector<8x1xf32> to vector<8x16xf32>
    %129 = arith.subf %125, %128 : vector<8x16xf32>
    %130 = math.exp %129 : vector<8x16xf32>
    %cst_90 = arith.constant dense<0.000000e+00> : vector<8xf32>
    %131 = vector.multi_reduction <add>, %130, %cst_90 [1] : vector<8x16xf32> to vector<8xf32>
    %132 = vector.shape_cast %131 : vector<8xf32> to vector<8x1xf32>
    %133 = tpu.reciprocal %132 {approx = true} : vector<8x1xf32> -> vector<8x1xf32>
    %134 = vector.broadcast %133 : vector<8x1xf32> to vector<8x16xf32>
    %135 = arith.mulf %130, %134 : vector<8x16xf32>
    %136 = arith.truncf %135 : vector<8x16xf32> to vector<8x16xbf16>
    %137 = arith.truncf %119 : vector<16x8xf32> to vector<16x8xbf16>
    %cst_91 = arith.constant dense<0.000000e+00> : vector<8x8xf32>
    %138 = tpu.matmul %136, %137, %cst_91 {dimension_numbers = #tpu.dot_dimension_numbers<[1], [0], [0], [1], [0, 0, 1, 1], [], []>} : vector<8x16xbf16>, vector<16x8xbf16>, vector<8x8xf32> -> vector<8x8xf32>
    %139 = arith.truncf %138 : vector<8x8xf32> to vector<8x8xbf16>
    %c2_92 = arith.constant 2 : index
    %c0_93 = arith.constant 0 : index
    %c0_94 = arith.constant 0 : index
    %140 = vector.load %arg10[%c2_92, %c0_93, %c0_94] : memref<4x8x32xbf16, #tpu.memory_space<vmem>>, vector<1x8x32xbf16>
    %141 = vector.shape_cast %140 : vector<1x8x32xbf16> to vector<8x32xbf16>
    %cst_95 = arith.constant dense<0.000000e+00> : vector<8x32xf32>
    %142 = tpu.matmul %139, %141, %cst_95 {dimension_numbers = #tpu.dot_dimension_numbers<[1], [0], [0], [1], [0, 0, 1, 1], [], []>} : vector<8x8xbf16>, vector<8x32xbf16>, vector<8x32xf32> -> vector<8x32xf32>
    %143 = arith.addf %98, %142 : vector<8x32xf32>
    %c3 = arith.constant 3 : index
    %c0_96 = arith.constant 0 : index
    %c0_97 = arith.constant 0 : index
    %144 = vector.load %arg4[%c3, %c0_96, %c0_97] : memref<4x32x8xbf16, #tpu.memory_space<vmem>>, vector<1x32x8xbf16>
    %145 = vector.shape_cast %144 : vector<1x32x8xbf16> to vector<32x8xbf16>
    %cst_98 = arith.constant dense<0.000000e+00> : vector<8x8xf32>
    %146 = tpu.matmul %6, %145, %cst_98 {dimension_numbers = #tpu.dot_dimension_numbers<[1], [0], [0], [1], [0, 0, 1, 1], [], []>} : vector<8x32xbf16>, vector<32x8xbf16>, vector<8x8xf32> -> vector<8x8xf32>
    %c3_99 = arith.constant 3 : index
    %c0_100 = arith.constant 0 : index
    %c0_101 = arith.constant 0 : index
    %147 = vector.load %arg7[%c3_99, %c0_100, %c0_101] : memref<4x1x8xf32, #tpu.memory_space<vmem>>, vector<1x1x8xf32>
    %148 = vector.shape_cast %147 : vector<1x1x8xf32> to vector<1x8xf32>
    %149 = vector.broadcast %148 : vector<1x8xf32> to vector<8x8xf32>
    %150 = arith.addf %146, %149 : vector<8x8xf32>
    %c3_102 = arith.constant 3 : index
    %c0_103 = arith.constant 0 : index
    %c0_104 = arith.constant 0 : index
    %151 = vector.load %arg5[%c3_102, %c0_103, %c0_104] : memref<4x32x8xbf16, #tpu.memory_space<vmem>>, vector<1x32x8xbf16>
    %152 = vector.shape_cast %151 : vector<1x32x8xbf16> to vector<32x8xbf16>
    %cst_105 = arith.constant dense<0.000000e+00> : vector<16x8xf32>
    %153 = tpu.matmul %7, %152, %cst_105 {dimension_numbers = #tpu.dot_dimension_numbers<[1], [0], [0], [1], [0, 0, 1, 1], [], []>} : vector<16x32xbf16>, vector<32x8xbf16>, vector<16x8xf32> -> vector<16x8xf32>
    %c3_106 = arith.constant 3 : index
    %c0_107 = arith.constant 0 : index
    %c0_108 = arith.constant 0 : index
    %154 = vector.load %arg8[%c3_106, %c0_107, %c0_108] : memref<4x1x8xf32, #tpu.memory_space<vmem>>, vector<1x1x8xf32>
    %155 = vector.shape_cast %154 : vector<1x1x8xf32> to vector<1x8xf32>
    %156 = vector.broadcast %155 : vector<1x8xf32> to vector<16x8xf32>
    %157 = arith.addf %153, %156 : vector<16x8xf32>
    %c3_109 = arith.constant 3 : index
    %c0_110 = arith.constant 0 : index
    %c0_111 = arith.constant 0 : index
    %158 = vector.load %arg6[%c3_109, %c0_110, %c0_111] : memref<4x32x8xbf16, #tpu.memory_space<vmem>>, vector<1x32x8xbf16>
    %159 = vector.shape_cast %158 : vector<1x32x8xbf16> to vector<32x8xbf16>
    %cst_112 = arith.constant dense<0.000000e+00> : vector<16x8xf32>
    %160 = tpu.matmul %7, %159, %cst_112 {dimension_numbers = #tpu.dot_dimension_numbers<[1], [0], [0], [1], [0, 0, 1, 1], [], []>} : vector<16x32xbf16>, vector<32x8xbf16>, vector<16x8xf32> -> vector<16x8xf32>
    %c3_113 = arith.constant 3 : index
    %c0_114 = arith.constant 0 : index
    %c0_115 = arith.constant 0 : index
    %161 = vector.load %arg9[%c3_113, %c0_114, %c0_115] : memref<4x1x8xf32, #tpu.memory_space<vmem>>, vector<1x1x8xf32>
    %162 = vector.shape_cast %161 : vector<1x1x8xf32> to vector<1x8xf32>
    %163 = vector.broadcast %162 : vector<1x8xf32> to vector<16x8xf32>
    %164 = arith.addf %160, %163 : vector<16x8xf32>
    %cst_116 = arith.constant 0.353553385 : f32
    %165 = vector.broadcast %cst_116 : f32 to vector<8x8xf32>
    %166 = arith.mulf %150, %165 : vector<8x8xf32>
    %167 = arith.truncf %166 : vector<8x8xf32> to vector<8x8xbf16>
    %168 = arith.truncf %157 : vector<16x8xf32> to vector<16x8xbf16>
    %cst_117 = arith.constant dense<0.000000e+00> : vector<8x16xf32>
    %169 = tpu.matmul %167, %168, %cst_117 {dimension_numbers = #tpu.dot_dimension_numbers<[1], [1], [0], [0], [0, 0, 1, 0], [], []>} : vector<8x8xbf16>, vector<16x8xbf16>, vector<8x16xf32> -> vector<8x16xf32>
    %170 = arith.addf %169, %5 : vector<8x16xf32>
    %cst_118 = arith.constant dense<0xFF800000> : vector<8xf32>
    %171 = vector.multi_reduction <maximumf>, %170, %cst_118 [1] : vector<8x16xf32> to vector<8xf32>
    %172 = vector.shape_cast %171 : vector<8xf32> to vector<8x1xf32>
    %173 = vector.broadcast %172 : vector<8x1xf32> to vector<8x16xf32>
    %174 = arith.subf %170, %173 : vector<8x16xf32>
    %175 = math.exp %174 : vector<8x16xf32>
    %cst_119 = arith.constant dense<0.000000e+00> : vector<8xf32>
    %176 = vector.multi_reduction <add>, %175, %cst_119 [1] : vector<8x16xf32> to vector<8xf32>
    %177 = vector.shape_cast %176 : vector<8xf32> to vector<8x1xf32>
    %178 = tpu.reciprocal %177 {approx = true} : vector<8x1xf32> -> vector<8x1xf32>
    %179 = vector.broadcast %178 : vector<8x1xf32> to vector<8x16xf32>
    %180 = arith.mulf %175, %179 : vector<8x16xf32>
    %181 = arith.truncf %180 : vector<8x16xf32> to vector<8x16xbf16>
    %182 = arith.truncf %164 : vector<16x8xf32> to vector<16x8xbf16>
    %cst_120 = arith.constant dense<0.000000e+00> : vector<8x8xf32>
    %183 = tpu.matmul %181, %182, %cst_120 {dimension_numbers = #tpu.dot_dimension_numbers<[1], [0], [0], [1], [0, 0, 1, 1], [], []>} : vector<8x16xbf16>, vector<16x8xbf16>, vector<8x8xf32> -> vector<8x8xf32>
    %184 = arith.truncf %183 : vector<8x8xf32> to vector<8x8xbf16>
    %c3_121 = arith.constant 3 : index
    %c0_122 = arith.constant 0 : index
    %c0_123 = arith.constant 0 : index
    %185 = vector.load %arg10[%c3_121, %c0_122, %c0_123] : memref<4x8x32xbf16, #tpu.memory_space<vmem>>, vector<1x8x32xbf16>
    %186 = vector.shape_cast %185 : vector<1x8x32xbf16> to vector<8x32xbf16>
    %cst_124 = arith.constant dense<0.000000e+00> : vector<8x32xf32>
    %187 = tpu.matmul %184, %186, %cst_124 {dimension_numbers = #tpu.dot_dimension_numbers<[1], [0], [0], [1], [0, 0, 1, 1], [], []>} : vector<8x8xbf16>, vector<8x32xbf16>, vector<8x32xf32> -> vector<8x32xf32>
    %188 = arith.addf %143, %187 : vector<8x32xf32>
    %189 = arith.addf %1, %188 : vector<8x32xf32>
    %c0_125 = arith.constant 0 : index
    %c0_126 = arith.constant 0 : index
    %190 = vector.load %arg11[%c0_125, %c0_126] : memref<1x32xf32, #tpu.memory_space<vmem>>, vector<1x32xf32>
    %191 = vector.broadcast %190 : vector<1x32xf32> to vector<8x32xf32>
    %192 = arith.addf %189, %191 : vector<8x32xf32>
    %c0_127 = arith.constant 0 : index
    %c0_128 = arith.constant 0 : index
    %193 = vector.load %arg12[%c0_127, %c0_128] : memref<1x32xf32, #tpu.memory_space<vmem>>, vector<1x32xf32>
    %c0_129 = arith.constant 0 : index
    %c0_130 = arith.constant 0 : index
    %194 = vector.load %arg13[%c0_129, %c0_130] : memref<1x32xf32, #tpu.memory_space<vmem>>, vector<1x32xf32>
    %cst_131 = arith.constant dense<0.000000e+00> : vector<8xf32>
    %195 = vector.multi_reduction <add>, %192, %cst_131 [1] : vector<8x32xf32> to vector<8xf32>
    %196 = vector.shape_cast %195 : vector<8xf32> to vector<8x1xf32>
    %cst_132 = arith.constant 3.200000e+01 : f32
    %197 = vector.broadcast %cst_132 : f32 to vector<8x1xf32>
    %198 = arith.divf %196, %197 : vector<8x1xf32>
    %199 = vector.broadcast %198 : vector<8x1xf32> to vector<8x32xf32>
    %200 = arith.subf %192, %199 : vector<8x32xf32>
    %201 = arith.mulf %200, %200 : vector<8x32xf32>
    %cst_133 = arith.constant dense<0.000000e+00> : vector<8xf32>
    %202 = vector.multi_reduction <add>, %201, %cst_133 [1] : vector<8x32xf32> to vector<8xf32>
    %203 = vector.shape_cast %202 : vector<8xf32> to vector<8x1xf32>
    %cst_134 = arith.constant 3.200000e+01 : f32
    %204 = vector.broadcast %cst_134 : f32 to vector<8x1xf32>
    %205 = arith.divf %203, %204 : vector<8x1xf32>
    %206 = vector.broadcast %198 : vector<8x1xf32> to vector<8x32xf32>
    %207 = arith.subf %192, %206 : vector<8x32xf32>
    %cst_135 = arith.constant 9.99999974E-6 : f32
    %208 = vector.broadcast %cst_135 : f32 to vector<8x1xf32>
    %209 = arith.addf %205, %208 : vector<8x1xf32>
    %210 = math.rsqrt %209 : vector<8x1xf32>
    %211 = vector.broadcast %210 : vector<8x1xf32> to vector<8x32xf32>
    %212 = arith.mulf %207, %211 : vector<8x32xf32>
    %213 = vector.broadcast %193 : vector<1x32xf32> to vector<8x32xf32>
    %214 = arith.mulf %212, %213 : vector<8x32xf32>
    %215 = vector.broadcast %194 : vector<1x32xf32> to vector<8x32xf32>
    %216 = arith.addf %214, %215 : vector<8x32xf32>
    %c0_136 = arith.constant 0 : index
    %c0_137 = arith.constant 0 : index
    %c0_138 = arith.constant 0 : index
    %217 = vector.load %arg14[%c0_136, %c0_137, %c0_138] : memref<1x8x32xf32, #tpu.memory_space<vmem>>, vector<1x8x32xf32>
    %218 = vector.shape_cast %217 : vector<1x8x32xf32> to vector<8x32xf32>
    %219 = vector.shape_cast %216 : vector<8x32xf32> to vector<1x8x32xf32>
    tpu.vector_store %arg14[%c0_136, %c0_137, %c0_138], %219 {strides = array<i32>} : memref<1x8x32xf32, #tpu.memory_space<vmem>>, vector<1x8x32xf32>,
    return
  }
  func.func @transform_0(%arg0: i32) -> (i32, i32, i32) {
    %c0_i32 = arith.constant 0 : i32
    %c0_i32_0 = arith.constant 0 : i32
    %c0_i32_1 = arith.constant 0 : i32
    return %arg0, %c0_i32, %c0_i32_0 : i32, i32, i32
  }
  func.func @transform_1(%arg0: i32) -> (i32, i32, i32) {
    %c0_i32 = arith.constant 0 : i32
    %c0_i32_0 = arith.constant 0 : i32
    %c0_i32_1 = arith.constant 0 : i32
    return %arg0, %c0_i32, %c0_i32_0 : i32, i32, i32
  }
  func.func @transform_2(%arg0: i32) -> (i32, i32, i32) {
    %c0_i32 = arith.constant 0 : i32
    %c0_i32_0 = arith.constant 0 : i32
    %c0_i32_1 = arith.constant 0 : i32
    return %arg0, %c0_i32, %c0_i32_0 : i32, i32, i32
  }
  func.func @transform_3(%arg0: i32) -> (i32, i32, i32) {
    %c0_i32 = arith.constant 0 : i32
    %c0_i32_0 = arith.constant 0 : i32
    %c0_i32_1 = arith.constant 0 : i32
    %c0_i32_2 = arith.constant 0 : i32
    return %c0_i32, %c0_i32_0, %c0_i32_1 : i32, i32, i32
  }
  func.func @transform_4(%arg0: i32) -> (i32, i32, i32) {
    %c0_i32 = arith.constant 0 : i32
    %c0_i32_0 = arith.constant 0 : i32
    %c0_i32_1 = arith.constant 0 : i32
    %c0_i32_2 = arith.constant 0 : i32
    return %c0_i32, %c0_i32_0, %c0_i32_1 : i32, i32, i32
  }
  func.func @transform_5(%arg0: i32) -> (i32, i32, i32) {
    %c0_i32 = arith.constant 0 : i32
    %c0_i32_0 = arith.constant 0 : i32
    %c0_i32_1 = arith.constant 0 : i32
    %c0_i32_2 = arith.constant 0 : i32
    return %c0_i32, %c0_i32_0, %c0_i32_1 : i32, i32, i32
  }
  func.func @transform_6(%arg0: i32) -> (i32, i32, i32) {
    %c0_i32 = arith.constant 0 : i32
    %c0_i32_0 = arith.constant 0 : i32
    %c0_i32_1 = arith.constant 0 : i32
    %c0_i32_2 = arith.constant 0 : i32
    return %c0_i32, %c0_i32_0, %c0_i32_1 : i32, i32, i32
  }
  func.func @transform_7(%arg0: i32) -> (i32, i32, i32) {
    %c0_i32 = arith.constant 0 : i32
    %c0_i32_0 = arith.constant 0 : i32
    %c0_i32_1 = arith.constant 0 : i32
    %c0_i32_2 = arith.constant 0 : i32
    return %c0_i32, %c0_i32_0, %c0_i32_1 : i32, i32, i32
  }
  func.func @transform_8(%arg0: i32) -> (i32, i32, i32) {
    %c0_i32 = arith.constant 0 : i32
    %c0_i32_0 = arith.constant 0 : i32
    %c0_i32_1 = arith.constant 0 : i32
    %c0_i32_2 = arith.constant 0 : i32
    return %c0_i32, %c0_i32_0, %c0_i32_1 : i32, i32, i32
  }
  func.func @transform_9(%arg0: i32) -> (i32, i32, i32) {
    %c0_i32 = arith.constant 0 : i32
    %c0_i32_0 = arith.constant 0 : i32
    %c0_i32_1 = arith.constant 0 : i32
    %c0_i32_2 = arith.constant 0 : i32
    return %c0_i32, %c0_i32_0, %c0_i32_1 : i32, i32, i32
  }
  func.func @transform_10(%arg0: i32) -> (i32, i32) {
    %c0_i32 = arith.constant 0 : i32
    %c0_i32_0 = arith.constant 0 : i32
    %c0_i32_1 = arith.constant 0 : i32
    return %c0_i32, %c0_i32_0 : i32, i32
  }
  func.func @transform_11(%arg0: i32) -> (i32, i32) {
    %c0_i32 = arith.constant 0 : i32
    %c0_i32_0 = arith.constant 0 : i32
    %c0_i32_1 = arith.constant 0 : i32
    return %c0_i32, %c0_i32_0 : i32, i32
  }
  func.func @transform_12(%arg0: i32) -> (i32, i32) {
    %c0_i32 = arith.constant 0 : i32
    %c0_i32_0 = arith.constant 0 : i32
    %c0_i32_1 = arith.constant 0 : i32
    return %c0_i32, %c0_i32_0 : i32, i32
  }
  func.func @transform_13(%arg0: i32) -> (i32, i32, i32) {
    %c0_i32 = arith.constant 0 : i32
    %c0_i32_0 = arith.constant 0 : i32
    %c0_i32_1 = arith.constant 0 : i32
    return %arg0, %c0_i32, %c0_i32_0 : i32, i32, i32
  }
}

module attributes {stable_mosaic.version = 11 : i64} {
  func.func @_mha_kernel(%arg0: i32, %arg1: memref<1x8x32xf32, #tpu.memory_space<vmem>>, %arg2: memref<1x16x32xf32, #tpu.memory_space<vmem>>, %arg3: memref<1x8x16xf32, #tpu.memory_space<vmem>>, %arg4: memref<4x32x8xbf16, #tpu.memory_space<vmem>>, %arg5: memref<4x32x8xbf16, #tpu.memory_space<vmem>>, %arg6: memref<4x32x8xbf16, #tpu.memory_space<vmem>>, %arg7: memref<4x1x8xf32, #tpu.memory_space<vmem>>, %arg8: memref<4x1x8xf32, #tpu.memory_space<vmem>>, %arg9: memref<4x1x8xf32, #tpu.memory_space<vmem>>, %arg10: memref<4x8x32xbf16, #tpu.memory_space<vmem>>, %arg11: memref<1x32xf32, #tpu.memory_space<vmem>>, %arg12: memref<1x32xf32, #tpu.memory_space<vmem>>, %arg13: memref<1x32xf32, #tpu.memory_space<vmem>>, %arg14: memref<1x8x32xf32, #tpu.memory_space<vmem>>) attributes {dimension_semantics = [#tpu.dimension_semantics<parallel>], iteration_bounds = array<i64: 2>, scalar_prefetch = 0 : i64, scratch_operands = 0 : i64, tpu.core_type = #tpu.core_type<tc>, window_params = [{transform_indices = @transform_0, window_bounds = array<i64: 1, 8, 32>}, {transform_indices = @transform_1, window_bounds = array<i64: 1, 16, 32>}, {transform_indices = @transform_2, window_bounds = array<i64: 1, 8, 16>}, {pipeline_mode = #tpu.pipeline_mode<synchronous>, transform_indices = @transform_3, window_bounds = array<i64: 4, 32, 8>}, {pipeline_mode = #tpu.pipeline_mode<synchronous>, transform_indices = @transform_4, window_bounds = array<i64: 4, 32, 8>}, {pipeline_mode = #tpu.pipeline_mode<synchronous>, transform_indices = @transform_5, window_bounds = array<i64: 4, 32, 8>}, {pipeline_mode = #tpu.pipeline_mode<synchronous>, transform_indices = @transform_6, window_bounds = array<i64: 4, 1, 8>}, {pipeline_mode = #tpu.pipeline_mode<synchronous>, transform_indices = @transform_7, window_bounds = array<i64: 4, 1, 8>}, {pipeline_mode = #tpu.pipeline_mode<synchronous>, transform_indices = @transform_8, window_bounds = array<i64: 4, 1, 8>}, {pipeline_mode = #tpu.pipeline_mode<synchronous>, transform_indices = @transform_9, window_bounds = array<i64: 4, 8, 32>}, {pipeline_mode = #tpu.pipeline_mode<synchronous>, transform_indices = @transform_10, window_bounds = array<i64: 1, 32>}, {pipeline_mode = #tpu.pipeline_mode<synchronous>, transform_indices = @transform_11, window_bounds = array<i64: 1, 32>}, {pipeline_mode = #tpu.pipeline_mode<synchronous>, transform_indices = @transform_12, window_bounds = array<i64: 1, 32>}, {transform_indices = @transform_13, window_bounds = array<i64: 1, 8, 32>}]} {
    %c0 = arith.constant 0 : index
    %c0_0 = arith.constant 0 : index
    %c0_1 = arith.constant 0 : index
    %0 = vector.load %arg1[%c0, %c0_0, %c0_1] : memref<1x8x32xf32, #tpu.memory_space<vmem>>, vector<1x8x32xf32>
    %1 = vector.shape_cast %0 : vector<1x8x32xf32> to vector<8x32xf32>
    %c0_2 = arith.constant 0 : index
    %c0_3 = arith.constant 0 : index
    %c0_4 = arith.constant 0 : index
    %2 = vector.load %arg2[%c0_2, %c0_3, %c0_4] : memref<1x16x32xf32, #tpu.memory_space<vmem>>, vector<1x16x32xf32>
    %3 = vector.shape_cast %2 : vector<1x16x32xf32> to vector<16x32xf32>
    %c0_5 = arith.constant 0 : index
    %c0_6 = arith.constant 0 : index
    %c0_7 = arith.constant 0 : index
    %4 = vector.load %arg3[%c0_5, %c0_6, %c0_7] : memref<1x8x16xf32, #tpu.memory_space<vmem>>, vector<1x8x16xf32>
    %5 = vector.shape_cast %4 : vector<1x8x16xf32> to vector<8x16xf32>
    %6 = arith.truncf %1 : vector<8x32xf32> to vector<8x32xbf16>
    %7 = arith.truncf %3 : vector<16x32xf32> to vector<16x32xbf16>
    %cst = arith.constant 0.000000e+00 : f32
    %8 = vector.broadcast %cst : f32 to vector<8x32xf32>
    %c0_8 = arith.constant 0 : index
    %c0_9 = arith.constant 0 : index
    %c0_10 = arith.constant 0 : index
    %9 = vector.load %arg4[%c0_8, %c0_9, %c0_10] : memref<4x32x8xbf16, #tpu.memory_space<vmem>>, vector<1x32x8xbf16>
    %10 = vector.shape_cast %9 : vector<1x32x8xbf16> to vector<32x8xbf16>
    %cst_11 = arith.constant dense<0.000000e+00> : vector<8x8xf32>
    %11 = tpu.matmul %6, %10, %cst_11 {dimension_numbers = #tpu.dot_dimension_numbers<[1], [0], [0], [1], [0, 0, 1, 1], [], []>} : vector<8x32xbf16>, vector<32x8xbf16>, vector<8x8xf32> -> vector<8x8xf32>
    %c0_12 = arith.constant 0 : index
    %c0_13 = arith.constant 0 : index
    %c0_14 = arith.constant 0 : index
    %12 = vector.load %arg7[%c0_12, %c0_13, %c0_14] : memref<4x1x8xf32, #tpu.memory_space<vmem>>, vector<1x1x8xf32>
    %13 = vector.shape_cast %12 : vector<1x1x8xf32> to vector<1x8xf32>
    %14 = vector.broadcast %13 : vector<1x8xf32> to vector<8x8xf32>
    %15 = arith.addf %11, %14 : vector<8x8xf32>
    %c0_15 = arith.constant 0 : index
    %c0_16 = arith.constant 0 : index
    %c0_17 = arith.constant 0 : index
    %16 = vector.load %arg5[%c0_15, %c0_16, %c0_17] : memref<4x32x8xbf16, #tpu.memory_space<vmem>>, vector<1x32x8xbf16>
    %17 = vector.shape_cast %16 : vector<1x32x8xbf16> to vector<32x8xbf16>
    %cst_18 = arith.constant dense<0.000000e+00> : vector<16x8xf32>
    %18 = tpu.matmul %7, %17, %cst_18 {dimension_numbers = #tpu.dot_dimension_numbers<[1], [0], [0], [1], [0, 0, 1, 1], [], []>} : vector<16x32xbf16>, vector<32x8xbf16>, vector<16x8xf32> -> vector<16x8xf32>
    %c0_19 = arith.constant 0 : index
    %c0_20 = arith.constant 0 : index
    %c0_21 = arith.constant 0 : index
    %19 = vector.load %arg8[%c0_19, %c0_20, %c0_21] : memref<4x1x8xf32, #tpu.memory_space<vmem>>, vector<1x1x8xf32>
    %20 = vector.shape_cast %19 : vector<1x1x8xf32> to vector<1x8xf32>
    %21 = vector.broadcast %20 : vector<1x8xf32> to vector<16x8xf32>
    %22 = arith.addf %18, %21 : vector<16x8xf32>
    %c0_22 = arith.constant 0 : index
    %c0_23 = arith.constant 0 : index
    %c0_24 = arith.constant 0 : index
    %23 = vector.load %arg6[%c0_22, %c0_23, %c0_24] : memref<4x32x8xbf16, #tpu.memory_space<vmem>>, vector<1x32x8xbf16>
    %24 = vector.shape_cast %23 : vector<1x32x8xbf16> to vector<32x8xbf16>
    %cst_25 = arith.constant dense<0.000000e+00> : vector<16x8xf32>
    %25 = tpu.matmul %7, %24, %cst_25 {dimension_numbers = #tpu.dot_dimension_numbers<[1], [0], [0], [1], [0, 0, 1, 1], [], []>} : vector<16x32xbf16>, vector<32x8xbf16>, vector<16x8xf32> -> vector<16x8xf32>
    %c0_26 = arith.constant 0 : index
    %c0_27 = arith.constant 0 : index
    %c0_28 = arith.constant 0 : index
    %26 = vector.load %arg9[%c0_26, %c0_27, %c0_28] : memref<4x1x8xf32, #tpu.memory_space<vmem>>, vector<1x1x8xf32>
    %27 = vector.shape_cast %26 : vector<1x1x8xf32> to vector<1x8xf32>
    %28 = vector.broadcast %27 : vector<1x8xf32> to vector<16x8xf32>
    %29 = arith.addf %25, %28 : vector<16x8xf32>
    %cst_29 = arith.constant 0.353553385 : f32
    %30 = vector.broadcast %cst_29 : f32 to vector<8x8xf32>
    %31 = arith.mulf %15, %30 : vector<8x8xf32>
    %32 = arith.truncf %31 : vector<8x8xf32> to vector<8x8xbf16>
    %33 = arith.truncf %22 : vector<16x8xf32> to vector<16x8xbf16>
    %cst_30 = arith.constant dense<0.000000e+00> : vector<8x16xf32>
    %34 = tpu.matmul %32, %33, %cst_30 {dimension_numbers = #tpu.dot_dimension_numbers<[1], [1], [0], [0], [0, 0, 1, 0], [], []>} : vector<8x8xbf16>, vector<16x8xbf16>, vector<8x16xf32> -> vector<8x16xf32>
    %35 = arith.addf %34, %5 : vector<8x16xf32>
    %cst_31 = arith.constant dense<0xFF800000> : vector<8xf32>
    %36 = vector.multi_reduction <maximumf>, %35, %cst_31 [1] : vector<8x16xf32> to vector<8xf32>
    %37 = vector.shape_cast %36 : vector<8xf32> to vector<8x1xf32>
    %38 = vector.broadcast %37 : vector<8x1xf32> to vector<8x16xf32>
    %39 = arith.subf %35, %38 : vector<8x16xf32>
    %40 = math.exp %39 : vector<8x16xf32>
    %cst_32 = arith.constant dense<0.000000e+00> : vector<8xf32>
    %41 = vector.multi_reduction <add>, %40, %cst_32 [1] : vector<8x16xf32> to vector<8xf32>
    %42 = vector.shape_cast %41 : vector<8xf32> to vector<8x1xf32>
    %43 = tpu.reciprocal %42 {approx = true} : vector<8x1xf32> -> vector<8x1xf32>
    %44 = vector.broadcast %43 : vector<8x1xf32> to vector<8x16xf32>
    %45 = arith.mulf %40, %44 : vector<8x16xf32>
    %46 = arith.truncf %45 : vector<8x16xf32> to vector<8x16xbf16>
    %47 = arith.truncf %29 : vector<16x8xf32> to vector<16x8xbf16>
    %cst_33 = arith.constant dense<0.000000e+00> : vector<8x8xf32>
    %48 = tpu.matmul %46, %47, %cst_33 {dimension_numbers = #tpu.dot_dimension_numbers<[1], [0], [0], [1], [0, 0, 1, 1], [], []>} : vector<8x16xbf16>, vector<16x8xbf16>, vector<8x8xf32> -> vector<8x8xf32>
    %49 = arith.truncf %48 : vector<8x8xf32> to vector<8x8xbf16>
    %c0_34 = arith.constant 0 : index
    %c0_35 = arith.constant 0 : index
    %c0_36 = arith.constant 0 : index
    %50 = vector.load %arg10[%c0_34, %c0_35, %c0_36] : memref<4x8x32xbf16, #tpu.memory_space<vmem>>, vector<1x8x32xbf16>
    %51 = vector.shape_cast %50 : vector<1x8x32xbf16> to vector<8x32xbf16>
    %cst_37 = arith.constant dense<0.000000e+00> : vector<8x32xf32>
    %52 = tpu.matmul %49, %51, %cst_37 {dimension_numbers = #tpu.dot_dimension_numbers<[1], [0], [0], [1], [0, 0, 1, 1], [], []>} : vector<8x8xbf16>, vector<8x32xbf16>, vector<8x32xf32> -> vector<8x32xf32>
    %53 = arith.addf %8, %52 : vector<8x32xf32>
    %c1 = arith.constant 1 : index
    %c0_38 = arith.constant 0 : index
    %c0_39 = arith.constant 0 : index
    %54 = vector.load %arg4[%c1, %c0_38, %c0_39] : memref<4x32x8xbf16, #tpu.memory_space<vmem>>, vector<1x32x8xbf16>
    %55 = vector.shape_cast %54 : vector<1x32x8xbf16> to vector<32x8xbf16>
    %cst_40 = arith.constant dense<0.000000e+00> : vector<8x8xf32>
    %56 = tpu.matmul %6, %55, %cst_40 {dimension_numbers = #tpu.dot_dimension_numbers<[1], [0], [0], [1], [0, 0, 1, 1], [], []>} : vector<8x32xbf16>, vector<32x8xbf16>, vector<8x8xf32> -> vector<8x8xf32>
    %c1_41 = arith.constant 1 : index
    %c0_42 = arith.constant 0 : index
    %c0_43 = arith.constant 0 : index
    %57 = vector.load %arg7[%c1_41, %c0_42, %c0_43] : memref<4x1x8xf32, #tpu.memory_space<vmem>>, vector<1x1x8xf32>
    %58 = vector.shape_cast %57 : vector<1x1x8xf32> to vector<1x8xf32>
    %59 = vector.broadcast %58 : vector<1x8xf32> to vector<8x8xf32>
    %60 = arith.addf %56, %59 : vector<8x8xf32>
    %c1_44 = arith.constant 1 : index
    %c0_45 = arith.constant 0 : index
    %c0_46 = arith.constant 0 : index
    %61 = vector.load %arg5[%c1_44, %c0_45, %c0_46] : memref<4x32x8xbf16, #tpu.memory_space<vmem>>, vector<1x32x8xbf16>
    %62 = vector.shape_cast %61 : vector<1x32x8xbf16> to vector<32x8xbf16>
    %cst_47 = arith.constant dense<0.000000e+00> : vector<16x8xf32>
    %63 = tpu.matmul %7, %62, %cst_47 {dimension_numbers = #tpu.dot_dimension_numbers<[1], [0], [0], [1], [0, 0, 1, 1], [], []>} : vector<16x32xbf16>, vector<32x8xbf16>, vector<16x8xf32> -> vector<16x8xf32>
    %c1_48 = arith.constant 1 : index
    %c0_49 = arith.constant 0 : index
    %c0_50 = arith.constant 0 : index
    %64 = vector.load %arg8[%c1_48, %c0_49, %c0_50] : memref<4x1x8xf32, #tpu.memory_space<vmem>>, vector<1x1x8xf32>
    %65 = vector.shape_cast %64 : vector<1x1x8xf32> to vector<1x8xf32>
    %66 = vector.broadcast %65 : vector<1x8xf32> to vector<16x8xf32>
    %67 = arith.addf %63, %66 : vector<16x8xf32>
    %c1_51 = arith.constant 1 : index
    %c0_52 = arith.constant 0 : index
    %c0_53 = arith.constant 0 : index
    %68 = vector.load %arg6[%c1_51, %c0_52, %c0_53] : memref<4x32x8xbf16, #tpu.memory_space<vmem>>, vector<1x32x8xbf16>
    %69 = vector.shape_cast %68 : vector<1x32x8xbf16> to vector<32x8xbf16>
    %cst_54 = arith.constant dense<0.000000e+00> : vector<16x8xf32>
    %70 = tpu.matmul %7, %69, %cst_54 {dimension_numbers = #tpu.dot_dimension_numbers<[1], [0], [0], [1], [0, 0, 1, 1], [], []>} : vector<16x32xbf16>, vector<32x8xbf16>, vector<16x8xf32> -> vector<16x8xf32>
    %c1_55 = arith.constant 1 : index
    %c0_56 = arith.constant 0 : index
    %c0_57 = arith.constant 0 : index
    %71 = vector.load %arg9[%c1_55, %c0_56, %c0_57] : memref<4x1x8xf32, #tpu.memory_space<vmem>>, vector<1x1x8xf32>
    %72 = vector.shape_cast %71 : vector<1x1x8xf32> to vector<1x8xf32>
    %73 = vector.broadcast %72 : vector<1x8xf32> to vector<16x8xf32>
    %74 = arith.addf %70, %73 : vector<16x8xf32>
    %cst_58 = arith.constant 0.353553385 : f32
    %75 = vector.broadcast %cst_58 : f32 to vector<8x8xf32>
    %76 = arith.mulf %60, %75 : vector<8x8xf32>
    %77 = arith.truncf %76 : vector<8x8xf32> to vector<8x8xbf16>
    %78 = arith.truncf %67 : vector<16x8xf32> to vector<16x8xbf16>
    %cst_59 = arith.constant dense<0.000000e+00> : vector<8x16xf32>
    %79 = tpu.matmul %77, %78, %cst_59 {dimension_numbers = #tpu.dot_dimension_numbers<[1], [1], [0], [0], [0, 0, 1, 0], [], []>} : vector<8x8xbf16>, vector<16x8xbf16>, vector<8x16xf32> -> vector<8x16xf32>
    %80 = arith.addf %79, %5 : vector<8x16xf32>
    %cst_60 = arith.constant dense<0xFF800000> : vector<8xf32>
    %81 = vector.multi_reduction <maximumf>, %80, %cst_60 [1] : vector<8x16xf32> to vector<8xf32>
    %82 = vector.shape_cast %81 : vector<8xf32> to vector<8x1xf32>
    %83 = vector.broadcast %82 : vector<8x1xf32> to vector<8x16xf32>
    %84 = arith.subf %80, %83 : vector<8x16xf32>
    %85 = math.exp %84 : vector<8x16xf32>
    %cst_61 = arith.constant dense<0.000000e+00> : vector<8xf32>
    %86 = vector.multi_reduction <add>, %85, %cst_61 [1] : vector<8x16xf32> to vector<8xf32>
    %87 = vector.shape_cast %86 : vector<8xf32> to vector<8x1xf32>
    %88 = tpu.reciprocal %87 {approx = true} : vector<8x1xf32> -> vector<8x1xf32>
    %89 = vector.broadcast %88 : vector<8x1xf32> to vector<8x16xf32>
    %90 = arith.mulf %85, %89 : vector<8x16xf32>
    %91 = arith.truncf %90 : vector<8x16xf32> to vector<8x16xbf16>
    %92 = arith.truncf %74 : vector<16x8xf32> to vector<16x8xbf16>
    %cst_62 = arith.constant dense<0.000000e+00> : vector<8x8xf32>
    %93 = tpu.matmul %91, %92, %cst_62 {dimension_numbers = #tpu.dot_dimension_numbers<[1], [0], [0], [1], [0, 0, 1, 1], [], []>} : vector<8x16xbf16>, vector<16x8xbf16>, vector<8x8xf32> -> vector<8x8xf32>
    %94 = arith.truncf %93 : vector<8x8xf32> to vector<8x8xbf16>
    %c1_63 = arith.constant 1 : index
    %c0_64 = arith.constant 0 : index
    %c0_65 = arith.constant 0 : index
    %95 = vector.load %arg10[%c1_63, %c0_64, %c0_65] : memref<4x8x32xbf16, #tpu.memory_space<vmem>>, vector<1x8x32xbf16>
    %96 = vector.shape_cast %95 : vector<1x8x32xbf16> to vector<8x32xbf16>
    %cst_66 = arith.constant dense<0.000000e+00> : vector<8x32xf32>
    %97 = tpu.matmul %94, %96, %cst_66 {dimension_numbers = #tpu.dot_dimension_numbers<[1], [0], [0], [1], [0, 0, 1, 1], [], []>} : vector<8x8xbf16>, vector<8x32xbf16>, vector<8x32xf32> -> vector<8x32xf32>
    %98 = arith.addf %53, %97 : vector<8x32xf32>
    %c2 = arith.constant 2 : index
    %c0_67 = arith.constant 0 : index
    %c0_68 = arith.constant 0 : index
    %99 = vector.load %arg4[%c2, %c0_67, %c0_68] : memref<4x32x8xbf16, #tpu.memory_space<vmem>>, vector<1x32x8xbf16>
    %100 = vector.shape_cast %99 : vector<1x32x8xbf16> to vector<32x8xbf16>
    %cst_69 = arith.constant dense<0.000000e+00> : vector<8x8xf32>
    %101 = tpu.matmul %6, %100, %cst_69 {dimension_numbers = #tpu.dot_dimension_numbers<[1], [0], [0], [1], [0, 0, 1, 1], [], []>} : vector<8x32xbf16>, vector<32x8xbf16>, vector<8x8xf32> -> vector<8x8xf32>
    %c2_70 = arith.constant 2 : index
    %c0_71 = arith.constant 0 : index
    %c0_72 = arith.constant 0 : index
    %102 = vector.load %arg7[%c2_70, %c0_71, %c0_72] : memref<4x1x8xf32, #tpu.memory_space<vmem>>, vector<1x1x8xf32>
    %103 = vector.shape_cast %102 : vector<1x1x8xf32> to vector<1x8xf32>
    %104 = vector.broadcast %103 : vector<1x8xf32> to vector<8x8xf32>
    %105 = arith.addf %101, %104 : vector<8x8xf32>
    %c2_73 = arith.constant 2 : index
    %c0_74 = arith.constant 0 : index
    %c0_75 = arith.constant 0 : index
    %106 = vector.load %arg5[%c2_73, %c0_74, %c0_75] : memref<4x32x8xbf16, #tpu.memory_space<vmem>>, vector<1x32x8xbf16>
    %107 = vector.shape_cast %106 : vector<1x32x8xbf16> to vector<32x8xbf16>
    %cst_76 = arith.constant dense<0.000000e+00> : vector<16x8xf32>
    %108 = tpu.matmul %7, %107, %cst_76 {dimension_numbers = #tpu.dot_dimension_numbers<[1], [0], [0], [1], [0, 0, 1, 1], [], []>} : vector<16x32xbf16>, vector<32x8xbf16>, vector<16x8xf32> -> vector<16x8xf32>
    %c2_77 = arith.constant 2 : index
    %c0_78 = arith.constant 0 : index
    %c0_79 = arith.constant 0 : index
    %109 = vector.load %arg8[%c2_77, %c0_78, %c0_79] : memref<4x1x8xf32, #tpu.memory_space<vmem>>, vector<1x1x8xf32>
    %110 = vector.shape_cast %109 : vector<1x1x8xf32> to vector<1x8xf32>
    %111 = vector.broadcast %110 : vector<1x8xf32> to vector<16x8xf32>
    %112 = arith.addf %108, %111 : vector<16x8xf32>
    %c2_80 = arith.constant 2 : index
    %c0_81 = arith.constant 0 : index
    %c0_82 = arith.constant 0 : index
    %113 = vector.load %arg6[%c2_80, %c0_81, %c0_82] : memref<4x32x8xbf16, #tpu.memory_space<vmem>>, vector<1x32x8xbf16>
    %114 = vector.shape_cast %113 : vector<1x32x8xbf16> to vector<32x8xbf16>
    %cst_83 = arith.constant dense<0.000000e+00> : vector<16x8xf32>
    %115 = tpu.matmul %7, %114, %cst_83 {dimension_numbers = #tpu.dot_dimension_numbers<[1], [0], [0], [1], [0, 0, 1, 1], [], []>} : vector<16x32xbf16>, vector<32x8xbf16>, vector<16x8xf32> -> vector<16x8xf32>
    %c2_84 = arith.constant 2 : index
    %c0_85 = arith.constant 0 : index
    %c0_86 = arith.constant 0 : index
    %116 = vector.load %arg9[%c2_84, %c0_85, %c0_86] : memref<4x1x8xf32, #tpu.memory_space<vmem>>, vector<1x1x8xf32>
    %117 = vector.shape_cast %116 : vector<1x1x8xf32> to vector<1x8xf32>
    %118 = vector.broadcast %117 : vector<1x8xf32> to vector<16x8xf32>
    %119 = arith.addf %115, %118 : vector<16x8xf32>
    %cst_87 = arith.constant 0.353553385 : f32
    %120 = vector.broadcast %cst_87 : f32 to vector<8x8xf32>
    %121 = arith.mulf %105, %120 : vector<8x8xf32>
    %122 = arith.truncf %121 : vector<8x8xf32> to vector<8x8xbf16>
    %123 = arith.truncf %112 : vector<16x8xf32> to vector<16x8xbf16>
    %cst_88 = arith.constant dense<0.000000e+00> : vector<8x16xf32>
    %124 = tpu.matmul %122, %123, %cst_88 {dimension_numbers = #tpu.dot_dimension_numbers<[1], [1], [0], [0], [0, 0, 1, 0], [], []>} : vector<8x8xbf16>, vector<16x8xbf16>, vector<8x16xf32> -> vector<8x16xf32>
    %125 = arith.addf %124, %5 : vector<8x16xf32>
    %cst_89 = arith.constant dense<0xFF800000> : vector<8xf32>
    %126 = vector.multi_reduction <maximumf>, %125, %cst_89 [1] : vector<8x16xf32> to vector<8xf32>
    %127 = vector.shape_cast %126 : vector<8xf32> to vector<8x1xf32>
    %128 = vector.broadcast %127 : vector<8x1xf32> to vector<8x16xf32>
    %129 = arith.subf %125, %128 : vector<8x16xf32>
    %130 = math.exp %129 : vector<8x16xf32>
    %cst_90 = arith.constant dense<0.000000e+00> : vector<8xf32>
    %131 = vector.multi_reduction <add>, %130, %cst_90 [1] : vector<8x16xf32> to vector<8xf32>
    %132 = vector.shape_cast %131 : vector<8xf32> to vector<8x1xf32>
    %133 = tpu.reciprocal %132 {approx = true} : vector<8x1xf32> -> vector<8x1xf32>
    %134 = vector.broadcast %133 : vector<8x1xf32> to vector<8x16xf32>
    %135 = arith.mulf %130, %134 : vector<8x16xf32>
    %136 = arith.truncf %135 : vector<8x16xf32> to vector<8x16xbf16>
    %137 = arith.truncf %119 : vector<16x8xf32> to vector<16x8xbf16>
    %cst_91 = arith.constant dense<0.000000e+00> : vector<8x8xf32>
    %138 = tpu.matmul %136, %137, %cst_91 {dimension_numbers = #tpu.dot_dimension_numbers<[1], [0], [0], [1], [0, 0, 1, 1], [], []>} : vector<8x16xbf16>, vector<16x8xbf16>, vector<8x8xf32> -> vector<8x8xf32>
    %139 = arith.truncf %138 : vector<8x8xf32> to vector<8x8xbf16>
    %c2_92 = arith.constant 2 : index
    %c0_93 = arith.constant 0 : index
    %c0_94 = arith.constant 0 : index
    %140 = vector.load %arg10[%c2_92, %c0_93, %c0_94] : memref<4x8x32xbf16, #tpu.memory_space<vmem>>, vector<1x8x32xbf16>
    %141 = vector.shape_cast %140 : vector<1x8x32xbf16> to vector<8x32xbf16>
    %cst_95 = arith.constant dense<0.000000e+00> : vector<8x32xf32>
    %142 = tpu.matmul %139, %141, %cst_95 {dimension_numbers = #tpu.dot_dimension_numbers<[1], [0], [0], [1], [0, 0, 1, 1], [], []>} : vector<8x8xbf16>, vector<8x32xbf16>, vector<8x32xf32> -> vector<8x32xf32>
    %143 = arith.addf %98, %142 : vector<8x32xf32>
    %c3 = arith.constant 3 : index
    %c0_96 = arith.constant 0 : index
    %c0_97 = arith.constant 0 : index
    %144 = vector.load %arg4[%c3, %c0_96, %c0_97] : memref<4x32x8xbf16, #tpu.memory_space<vmem>>, vector<1x32x8xbf16>
    %145 = vector.shape_cast %144 : vector<1x32x8xbf16> to vector<32x8xbf16>
    %cst_98 = arith.constant dense<0.000000e+00> : vector<8x8xf32>
    %146 = tpu.matmul %6, %145, %cst_98 {dimension_numbers = #tpu.dot_dimension_numbers<[1], [0], [0], [1], [0, 0, 1, 1], [], []>} : vector<8x32xbf16>, vector<32x8xbf16>, vector<8x8xf32> -> vector<8x8xf32>
    %c3_99 = arith.constant 3 : index
    %c0_100 = arith.constant 0 : index
    %c0_101 = arith.constant 0 : index
    %147 = vector.load %arg7[%c3_99, %c0_100, %c0_101] : memref<4x1x8xf32, #tpu.memory_space<vmem>>, vector<1x1x8xf32>
    %148 = vector.shape_cast %147 : vector<1x1x8xf32> to vector<1x8xf32>
    %149 = vector.broadcast %148 : vector<1x8xf32> to vector<8x8xf32>
    %150 = arith.addf %146, %149 : vector<8x8xf32>
    %c3_102 = arith.constant 3 : index
    %c0_103 = arith.constant 0 : index
    %c0_104 = arith.constant 0 : index
    %151 = vector.load %arg5[%c3_102, %c0_103, %c0_104] : memref<4x32x8xbf16, #tpu.memory_space<vmem>>, vector<1x32x8xbf16>
    %152 = vector.shape_cast %151 : vector<1x32x8xbf16> to vector<32x8xbf16>
    %cst_105 = arith.constant dense<0.000000e+00> : vector<16x8xf32>
    %153 = tpu.matmul %7, %152, %cst_105 {dimension_numbers = #tpu.dot_dimension_numbers<[1], [0], [0], [1], [0, 0, 1, 1], [], []>} : vector<16x32xbf16>, vector<32x8xbf16>, vector<16x8xf32> -> vector<16x8xf32>
    %c3_106 = arith.constant 3 : index
    %c0_107 = arith.constant 0 : index
    %c0_108 = arith.constant 0 : index
    %154 = vector.load %arg8[%c3_106, %c0_107, %c0_108] : memref<4x1x8xf32, #tpu.memory_space<vmem>>, vector<1x1x8xf32>
    %155 = vector.shape_cast %154 : vector<1x1x8xf32> to vector<1x8xf32>
    %156 = vector.broadcast %155 : vector<1x8xf32> to vector<16x8xf32>
    %157 = arith.addf %153, %156 : vector<16x8xf32>
    %c3_109 = arith.constant 3 : index
    %c0_110 = arith.constant 0 : index
    %c0_111 = arith.constant 0 : index
    %158 = vector.load %arg6[%c3_109, %c0_110, %c0_111] : memref<4x32x8xbf16, #tpu.memory_space<vmem>>, vector<1x32x8xbf16>
    %159 = vector.shape_cast %158 : vector<1x32x8xbf16> to vector<32x8xbf16>
    %cst_112 = arith.constant dense<0.000000e+00> : vector<16x8xf32>
    %160 = tpu.matmul %7, %159, %cst_112 {dimension_numbers = #tpu.dot_dimension_numbers<[1], [0], [0], [1], [0, 0, 1, 1], [], []>} : vector<16x32xbf16>, vector<32x8xbf16>, vector<16x8xf32> -> vector<16x8xf32>
    %c3_113 = arith.constant 3 : index
    %c0_114 = arith.constant 0 : index
    %c0_115 = arith.constant 0 : index
    %161 = vector.load %arg9[%c3_113, %c0_114, %c0_115] : memref<4x1x8xf32, #tpu.memory_space<vmem>>, vector<1x1x8xf32>
    %162 = vector.shape_cast %161 : vector<1x1x8xf32> to vector<1x8xf32>
    %163 = vector.broadcast %162 : vector<1x8xf32> to vector<16x8xf32>
    %164 = arith.addf %160, %163 : vector<16x8xf32>
    %cst_116 = arith.constant 0.353553385 : f32
    %165 = vector.broadcast %cst_116 : f32 to vector<8x8xf32>
    %166 = arith.mulf %150, %165 : vector<8x8xf32>
    %167 = arith.truncf %166 : vector<8x8xf32> to vector<8x8xbf16>
    %168 = arith.truncf %157 : vector<16x8xf32> to vector<16x8xbf16>
    %cst_117 = arith.constant dense<0.000000e+00> : vector<8x16xf32>
    %169 = tpu.matmul %167, %168, %cst_117 {dimension_numbers = #tpu.dot_dimension_numbers<[1], [1], [0], [0], [0, 0, 1, 0], [], []>} : vector<8x8xbf16>, vector<16x8xbf16>, vector<8x16xf32> -> vector<8x16xf32>
    %170 = arith.addf %169, %5 : vector<8x16xf32>
    %cst_118 = arith.constant dense<0xFF800000> : vector<8xf32>
    %171 = vector.multi_reduction <maximumf>, %170, %cst_118 [1] : vector<8x16xf32> to vector<8xf32>
    %172 = vector.shape_cast %171 : vector<8xf32> to vector<8x1xf32>
    %173 = vector.broadcast %172 : vector<8x1xf32> to vector<8x16xf32>
    %174 = arith.subf %170, %173 : vector<8x16xf32>
    %175 = math.exp %174 : vector<8x16xf32>
    %cst_119 = arith.constant dense<0.000000e+00> : vector<8xf32>
    %176 = vector.multi_reduction <add>, %175, %cst_119 [1] : vector<8x16xf32> to vector<8xf32>
    %177 = vector.shape_cast %176 : vector<8xf32> to vector<8x1xf32>
    %178 = tpu.reciprocal %177 {approx = true} : vector<8x1xf32> -> vector<8x1xf32>
    %179 = vector.broadcast %178 : vector<8x1xf32> to vector<8x16xf32>
    %180 = arith.mulf %175, %179 : vector<8x16xf32>
    %181 = arith.truncf %180 : vector<8x16xf32> to vector<8x16xbf16>
    %182 = arith.truncf %164 : vector<16x8xf32> to vector<16x8xbf16>
    %cst_120 = arith.constant dense<0.000000e+00> : vector<8x8xf32>
    %183 = tpu.matmul %181, %182, %cst_120 {dimension_numbers = #tpu.dot_dimension_numbers<[1], [0], [0], [1], [0, 0, 1, 1], [], []>} : vector<8x16xbf16>, vector<16x8xbf16>, vector<8x8xf32> -> vector<8x8xf32>
    %184 = arith.truncf %183 : vector<8x8xf32> to vector<8x8xbf16>
    %c3_121 = arith.constant 3 : index
    %c0_122 = arith.constant 0 : index
    %c0_123 = arith.constant 0 : index
    %185 = vector.load %arg10[%c3_121, %c0_122, %c0_123] : memref<4x8x32xbf16, #tpu.memory_space<vmem>>, vector<1x8x32xbf16>
    %186 = vector.shape_cast %185 : vector<1x8x32xbf16> to vector<8x32xbf16>
    %cst_124 = arith.constant dense<0.000000e+00> : vector<8x32xf32>
    %187 = tpu.matmul %184, %186, %cst_124 {dimension_numbers = #tpu.dot_dimension_numbers<[1], [0], [0], [1], [0, 0, 1, 1], [], []>} : vector<8x8xbf16>, vector<8x32xbf16>, vector<8x32xf32> -> vector<8x32xf32>
    %188 = arith.addf %143, %187 : vector<8x32xf32>
    %189 = arith.addf %1, %188 : vector<8x32xf32>
    %c0_125 = arith.constant 0 : index
    %c0_126 = arith.constant 0 : index
    %190 = vector.load %arg11[%c0_125, %c0_126] : memref<1x32xf32, #tpu.memory_space<vmem>>, vector<1x32xf32>
    %191 = vector.broadcast %190 : vector<1x32xf32> to vector<8x32xf32>
    %192 = arith.addf %189, %191 : vector<8x32xf32>
    %c0_127 = arith.constant 0 : index
    %c0_128 = arith.constant 0 : index
    %193 = vector.load %arg12[%c0_127, %c0_128] : memref<1x32xf32, #tpu.memory_space<vmem>>, vector<1x32xf32>
    %c0_129 = arith.constant 0 : index
    %c0_130 = arith.constant 0 : index
    %194 = vector.load %arg13[%c0_129, %c0_130] : memref<1x32xf32, #tpu.memory_space<vmem>>, vector<1x32xf32>
    %cst_131 = arith.constant dense<0.000000e+00> : vector<8xf32>
    %195 = vector.multi_reduction <add>, %192, %cst_131 [1] : vector<8x32xf32> to vector<8xf32>
    %196 = vector.shape_cast %195 : vector<8xf32> to vector<8x1xf32>
    %cst_132 = arith.constant 3.200000e+01 : f32
    %197 = vector.broadcast %cst_132 : f32 to vector<8x1xf32>
    %198 = arith.divf %196, %197 : vector<8x1xf32>
    %199 = vector.broadcast %198 : vector<8x1xf32> to vector<8x32xf32>
    %200 = arith.subf %192, %199 : vector<8x32xf32>
    %201 = arith.mulf %200, %200 : vector<8x32xf32>
    %cst_133 = arith.constant dense<0.000000e+00> : vector<8xf32>
    %202 = vector.multi_reduction <add>, %201, %cst_133 [1] : vector<8x32xf32> to vector<8xf32>
    %203 = vector.shape_cast %202 : vector<8xf32> to vector<8x1xf32>
    %cst_134 = arith.constant 3.200000e+01 : f32
    %204 = vector.broadcast %cst_134 : f32 to vector<8x1xf32>
    %205 = arith.divf %203, %204 : vector<8x1xf32>
    %206 = vector.broadcast %198 : vector<8x1xf32> to vector<8x32xf32>
    %207 = arith.subf %192, %206 : vector<8x32xf32>
    %cst_135 = arith.constant 9.99999974E-6 : f32
    %208 = vector.broadcast %cst_135 : f32 to vector<8x1xf32>
    %209 = arith.addf %205, %208 : vector<8x1xf32>
    %210 = math.rsqrt %209 : vector<8x1xf32>
    %211 = vector.broadcast %210 : vector<8x1xf32> to vector<8x32xf32>
    %212 = arith.mulf %207, %211 : vector<8x32xf32>
    %213 = vector.broadcast %193 : vector<1x32xf32> to vector<8x32xf32>
    %214 = arith.mulf %212, %213 : vector<8x32xf32>
    %215 = vector.broadcast %194 : vector<1x32xf32> to vector<8x32xf32>
    %216 = arith.addf %214, %215 : vector<8x32xf32>
    %c0_136 = arith.constant 0 : index
    %c0_137 = arith.constant 0 : index
    %c0_138 = arith.constant 0 : index
    %217 = vector.load %arg14[%c0_136, %c0_137, %c0_138] : memref<1x8x32xf32, #tpu.memory_space<vmem>>, vector<1x8x32xf32>
    %218 = vector.shape_cast %217 : vector<1x8x32xf32> to vector<8x32xf32>
    %219 = vector.shape_cast %216 : vector<8x32xf32> to vector<1x8x32xf32>
    tpu.vector_store %arg14[%c0_136, %c0_137, %c0_138], %219 {strides = array<i32>} : memref<1x8x32xf32, #tpu.memory_space<vmem>>, vector<1x8x32xf32>,
    return
  }
  func.func @transform_0(%arg0: i32) -> (i32, i32, i32) {
    %c0_i32 = arith.constant 0 : i32
    %c0_i32_0 = arith.constant 0 : i32
    %c0_i32_1 = arith.constant 0 : i32
    return %arg0, %c0_i32, %c0_i32_0 : i32, i32, i32
  }
  func.func @transform_1(%arg0: i32) -> (i32, i32, i32) {
    %c0_i32 = arith.constant 0 : i32
    %c0_i32_0 = arith.constant 0 : i32
    %c0_i32_1 = arith.constant 0 : i32
    return %arg0, %c0_i32, %c0_i32_0 : i32, i32, i32
  }
  func.func @transform_2(%arg0: i32) -> (i32, i32, i32) {
    %c0_i32 = arith.constant 0 : i32
    %c0_i32_0 = arith.constant 0 : i32
    %c0_i32_1 = arith.constant 0 : i32
    return %arg0, %c0_i32, %c0_i32_0 : i32, i32, i32
  }
  func.func @transform_3(%arg0: i32) -> (i32, i32, i32) {
    %c0_i32 = arith.constant 0 : i32
    %c0_i32_0 = arith.constant 0 : i32
    %c0_i32_1 = arith.constant 0 : i32
    %c0_i32_2 = arith.constant 0 : i32
    return %c0_i32, %c0_i32_0, %c0_i32_1 : i32, i32, i32
  }
  func.func @transform_4(%arg0: i32) -> (i32, i32, i32) {
    %c0_i32 = arith.constant 0 : i32
    %c0_i32_0 = arith.constant 0 : i32
    %c0_i32_1 = arith.constant 0 : i32
    %c0_i32_2 = arith.constant 0 : i32
    return %c0_i32, %c0_i32_0, %c0_i32_1 : i32, i32, i32
  }
  func.func @transform_5(%arg0: i32) -> (i32, i32, i32) {
    %c0_i32 = arith.constant 0 : i32
    %c0_i32_0 = arith.constant 0 : i32
    %c0_i32_1 = arith.constant 0 : i32
    %c0_i32_2 = arith.constant 0 : i32
    return %c0_i32, %c0_i32_0, %c0_i32_1 : i32, i32, i32
  }
  func.func @transform_6(%arg0: i32) -> (i32, i32, i32) {
    %c0_i32 = arith.constant 0 : i32
    %c0_i32_0 = arith.constant 0 : i32
    %c0_i32_1 = arith.constant 0 : i32
    %c0_i32_2 = arith.constant 0 : i32
    return %c0_i32, %c0_i32_0, %c0_i32_1 : i32, i32, i32
  }
  func.func @transform_7(%arg0: i32) -> (i32, i32, i32) {
    %c0_i32 = arith.constant 0 : i32
    %c0_i32_0 = arith.constant 0 : i32
    %c0_i32_1 = arith.constant 0 : i32
    %c0_i32_2 = arith.constant 0 : i32
    return %c0_i32, %c0_i32_0, %c0_i32_1 : i32, i32, i32
  }
  func.func @transform_8(%arg0: i32) -> (i32, i32, i32) {
    %c0_i32 = arith.constant 0 : i32
    %c0_i32_0 = arith.constant 0 : i32
    %c0_i32_1 = arith.constant 0 : i32
    %c0_i32_2 = arith.constant 0 : i32
    return %c0_i32, %c0_i32_0, %c0_i32_1 : i32, i32, i32
  }
  func.func @transform_9(%arg0: i32) -> (i32, i32, i32) {
    %c0_i32 = arith.constant 0 : i32
    %c0_i32_0 = arith.constant 0 : i32
    %c0_i32_1 = arith.constant 0 : i32
    %c0_i32_2 = arith.constant 0 : i32
    return %c0_i32, %c0_i32_0, %c0_i32_1 : i32, i32, i32
  }
  func.func @transform_10(%arg0: i32) -> (i32, i32) {
    %c0_i32 = arith.constant 0 : i32
    %c0_i32_0 = arith.constant 0 : i32
    %c0_i32_1 = arith.constant 0 : i32
    return %c0_i32, %c0_i32_0 : i32, i32
  }
  func.func @transform_11(%arg0: i32) -> (i32, i32) {
    %c0_i32 = arith.constant 0 : i32
    %c0_i32_0 = arith.constant 0 : i32
    %c0_i32_1 = arith.constant 0 : i32
    return %c0_i32, %c0_i32_0 : i32, i32
  }
  func.func @transform_12(%arg0: i32) -> (i32, i32) {
    %c0_i32 = arith.constant 0 : i32
    %c0_i32_0 = arith.constant 0 : i32
    %c0_i32_1 = arith.constant 0 : i32
    return %c0_i32, %c0_i32_0 : i32, i32
  }
  func.func @transform_13(%arg0: i32) -> (i32, i32, i32) {
    %c0_i32 = arith.constant 0 : i32
    %c0_i32_0 = arith.constant 0 : i32
    %c0_i32_1 = arith.constant 0 : i32
    return %arg0, %c0_i32, %c0_i32_0 : i32, i32, i32
  }
}

module attributes {stable_mosaic.version = 11 : i64} {
  func.func @_ffn_kernel(%arg0: i32, %arg1: memref<16x32xf32, #tpu.memory_space<vmem>>, %arg2: memref<32x64xbf16, #tpu.memory_space<vmem>>, %arg3: memref<1x64xf32, #tpu.memory_space<vmem>>, %arg4: memref<64x32xbf16, #tpu.memory_space<vmem>>, %arg5: memref<1x32xf32, #tpu.memory_space<vmem>>, %arg6: memref<1x32xf32, #tpu.memory_space<vmem>>, %arg7: memref<1x32xf32, #tpu.memory_space<vmem>>, %arg8: memref<16x32xf32, #tpu.memory_space<vmem>>) attributes {dimension_semantics = [#tpu.dimension_semantics<parallel>], iteration_bounds = array<i64: 1>, scalar_prefetch = 0 : i64, scratch_operands = 0 : i64, tpu.core_type = #tpu.core_type<tc>, window_params = [{transform_indices = @transform_0, window_bounds = array<i64: 16, 32>}, {pipeline_mode = #tpu.pipeline_mode<synchronous>, transform_indices = @transform_1, window_bounds = array<i64: 32, 64>}, {pipeline_mode = #tpu.pipeline_mode<synchronous>, transform_indices = @transform_2, window_bounds = array<i64: 1, 64>}, {pipeline_mode = #tpu.pipeline_mode<synchronous>, transform_indices = @transform_3, window_bounds = array<i64: 64, 32>}, {pipeline_mode = #tpu.pipeline_mode<synchronous>, transform_indices = @transform_4, window_bounds = array<i64: 1, 32>}, {pipeline_mode = #tpu.pipeline_mode<synchronous>, transform_indices = @transform_5, window_bounds = array<i64: 1, 32>}, {pipeline_mode = #tpu.pipeline_mode<synchronous>, transform_indices = @transform_6, window_bounds = array<i64: 1, 32>}, {transform_indices = @transform_7, window_bounds = array<i64: 16, 32>}]} {
    %c0 = arith.constant 0 : index
    %c0_0 = arith.constant 0 : index
    %0 = vector.load %arg1[%c0, %c0_0] : memref<16x32xf32, #tpu.memory_space<vmem>>, vector<16x32xf32>
    %1 = arith.truncf %0 : vector<16x32xf32> to vector<16x32xbf16>
    %c0_1 = arith.constant 0 : index
    %c0_2 = arith.constant 0 : index
    %2 = vector.load %arg2[%c0_1, %c0_2] : memref<32x64xbf16, #tpu.memory_space<vmem>>, vector<32x64xbf16>
    %cst = arith.constant dense<0.000000e+00> : vector<16x64xf32>
    %3 = tpu.matmul %1, %2, %cst {dimension_numbers = #tpu.dot_dimension_numbers<[1], [0], [0], [1], [0, 0, 1, 1], [], []>} : vector<16x32xbf16>, vector<32x64xbf16>, vector<16x64xf32> -> vector<16x64xf32>
    %c0_3 = arith.constant 0 : index
    %c0_4 = arith.constant 0 : index
    %4 = vector.load %arg3[%c0_3, %c0_4] : memref<1x64xf32, #tpu.memory_space<vmem>>, vector<1x64xf32>
    %5 = vector.broadcast %4 : vector<1x64xf32> to vector<16x64xf32>
    %6 = arith.addf %3, %5 : vector<16x64xf32>
    %cst_5 = arith.constant 0.000000e+00 : f32
    %7 = vector.broadcast %cst_5 : f32 to vector<16x64xf32>
    %8 = arith.maximumf %6, %7 : vector<16x64xf32>
    %9 = arith.truncf %8 : vector<16x64xf32> to vector<16x64xbf16>
    %c0_6 = arith.constant 0 : index
    %c0_7 = arith.constant 0 : index
    %10 = vector.load %arg4[%c0_6, %c0_7] : memref<64x32xbf16, #tpu.memory_space<vmem>>, vector<64x32xbf16>
    %cst_8 = arith.constant dense<0.000000e+00> : vector<16x32xf32>
    %11 = tpu.matmul %9, %10, %cst_8 {dimension_numbers = #tpu.dot_dimension_numbers<[1], [0], [0], [1], [0, 0, 1, 1], [], []>} : vector<16x64xbf16>, vector<64x32xbf16>, vector<16x32xf32> -> vector<16x32xf32>
    %c0_9 = arith.constant 0 : index
    %c0_10 = arith.constant 0 : index
    %12 = vector.load %arg5[%c0_9, %c0_10] : memref<1x32xf32, #tpu.memory_space<vmem>>, vector<1x32xf32>
    %13 = vector.broadcast %12 : vector<1x32xf32> to vector<16x32xf32>
    %14 = arith.addf %11, %13 : vector<16x32xf32>
    %15 = arith.addf %0, %14 : vector<16x32xf32>
    %c0_11 = arith.constant 0 : index
    %c0_12 = arith.constant 0 : index
    %16 = vector.load %arg6[%c0_11, %c0_12] : memref<1x32xf32, #tpu.memory_space<vmem>>, vector<1x32xf32>
    %c0_13 = arith.constant 0 : index
    %c0_14 = arith.constant 0 : index
    %17 = vector.load %arg7[%c0_13, %c0_14] : memref<1x32xf32, #tpu.memory_space<vmem>>, vector<1x32xf32>
    %cst_15 = arith.constant dense<0.000000e+00> : vector<16xf32>
    %18 = vector.multi_reduction <add>, %15, %cst_15 [1] : vector<16x32xf32> to vector<16xf32>
    %19 = vector.shape_cast %18 : vector<16xf32> to vector<16x1xf32>
    %cst_16 = arith.constant 3.200000e+01 : f32
    %20 = vector.broadcast %cst_16 : f32 to vector<16x1xf32>
    %21 = arith.divf %19, %20 : vector<16x1xf32>
    %22 = vector.broadcast %21 : vector<16x1xf32> to vector<16x32xf32>
    %23 = arith.subf %15, %22 : vector<16x32xf32>
    %24 = arith.mulf %23, %23 : vector<16x32xf32>
    %cst_17 = arith.constant dense<0.000000e+00> : vector<16xf32>
    %25 = vector.multi_reduction <add>, %24, %cst_17 [1] : vector<16x32xf32> to vector<16xf32>
    %26 = vector.shape_cast %25 : vector<16xf32> to vector<16x1xf32>
    %cst_18 = arith.constant 3.200000e+01 : f32
    %27 = vector.broadcast %cst_18 : f32 to vector<16x1xf32>
    %28 = arith.divf %26, %27 : vector<16x1xf32>
    %29 = vector.broadcast %21 : vector<16x1xf32> to vector<16x32xf32>
    %30 = arith.subf %15, %29 : vector<16x32xf32>
    %cst_19 = arith.constant 9.99999974E-6 : f32
    %31 = vector.broadcast %cst_19 : f32 to vector<16x1xf32>
    %32 = arith.addf %28, %31 : vector<16x1xf32>
    %33 = math.rsqrt %32 : vector<16x1xf32>
    %34 = vector.broadcast %33 : vector<16x1xf32> to vector<16x32xf32>
    %35 = arith.mulf %30, %34 : vector<16x32xf32>
    %36 = vector.broadcast %16 : vector<1x32xf32> to vector<16x32xf32>
    %37 = arith.mulf %35, %36 : vector<16x32xf32>
    %38 = vector.broadcast %17 : vector<1x32xf32> to vector<16x32xf32>
    %39 = arith.addf %37, %38 : vector<16x32xf32>
    %c0_20 = arith.constant 0 : index
    %c0_21 = arith.constant 0 : index
    %40 = vector.load %arg8[%c0_20, %c0_21] : memref<16x32xf32, #tpu.memory_space<vmem>>, vector<16x32xf32>
    tpu.vector_store %arg8[%c0_20, %c0_21], %39 {strides = array<i32>} : memref<16x32xf32, #tpu.memory_space<vmem>>, vector<16x32xf32>,
    return
  }
  func.func @transform_0(%arg0: i32) -> (i32, i32) {
    %c0_i32 = arith.constant 0 : i32
    %c0_i32_0 = arith.constant 0 : i32
    return %arg0, %c0_i32 : i32, i32
  }
  func.func @transform_1(%arg0: i32) -> (i32, i32) {
    %c0_i32 = arith.constant 0 : i32
    %c0_i32_0 = arith.constant 0 : i32
    %c0_i32_1 = arith.constant 0 : i32
    return %c0_i32, %c0_i32_0 : i32, i32
  }
  func.func @transform_2(%arg0: i32) -> (i32, i32) {
    %c0_i32 = arith.constant 0 : i32
    %c0_i32_0 = arith.constant 0 : i32
    %c0_i32_1 = arith.constant 0 : i32
    return %c0_i32, %c0_i32_0 : i32, i32
  }
  func.func @transform_3(%arg0: i32) -> (i32, i32) {
    %c0_i32 = arith.constant 0 : i32
    %c0_i32_0 = arith.constant 0 : i32
    %c0_i32_1 = arith.constant 0 : i32
    return %c0_i32, %c0_i32_0 : i32, i32
  }
  func.func @transform_4(%arg0: i32) -> (i32, i32) {
    %c0_i32 = arith.constant 0 : i32
    %c0_i32_0 = arith.constant 0 : i32
    %c0_i32_1 = arith.constant 0 : i32
    return %c0_i32, %c0_i32_0 : i32, i32
  }
  func.func @transform_5(%arg0: i32) -> (i32, i32) {
    %c0_i32 = arith.constant 0 : i32
    %c0_i32_0 = arith.constant 0 : i32
    %c0_i32_1 = arith.constant 0 : i32
    return %c0_i32, %c0_i32_0 : i32, i32
  }
  func.func @transform_6(%arg0: i32) -> (i32, i32) {
    %c0_i32 = arith.constant 0 : i32
    %c0_i32_0 = arith.constant 0 : i32
    %c0_i32_1 = arith.constant 0 : i32
    return %c0_i32, %c0_i32_0 : i32, i32
  }
  func.func @transform_7(%arg0: i32) -> (i32, i32) {
    %c0_i32 = arith.constant 0 : i32
    %c0_i32_0 = arith.constant 0 : i32
    return %arg0, %c0_i32 : i32, i32
  }
}

module attributes {stable_mosaic.version = 11 : i64} {
  func.func @_score_kernel(%arg0: i32, %arg1: memref<1x8x32xf32, #tpu.memory_space<vmem>>, %arg2: memref<1x32xf32, #tpu.memory_space<vmem>>, %arg3: memref<1x32xf32, #tpu.memory_space<vmem>>, %arg4: memref<32x32xbf16, #tpu.memory_space<vmem>>, %arg5: memref<6x32xbf16, #tpu.memory_space<vmem>>, %arg6: memref<1x4x32xf32, #tpu.memory_space<vmem>>, %arg7: memref<1x8x6xf32, #tpu.memory_space<vmem>>, %arg8: memref<1x8x4xf32, #tpu.memory_space<vmem>>) attributes {dimension_semantics = [#tpu.dimension_semantics<parallel>], iteration_bounds = array<i64: 2>, scalar_prefetch = 0 : i64, scratch_operands = 0 : i64, tpu.core_type = #tpu.core_type<tc>, window_params = [{transform_indices = @transform_0, window_bounds = array<i64: 1, 8, 32>}, {pipeline_mode = #tpu.pipeline_mode<synchronous>, transform_indices = @transform_1, window_bounds = array<i64: 1, 32>}, {pipeline_mode = #tpu.pipeline_mode<synchronous>, transform_indices = @transform_2, window_bounds = array<i64: 1, 32>}, {pipeline_mode = #tpu.pipeline_mode<synchronous>, transform_indices = @transform_3, window_bounds = array<i64: 32, 32>}, {pipeline_mode = #tpu.pipeline_mode<synchronous>, transform_indices = @transform_4, window_bounds = array<i64: 6, 32>}, {transform_indices = @transform_5, window_bounds = array<i64: 1, 4, 32>}, {transform_indices = @transform_6, window_bounds = array<i64: 1, 8, 6>}, {transform_indices = @transform_7, window_bounds = array<i64: 1, 8, 4>}]} {
    %c0 = arith.constant 0 : index
    %c0_0 = arith.constant 0 : index
    %c0_1 = arith.constant 0 : index
    %0 = vector.load %arg1[%c0, %c0_0, %c0_1] : memref<1x8x32xf32, #tpu.memory_space<vmem>>, vector<1x8x32xf32>
    %1 = vector.shape_cast %0 : vector<1x8x32xf32> to vector<8x32xf32>
    %c0_2 = arith.constant 0 : index
    %c0_3 = arith.constant 0 : index
    %2 = vector.load %arg2[%c0_2, %c0_3] : memref<1x32xf32, #tpu.memory_space<vmem>>, vector<1x32xf32>
    %c0_4 = arith.constant 0 : index
    %c0_5 = arith.constant 0 : index
    %3 = vector.load %arg3[%c0_4, %c0_5] : memref<1x32xf32, #tpu.memory_space<vmem>>, vector<1x32xf32>
    %cst = arith.constant dense<0.000000e+00> : vector<8xf32>
    %4 = vector.multi_reduction <add>, %1, %cst [1] : vector<8x32xf32> to vector<8xf32>
    %5 = vector.shape_cast %4 : vector<8xf32> to vector<8x1xf32>
    %cst_6 = arith.constant 3.200000e+01 : f32
    %6 = vector.broadcast %cst_6 : f32 to vector<8x1xf32>
    %7 = arith.divf %5, %6 : vector<8x1xf32>
    %8 = vector.broadcast %7 : vector<8x1xf32> to vector<8x32xf32>
    %9 = arith.subf %1, %8 : vector<8x32xf32>
    %10 = arith.mulf %9, %9 : vector<8x32xf32>
    %cst_7 = arith.constant dense<0.000000e+00> : vector<8xf32>
    %11 = vector.multi_reduction <add>, %10, %cst_7 [1] : vector<8x32xf32> to vector<8xf32>
    %12 = vector.shape_cast %11 : vector<8xf32> to vector<8x1xf32>
    %cst_8 = arith.constant 3.200000e+01 : f32
    %13 = vector.broadcast %cst_8 : f32 to vector<8x1xf32>
    %14 = arith.divf %12, %13 : vector<8x1xf32>
    %15 = vector.broadcast %7 : vector<8x1xf32> to vector<8x32xf32>
    %16 = arith.subf %1, %15 : vector<8x32xf32>
    %cst_9 = arith.constant 9.99999974E-6 : f32
    %17 = vector.broadcast %cst_9 : f32 to vector<8x1xf32>
    %18 = arith.addf %14, %17 : vector<8x1xf32>
    %19 = math.rsqrt %18 : vector<8x1xf32>
    %20 = vector.broadcast %19 : vector<8x1xf32> to vector<8x32xf32>
    %21 = arith.mulf %16, %20 : vector<8x32xf32>
    %22 = vector.broadcast %2 : vector<1x32xf32> to vector<8x32xf32>
    %23 = arith.mulf %21, %22 : vector<8x32xf32>
    %24 = vector.broadcast %3 : vector<1x32xf32> to vector<8x32xf32>
    %25 = arith.addf %23, %24 : vector<8x32xf32>
    %26 = arith.truncf %25 : vector<8x32xf32> to vector<8x32xbf16>
    %c0_10 = arith.constant 0 : index
    %c0_11 = arith.constant 0 : index
    %27 = vector.load %arg4[%c0_10, %c0_11] : memref<32x32xbf16, #tpu.memory_space<vmem>>, vector<32x32xbf16>
    %cst_12 = arith.constant dense<0.000000e+00> : vector<8x32xf32>
    %28 = tpu.matmul %26, %27, %cst_12 {dimension_numbers = #tpu.dot_dimension_numbers<[1], [0], [0], [1], [0, 0, 1, 1], [], []>} : vector<8x32xbf16>, vector<32x32xbf16>, vector<8x32xf32> -> vector<8x32xf32>
    %29 = arith.truncf %28 : vector<8x32xf32> to vector<8x32xbf16>
    %c0_13 = arith.constant 0 : index
    %c0_14 = arith.constant 0 : index
    %30 = vector.load %arg5[%c0_13, %c0_14] : memref<6x32xbf16, #tpu.memory_space<vmem>>, vector<6x32xbf16>
    %cst_15 = arith.constant dense<0.000000e+00> : vector<8x6xf32>
    %31 = tpu.matmul %29, %30, %cst_15 {dimension_numbers = #tpu.dot_dimension_numbers<[1], [1], [0], [0], [0, 0, 1, 0], [], []>} : vector<8x32xbf16>, vector<6x32xbf16>, vector<8x6xf32> -> vector<8x6xf32>
    %c0_16 = arith.constant 0 : index
    %c0_17 = arith.constant 0 : index
    %c0_18 = arith.constant 0 : index
    %32 = vector.load %arg7[%c0_16, %c0_17, %c0_18] : memref<1x8x6xf32, #tpu.memory_space<vmem>>, vector<1x8x6xf32>
    %33 = vector.shape_cast %32 : vector<1x8x6xf32> to vector<8x6xf32>
    %34 = vector.shape_cast %31 : vector<8x6xf32> to vector<1x8x6xf32>
    tpu.vector_store %arg7[%c0_16, %c0_17, %c0_18], %34 {strides = array<i32>} : memref<1x8x6xf32, #tpu.memory_space<vmem>>, vector<1x8x6xf32>,
    %c0_19 = arith.constant 0 : index
    %c0_20 = arith.constant 0 : index
    %c0_21 = arith.constant 0 : index
    %35 = vector.load %arg6[%c0_19, %c0_20, %c0_21] : memref<1x4x32xf32, #tpu.memory_space<vmem>>, vector<1x4x32xf32>
    %36 = vector.shape_cast %35 : vector<1x4x32xf32> to vector<4x32xf32>
    %37 = arith.truncf %36 : vector<4x32xf32> to vector<4x32xbf16>
    %cst_22 = arith.constant dense<0.000000e+00> : vector<8x4xf32>
    %38 = tpu.matmul %29, %37, %cst_22 {dimension_numbers = #tpu.dot_dimension_numbers<[1], [1], [0], [0], [0, 0, 1, 0], [], []>} : vector<8x32xbf16>, vector<4x32xbf16>, vector<8x4xf32> -> vector<8x4xf32>
    %c0_23 = arith.constant 0 : index
    %c0_24 = arith.constant 0 : index
    %c0_25 = arith.constant 0 : index
    %39 = vector.load %arg8[%c0_23, %c0_24, %c0_25] : memref<1x8x4xf32, #tpu.memory_space<vmem>>, vector<1x8x4xf32>
    %40 = vector.shape_cast %39 : vector<1x8x4xf32> to vector<8x4xf32>
    %41 = vector.shape_cast %38 : vector<8x4xf32> to vector<1x8x4xf32>
    tpu.vector_store %arg8[%c0_23, %c0_24, %c0_25], %41 {strides = array<i32>} : memref<1x8x4xf32, #tpu.memory_space<vmem>>, vector<1x8x4xf32>,
    return
  }
  func.func @transform_0(%arg0: i32) -> (i32, i32, i32) {
    %c0_i32 = arith.constant 0 : i32
    %c0_i32_0 = arith.constant 0 : i32
    %c0_i32_1 = arith.constant 0 : i32
    return %arg0, %c0_i32, %c0_i32_0 : i32, i32, i32
  }
  func.func @transform_1(%arg0: i32) -> (i32, i32) {
    %c0_i32 = arith.constant 0 : i32
    %c0_i32_0 = arith.constant 0 : i32
    %c0_i32_1 = arith.constant 0 : i32
    return %c0_i32, %c0_i32_0 : i32, i32
  }
  func.func @transform_2(%arg0: i32) -> (i32, i32) {
    %c0_i32 = arith.constant 0 : i32
    %c0_i32_0 = arith.constant 0 : i32
    %c0_i32_1 = arith.constant 0 : i32
    return %c0_i32, %c0_i32_0 : i32, i32
  }
  func.func @transform_3(%arg0: i32) -> (i32, i32) {
    %c0_i32 = arith.constant 0 : i32
    %c0_i32_0 = arith.constant 0 : i32
    %c0_i32_1 = arith.constant 0 : i32
    return %c0_i32, %c0_i32_0 : i32, i32
  }
  func.func @transform_4(%arg0: i32) -> (i32, i32) {
    %c0_i32 = arith.constant 0 : i32
    %c0_i32_0 = arith.constant 0 : i32
    %c0_i32_1 = arith.constant 0 : i32
    return %c0_i32, %c0_i32_0 : i32, i32
  }
  func.func @transform_5(%arg0: i32) -> (i32, i32, i32) {
    %c0_i32 = arith.constant 0 : i32
    %c0_i32_0 = arith.constant 0 : i32
    %c0_i32_1 = arith.constant 0 : i32
    return %arg0, %c0_i32, %c0_i32_0 : i32, i32, i32
  }
  func.func @transform_6(%arg0: i32) -> (i32, i32, i32) {
    %c0_i32 = arith.constant 0 : i32
    %c0_i32_0 = arith.constant 0 : i32
    %c0_i32_1 = arith.constant 0 : i32
    return %arg0, %c0_i32, %c0_i32_0 : i32, i32, i32
  }
  func.func @transform_7(%arg0: i32) -> (i32, i32, i32) {
    %c0_i32 = arith.constant 0 : i32
    %c0_i32_0 = arith.constant 0 : i32
    %c0_i32_1 = arith.constant 0 : i32
    return %arg0, %c0_i32, %c0_i32_0 : i32, i32, i32
  }
}

</mosaic_0001>

<llo_original>
// kernel: _lambda_.9
$region0: #{_lambda_.9}
  #allocation0 [shape = 'u32[]', space=smem, size = 0x4, offset = 0x4, fixed_abs, tag = 'smem constant byte address 0x4 - core index']
  #allocation1 [shape = 'u32[72,128]{1,0:T(1,128)}', space=vmem, size = 0x9000, scoped, tag = 'internal scratch']
  %s0 = inlined_call_operand.vmem [shape: f32[16,32], index: 0, kind: input, shape index: {}]
  %s1 = inlined_call_operand.hbm [shape: bf16[32,64], index: 1, kind: input, shape index: {}]
  %s2 = inlined_call_operand.vmem [shape: f32[1,64], index: 2, kind: input, shape index: {}]
  %s3 = inlined_call_operand.hbm [shape: bf16[64,32], index: 3, kind: input, shape index: {}]
  %s4 = inlined_call_operand.vmem [shape: f32[1,32], index: 4, kind: input, shape index: {}, may-alias: {4,6}]
  %s5 = inlined_call_operand.vmem [shape: f32[1,32], index: 5, kind: input, shape index: {}]
  %s6 = inlined_call_operand.vmem [shape: f32[1,32], index: 6, kind: input, shape index: {}, may-alias: {4,6}]
  %s7 = inlined_call_operand.vmem [shape: f32[16,32], index: 7, kind: output, shape index: {}]
  %s8 = sld [smem:[#allocation0]]
  $region46: #{_lambda_.9} parent=0
    _
  %s10 = ssub.s32 1, %s8
  %s11 = scalar_select 0, %s10, %s8
  $region1: #{_lambda_.9} parent=0
    #allocation2 [shape = 'u8[8192]{0}', space=vmem, size = 0x2000, scoped, tag = 'input window, operand 1, single buffered']
    #allocation3 [shape = 's32[1]{0}', space=sflag, size = 0x4, scoped, tag = 'scoped memory for _lambda_.9']
    #allocation4 [shape = 'u8[16384]{0}', space=vmem, size = 0x4000, scoped, tag = 'input window, operand 3, single buffered']
    #allocation5 [shape = 's32[1]{0}', space=sflag, size = 0x4, scoped, tag = 'scoped memory for _lambda_.9']
    %12 = vsyncpa [#allocation3], 0
    %13 = vsyncpa [#allocation5], 0
    // Predicated region
    $region2: #{_lambda_.9} parent=1 // pred_check
      _
    $region3: #{_lambda_.9} parent=1 // pred_check_branch
      %15 = sbr.rel (0) target = $region5
    $region4: #{_lambda_.9} parent=1 // pred_region
      _
    $region5: #{_lambda_.9} parent=1 // pred_fallthru
      _
    // Predicated region
    $region6: #{_lambda_.9} parent=1 // pred_check
      _
    $region7: #{_lambda_.9} parent=1 // pred_check_branch
      %17 = sbr.rel (0) target = $region9
    $region8: #{_lambda_.9} parent=1 // pred_region
      %19 = vsyncadd [#allocation3], 0
      %s20 = sshll.u32 %s1, 4
      %s21 = int_to_ptr.hbm [resolvable:$true] %s20
      %s22 = sshll.u32 [#allocation2], 4
      %s23 = int_to_ptr.vmem [resolvable:$true] %s22
      %28 = dma.hbm_to_vmem [thread:$0]  %s21, 256, %s23, [#allocation3], 64, 64, 4
    $region9: #{_lambda_.9} parent=1 // pred_fallthru
      _
    // Predicated region
    $region10: #{_lambda_.9} parent=1 // pred_check
      _
    $region11: #{_lambda_.9} parent=1 // pred_check_branch
      %30 = sbr.rel (0) target = $region13
    $region12: #{_lambda_.9} parent=1 // pred_region
      _
    $region13: #{_lambda_.9} parent=1 // pred_fallthru
      _
    // Predicated region
    $region14: #{_lambda_.9} parent=1 // pred_check
      _
    $region15: #{_lambda_.9} parent=1 // pred_check_branch
      %32 = sbr.rel (0) target = $region17
    $region16: #{_lambda_.9} parent=1 // pred_region
      %34 = vsyncadd [#allocation5], 0
      %s35 = sshll.u32 %s3, 4
      %s36 = int_to_ptr.hbm [resolvable:$true] %s35
      %s37 = sshll.u32 [#allocation4], 4
      %s38 = int_to_ptr.vmem [resolvable:$true] %s37
      %43 = dma.hbm_to_vmem [thread:$0]  %s36, 512, %s38, [#allocation5], 64, 64, 4
    $region17: #{_lambda_.9} parent=1 // pred_fallthru
      _
    // Predicated region
    $region18: #{_lambda_.9} parent=1 // pred_check
      _
    $region19: #{_lambda_.9} parent=1 // pred_check_branch
      %45 = sbr.rel (0) target = $region21
    $region20: #{_lambda_.9} parent=1 // pred_region
      _
    $region21: #{_lambda_.9} parent=1 // pred_fallthru
      _
    // Predicated region
    $region22: #{_lambda_.9} parent=1 // pred_check
      _
    $region23: #{_lambda_.9} parent=1 // pred_check_branch
      %47 = sbr.rel (0) target = $region25
    $region24: #{_lambda_.9} parent=1 // pred_region
      _
    $region25: #{_lambda_.9} parent=1 // pred_fallthru
      _
    // Predicated region
    $region26: #{_lambda_.9} parent=1 // pred_check
      _
    $region27: #{_lambda_.9} parent=1 // pred_check_branch
      %49 = sbr.rel (0) target = $region29
    $region28: #{_lambda_.9} parent=1 // pred_region
      _
    $region29: #{_lambda_.9} parent=1 // pred_fallthru
      _
    // Predicated region
    $region30: #{_lambda_.9} parent=1 // pred_check
      _
    $region31: #{_lambda_.9} parent=1 // pred_check_branch
      %51 = sbr.rel (0) target = $region33
    $region32: #{_lambda_.9} parent=1 // pred_region
      %53 = dma.done [#allocation3], 256
    $region33: #{_lambda_.9} parent=1 // pred_fallthru
      _
    // Predicated region
    $region34: #{_lambda_.9} parent=1 // pred_check
      _
    $region35: #{_lambda_.9} parent=1 // pred_check_branch
      %55 = sbr.rel (0) target = $region37
    $region36: #{_lambda_.9} parent=1 // pred_region
      %57 = dma.done [#allocation5], 512
    $region37: #{_lambda_.9} parent=1 // pred_fallthru
      _
    %v59 = vld [vmem:[%s0] sm:$0xff]
    %v60 = vld [vmem:[%s0 + $0x8] sm:$0xff]
    %v61 = vpack.c.bf16 %v60, %v59
    %v62 = vld [vmem:[#allocation2] sm:$0xf]
    %v63 = vld [vmem:[#allocation2 + $0x4] sm:$0xf]
    %v64 = vld [vmem:[#allocation2 + $0x8] sm:$0xf]
    %v65 = vld [vmem:[#allocation2 + $0xc] sm:$0xf]
    %v66 = vld [vmem:[%s2] sm:$0x1]
    %v68 = vperm.slane %v66, 0
    %v74 = vunpack.c.l.b16 %v62
    %v75 = vunpack.c.l.b16 %v63
    %v76 = vunpack.c.l.b16 %v64
    %v77 = vunpack.c.l.b16 %v65
    %v78 = vpack.c.b16 %v75, %v74
    %v79 = vpack.c.b16 %v77, %v76
    %vm82 = vcmask 261120
    %v84 = vsel %vm82, %v61, 0
    %86 = vmatpush.bf16.msra.mxu0 0
    %87 = vmatpush.bf16.msra.mxu0 0
    %88 = vmatpush.bf16.msra.mxu0 0
    %89 = vmatpush.bf16.msra.mxu0 0
    %90 = vmatpush.bf16.msra.mxu0 0
    %91 = vmatpush.bf16.msra.mxu0 0
    %92 = vmatpush.bf16.msra.mxu0 %v79
    %93 = vmatpush.bf16.msra.mxu0 %v78
    %94 = vmatmul.bf16.gmra.mxu0 %v84
    %v95 = vpop.f32.mrf.mxu0
    %v96 = vadd.f32 %v68, %v95
    %v97 = vpop.f32.mrf.mxu0
    %v98 = vadd.f32 %v68, %v97
    %99 = vdwg.mxu0
    %v100 = vmax.f32 %v96, 0.0
    %v101 = vmax.f32 %v98, 0.0
    %v102 = vpack.c.bf16 %v101, %v100
    %v103 = vld [vmem:[#allocation4] sm:$0xf]
    %v104 = vld [vmem:[#allocation4 + $0x4] sm:$0xf]
    %v105 = vld [vmem:[#allocation4 + $0x8] sm:$0xf]
    %v106 = vld [vmem:[#allocation4 + $0xc] sm:$0xf]
    %v107 = vld [vmem:[#allocation4 + $0x10] sm:$0xf]
    %v108 = vld [vmem:[#allocation4 + $0x14] sm:$0xf]
    %v109 = vld [vmem:[#allocation4 + $0x18] sm:$0xf]
    %v110 = vld [vmem:[#allocation4 + $0x1c] sm:$0xf]
    %v111 = vld [vmem:[%s4] sm:$0x1]
    %v113 = vperm.slane %v111, 0
    %v123 = vunpack.c.l.b16 %v103
    %v124 = vunpack.c.l.b16 %v104
    %v125 = vunpack.c.l.b16 %v105
    %v126 = vunpack.c.l.b16 %v106
    %v127 = vunpack.c.l.b16 %v107
    %v128 = vunpack.c.l.b16 %v108
    %v129 = vunpack.c.l.b16 %v109
    %v130 = vunpack.c.l.b16 %v110
    %v131 = vpack.c.b16 %v124, %v123
    %v132 = vpack.c.b16 %v126, %v125
    %v133 = vpack.c.b16 %v128, %v127
    %v134 = vpack.c.b16 %v130, %v129
    %vm139 = vcmask 523264
    %v141 = vsel %vm139, %v102, 0
    %143 = vmatpush.bf16.msra.mxu0 0
    %144 = vmatpush.bf16.msra.mxu0 0
    %145 = vmatpush.bf16.msra.mxu0 0
    %146 = vmatpush.bf16.msra.mxu0 0
    %147 = vmatpush.bf16.msra.mxu0 %v134
    %148 = vmatpush.bf16.msra.mxu0 %v133
    %149 = vmatpush.bf16.msra.mxu0 %v132
    %150 = vmatpush.bf16.msra.mxu0 %v131
    %151 = vmatmul.bf16.gmra.mxu0 %v141
    %v152 = vpop.f32.mrf.mxu0
    %v153 = vadd.f32 %v113, %v152
    %v154 = vpop.f32.mrf.mxu0
    %v155 = vadd.f32 %v113, %v154
    %156 = vdwg.mxu0
    %v157 = vadd.f32 %v59, %v153
    %v158 = vadd.f32 %v60, %v155
    %v159 = vld [vmem:[%s5] sm:$0x1]
    %v160 = vld [vmem:[%s6] sm:$0x1]
    %v161 = vsel %vm82, %v157, 0.0
    %162 = vadd.xlane.f32.xlu0 %v161
    %v163 = vpop.xlane.xlu0 %162
    %v164 = vsel %vm82, %v158, 0.0
    %165 = vadd.xlane.f32.xlu0 %v164
    %v166 = vpop.xlane.xlu0 %165
    %v167 = vrcp.pop 32.0
    %v168 = vmul.f32 32.0, %v167
    %v169 = vsub.f32 1.0, %v168
    %v170 = vmul.f32 %v167, %v169
    %v171 = vadd.f32 %v167, %v170
    %vm172 = vweird.f32 %v167
    %v173 = vsel %vm172, %v167, %v171
    %v174 = vmul.f32 %v163, %v173
    %v175 = vmul.f32 %v166, %v173
    %v176 = vsub.f32 %v157, %v174
    %v177 = vsub.f32 %v158, %v175
    %v178 = vmul.f32 %v176, %v176
    %v179 = vmul.f32 %v177, %v177
    %v180 = vsel %vm82, %v178, 0.0
    %181 = vadd.xlane.f32.xlu0 %v180
    %v182 = vpop.xlane.xlu0 %181
    %v183 = vsel %vm82, %v179, 0.0
    %184 = vadd.xlane.f32.xlu0 %v183
    %v185 = vpop.xlane.xlu0 %184
    %v186 = vmul.f32 %v182, %v173
    %v187 = vmul.f32 %v185, %v173
    %v188 = vadd.f32 %v186, 1e-05
    %v189 = vadd.f32 %v187, 1e-05
    %v190 = vrsqrt.pop %v188
    %v191 = vmul.f32 %v190, %v188
    %v192 = vmul.f32 %v191, %v190
    %v193 = vmul.f32 0.5, %v192
    %v194 = vsub.f32 1.5, %v193
    %v195 = vmul.f32 %v190, %v194
    %vm196 = vweird.f32 %v188
    %vm197 = vweird.f32 %v190
    %vm198 = vmor %vm196, %vm197
    %v199 = vsel %vm198, %v190, %v195
    %v200 = vrsqrt.pop %v189
    %v201 = vmul.f32 %v200, %v189
    %v202 = vmul.f32 %v201, %v200
    %v203 = vmul.f32 0.5, %v202
    %v204 = vsub.f32 1.5, %v203
    %v205 = vmul.f32 %v200, %v204
    %vm206 = vweird.f32 %v189
    %vm207 = vweird.f32 %v200
    %vm208 = vmor %vm206, %vm207
    %v209 = vsel %vm208, %v200, %v205
    %v210 = vmul.f32 %v176, %v199
    %v211 = vmul.f32 %v177, %v209
    %v213 = vperm.slane %v159, 0
    %v215 = vmul.f32 %v210, %v213
    %v216 = vmul.f32 %v211, %v213
    %v218 = vperm.slane %v160, 0
    %v220 = vadd.f32 %v215, %v218
    %v221 = vadd.f32 %v216, %v218
    %222 = vst.msk [vmem:[%s7] sm:$0xff] %vm82, %v220
    %223 = vst.msk [vmem:[%s7 + $0x8] sm:$0xff] %vm82, %v221
    // Predicated region
    $region38: #{_lambda_.9} parent=1 // pred_check
      _
    $region39: #{_lambda_.9} parent=1 // pred_check_branch
      %225 = sbr.rel (0) target = $region41
    $region40: #{_lambda_.9} parent=1 // pred_region
      _
    $region41: #{_lambda_.9} parent=1 // pred_fallthru
      _
    // Predicated region
    $region42: #{_lambda_.9} parent=1 // pred_check
      _
    $region43: #{_lambda_.9} parent=1 // pred_check_branch
      %227 = sbr.rel (0) target = $region45
    $region44: #{_lambda_.9} parent=1 // pred_region
      _
    $region45: #{_lambda_.9} parent=1 // pred_fallthru
      _
    %228 = vsyncpa [#allocation3], 1
    %229 = vsyncpa [#allocation5], 1

// kernel: _lambda_.10
$region0: #{_lambda_.10}
  #allocation0 [shape = 'u32[]', space=smem, size = 0x4, offset = 0x4, fixed_abs, tag = 'smem constant byte address 0x4 - core index']
  #allocation1 [shape = 'u32[72,128]{1,0:T(1,128)}', space=vmem, size = 0x9000, scoped, tag = 'internal scratch']
  %s0 = inlined_call_operand.vmem [shape: f32[2,8,32], index: 0, kind: input, shape index: {}, may-alias: {0,1}]
  %s1 = inlined_call_operand.vmem [shape: f32[2,8,32], index: 1, kind: input, shape index: {}, may-alias: {0,1}]
  %s2 = inlined_call_operand.vmem [shape: f32[2,8,8], index: 2, kind: input, shape index: {}]
  %s3 = inlined_call_operand.vmem [shape: bf16[4,32,8], index: 3, kind: input, shape index: {}]
  %s4 = inlined_call_operand.vmem [shape: bf16[4,32,8], index: 4, kind: input, shape index: {}]
  %s5 = inlined_call_operand.vmem [shape: bf16[4,32,8], index: 5, kind: input, shape index: {}]
  %s6 = inlined_call_operand.vmem [shape: f32[4,1,8], index: 6, kind: input, shape index: {}, may-alias: {6,7,8}]
  %s7 = inlined_call_operand.vmem [shape: f32[4,1,8], index: 7, kind: input, shape index: {}, may-alias: {6,7,8}]
  %s8 = inlined_call_operand.vmem [shape: f32[4,1,8], index: 8, kind: input, shape index: {}, may-alias: {6,7,8}]
  %s9 = inlined_call_operand.vmem [shape: bf16[4,8,32], index: 9, kind: input, shape index: {}]
  %s10 = inlined_call_operand.vmem [shape: f32[1,32], index: 10, kind: input, shape index: {}, may-alias: {10,12}]
  %s11 = inlined_call_operand.vmem [shape: f32[1,32], index: 11, kind: input, shape index: {}]
  %s12 = inlined_call_operand.vmem [shape: f32[1,32], index: 12, kind: input, shape index: {}, may-alias: {10,12}]
  %s13 = inlined_call_operand.vmem [shape: f32[2,8,32], index: 13, kind: output, shape index: {}]
  %s14 = sld [smem:[#allocation0]]
  $region85: #{_lambda_.10} parent=0
    _
  %s16 = ssub.s32 1, %s14
  %s17 = scalar_select 0, %s16, %s14
  loop: start=0, step=1, limit=4
  $region2: #{_lambda_.10} parent=0 // loop_pre_header
    _
  $region3: #{_lambda_.10} parent=0 // loop_header
    %s19 = sphi 0, %s23
    %p20 = scmp.ge.s32.totalorder %s19, 4
    %s29 = sphi 0, %s31
    %s32 = sphi 0, %s29
    %s33 = sphi 0, %s32
    %s49 = sphi 0, %s33
    %s55 = sphi 0, %s57
    %s58 = sphi 0, %s55
    %s59 = sphi 0, %s58
    %s75 = sphi 0, %s59
    %s81 = sphi 0, %s83
    %s84 = sphi 0, %s81
    %s85 = sphi 0, %s84
    %s101 = sphi 0, %s85
    %s105 = sphi 0, %s105
    %s107 = sphi 0, %s105
    %s108 = sphi 0, %s107
    %s122 = sphi 0, %s108
    %s126 = sphi 0, %s126
    %s128 = sphi 0, %s126
    %s129 = sphi 0, %s128
    %s143 = sphi 0, %s129
    %s147 = sphi 0, %s147
    %s149 = sphi 0, %s147
    %s150 = sphi 0, %s149
    %s164 = sphi 0, %s150
    %s168 = sphi 0, %s168
    %s170 = sphi 0, %s168
    %s171 = sphi 0, %s170
    %s185 = sphi 0, %s171
    %s189 = sphi 0, %s189
    %s191 = sphi 0, %s189
    %s192 = sphi 0, %s191
    %s206 = sphi 0, %s192
    %s210 = sphi 0, %s210
    %s212 = sphi 0, %s210
    %s213 = sphi 0, %s212
    %s227 = sphi 0, %s213
    %s231 = sphi 0, %s231
    %s233 = sphi 0, %s231
    %s234 = sphi 0, %s233
    %s248 = sphi 0, %s234
    %s252 = sphi 0, %s252
    %s254 = sphi 0, %s252
    %s255 = sphi 0, %s254
    %s269 = sphi 0, %s255
    %s273 = sphi 0, %s273
    %s275 = sphi 0, %s273
    %s276 = sphi 0, %s275
    %s290 = sphi 0, %s276
    %s294 = sphi 0, %s294
    %s296 = sphi 0, %s294
    %s297 = sphi 0, %s296
    %s311 = sphi 0, %s297
    %s317 = sphi 0, %s319
    %s320 = sphi 0, %s317
    %s321 = sphi 0, %s320
    %s337 = sphi 0, %s321
  $region4: #{_lambda_.10} parent=0 // loop_header_branch
    %22 = sbr.rel (%p20) target = $region8
  $region5: #{_lambda_.10} parent=0 // loop_body
    %s24 = ssub.s32 %s19, 1
    %s25 = ssub.s32 %s19, 2
    %s26 = sadd.s32 %s19, 1
    %s27 = ssub.s32 %s19, %s26
    %p28 = scmp.eq.s32.totalorder %s27, 0
    %s30 = sadd.s32 %s29, 1
    %s31 = scalar_select %p28, %s29, %s30
    %p34 = pneg %p28
    %p35 = scmp.eq.s32.totalorder %s19, 1
    %p36 = por %p34, %p35
    %p37 = scmp.ne.s32.totalorder %s29, %s32
    %p38 = scmp.eq.s32.totalorder %s19, 0
    %p39 = por %p37, %p38
    %p40 = scmp.ne.s32.totalorder %s29, %s32
    %p41 = scmp.eq.s32.totalorder %s24, 1
    %p42 = por %p40, %p41
    %p43 = scmp.ne.s32.totalorder %s32, %s33
    %p44 = scmp.eq.s32.totalorder %s24, 0
    %p45 = por %p43, %p44
    %p46 = scmp.ne.s32.totalorder %s32, %s33
    %p47 = scmp.eq.s32.totalorder %s25, 1
    %p48 = por %p46, %p47
    %p50 = scmp.ne.s32.totalorder %s33, %s49
    %p51 = scmp.eq.s32.totalorder %s25, 0
    %p52 = por %p50, %p51
    %s53 = ssub.s32 %s19, %s26
    %p54 = scmp.eq.s32.totalorder %s53, 0
    %s56 = sadd.s32 %s55, 1
    %s57 = scalar_select %p54, %s55, %s56
    %p60 = pneg %p54
    %p61 = scmp.eq.s32.totalorder %s19, 1
    %p62 = por %p60, %p61
    %p63 = scmp.ne.s32.totalorder %s55, %s58
    %p64 = scmp.eq.s32.totalorder %s19, 0
    %p65 = por %p63, %p64
    %p66 = scmp.ne.s32.totalorder %s55, %s58
    %p67 = scmp.eq.s32.totalorder %s24, 1
    %p68 = por %p66, %p67
    %p69 = scmp.ne.s32.totalorder %s58, %s59
    %p70 = scmp.eq.s32.totalorder %s24, 0
    %p71 = por %p69, %p70
    %p72 = scmp.ne.s32.totalorder %s58, %s59
    %p73 = scmp.eq.s32.totalorder %s25, 1
    %p74 = por %p72, %p73
    %p76 = scmp.ne.s32.totalorder %s59, %s75
    %p77 = scmp.eq.s32.totalorder %s25, 0
    %p78 = por %p76, %p77
    %s79 = ssub.s32 %s19, %s26
    %p80 = scmp.eq.s32.totalorder %s79, 0
    %s82 = sadd.s32 %s81, 1
    %s83 = scalar_select %p80, %s81, %s82
    %p86 = pneg %p80
    %p87 = scmp.eq.s32.totalorder %s19, 1
    %p88 = por %p86, %p87
    %p89 = scmp.ne.s32.totalorder %s81, %s84
    %p90 = scmp.eq.s32.totalorder %s19, 0
    %p91 = por %p89, %p90
    %p92 = scmp.ne.s32.totalorder %s81, %s84
    %p93 = scmp.eq.s32.totalorder %s24, 1
    %p94 = por %p92, %p93
    %p95 = scmp.ne.s32.totalorder %s84, %s85
    %p96 = scmp.eq.s32.totalorder %s24, 0
    %p97 = por %p95, %p96
    %p98 = scmp.ne.s32.totalorder %s84, %s85
    %p99 = scmp.eq.s32.totalorder %s25, 1
    %p100 = por %p98, %p99
    %p102 = scmp.ne.s32.totalorder %s85, %s101
    %p103 = scmp.eq.s32.totalorder %s25, 0
    %p104 = por %p102, %p103
    %s106 = sadd.s32 %s105, 1
    %p109 = scmp.eq.s32.totalorder %s19, 1
    %p110 = scmp.ne.s32.totalorder %s105, %s107
    %p111 = scmp.eq.s32.totalorder %s19, 0
    %p112 = por %p110, %p111
    %p113 = scmp.ne.s32.totalorder %s105, %s107
    %p114 = scmp.eq.s32.totalorder %s24, 1
    %p115 = por %p113, %p114
    %p116 = scmp.ne.s32.totalorder %s107, %s108
    %p117 = scmp.eq.s32.totalorder %s24, 0
    %p118 = por %p116, %p117
    %p119 = scmp.ne.s32.totalorder %s107, %s108
    %p120 = scmp.eq.s32.totalorder %s25, 1
    %p121 = por %p119, %p120
    %p123 = scmp.ne.s32.totalorder %s108, %s122
    %p124 = scmp.eq.s32.totalorder %s25, 0
    %p125 = por %p123, %p124
    %s127 = sadd.s32 %s126, 1
    %p130 = scmp.eq.s32.totalorder %s19, 1
    %p131 = scmp.ne.s32.totalorder %s126, %s128
    %p132 = scmp.eq.s32.totalorder %s19, 0
    %p133 = por %p131, %p132
    %p134 = scmp.ne.s32.totalorder %s126, %s128
    %p135 = scmp.eq.s32.totalorder %s24, 1
    %p136 = por %p134, %p135
    %p137 = scmp.ne.s32.totalorder %s128, %s129
    %p138 = scmp.eq.s32.totalorder %s24, 0
    %p139 = por %p137, %p138
    %p140 = scmp.ne.s32.totalorder %s128, %s129
    %p141 = scmp.eq.s32.totalorder %s25, 1
    %p142 = por %p140, %p141
    %p144 = scmp.ne.s32.totalorder %s129, %s143
    %p145 = scmp.eq.s32.totalorder %s25, 0
    %p146 = por %p144, %p145
    %s148 = sadd.s32 %s147, 1
    %p151 = scmp.eq.s32.totalorder %s19, 1
    %p152 = scmp.ne.s32.totalorder %s147, %s149
    %p153 = scmp.eq.s32.totalorder %s19, 0
    %p154 = por %p152, %p153
    %p155 = scmp.ne.s32.totalorder %s147, %s149
    %p156 = scmp.eq.s32.totalorder %s24, 1
    %p157 = por %p155, %p156
    %p158 = scmp.ne.s32.totalorder %s149, %s150
    %p159 = scmp.eq.s32.totalorder %s24, 0
    %p160 = por %p158, %p159
    %p161 = scmp.ne.s32.totalorder %s149, %s150
    %p162 = scmp.eq.s32.totalorder %s25, 1
    %p163 = por %p161, %p162
    %p165 = scmp.ne.s32.totalorder %s150, %s164
    %p166 = scmp.eq.s32.totalorder %s25, 0
    %p167 = por %p165, %p166
    %s169 = sadd.s32 %s168, 1
    %p172 = scmp.eq.s32.totalorder %s19, 1
    %p173 = scmp.ne.s32.totalorder %s168, %s170
    %p174 = scmp.eq.s32.totalorder %s19, 0
    %p175 = por %p173, %p174
    %p176 = scmp.ne.s32.totalorder %s168, %s170
    %p177 = scmp.eq.s32.totalorder %s24, 1
    %p178 = por %p176, %p177
    %p179 = scmp.ne.s32.totalorder %s170, %s171
    %p180 = scmp.eq.s32.totalorder %s24, 0
    %p181 = por %p179, %p180
    %p182 = scmp.ne.s32.totalorder %s170, %s171
    %p183 = scmp.eq.s32.totalorder %s25, 1
    %p184 = por %p182, %p183
    %p186 = scmp.ne.s32.totalorder %s171, %s185
    %p187 = scmp.eq.s32.totalorder %s25, 0
    %p188 = por %p186, %p187
    %s190 = sadd.s32 %s189, 1
    %p193 = scmp.eq.s32.totalorder %s19, 1
    %p194 = scmp.ne.s32.totalorder %s189, %s191
    %p195 = scmp.eq.s32.totalorder %s19, 0
    %p196 = por %p194, %p195
    %p197 = scmp.ne.s32.totalorder %s189, %s191
    %p198 = scmp.eq.s32.totalorder %s24, 1
    %p199 = por %p197, %p198
    %p200 = scmp.ne.s32.totalorder %s191, %s192
    %p201 = scmp.eq.s32.totalorder %s24, 0
    %p202 = por %p200, %p201
    %p203 = scmp.ne.s32.totalorder %s191, %s192
    %p204 = scmp.eq.s32.totalorder %s25, 1
    %p205 = por %p203, %p204
    %p207 = scmp.ne.s32.totalorder %s192, %s206
    %p208 = scmp.eq.s32.totalorder %s25, 0
    %p209 = por %p207, %p208
    %s211 = sadd.s32 %s210, 1
    %p214 = scmp.eq.s32.totalorder %s19, 1
    %p215 = scmp.ne.s32.totalorder %s210, %s212
    %p216 = scmp.eq.s32.totalorder %s19, 0
    %p217 = por %p215, %p216
    %p218 = scmp.ne.s32.totalorder %s210, %s212
    %p219 = scmp.eq.s32.totalorder %s24, 1
    %p220 = por %p218, %p219
    %p221 = scmp.ne.s32.totalorder %s212, %s213
    %p222 = scmp.eq.s32.totalorder %s24, 0
    %p223 = por %p221, %p222
    %p224 = scmp.ne.s32.totalorder %s212, %s213
    %p225 = scmp.eq.s32.totalorder %s25, 1
    %p226 = por %p224, %p225
    %p228 = scmp.ne.s32.totalorder %s213, %s227
    %p229 = scmp.eq.s32.totalorder %s25, 0
    %p230 = por %p228, %p229
    %s232 = sadd.s32 %s231, 1
    %p235 = scmp.eq.s32.totalorder %s19, 1
    %p236 = scmp.ne.s32.totalorder %s231, %s233
    %p237 = scmp.eq.s32.totalorder %s19, 0
    %p238 = por %p236, %p237
    %p239 = scmp.ne.s32.totalorder %s231, %s233
    %p240 = scmp.eq.s32.totalorder %s24, 1
    %p241 = por %p239, %p240
    %p242 = scmp.ne.s32.totalorder %s233, %s234
    %p243 = scmp.eq.s32.totalorder %s24, 0
    %p244 = por %p242, %p243
    %p245 = scmp.ne.s32.totalorder %s233, %s234
    %p246 = scmp.eq.s32.totalorder %s25, 1
    %p247 = por %p245, %p246
    %p249 = scmp.ne.s32.totalorder %s234, %s248
    %p250 = scmp.eq.s32.totalorder %s25, 0
    %p251 = por %p249, %p250
    %s253 = sadd.s32 %s252, 1
    %p256 = scmp.eq.s32.totalorder %s19, 1
    %p257 = scmp.ne.s32.totalorder %s252, %s254
    %p258 = scmp.eq.s32.totalorder %s19, 0
    %p259 = por %p257, %p258
    %p260 = scmp.ne.s32.totalorder %s252, %s254
    %p261 = scmp.eq.s32.totalorder %s24, 1
    %p262 = por %p260, %p261
    %p263 = scmp.ne.s32.totalorder %s254, %s255
    %p264 = scmp.eq.s32.totalorder %s24, 0
    %p265 = por %p263, %p264
    %p266 = scmp.ne.s32.totalorder %s254, %s255
    %p267 = scmp.eq.s32.totalorder %s25, 1
    %p268 = por %p266, %p267
    %p270 = scmp.ne.s32.totalorder %s255, %s269
    %p271 = scmp.eq.s32.totalorder %s25, 0
    %p272 = por %p270, %p271
    %s274 = sadd.s32 %s273, 1
    %p277 = scmp.eq.s32.totalorder %s19, 1
    %p278 = scmp.ne.s32.totalorder %s273, %s275
    %p279 = scmp.eq.s32.totalorder %s19, 0
    %p280 = por %p278, %p279
    %p281 = scmp.ne.s32.totalorder %s273, %s275
    %p282 = scmp.eq.s32.totalorder %s24, 1
    %p283 = por %p281, %p282
    %p284 = scmp.ne.s32.totalorder %s275, %s276
    %p285 = scmp.eq.s32.totalorder %s24, 0
    %p286 = por %p284, %p285
    %p287 = scmp.ne.s32.totalorder %s275, %s276
    %p288 = scmp.eq.s32.totalorder %s25, 1
    %p289 = por %p287, %p288
    %p291 = scmp.ne.s32.totalorder %s276, %s290
    %p292 = scmp.eq.s32.totalorder %s25, 0
    %p293 = por %p291, %p292
    %s295 = sadd.s32 %s294, 1
    %p298 = scmp.eq.s32.totalorder %s19, 1
    %p299 = scmp.ne.s32.totalorder %s294, %s296
    %p300 = scmp.eq.s32.totalorder %s19, 0
    %p301 = por %p299, %p300
    %p302 = scmp.ne.s32.totalorder %s294, %s296
    %p303 = scmp.eq.s32.totalorder %s24, 1
    %p304 = por %p302, %p303
    %p305 = scmp.ne.s32.totalorder %s296, %s297
    %p306 = scmp.eq.s32.totalorder %s24, 0
    %p307 = por %p305, %p306
    %p308 = scmp.ne.s32.totalorder %s296, %s297
    %p309 = scmp.eq.s32.totalorder %s25, 1
    %p310 = por %p308, %p309
    %p312 = scmp.ne.s32.totalorder %s297, %s311
    %p313 = scmp.eq.s32.totalorder %s25, 0
    %p314 = por %p312, %p313
    %s315 = ssub.s32 %s19, %s26
    %p316 = scmp.eq.s32.totalorder %s315, 0
    %s318 = sadd.s32 %s317, 1
    %s319 = scalar_select %p316, %s317, %s318
    %p322 = pneg %p316
    %p323 = scmp.eq.s32.totalorder %s19, 1
    %p324 = por %p322, %p323
    %p325 = scmp.ne.s32.totalorder %s317, %s320
    %p326 = scmp.eq.s32.totalorder %s19, 0
    %p327 = por %p325, %p326
    %p328 = scmp.ne.s32.totalorder %s317, %s320
    %p329 = scmp.eq.s32.totalorder %s24, 1
    %p330 = por %p328, %p329
    %p331 = scmp.ne.s32.totalorder %s320, %s321
    %p332 = scmp.eq.s32.totalorder %s24, 0
    %p333 = por %p331, %p332
    %p334 = scmp.ne.s32.totalorder %s320, %s321
    %p335 = scmp.eq.s32.totalorder %s25, 1
    %p336 = por %p334, %p335
    %p338 = scmp.ne.s32.totalorder %s321, %s337
    %p339 = scmp.eq.s32.totalorder %s25, 0
    %p340 = por %p338, %p339
    %p341 = scmp.le.s32.totalorder 1, %s19
    %p342 = scmp.lt.s32.totalorder %s19, 3
    %p343 = pnand %p341, %p342
    %p344 = pneg %p343
    // Predicated region
    $region9: #{_lambda_.10} parent=5 // pred_check
      _
    $region10: #{_lambda_.10} parent=5 // pred_check_branch
      %346 = sbr.rel (%p343) target = $region12
    $region11: #{_lambda_.10} parent=5 // pred_region
      %s347 = ssub.s32 %s19, 1
      // Predicated region
      $region13: #{_lambda_.10} parent=11 // pred_check
        %p348 = pneg %p118
      $region14: #{_lambda_.10} parent=11 // pred_check_branch
        %350 = sbr.rel (%p348) target = $region16
      $region15: #{_lambda_.10} parent=11 // pred_region
        _
      $region16: #{_lambda_.10} parent=11 // pred_fallthru
        _
      // Predicated region
      $region17: #{_lambda_.10} parent=11 // pred_check
        %p351 = pneg %p139
      $region18: #{_lambda_.10} parent=11 // pred_check_branch
        %353 = sbr.rel (%p351) target = $region20
      $region19: #{_lambda_.10} parent=11 // pred_region
        _
      $region20: #{_lambda_.10} parent=11 // pred_fallthru
        _
      // Predicated region
      $region21: #{_lambda_.10} parent=11 // pred_check
        %p354 = pneg %p160
      $region22: #{_lambda_.10} parent=11 // pred_check_branch
        %356 = sbr.rel (%p354) target = $region24
      $region23: #{_lambda_.10} parent=11 // pred_region
        _
      $region24: #{_lambda_.10} parent=11 // pred_fallthru
        _
      // Predicated region
      $region25: #{_lambda_.10} parent=11 // pred_check
        %p357 = pneg %p181
      $region26: #{_lambda_.10} parent=11 // pred_check_branch
        %359 = sbr.rel (%p357) target = $region28
      $region27: #{_lambda_.10} parent=11 // pred_region
        _
      $region28: #{_lambda_.10} parent=11 // pred_fallthru
        _
      // Predicated region
      $region29: #{_lambda_.10} parent=11 // pred_check
        %p360 = pneg %p202
      $region30: #{_lambda_.10} parent=11 // pred_check_branch
        %362 = sbr.rel (%p360) target = $region32
      $region31: #{_lambda_.10} parent=11 // pred_region
        _
      $region32: #{_lambda_.10} parent=11 // pred_fallthru
        _
      // Predicated region
      $region33: #{_lambda_.10} parent=11 // pred_check
        %p363 = pneg %p223
      $region34: #{_lambda_.10} parent=11 // pred_check_branch
        %365 = sbr.rel (%p363) target = $region36
      $region35: #{_lambda_.10} parent=11 // pred_region
        _
      $region36: #{_lambda_.10} parent=11 // pred_fallthru
        _
      // Predicated region
      $region37: #{_lambda_.10} parent=11 // pred_check
        %p366 = pneg %p244
      $region38: #{_lambda_.10} parent=11 // pred_check_branch
        %368 = sbr.rel (%p366) target = $region40
      $region39: #{_lambda_.10} parent=11 // pred_region
        _
      $region40: #{_lambda_.10} parent=11 // pred_fallthru
        _
      // Predicated region
      $region41: #{_lambda_.10} parent=11 // pred_check
        %p369 = pneg %p265
      $region42: #{_lambda_.10} parent=11 // pred_check_branch
        %371 = sbr.rel (%p369) target = $region44
      $region43: #{_lambda_.10} parent=11 // pred_region
        _
      $region44: #{_lambda_.10} parent=11 // pred_fallthru
        _
      // Predicated region
      $region45: #{_lambda_.10} parent=11 // pred_check
        %p372 = pneg %p286
      $region46: #{_lambda_.10} parent=11 // pred_check_branch
        %374 = sbr.rel (%p372) target = $region48
      $region47: #{_lambda_.10} parent=11 // pred_region
        _
      $region48: #{_lambda_.10} parent=11 // pred_fallthru
        _
      // Predicated region
      $region49: #{_lambda_.10} parent=11 // pred_check
        %p375 = pneg %p307
      $region50: #{_lambda_.10} parent=11 // pred_check_branch
        %377 = sbr.rel (%p375) target = $region52
      $region51: #{_lambda_.10} parent=11 // pred_region
        _
      $region52: #{_lambda_.10} parent=11 // pred_fallthru
        _
    $region12: #{_lambda_.10} parent=5 // pred_fallthru
      _
    %p378 = scmp.lt.s32.totalorder %s19, 2
    // Predicated region
    $region53: #{_lambda_.10} parent=5 // pred_check
      %p379 = pneg %p378
    $region54: #{_lambda_.10} parent=5 // pred_check_branch
      %381 = sbr.rel (%p379) target = $region56
    $region55: #{_lambda_.10} parent=5 // pred_region
      // Predicated region
      $region57: #{_lambda_.10} parent=55 // pred_check
        %p382 = pneg %p39
      $region58: #{_lambda_.10} parent=55 // pred_check_branch
        %384 = sbr.rel (%p382) target = $region60
      $region59: #{_lambda_.10} parent=55 // pred_region
        %p385 = scmp.lt.s32.totalorder %s19, 1
        %s386 = scalar_select %p385, %s19, 1
        %s387 = smul.addr %s386, 8
        %s388 = scalar_lea.vmem %s0, %s387
      $region60: #{_lambda_.10} parent=55 // pred_fallthru
        _
      // Predicated region
      $region61: #{_lambda_.10} parent=55 // pred_check
        %p389 = pneg %p65
      $region62: #{_lambda_.10} parent=55 // pred_check_branch
        %391 = sbr.rel (%p389) target = $region64
      $region63: #{_lambda_.10} parent=55 // pred_region
        %p392 = scmp.lt.s32.totalorder %s19, 1
        %s393 = scalar_select %p392, %s19, 1
        %s394 = smul.addr %s393, 8
        %s395 = scalar_lea.vmem %s1, %s394
      $region64: #{_lambda_.10} parent=55 // pred_fallthru
        _
      // Predicated region
      $region65: #{_lambda_.10} parent=55 // pred_check
        %p396 = pneg %p91
      $region66: #{_lambda_.10} parent=55 // pred_check_branch
        %398 = sbr.rel (%p396) target = $region68
      $region67: #{_lambda_.10} parent=55 // pred_region
        %p399 = scmp.lt.s32.totalorder %s19, 1
        %s400 = scalar_select %p399, %s19, 1
        %s401 = smul.addr %s400, 8
        %s402 = scalar_lea.vmem %s2, %s401
      $region68: #{_lambda_.10} parent=55 // pred_fallthru
        _
    $region56: #{_lambda_.10} parent=5 // pred_fallthru
      _
    %p403 = scmp.le.s32.totalorder 1, %s19
    %p404 = scmp.lt.s32.totalorder %s19, 3
    %p405 = pnand %p403, %p404
    %p406 = pneg %p405
    // Predicated region
    $region69: #{_lambda_.10} parent=5 // pred_check
      _
    $region70: #{_lambda_.10} parent=5 // pred_check_branch
      %408 = sbr.rel (%p405) target = $region72
    $region71: #{_lambda_.10} parent=5 // pred_region
      %s409 = ssub.s32 %s19, 1
      %p410 = scmp.lt.s32.totalorder %s24, 1
      %s411 = scalar_select %p410, %s24, 1
      %s412 = smul.addr %s411, 8
      %s413 = scalar_lea.vmem %s0, %s412
      %p414 = pneg %p45
      %p415 = pneg %p42
      %p416 = scmp.lt.s32.totalorder %s24, 1
      %s417 = scalar_select %p416, %s24, 1
      %s418 = smul.addr %s417, 8
      %s419 = scalar_lea.vmem %s1, %s418
      %p420 = pneg %p71
      %p421 = pneg %p68
      %p422 = scmp.lt.s32.totalorder %s24, 1
      %s423 = scalar_select %p422, %s24, 1
      %s424 = smul.addr %s423, 8
      %s425 = scalar_lea.vmem %s2, %s424
      %p426 = pneg %p97
      %p427 = pneg %p94
      %p428 = pneg %p118
      %p429 = pneg %p115
      %p430 = pneg %p139
      %p431 = pneg %p136
      %p432 = pneg %p160
      %p433 = pneg %p157
      %p434 = pneg %p181
      %p435 = pneg %p178
      %p436 = pneg %p202
      %p437 = pneg %p199
      %p438 = pneg %p223
      %p439 = pneg %p220
      %p440 = pneg %p244
      %p441 = pneg %p241
      %p442 = pneg %p265
      %p443 = pneg %p262
      %p444 = pneg %p286
      %p445 = pneg %p283
      %p446 = pneg %p307
      %p447 = pneg %p304
      %p448 = pneg %p333
      %p449 = pneg %p330
      %p450 = scmp.lt.s32.totalorder %s24, 1
      %s451 = scalar_select %p450, %s24, 1
      %s452 = smul.addr %s451, 8
      %s453 = scalar_lea.vmem %s13, %s452
      %p454 = scmp.lt.s32.totalorder %s24, 1
      %s455 = scalar_select %p454, %s24, 1
      %s456 = smul.addr %s455, 8
      %s457 = scalar_lea.vmem %s0, %s456
      %p458 = scmp.lt.s32.totalorder %s24, 1
      %s459 = scalar_select %p458, %s24, 1
      %s460 = smul.addr %s459, 8
      %s461 = scalar_lea.vmem %s1, %s460
      %p462 = scmp.lt.s32.totalorder %s24, 1
      %s463 = scalar_select %p462, %s24, 1
      %s464 = smul.addr %s463, 8
      %s465 = scalar_lea.vmem %s2, %s464
      %p466 = scmp.lt.s32.totalorder %s24, 1
      %s467 = scalar_select %p466, %s24, 1
      %s468 = smul.addr %s467, 8
      %s469 = scalar_lea.vmem %s13, %s468
      %v471 = vld [vmem:[%s457] sm:$0xff]
      %v472 = vld [vmem:[%s461] sm:$0xff]
      %v473 = vld [vmem:[%s465] sm:$0xff]
      %v474 = vpack.c.bf16 %v471, %v471
      %v475 = vpack.c.bf16 %v472, %v472
      %v476 = vld [vmem:[%s3] sm:$0xf]
      %v477 = vld [vmem:[%s3 + $0x4] sm:$0xf]
      %v478 = vld [vmem:[%s3 + $0x8] sm:$0xf]
      %v479 = vld [vmem:[%s3 + $0xc] sm:$0xf]
      %v480 = vld [vmem:[%s6] sm:$0x1]
      %v482 = vperm.slane %v480, 0
      %v488 = vunpack.c.l.b16 %v476
      %v489 = vunpack.c.l.b16 %v477
      %v490 = vunpack.c.l.b16 %v478
      %v491 = vunpack.c.l.b16 %v479
      %v492 = vpack.c.b16 %v489, %v488
      %v493 = vpack.c.b16 %v491, %v490
      %vm496 = vcmask 261120
      %v498 = vsel %vm496, %v474, 0
      %500 = vmatpush.bf16.msra.mxu0 0
      %501 = vmatpush.bf16.msra.mxu0 0
      %502 = vmatpush.bf16.msra.mxu0 0
      %503 = vmatpush.bf16.msra.mxu0 0
      %504 = vmatpush.bf16.msra.mxu0 0
      %505 = vmatpush.bf16.msra.mxu0 0
      %506 = vmatpush.bf16.msra.mxu0 %v493
      %507 = vmatpush.bf16.msra.mxu0 %v492
      %508 = vmatmul.bf16.gmra.mxu0 %v498
      %v509 = vpop.f32.mrf.mxu0
      %v510 = vadd.f32 %v482, %v509
      %v511 = vpop.f32.mrf.mxu0
      %512 = vdwg.mxu0
      %v513 = vld [vmem:[%s4] sm:$0xf]
      %v514 = vld [vmem:[%s4 + $0x4] sm:$0xf]
      %v515 = vld [vmem:[%s4 + $0x8] sm:$0xf]
      %v516 = vld [vmem:[%s4 + $0xc] sm:$0xf]
      %v517 = vld [vmem:[%s7] sm:$0x1]
      %v519 = vperm.slane %v517, 0
      %v525 = vunpack.c.l.b16 %v513
      %v526 = vunpack.c.l.b16 %v514
      %v527 = vunpack.c.l.b16 %v515
      %v528 = vunpack.c.l.b16 %v516
      %v529 = vpack.c.b16 %v526, %v525
      %v530 = vpack.c.b16 %v528, %v527
      %v534 = vsel %vm496, %v475, 0
      %536 = vmatpush.bf16.msra.mxu0 0
      %537 = vmatpush.bf16.msra.mxu0 0
      %538 = vmatpush.bf16.msra.mxu0 0
      %539 = vmatpush.bf16.msra.mxu0 0
      %540 = vmatpush.bf16.msra.mxu0 0
      %541 = vmatpush.bf16.msra.mxu0 0
      %542 = vmatpush.bf16.msra.mxu0 %v530
      %543 = vmatpush.bf16.msra.mxu0 %v529
      %544 = vmatmul.bf16.gmra.mxu0 %v534
      %v545 = vpop.f32.mrf.mxu0
      %v546 = vadd.f32 %v519, %v545
      %v547 = vpop.f32.mrf.mxu0
      %548 = vdwg.mxu0
      %v549 = vld [vmem:[%s5] sm:$0xf]
      %v550 = vld [vmem:[%s5 + $0x4] sm:$0xf]
      %v551 = vld [vmem:[%s5 + $0x8] sm:$0xf]
      %v552 = vld [vmem:[%s5 + $0xc] sm:$0xf]
      %v553 = vld [vmem:[%s8] sm:$0x1]
      %v555 = vperm.slane %v553, 0
      %v561 = vunpack.c.l.b16 %v549
      %v562 = vunpack.c.l.b16 %v550
      %v563 = vunpack.c.l.b16 %v551
      %v564 = vunpack.c.l.b16 %v552
      %v565 = vpack.c.b16 %v562, %v561
      %v566 = vpack.c.b16 %v564, %v563
      %569 = vmatpush.bf16.msra.mxu0 0
      %570 = vmatpush.bf16.msra.mxu0 0
      %571 = vmatpush.bf16.msra.mxu0 0
      %572 = vmatpush.bf16.msra.mxu0 0
      %573 = vmatpush.bf16.msra.mxu0 0
      %574 = vmatpush.bf16.msra.mxu0 0
      %575 = vmatpush.bf16.msra.mxu0 %v566
      %576 = vmatpush.bf16.msra.mxu0 %v565
      %577 = vmatmul.bf16.gmra.mxu0 %v534
      %v578 = vpop.f32.mrf.mxu0
      %v579 = vadd.f32 %v555, %v578
      %v580 = vpop.f32.mrf.mxu0
      %581 = vdwg.mxu0
      %v582 = vmul.f32 %v510, 0.35355338
      %v583 = vpack.c.bf16 %v582, %v582
      %v584 = vpack.c.bf16 %v546, %v546
      %vm585 = vcmask 64512
      %v587 = vsel %vm585, %v583, 0
      %v590 = vsel %vm585, %v584, 0
      %592 = vmatpush.bf16.xpose.msra.mxu0 0
      %593 = vmatpush.bf16.xpose.msra.mxu0 0
      %594 = vmatpush.bf16.xpose.msra.mxu0 0
      %595 = vmatpush.bf16.xpose.msra.mxu0 0
      %596 = vmatpush.bf16.xpose.msra.mxu0 0
      %597 = vmatpush.bf16.xpose.msra.mxu0 0
      %598 = vmatpush.bf16.xpose.msra.mxu0 0
      %599 = vmatpush.bf16.xpose.msra.mxu0 %v590
      %600 = vmatmul.bf16.gmra.mxu0 %v587
      %v601 = vpop.f32.mrf.mxu0
      %v602 = vadd.f32 %v473, %v601
      %v603 = vpop.f32.mrf.mxu0
      %604 = vdwg.mxu0
      %v605 = vsel %vm585, %v602, -inf
      %606 = vmax.xlane.f32.xlu0 %v605
      %v607 = vpop.xlane.xlu0 %606
      %v608 = vsub.f32 %v602, %v607
      %v609 = vmul.f32 %v608, 1.442695
      %v610 = vpow.pop %v609
      %v611 = vsel %vm585, %v610, 0.0
      %612 = vadd.xlane.f32.xlu0 %v611
      %v613 = vpop.xlane.xlu0 %612
      %v614 = vrcp.pop %v613
      %v615 = vmul.f32 %v610, %v614
      %v616 = vpack.c.bf16 %v615, %v615
      %v617 = vpack.c.bf16 %v579, %v579
      %v619 = vsel %vm585, %v616, 0
      %vm621 = vcmask 1043456
      %v623 = vsel %vm621, %v617, 0
      %625 = vmatpush.bf16.msra.mxu0 0
      %626 = vmatpush.bf16.msra.mxu0 0
      %627 = vmatpush.bf16.msra.mxu0 0
      %628 = vmatpush.bf16.msra.mxu0 0
      %629 = vmatpush.bf16.msra.mxu0 0
      %630 = vmatpush.bf16.msra.mxu0 0
      %631 = vmatpush.bf16.msra.mxu0 0
      %632 = vmatpush.bf16.msra.mxu0 %v623
      %633 = vmatmul.bf16.gmra.mxu0 %v619
      %v634 = vpop.f32.mrf.mxu0
      %v635 = vadd.f32 0.0, %v634
      %v636 = vpop.f32.mrf.mxu0
      %637 = vdwg.mxu0
      %v638 = vpack.c.bf16 %v635, %v635
      %v639 = vld [vmem:[%s9] sm:$0xf]
      %s640 = scalar_lea.vmem %s3, 16
      %v641 = vld [vmem:[%s640] sm:$0xf]
      %v642 = vld [vmem:[%s640 + $0x4] sm:$0xf]
      %v643 = vld [vmem:[%s640 + $0x8] sm:$0xf]
      %v644 = vld [vmem:[%s640 + $0xc] sm:$0xf]
      %s645 = scalar_lea.vmem %s6, 1
      %v646 = vld [vmem:[%s645] sm:$0x1]
      %v648 = vperm.slane %v646, 0
      %v654 = vunpack.c.l.b16 %v641
      %v655 = vunpack.c.l.b16 %v642
      %v656 = vunpack.c.l.b16 %v643
      %v657 = vunpack.c.l.b16 %v644
      %v658 = vpack.c.b16 %v655, %v654
      %v659 = vpack.c.b16 %v657, %v656
      %662 = vmatpush.bf16.msra.mxu0 0
      %663 = vmatpush.bf16.msra.mxu0 0
      %664 = vmatpush.bf16.msra.mxu0 0
      %665 = vmatpush.bf16.msra.mxu0 0
      %666 = vmatpush.bf16.msra.mxu0 0
      %667 = vmatpush.bf16.msra.mxu0 0
      %668 = vmatpush.bf16.msra.mxu0 %v659
      %669 = vmatpush.bf16.msra.mxu0 %v658
      %670 = vmatmul.bf16.gmra.mxu0 %v498
      %v671 = vpop.f32.mrf.mxu0
      %v672 = vadd.f32 %v648, %v671
      %v673 = vpop.f32.mrf.mxu0
      %674 = vdwg.mxu0
      %s675 = scalar_lea.vmem %s4, 16
      %v676 = vld [vmem:[%s675] sm:$0xf]
      %v677 = vld [vmem:[%s675 + $0x4] sm:$0xf]
      %v678 = vld [vmem:[%s675 + $0x8] sm:$0xf]
      %v679 = vld [vmem:[%s675 + $0xc] sm:$0xf]
      %s680 = scalar_lea.vmem %s7, 1
      %v681 = vld [vmem:[%s680] sm:$0x1]
      %v683 = vperm.slane %v681, 0
      %v689 = vunpack.c.l.b16 %v676
      %v690 = vunpack.c.l.b16 %v677
      %v691 = vunpack.c.l.b16 %v678
      %v692 = vunpack.c.l.b16 %v679
      %v693 = vpack.c.b16 %v690, %v689
      %v694 = vpack.c.b16 %v692, %v691
      %697 = vmatpush.bf16.msra.mxu0 0
      %698 = vmatpush.bf16.msra.mxu0 0
      %699 = vmatpush.bf16.msra.mxu0 0
      %700 = vmatpush.bf16.msra.mxu0 0
      %701 = vmatpush.bf16.msra.mxu0 0
      %702 = vmatpush.bf16.msra.mxu0 0
      %703 = vmatpush.bf16.msra.mxu0 %v694
      %704 = vmatpush.bf16.msra.mxu0 %v693
      %705 = vmatmul.bf16.gmra.mxu0 %v534
      %v706 = vpop.f32.mrf.mxu0
      %v707 = vadd.f32 %v683, %v706
      %v708 = vpop.f32.mrf.mxu0
      %709 = vdwg.mxu0
      %s710 = scalar_lea.vmem %s5, 16
      %v711 = vld [vmem:[%s710] sm:$0xf]
      %v712 = vld [vmem:[%s710 + $0x4] sm:$0xf]
      %v713 = vld [vmem:[%s710 + $0x8] sm:$0xf]
      %v714 = vld [vmem:[%s710 + $0xc] sm:$0xf]
      %s715 = scalar_lea.vmem %s8, 1
      %v716 = vld [vmem:[%s715] sm:$0x1]
      %v718 = vperm.slane %v716, 0
      %v724 = vunpack.c.l.b16 %v711
      %v725 = vunpack.c.l.b16 %v712
      %v726 = vunpack.c.l.b16 %v713
      %v727 = vunpack.c.l.b16 %v714
      %v728 = vpack.c.b16 %v725, %v724
      %v729 = vpack.c.b16 %v727, %v726
      %732 = vmatpush.bf16.msra.mxu0 0
      %733 = vmatpush.bf16.msra.mxu0 0
      %734 = vmatpush.bf16.msra.mxu0 0
      %735 = vmatpush.bf16.msra.mxu0 0
      %736 = vmatpush.bf16.msra.mxu0 0
      %737 = vmatpush.bf16.msra.mxu0 0
      %738 = vmatpush.bf16.msra.mxu0 %v729
      %739 = vmatpush.bf16.msra.mxu0 %v728
      %740 = vmatmul.bf16.gmra.mxu0 %v534
      %v741 = vpop.f32.mrf.mxu0
      %v742 = vadd.f32 %v718, %v741
      %v743 = vpop.f32.mrf.mxu0
      %744 = vdwg.mxu0
      %v745 = vmul.f32 %v672, 0.35355338
      %v746 = vpack.c.bf16 %v745, %v745
      %v747 = vpack.c.bf16 %v707, %v707
      %v749 = vsel %vm585, %v746, 0
      %v752 = vsel %vm585, %v747, 0
      %754 = vmatpush.bf16.xpose.msra.mxu0 0
      %755 = vmatpush.bf16.xpose.msra.mxu0 0
      %756 = vmatpush.bf16.xpose.msra.mxu0 0
      %757 = vmatpush.bf16.xpose.msra.mxu0 0
      %758 = vmatpush.bf16.xpose.msra.mxu0 0
      %759 = vmatpush.bf16.xpose.msra.mxu0 0
      %760 = vmatpush.bf16.xpose.msra.mxu0 0
      %761 = vmatpush.bf16.xpose.msra.mxu0 %v752
      %762 = vmatmul.bf16.gmra.mxu0 %v749
      %v763 = vpop.f32.mrf.mxu0
      %v764 = vadd.f32 %v473, %v763
      %v765 = vpop.f32.mrf.mxu0
      %766 = vdwg.mxu0
      %v767 = vsel %vm585, %v764, -inf
      %768 = vmax.xlane.f32.xlu0 %v767
      %v769 = vpop.xlane.xlu0 %768
      %v770 = vsub.f32 %v764, %v769
      %v771 = vmul.f32 %v770, 1.442695
      %v772 = vpow.pop %v771
      %v773 = vsel %vm585, %v772, 0.0
      %774 = vadd.xlane.f32.xlu0 %v773
      %v775 = vpop.xlane.xlu0 %774
      %v776 = vrcp.pop %v775
      %v777 = vmul.f32 %v772, %v776
      %v778 = vpack.c.bf16 %v777, %v777
      %v779 = vpack.c.bf16 %v742, %v742
      %v781 = vsel %vm585, %v778, 0
      %v784 = vsel %vm621, %v779, 0
      %786 = vmatpush.bf16.msra.mxu0 0
      %787 = vmatpush.bf16.msra.mxu0 0
      %788 = vmatpush.bf16.msra.mxu0 0
      %789 = vmatpush.bf16.msra.mxu0 0
      %790 = vmatpush.bf16.msra.mxu0 0
      %791 = vmatpush.bf16.msra.mxu0 0
      %792 = vmatpush.bf16.msra.mxu0 0
      %793 = vmatpush.bf16.msra.mxu0 %v784
      %794 = vmatmul.bf16.gmra.mxu0 %v781
      %v795 = vpop.f32.mrf.mxu0
      %v796 = vadd.f32 0.0, %v795
      %v797 = vpop.f32.mrf.mxu0
      %798 = vdwg.mxu0
      %v799 = vpack.c.bf16 %v796, %v796
      %s800 = scalar_lea.vmem %s9, 4
      %v801 = vld [vmem:[%s800] sm:$0xf]
      %v803 = vsel %vm585, %v799, 0
      %v806 = vsel %vm621, %v801, 0
      %808 = vmatpush.bf16.msra.mxu0 0
      %809 = vmatpush.bf16.msra.mxu0 0
      %810 = vmatpush.bf16.msra.mxu0 0
      %811 = vmatpush.bf16.msra.mxu0 0
      %812 = vmatpush.bf16.msra.mxu0 0
      %813 = vmatpush.bf16.msra.mxu0 0
      %814 = vmatpush.bf16.msra.mxu0 0
      %815 = vmatpush.bf16.msra.mxu0 %v806
      %816 = vmatmul.bf16.gmra.mxu0 %v803
      %v817 = vpop.f32.mrf.mxu0
      %v818 = vadd.f32 0.0, %v817
      %v819 = vpop.f32.mrf.mxu0
      %820 = vdwg.mxu0
      %v822 = vsel %vm585, %v638, 0
      %v825 = vsel %vm621, %v639, 0
      %827 = vmatpush.bf16.msra.mxu0 0
      %828 = vmatpush.bf16.msra.mxu0 0
      %829 = vmatpush.bf16.msra.mxu0 0
      %830 = vmatpush.bf16.msra.mxu0 0
      %831 = vmatpush.bf16.msra.mxu0 0
      %832 = vmatpush.bf16.msra.mxu0 0
      %833 = vmatpush.bf16.msra.mxu0 0
      %834 = vmatpush.bf16.msra.mxu0 %v825
      %835 = vmatmul.bf16.gmra.mxu0 %v822
      %v836 = vpop.f32.mrf.mxu0
      %v837 = vadd.f32 %v818, %v836
      %v838 = vpop.f32.mrf.mxu0
      %839 = vdwg.mxu0
      %s840 = scalar_lea.vmem %s3, 32
      %v841 = vld [vmem:[%s840] sm:$0xf]
      %v842 = vld [vmem:[%s840 + $0x4] sm:$0xf]
      %v843 = vld [vmem:[%s840 + $0x8] sm:$0xf]
      %v844 = vld [vmem:[%s840 + $0xc] sm:$0xf]
      %s845 = scalar_lea.vmem %s6, 2
      %v846 = vld [vmem:[%s845] sm:$0x1]
      %v848 = vperm.slane %v846, 0
      %v854 = vunpack.c.l.b16 %v841
      %v855 = vunpack.c.l.b16 %v842
      %v856 = vunpack.c.l.b16 %v843
      %v857 = vunpack.c.l.b16 %v844
      %v858 = vpack.c.b16 %v855, %v854
      %v859 = vpack.c.b16 %v857, %v856
      %862 = vmatpush.bf16.msra.mxu0 0
      %863 = vmatpush.bf16.msra.mxu0 0
      %864 = vmatpush.bf16.msra.mxu0 0
      %865 = vmatpush.bf16.msra.mxu0 0
      %866 = vmatpush.bf16.msra.mxu0 0
      %867 = vmatpush.bf16.msra.mxu0 0
      %868 = vmatpush.bf16.msra.mxu0 %v859
      %869 = vmatpush.bf16.msra.mxu0 %v858
      %870 = vmatmul.bf16.gmra.mxu0 %v498
      %v871 = vpop.f32.mrf.mxu0
      %v872 = vadd.f32 %v848, %v871
      %v873 = vpop.f32.mrf.mxu0
      %874 = vdwg.mxu0
      %s875 = scalar_lea.vmem %s4, 32
      %v876 = vld [vmem:[%s875] sm:$0xf]
      %v877 = vld [vmem:[%s875 + $0x4] sm:$0xf]
      %v878 = vld [vmem:[%s875 + $0x8] sm:$0xf]
      %v879 = vld [vmem:[%s875 + $0xc] sm:$0xf]
      %s880 = scalar_lea.vmem %s7, 2
      %v881 = vld [vmem:[%s880] sm:$0x1]
      %v883 = vperm.slane %v881, 0
      %v889 = vunpack.c.l.b16 %v876
      %v890 = vunpack.c.l.b16 %v877
      %v891 = vunpack.c.l.b16 %v878
      %v892 = vunpack.c.l.b16 %v879
      %v893 = vpack.c.b16 %v890, %v889
      %v894 = vpack.c.b16 %v892, %v891
      %897 = vmatpush.bf16.msra.mxu0 0
      %898 = vmatpush.bf16.msra.mxu0 0
      %899 = vmatpush.bf16.msra.mxu0 0
      %900 = vmatpush.bf16.msra.mxu0 0
      %901 = vmatpush.bf16.msra.mxu0 0
      %902 = vmatpush.bf16.msra.mxu0 0
      %903 = vmatpush.bf16.msra.mxu0 %v894
      %904 = vmatpush.bf16.msra.mxu0 %v893
      %905 = vmatmul.bf16.gmra.mxu0 %v534
      %v906 = vpop.f32.mrf.mxu0
      %v907 = vadd.f32 %v883, %v906
      %v908 = vpop.f32.mrf.mxu0
      %909 = vdwg.mxu0
      %s910 = scalar_lea.vmem %s5, 32
      %v911 = vld [vmem:[%s910] sm:$0xf]
      %v912 = vld [vmem:[%s910 + $0x4] sm:$0xf]
      %v913 = vld [vmem:[%s910 + $0x8] sm:$0xf]
      %v914 = vld [vmem:[%s910 + $0xc] sm:$0xf]
      %s915 = scalar_lea.vmem %s8, 2
      %v916 = vld [vmem:[%s915] sm:$0x1]
      %v918 = vperm.slane %v916, 0
      %v924 = vunpack.c.l.b16 %v911
      %v925 = vunpack.c.l.b16 %v912
      %v926 = vunpack.c.l.b16 %v913
      %v927 = vunpack.c.l.b16 %v914
      %v928 = vpack.c.b16 %v925, %v924
      %v929 = vpack.c.b16 %v927, %v926
      %932 = vmatpush.bf16.msra.mxu0 0
      %933 = vmatpush.bf16.msra.mxu0 0
      %934 = vmatpush.bf16.msra.mxu0 0
      %935 = vmatpush.bf16.msra.mxu0 0
      %936 = vmatpush.bf16.msra.mxu0 0
      %937 = vmatpush.bf16.msra.mxu0 0
      %938 = vmatpush.bf16.msra.mxu0 %v929
      %939 = vmatpush.bf16.msra.mxu0 %v928
      %940 = vmatmul.bf16.gmra.mxu0 %v534
      %v941 = vpop.f32.mrf.mxu0
      %v942 = vadd.f32 %v918, %v941
      %v943 = vpop.f32.mrf.mxu0
      %944 = vdwg.mxu0
      %v945 = vmul.f32 %v872, 0.35355338
      %v946 = vpack.c.bf16 %v945, %v945
      %v947 = vpack.c.bf16 %v907, %v907
      %v949 = vsel %vm585, %v946, 0
      %v952 = vsel %vm585, %v947, 0
      %954 = vmatpush.bf16.xpose.msra.mxu0 0
      %955 = vmatpush.bf16.xpose.msra.mxu0 0
      %956 = vmatpush.bf16.xpose.msra.mxu0 0
      %957 = vmatpush.bf16.xpose.msra.mxu0 0
      %958 = vmatpush.bf16.xpose.msra.mxu0 0
      %959 = vmatpush.bf16.xpose.msra.mxu0 0
      %960 = vmatpush.bf16.xpose.msra.mxu0 0
      %961 = vmatpush.bf16.xpose.msra.mxu0 %v952
      %962 = vmatmul.bf16.gmra.mxu0 %v949
      %v963 = vpop.f32.mrf.mxu0
      %v964 = vadd.f32 %v473, %v963
      %v965 = vpop.f32.mrf.mxu0
      %966 = vdwg.mxu0
      %v967 = vsel %vm585, %v964, -inf
      %968 = vmax.xlane.f32.xlu0 %v967
      %v969 = vpop.xlane.xlu0 %968
      %v970 = vsub.f32 %v964, %v969
      %v971 = vmul.f32 %v970, 1.442695
      %v972 = vpow.pop %v971
      %v973 = vsel %vm585, %v972, 0.0
      %974 = vadd.xlane.f32.xlu0 %v973
      %v975 = vpop.xlane.xlu0 %974
      %v976 = vrcp.pop %v975
      %v977 = vmul.f32 %v972, %v976
      %v978 = vpack.c.bf16 %v977, %v977
      %v979 = vpack.c.bf16 %v942, %v942
      %v981 = vsel %vm585, %v978, 0
      %v984 = vsel %vm621, %v979, 0
      %986 = vmatpush.bf16.msra.mxu0 0
      %987 = vmatpush.bf16.msra.mxu0 0
      %988 = vmatpush.bf16.msra.mxu0 0
      %989 = vmatpush.bf16.msra.mxu0 0
      %990 = vmatpush.bf16.msra.mxu0 0
      %991 = vmatpush.bf16.msra.mxu0 0
      %992 = vmatpush.bf16.msra.mxu0 0
      %993 = vmatpush.bf16.msra.mxu0 %v984
      %994 = vmatmul.bf16.gmra.mxu0 %v981
      %v995 = vpop.f32.mrf.mxu0
      %v996 = vadd.f32 0.0, %v995
      %v997 = vpop.f32.mrf.mxu0
      %998 = vdwg.mxu0
      %v999 = vpack.c.bf16 %v996, %v996
      %s1000 = scalar_lea.vmem %s9, 8
      %v1001 = vld [vmem:[%s1000] sm:$0xf]
      %v1003 = vsel %vm585, %v999, 0
      %v1006 = vsel %vm621, %v1001, 0
      %1008 = vmatpush.bf16.msra.mxu0 0
      %1009 = vmatpush.bf16.msra.mxu0 0
      %1010 = vmatpush.bf16.msra.mxu0 0
      %1011 = vmatpush.bf16.msra.mxu0 0
      %1012 = vmatpush.bf16.msra.mxu0 0
      %1013 = vmatpush.bf16.msra.mxu0 0
      %1014 = vmatpush.bf16.msra.mxu0 0
      %1015 = vmatpush.bf16.msra.mxu0 %v1006
      %1016 = vmatmul.bf16.gmra.mxu0 %v1003
      %v1017 = vpop.f32.mrf.mxu0
      %v1018 = vadd.f32 0.0, %v1017
      %v1019 = vpop.f32.mrf.mxu0
      %1020 = vdwg.mxu0
      %v1021 = vadd.f32 %v837, %v1018
      %s1022 = scalar_lea.vmem %s3, 48
      %v1023 = vld [vmem:[%s1022] sm:$0xf]
      %v1024 = vld [vmem:[%s1022 + $0x4] sm:$0xf]
      %v1025 = vld [vmem:[%s1022 + $0x8] sm:$0xf]
      %v1026 = vld [vmem:[%s1022 + $0xc] sm:$0xf]
      %s1027 = scalar_lea.vmem %s6, 3
      %v1028 = vld [vmem:[%s1027] sm:$0x1]
      %v1030 = vperm.slane %v1028, 0
      %v1036 = vunpack.c.l.b16 %v1023
      %v1037 = vunpack.c.l.b16 %v1024
      %v1038 = vunpack.c.l.b16 %v1025
      %v1039 = vunpack.c.l.b16 %v1026
      %v1040 = vpack.c.b16 %v1037, %v1036
      %v1041 = vpack.c.b16 %v1039, %v1038
      %1044 = vmatpush.bf16.msra.mxu0 0
      %1045 = vmatpush.bf16.msra.mxu0 0
      %1046 = vmatpush.bf16.msra.mxu0 0
      %1047 = vmatpush.bf16.msra.mxu0 0
      %1048 = vmatpush.bf16.msra.mxu0 0
      %1049 = vmatpush.bf16.msra.mxu0 0
      %1050 = vmatpush.bf16.msra.mxu0 %v1041
      %1051 = vmatpush.bf16.msra.mxu0 %v1040
      %1052 = vmatmul.bf16.gmra.mxu0 %v498
      %v1053 = vpop.f32.mrf.mxu0
      %v1054 = vadd.f32 %v1030, %v1053
      %v1055 = vpop.f32.mrf.mxu0
      %1056 = vdwg.mxu0
      %s1057 = scalar_lea.vmem %s4, 48
      %v1058 = vld [vmem:[%s1057] sm:$0xf]
      %v1059 = vld [vmem:[%s1057 + $0x4] sm:$0xf]
      %v1060 = vld [vmem:[%s1057 + $0x8] sm:$0xf]
      %v1061 = vld [vmem:[%s1057 + $0xc] sm:$0xf]
      %s1062 = scalar_lea.vmem %s7, 3
      %v1063 = vld [vmem:[%s1062] sm:$0x1]
      %v1065 = vperm.slane %v1063, 0
      %v1071 = vunpack.c.l.b16 %v1058
      %v1072 = vunpack.c.l.b16 %v1059
      %v1073 = vunpack.c.l.b16 %v1060
      %v1074 = vunpack.c.l.b16 %v1061
      %v1075 = vpack.c.b16 %v1072, %v1071
      %v1076 = vpack.c.b16 %v1074, %v1073
      %1079 = vmatpush.bf16.msra.mxu0 0
      %1080 = vmatpush.bf16.msra.mxu0 0
      %1081 = vmatpush.bf16.msra.mxu0 0
      %1082 = vmatpush.bf16.msra.mxu0 0
      %1083 = vmatpush.bf16.msra.mxu0 0
      %1084 = vmatpush.bf16.msra.mxu0 0
      %1085 = vmatpush.bf16.msra.mxu0 %v1076
      %1086 = vmatpush.bf16.msra.mxu0 %v1075
      %1087 = vmatmul.bf16.gmra.mxu0 %v534
      %v1088 = vpop.f32.mrf.mxu0
      %v1089 = vadd.f32 %v1065, %v1088
      %v1090 = vpop.f32.mrf.mxu0
      %1091 = vdwg.mxu0
      %s1092 = scalar_lea.vmem %s5, 48
      %v1093 = vld [vmem:[%s1092] sm:$0xf]
      %v1094 = vld [vmem:[%s1092 + $0x4] sm:$0xf]
      %v1095 = vld [vmem:[%s1092 + $0x8] sm:$0xf]
      %v1096 = vld [vmem:[%s1092 + $0xc] sm:$0xf]
      %s1097 = scalar_lea.vmem %s8, 3
      %v1098 = vld [vmem:[%s1097] sm:$0x1]
      %v1100 = vperm.slane %v1098, 0
      %v1106 = vunpack.c.l.b16 %v1093
      %v1107 = vunpack.c.l.b16 %v1094
      %v1108 = vunpack.c.l.b16 %v1095
      %v1109 = vunpack.c.l.b16 %v1096
      %v1110 = vpack.c.b16 %v1107, %v1106
      %v1111 = vpack.c.b16 %v1109, %v1108
      %1114 = vmatpush.bf16.msra.mxu0 0
      %1115 = vmatpush.bf16.msra.mxu0 0
      %1116 = vmatpush.bf16.msra.mxu0 0
      %1117 = vmatpush.bf16.msra.mxu0 0
      %1118 = vmatpush.bf16.msra.mxu0 0
      %1119 = vmatpush.bf16.msra.mxu0 0
      %1120 = vmatpush.bf16.msra.mxu0 %v1111
      %1121 = vmatpush.bf16.msra.mxu0 %v1110
      %1122 = vmatmul.bf16.gmra.mxu0 %v534
      %v1123 = vpop.f32.mrf.mxu0
      %v1124 = vadd.f32 %v1100, %v1123
      %v1125 = vpop.f32.mrf.mxu0
      %1126 = vdwg.mxu0
      %v1127 = vmul.f32 %v1054, 0.35355338
      %v1128 = vpack.c.bf16 %v1127, %v1127
      %v1129 = vpack.c.bf16 %v1089, %v1089
      %v1131 = vsel %vm585, %v1128, 0
      %v1134 = vsel %vm585, %v1129, 0
      %1136 = vmatpush.bf16.xpose.msra.mxu0 0
      %1137 = vmatpush.bf16.xpose.msra.mxu0 0
      %1138 = vmatpush.bf16.xpose.msra.mxu0 0
      %1139 = vmatpush.bf16.xpose.msra.mxu0 0
      %1140 = vmatpush.bf16.xpose.msra.mxu0 0
      %1141 = vmatpush.bf16.xpose.msra.mxu0 0
      %1142 = vmatpush.bf16.xpose.msra.mxu0 0
      %1143 = vmatpush.bf16.xpose.msra.mxu0 %v1134
      %1144 = vmatmul.bf16.gmra.mxu0 %v1131
      %v1145 = vpop.f32.mrf.mxu0
      %v1146 = vadd.f32 %v473, %v1145
      %v1147 = vpop.f32.mrf.mxu0
      %1148 = vdwg.mxu0
      %v1149 = vsel %vm585, %v1146, -inf
      %1150 = vmax.xlane.f32.xlu0 %v1149
      %v1151 = vpop.xlane.xlu0 %1150
      %v1152 = vsub.f32 %v1146, %v1151
      %v1153 = vmul.f32 %v1152, 1.442695
      %v1154 = vpow.pop %v1153
      %v1155 = vsel %vm585, %v1154, 0.0
      %1156 = vadd.xlane.f32.xlu0 %v1155
      %v1157 = vpop.xlane.xlu0 %1156
      %v1158 = vrcp.pop %v1157
      %v1159 = vmul.f32 %v1154, %v1158
      %v1160 = vpack.c.bf16 %v1159, %v1159
      %v1161 = vpack.c.bf16 %v1124, %v1124
      %v1163 = vsel %vm585, %v1160, 0
      %v1166 = vsel %vm621, %v1161, 0
      %1168 = vmatpush.bf16.msra.mxu0 0
      %1169 = vmatpush.bf16.msra.mxu0 0
      %1170 = vmatpush.bf16.msra.mxu0 0
      %1171 = vmatpush.bf16.msra.mxu0 0
      %1172 = vmatpush.bf16.msra.mxu0 0
      %1173 = vmatpush.bf16.msra.mxu0 0
      %1174 = vmatpush.bf16.msra.mxu0 0
      %1175 = vmatpush.bf16.msra.mxu0 %v1166
      %1176 = vmatmul.bf16.gmra.mxu0 %v1163
      %v1177 = vpop.f32.mrf.mxu0
      %v1178 = vadd.f32 0.0, %v1177
      %v1179 = vpop.f32.mrf.mxu0
      %1180 = vdwg.mxu0
      %v1181 = vpack.c.bf16 %v1178, %v1178
      %s1182 = scalar_lea.vmem %s9, 12
      %v1183 = vld [vmem:[%s1182] sm:$0xf]
      %v1185 = vsel %vm585, %v1181, 0
      %v1188 = vsel %vm621, %v1183, 0
      %1190 = vmatpush.bf16.msra.mxu0 0
      %1191 = vmatpush.bf16.msra.mxu0 0
      %1192 = vmatpush.bf16.msra.mxu0 0
      %1193 = vmatpush.bf16.msra.mxu0 0
      %1194 = vmatpush.bf16.msra.mxu0 0
      %1195 = vmatpush.bf16.msra.mxu0 0
      %1196 = vmatpush.bf16.msra.mxu0 0
      %1197 = vmatpush.bf16.msra.mxu0 %v1188
      %1198 = vmatmul.bf16.gmra.mxu0 %v1185
      %v1199 = vpop.f32.mrf.mxu0
      %v1200 = vadd.f32 0.0, %v1199
      %v1201 = vpop.f32.mrf.mxu0
      %1202 = vdwg.mxu0
      %v1203 = vadd.f32 %v1021, %v1200
      %v1204 = vadd.f32 %v471, %v1203
      %v1205 = vld [vmem:[%s10] sm:$0x1]
      %v1207 = vperm.slane %v1205, 0
      %v1209 = vadd.f32 %v1204, %v1207
      %v1210 = vld [vmem:[%s11] sm:$0x1]
      %v1211 = vld [vmem:[%s12] sm:$0x1]
      %v1212 = vsel %vm496, %v1209, 0.0
      %1213 = vadd.xlane.f32.xlu0 %v1212
      %v1214 = vpop.xlane.xlu0 %1213
      %v1215 = vrcp.pop 32.0
      %v1216 = vmul.f32 32.0, %v1215
      %v1217 = vsub.f32 1.0, %v1216
      %v1218 = vmul.f32 %v1215, %v1217
      %v1219 = vadd.f32 %v1215, %v1218
      %vm1220 = vweird.f32 %v1215
      %v1221 = vsel %vm1220, %v1215, %v1219
      %v1222 = vmul.f32 %v1214, %v1221
      %v1223 = vsub.f32 %v1209, %v1222
      %v1224 = vmul.f32 %v1223, %v1223
      %v1225 = vsel %vm496, %v1224, 0.0
      %1226 = vadd.xlane.f32.xlu0 %v1225
      %v1227 = vpop.xlane.xlu0 %1226
      %v1228 = vmul.f32 %v1227, %v1221
      %v1229 = vadd.f32 %v1228, 1e-05
      %v1230 = vrsqrt.pop %v1229
      %v1231 = vmul.f32 %v1230, %v1229
      %v1232 = vmul.f32 %v1231, %v1230
      %v1233 = vmul.f32 0.5, %v1232
      %v1234 = vsub.f32 1.5, %v1233
      %v1235 = vmul.f32 %v1230, %v1234
      %vm1236 = vweird.f32 %v1229
      %vm1237 = vweird.f32 %v1230
      %vm1238 = vmor %vm1236, %vm1237
      %v1239 = vsel %vm1238, %v1230, %v1235
      %v1240 = vmul.f32 %v1223, %v1239
      %v1242 = vperm.slane %v1210, 0
      %v1244 = vmul.f32 %v1240, %v1242
      %v1246 = vperm.slane %v1211, 0
      %v1248 = vadd.f32 %v1244, %v1246
      %1249 = vst.msk [vmem:[%s469] sm:$0xff] %vm496, %v1248
      %p1250 = scmp.lt.s32.totalorder %s24, 1
      %s1251 = scalar_select %p1250, %s24, 1
      %s1252 = smul.addr %s1251, 8
      %s1253 = scalar_lea.vmem %s13, %s1252
      // Predicated region
      $region73: #{_lambda_.10} parent=71 // pred_check
        %p1254 = pneg %p330
      $region74: #{_lambda_.10} parent=71 // pred_check_branch
        %1256 = sbr.rel (%p1254) target = $region76
      $region75: #{_lambda_.10} parent=71 // pred_region
        _
      $region76: #{_lambda_.10} parent=71 // pred_fallthru
        _
    $region72: #{_lambda_.10} parent=5 // pred_fallthru
      _
    %p1257 = scmp.le.s32.totalorder 2, %s19
    // Predicated region
    $region77: #{_lambda_.10} parent=5 // pred_check
      %p1258 = pneg %p1257
    $region78: #{_lambda_.10} parent=5 // pred_check_branch
      %1260 = sbr.rel (%p1258) target = $region80
    $region79: #{_lambda_.10} parent=5 // pred_region
      %s1261 = ssub.s32 %s19, 2
      // Predicated region
      $region81: #{_lambda_.10} parent=79 // pred_check
        %p1262 = pneg %p336
      $region82: #{_lambda_.10} parent=79 // pred_check_branch
        %1264 = sbr.rel (%p1262) target = $region84
      $region83: #{_lambda_.10} parent=79 // pred_region
        %p1265 = scmp.lt.s32.totalorder %s25, 1
        %s1266 = scalar_select %p1265, %s25, 1
        %s1267 = smul.addr %s1266, 8
        %s1268 = scalar_lea.vmem %s13, %s1267
      $region84: #{_lambda_.10} parent=79 // pred_fallthru
        _
    $region80: #{_lambda_.10} parent=5 // pred_fallthru
      _
  $region6: #{_lambda_.10} parent=0 // loop_footer
    %s23 = sadd.s32 1, %s19
  $region7: #{_lambda_.10} parent=0 // loop_footer_branch
    %18 = sbr.rel target = $region3
  $region8: #{_lambda_.10} parent=0 // loop_exit
    _

// kernel: _lambda_.7
$region0: #{_lambda_.7}
  #allocation0 [shape = 'u32[]', space=smem, size = 0x4, offset = 0x4, fixed_abs, tag = 'smem constant byte address 0x4 - core index']
  #allocation1 [shape = 'u32[72,128]{1,0:T(1,128)}', space=vmem, size = 0x9000, scoped, tag = 'internal scratch']
  %s0 = inlined_call_operand.vmem [shape: f32[2,8,32], index: 0, kind: input, shape index: {}, may-alias: {0,1}]
  %s1 = inlined_call_operand.vmem [shape: f32[2,8,32], index: 1, kind: input, shape index: {}, may-alias: {0,1}]
  %s2 = inlined_call_operand.vmem [shape: f32[2,8,8], index: 2, kind: input, shape index: {}]
  %s3 = inlined_call_operand.hbm [shape: bf16[4,32,8], index: 3, kind: input, shape index: {}]
  %s4 = inlined_call_operand.hbm [shape: bf16[4,32,8], index: 4, kind: input, shape index: {}]
  %s5 = inlined_call_operand.hbm [shape: bf16[4,32,8], index: 5, kind: input, shape index: {}]
  %s6 = inlined_call_operand.vmem [shape: f32[4,1,8], index: 6, kind: input, shape index: {}, may-alias: {6,7,8}]
  %s7 = inlined_call_operand.vmem [shape: f32[4,1,8], index: 7, kind: input, shape index: {}, may-alias: {6,7,8}]
  %s8 = inlined_call_operand.vmem [shape: f32[4,1,8], index: 8, kind: input, shape index: {}, may-alias: {6,7,8}]
  %s9 = inlined_call_operand.hbm [shape: bf16[4,8,32], index: 9, kind: input, shape index: {}]
  %s10 = inlined_call_operand.vmem [shape: f32[1,32], index: 10, kind: input, shape index: {}, may-alias: {10,12}]
  %s11 = inlined_call_operand.vmem [shape: f32[1,32], index: 11, kind: input, shape index: {}]
  %s12 = inlined_call_operand.vmem [shape: f32[1,32], index: 12, kind: input, shape index: {}, may-alias: {10,12}]
  %s13 = inlined_call_operand.vmem [shape: f32[2,8,32], index: 13, kind: output, shape index: {}]
  %s14 = sld [smem:[#allocation0]]
  $region101: #{_lambda_.7} parent=0
    _
  %s16 = ssub.s32 1, %s14
  %s17 = scalar_select 0, %s16, %s14
  $region1: #{_lambda_.7} parent=0
    #allocation2 [shape = 'u8[32768]{0}', space=vmem, size = 0x8000, scoped, tag = 'input window, operand 3, single buffered']
    #allocation3 [shape = 's32[2]{0}', space=sflag, size = 0x8, scoped, tag = 'scoped memory for _lambda_.7']
    #allocation4 [shape = 'u8[32768]{0}', space=vmem, size = 0x8000, scoped, tag = 'input window, operand 4, single buffered']
    #allocation5 [shape = 's32[1]{0}', space=sflag, size = 0x4, scoped, tag = 'scoped memory for _lambda_.7']
    #allocation6 [shape = 'u8[32768]{0}', space=vmem, size = 0x8000, scoped, tag = 'input window, operand 5, single buffered']
    #allocation7 [shape = 'u8[8192]{0}', space=vmem, size = 0x2000, scoped, tag = 'input window, operand 9, single buffered']
    #allocation8 [shape = 's32[1]{0}', space=sflag, size = 0x4, scoped, tag = 'scoped memory for _lambda_.7']
    %18 = vsyncpa [#allocation3], 0
    %19 = vsyncpa [#allocation5], 0
    %20 = vsyncpa [#allocation8], 0
    loop: start=0, step=1, limit=4
    $region2: #{_lambda_.7} parent=1 // loop_pre_header
      _
    $region3: #{_lambda_.7} parent=1 // loop_header
      %s22 = sphi 0, %s26
      %p23 = scmp.ge.s32.totalorder %s22, 4
      %s32 = sphi 0, %s34
      %s35 = sphi 0, %s32
      %s36 = sphi 0, %s35
      %s52 = sphi 0, %s36
      %s58 = sphi 0, %s60
      %s61 = sphi 0, %s58
      %s62 = sphi 0, %s61
      %s78 = sphi 0, %s62
      %s84 = sphi 0, %s86
      %s87 = sphi 0, %s84
      %s88 = sphi 0, %s87
      %s104 = sphi 0, %s88
      %s108 = sphi 0, %s108
      %s110 = sphi 0, %s108
      %s111 = sphi 0, %s110
      %s125 = sphi 0, %s111
      %s129 = sphi 0, %s129
      %s131 = sphi 0, %s129
      %s132 = sphi 0, %s131
      %s146 = sphi 0, %s132
      %s150 = sphi 0, %s150
      %s152 = sphi 0, %s150
      %s153 = sphi 0, %s152
      %s167 = sphi 0, %s153
      %s171 = sphi 0, %s171
      %s173 = sphi 0, %s171
      %s174 = sphi 0, %s173
      %s188 = sphi 0, %s174
      %s192 = sphi 0, %s192
      %s194 = sphi 0, %s192
      %s195 = sphi 0, %s194
      %s209 = sphi 0, %s195
      %s213 = sphi 0, %s213
      %s215 = sphi 0, %s213
      %s216 = sphi 0, %s215
      %s230 = sphi 0, %s216
      %s234 = sphi 0, %s234
      %s236 = sphi 0, %s234
      %s237 = sphi 0, %s236
      %s251 = sphi 0, %s237
      %s255 = sphi 0, %s255
      %s257 = sphi 0, %s255
      %s258 = sphi 0, %s257
      %s272 = sphi 0, %s258
      %s276 = sphi 0, %s276
      %s278 = sphi 0, %s276
      %s279 = sphi 0, %s278
      %s293 = sphi 0, %s279
      %s297 = sphi 0, %s297
      %s299 = sphi 0, %s297
      %s300 = sphi 0, %s299
      %s314 = sphi 0, %s300
      %s320 = sphi 0, %s322
      %s323 = sphi 0, %s320
      %s324 = sphi 0, %s323
      %s340 = sphi 0, %s324
    $region4: #{_lambda_.7} parent=1 // loop_header_branch
      %25 = sbr.rel (%p23) target = $region8
    $region5: #{_lambda_.7} parent=1 // loop_body
      %s27 = ssub.s32 %s22, 1
      %s28 = ssub.s32 %s22, 2
      %s29 = sadd.s32 %s22, 1
      %s30 = ssub.s32 %s22, %s29
      %p31 = scmp.eq.s32.totalorder %s30, 0
      %s33 = sadd.s32 %s32, 1
      %s34 = scalar_select %p31, %s32, %s33
      %p37 = pneg %p31
      %p38 = scmp.eq.s32.totalorder %s22, 1
      %p39 = por %p37, %p38
      %p40 = scmp.ne.s32.totalorder %s32, %s35
      %p41 = scmp.eq.s32.totalorder %s22, 0
      %p42 = por %p40, %p41
      %p43 = scmp.ne.s32.totalorder %s32, %s35
      %p44 = scmp.eq.s32.totalorder %s27, 1
      %p45 = por %p43, %p44
      %p46 = scmp.ne.s32.totalorder %s35, %s36
      %p47 = scmp.eq.s32.totalorder %s27, 0
      %p48 = por %p46, %p47
      %p49 = scmp.ne.s32.totalorder %s35, %s36
      %p50 = scmp.eq.s32.totalorder %s28, 1
      %p51 = por %p49, %p50
      %p53 = scmp.ne.s32.totalorder %s36, %s52
      %p54 = scmp.eq.s32.totalorder %s28, 0
      %p55 = por %p53, %p54
      %s56 = ssub.s32 %s22, %s29
      %p57 = scmp.eq.s32.totalorder %s56, 0
      %s59 = sadd.s32 %s58, 1
      %s60 = scalar_select %p57, %s58, %s59
      %p63 = pneg %p57
      %p64 = scmp.eq.s32.totalorder %s22, 1
      %p65 = por %p63, %p64
      %p66 = scmp.ne.s32.totalorder %s58, %s61
      %p67 = scmp.eq.s32.totalorder %s22, 0
      %p68 = por %p66, %p67
      %p69 = scmp.ne.s32.totalorder %s58, %s61
      %p70 = scmp.eq.s32.totalorder %s27, 1
      %p71 = por %p69, %p70
      %p72 = scmp.ne.s32.totalorder %s61, %s62
      %p73 = scmp.eq.s32.totalorder %s27, 0
      %p74 = por %p72, %p73
      %p75 = scmp.ne.s32.totalorder %s61, %s62
      %p76 = scmp.eq.s32.totalorder %s28, 1
      %p77 = por %p75, %p76
      %p79 = scmp.ne.s32.totalorder %s62, %s78
      %p80 = scmp.eq.s32.totalorder %s28, 0
      %p81 = por %p79, %p80
      %s82 = ssub.s32 %s22, %s29
      %p83 = scmp.eq.s32.totalorder %s82, 0
      %s85 = sadd.s32 %s84, 1
      %s86 = scalar_select %p83, %s84, %s85
      %p89 = pneg %p83
      %p90 = scmp.eq.s32.totalorder %s22, 1
      %p91 = por %p89, %p90
      %p92 = scmp.ne.s32.totalorder %s84, %s87
      %p93 = scmp.eq.s32.totalorder %s22, 0
      %p94 = por %p92, %p93
      %p95 = scmp.ne.s32.totalorder %s84, %s87
      %p96 = scmp.eq.s32.totalorder %s27, 1
      %p97 = por %p95, %p96
      %p98 = scmp.ne.s32.totalorder %s87, %s88
      %p99 = scmp.eq.s32.totalorder %s27, 0
      %p100 = por %p98, %p99
      %p101 = scmp.ne.s32.totalorder %s87, %s88
      %p102 = scmp.eq.s32.totalorder %s28, 1
      %p103 = por %p101, %p102
      %p105 = scmp.ne.s32.totalorder %s88, %s104
      %p106 = scmp.eq.s32.totalorder %s28, 0
      %p107 = por %p105, %p106
      %s109 = sadd.s32 %s108, 1
      %p112 = scmp.eq.s32.totalorder %s22, 1
      %p113 = scmp.ne.s32.totalorder %s108, %s110
      %p114 = scmp.eq.s32.totalorder %s22, 0
      %p115 = por %p113, %p114
      %p116 = scmp.ne.s32.totalorder %s108, %s110
      %p117 = scmp.eq.s32.totalorder %s27, 1
      %p118 = por %p116, %p117
      %p119 = scmp.ne.s32.totalorder %s110, %s111
      %p120 = scmp.eq.s32.totalorder %s27, 0
      %p121 = por %p119, %p120
      %p122 = scmp.ne.s32.totalorder %s110, %s111
      %p123 = scmp.eq.s32.totalorder %s28, 1
      %p124 = por %p122, %p123
      %p126 = scmp.ne.s32.totalorder %s111, %s125
      %p127 = scmp.eq.s32.totalorder %s28, 0
      %p128 = por %p126, %p127
      %s130 = sadd.s32 %s129, 1
      %p133 = scmp.eq.s32.totalorder %s22, 1
      %p134 = scmp.ne.s32.totalorder %s129, %s131
      %p135 = scmp.eq.s32.totalorder %s22, 0
      %p136 = por %p134, %p135
      %p137 = scmp.ne.s32.totalorder %s129, %s131
      %p138 = scmp.eq.s32.totalorder %s27, 1
      %p139 = por %p137, %p138
      %p140 = scmp.ne.s32.totalorder %s131, %s132
      %p141 = scmp.eq.s32.totalorder %s27, 0
      %p142 = por %p140, %p141
      %p143 = scmp.ne.s32.totalorder %s131, %s132
      %p144 = scmp.eq.s32.totalorder %s28, 1
      %p145 = por %p143, %p144
      %p147 = scmp.ne.s32.totalorder %s132, %s146
      %p148 = scmp.eq.s32.totalorder %s28, 0
      %p149 = por %p147, %p148
      %s151 = sadd.s32 %s150, 1
      %p154 = scmp.eq.s32.totalorder %s22, 1
      %p155 = scmp.ne.s32.totalorder %s150, %s152
      %p156 = scmp.eq.s32.totalorder %s22, 0
      %p157 = por %p155, %p156
      %p158 = scmp.ne.s32.totalorder %s150, %s152
      %p159 = scmp.eq.s32.totalorder %s27, 1
      %p160 = por %p158, %p159
      %p161 = scmp.ne.s32.totalorder %s152, %s153
      %p162 = scmp.eq.s32.totalorder %s27, 0
      %p163 = por %p161, %p162
      %p164 = scmp.ne.s32.totalorder %s152, %s153
      %p165 = scmp.eq.s32.totalorder %s28, 1
      %p166 = por %p164, %p165
      %p168 = scmp.ne.s32.totalorder %s153, %s167
      %p169 = scmp.eq.s32.totalorder %s28, 0
      %p170 = por %p168, %p169
      %s172 = sadd.s32 %s171, 1
      %p175 = scmp.eq.s32.totalorder %s22, 1
      %p176 = scmp.ne.s32.totalorder %s171, %s173
      %p177 = scmp.eq.s32.totalorder %s22, 0
      %p178 = por %p176, %p177
      %p179 = scmp.ne.s32.totalorder %s171, %s173
      %p180 = scmp.eq.s32.totalorder %s27, 1
      %p181 = por %p179, %p180
      %p182 = scmp.ne.s32.totalorder %s173, %s174
      %p183 = scmp.eq.s32.totalorder %s27, 0
      %p184 = por %p182, %p183
      %p185 = scmp.ne.s32.totalorder %s173, %s174
      %p186 = scmp.eq.s32.totalorder %s28, 1
      %p187 = por %p185, %p186
      %p189 = scmp.ne.s32.totalorder %s174, %s188
      %p190 = scmp.eq.s32.totalorder %s28, 0
      %p191 = por %p189, %p190
      %s193 = sadd.s32 %s192, 1
      %p196 = scmp.eq.s32.totalorder %s22, 1
      %p197 = scmp.ne.s32.totalorder %s192, %s194
      %p198 = scmp.eq.s32.totalorder %s22, 0
      %p199 = por %p197, %p198
      %p200 = scmp.ne.s32.totalorder %s192, %s194
      %p201 = scmp.eq.s32.totalorder %s27, 1
      %p202 = por %p200, %p201
      %p203 = scmp.ne.s32.totalorder %s194, %s195
      %p204 = scmp.eq.s32.totalorder %s27, 0
      %p205 = por %p203, %p204
      %p206 = scmp.ne.s32.totalorder %s194, %s195
      %p207 = scmp.eq.s32.totalorder %s28, 1
      %p208 = por %p206, %p207
      %p210 = scmp.ne.s32.totalorder %s195, %s209
      %p211 = scmp.eq.s32.totalorder %s28, 0
      %p212 = por %p210, %p211
      %s214 = sadd.s32 %s213, 1
      %p217 = scmp.eq.s32.totalorder %s22, 1
      %p218 = scmp.ne.s32.totalorder %s213, %s215
      %p219 = scmp.eq.s32.totalorder %s22, 0
      %p220 = por %p218, %p219
      %p221 = scmp.ne.s32.totalorder %s213, %s215
      %p222 = scmp.eq.s32.totalorder %s27, 1
      %p223 = por %p221, %p222
      %p224 = scmp.ne.s32.totalorder %s215, %s216
      %p225 = scmp.eq.s32.totalorder %s27, 0
      %p226 = por %p224, %p225
      %p227 = scmp.ne.s32.totalorder %s215, %s216
      %p228 = scmp.eq.s32.totalorder %s28, 1
      %p229 = por %p227, %p228
      %p231 = scmp.ne.s32.totalorder %s216, %s230
      %p232 = scmp.eq.s32.totalorder %s28, 0
      %p233 = por %p231, %p232
      %s235 = sadd.s32 %s234, 1
      %p238 = scmp.eq.s32.totalorder %s22, 1
      %p239 = scmp.ne.s32.totalorder %s234, %s236
      %p240 = scmp.eq.s32.totalorder %s22, 0
      %p241 = por %p239, %p240
      %p242 = scmp.ne.s32.totalorder %s234, %s236
      %p243 = scmp.eq.s32.totalorder %s27, 1
      %p244 = por %p242, %p243
      %p245 = scmp.ne.s32.totalorder %s236, %s237
      %p246 = scmp.eq.s32.totalorder %s27, 0
      %p247 = por %p245, %p246
      %p248 = scmp.ne.s32.totalorder %s236, %s237
      %p249 = scmp.eq.s32.totalorder %s28, 1
      %p250 = por %p248, %p249
      %p252 = scmp.ne.s32.totalorder %s237, %s251
      %p253 = scmp.eq.s32.totalorder %s28, 0
      %p254 = por %p252, %p253
      %s256 = sadd.s32 %s255, 1
      %p259 = scmp.eq.s32.totalorder %s22, 1
      %p260 = scmp.ne.s32.totalorder %s255, %s257
      %p261 = scmp.eq.s32.totalorder %s22, 0
      %p262 = por %p260, %p261
      %p263 = scmp.ne.s32.totalorder %s255, %s257
      %p264 = scmp.eq.s32.totalorder %s27, 1
      %p265 = por %p263, %p264
      %p266 = scmp.ne.s32.totalorder %s257, %s258
      %p267 = scmp.eq.s32.totalorder %s27, 0
      %p268 = por %p266, %p267
      %p269 = scmp.ne.s32.totalorder %s257, %s258
      %p270 = scmp.eq.s32.totalorder %s28, 1
      %p271 = por %p269, %p270
      %p273 = scmp.ne.s32.totalorder %s258, %s272
      %p274 = scmp.eq.s32.totalorder %s28, 0
      %p275 = por %p273, %p274
      %s277 = sadd.s32 %s276, 1
      %p280 = scmp.eq.s32.totalorder %s22, 1
      %p281 = scmp.ne.s32.totalorder %s276, %s278
      %p282 = scmp.eq.s32.totalorder %s22, 0
      %p283 = por %p281, %p282
      %p284 = scmp.ne.s32.totalorder %s276, %s278
      %p285 = scmp.eq.s32.totalorder %s27, 1
      %p286 = por %p284, %p285
      %p287 = scmp.ne.s32.totalorder %s278, %s279
      %p288 = scmp.eq.s32.totalorder %s27, 0
      %p289 = por %p287, %p288
      %p290 = scmp.ne.s32.totalorder %s278, %s279
      %p291 = scmp.eq.s32.totalorder %s28, 1
      %p292 = por %p290, %p291
      %p294 = scmp.ne.s32.totalorder %s279, %s293
      %p295 = scmp.eq.s32.totalorder %s28, 0
      %p296 = por %p294, %p295
      %s298 = sadd.s32 %s297, 1
      %p301 = scmp.eq.s32.totalorder %s22, 1
      %p302 = scmp.ne.s32.totalorder %s297, %s299
      %p303 = scmp.eq.s32.totalorder %s22, 0
      %p304 = por %p302, %p303
      %p305 = scmp.ne.s32.totalorder %s297, %s299
      %p306 = scmp.eq.s32.totalorder %s27, 1
      %p307 = por %p305, %p306
      %p308 = scmp.ne.s32.totalorder %s299, %s300
      %p309 = scmp.eq.s32.totalorder %s27, 0
      %p310 = por %p308, %p309
      %p311 = scmp.ne.s32.totalorder %s299, %s300
      %p312 = scmp.eq.s32.totalorder %s28, 1
      %p313 = por %p311, %p312
      %p315 = scmp.ne.s32.totalorder %s300, %s314
      %p316 = scmp.eq.s32.totalorder %s28, 0
      %p317 = por %p315, %p316
      %s318 = ssub.s32 %s22, %s29
      %p319 = scmp.eq.s32.totalorder %s318, 0
      %s321 = sadd.s32 %s320, 1
      %s322 = scalar_select %p319, %s320, %s321
      %p325 = pneg %p319
      %p326 = scmp.eq.s32.totalorder %s22, 1
      %p327 = por %p325, %p326
      %p328 = scmp.ne.s32.totalorder %s320, %s323
      %p329 = scmp.eq.s32.totalorder %s22, 0
      %p330 = por %p328, %p329
      %p331 = scmp.ne.s32.totalorder %s320, %s323
      %p332 = scmp.eq.s32.totalorder %s27, 1
      %p333 = por %p331, %p332
      %p334 = scmp.ne.s32.totalorder %s323, %s324
      %p335 = scmp.eq.s32.totalorder %s27, 0
      %p336 = por %p334, %p335
      %p337 = scmp.ne.s32.totalorder %s323, %s324
      %p338 = scmp.eq.s32.totalorder %s28, 1
      %p339 = por %p337, %p338
      %p341 = scmp.ne.s32.totalorder %s324, %s340
      %p342 = scmp.eq.s32.totalorder %s28, 0
      %p343 = por %p341, %p342
      %p344 = scmp.le.s32.totalorder 1, %s22
      %p345 = scmp.lt.s32.totalorder %s22, 3
      %p346 = pnand %p344, %p345
      %p347 = pneg %p346
      // Predicated region
      $region9: #{_lambda_.7} parent=5 // pred_check
        _
      $region10: #{_lambda_.7} parent=5 // pred_check_branch
        %349 = sbr.rel (%p346) target = $region12
      $region11: #{_lambda_.7} parent=5 // pred_region
        %s350 = ssub.s32 %s22, 1
        // Predicated region
        $region13: #{_lambda_.7} parent=11 // pred_check
          %p351 = pneg %p121
        $region14: #{_lambda_.7} parent=11 // pred_check_branch
          %353 = sbr.rel (%p351) target = $region16
        $region15: #{_lambda_.7} parent=11 // pred_region
          %355 = vsyncadd [#allocation3], 0
          %s356 = sshll.u32 %s3, 4
          %s357 = int_to_ptr.hbm [resolvable:$true] %s356
          %s358 = sshll.u32 [#allocation2], 4
          %s359 = int_to_ptr.vmem [resolvable:$true] %s358
          %364 = dma.hbm_to_vmem [thread:$0]  %s357, 1024, %s359, [#allocation3], 64, 64, 4
        $region16: #{_lambda_.7} parent=11 // pred_fallthru
          _
        // Predicated region
        $region17: #{_lambda_.7} parent=11 // pred_check
          %p365 = pneg %p142
        $region18: #{_lambda_.7} parent=11 // pred_check_branch
          %367 = sbr.rel (%p365) target = $region20
        $region19: #{_lambda_.7} parent=11 // pred_region
          %369 = vsyncadd [#allocation5], 0
          %s370 = sshll.u32 %s4, 4
          %s371 = int_to_ptr.hbm [resolvable:$true] %s370
          %s372 = sshll.u32 [#allocation4], 4
          %s373 = int_to_ptr.vmem [resolvable:$true] %s372
          %378 = dma.hbm_to_vmem [thread:$0]  %s371, 1024, %s373, [#allocation5], 64, 64, 4
        $region20: #{_lambda_.7} parent=11 // pred_fallthru
          _
        // Predicated region
        $region21: #{_lambda_.7} parent=11 // pred_check
          %p379 = pneg %p163
        $region22: #{_lambda_.7} parent=11 // pred_check_branch
          %381 = sbr.rel (%p379) target = $region24
        $region23: #{_lambda_.7} parent=11 // pred_region
          %383 = vsyncadd [#allocation5], 0
          %s384 = sshll.u32 %s5, 4
          %s385 = int_to_ptr.hbm [resolvable:$true] %s384
          %s386 = sshll.u32 [#allocation6], 4
          %s387 = int_to_ptr.vmem [resolvable:$true] %s386
          %392 = dma.hbm_to_vmem [thread:$0]  %s385, 1024, %s387, [#allocation5], 64, 64, 4
        $region24: #{_lambda_.7} parent=11 // pred_fallthru
          _
        // Predicated region
        $region25: #{_lambda_.7} parent=11 // pred_check
          %p393 = pneg %p184
        $region26: #{_lambda_.7} parent=11 // pred_check_branch
          %395 = sbr.rel (%p393) target = $region28
        $region27: #{_lambda_.7} parent=11 // pred_region
          _
        $region28: #{_lambda_.7} parent=11 // pred_fallthru
          _
        // Predicated region
        $region29: #{_lambda_.7} parent=11 // pred_check
          %p396 = pneg %p205
        $region30: #{_lambda_.7} parent=11 // pred_check_branch
          %398 = sbr.rel (%p396) target = $region32
        $region31: #{_lambda_.7} parent=11 // pred_region
          _
        $region32: #{_lambda_.7} parent=11 // pred_fallthru
          _
        // Predicated region
        $region33: #{_lambda_.7} parent=11 // pred_check
          %p399 = pneg %p226
        $region34: #{_lambda_.7} parent=11 // pred_check_branch
          %401 = sbr.rel (%p399) target = $region36
        $region35: #{_lambda_.7} parent=11 // pred_region
          _
        $region36: #{_lambda_.7} parent=11 // pred_fallthru
          _
        // Predicated region
        $region37: #{_lambda_.7} parent=11 // pred_check
          %p402 = pneg %p247
        $region38: #{_lambda_.7} parent=11 // pred_check_branch
          %404 = sbr.rel (%p402) target = $region40
        $region39: #{_lambda_.7} parent=11 // pred_region
          %406 = vsyncadd [#allocation8], 0
          %s407 = sshll.u32 %s9, 4
          %s408 = int_to_ptr.hbm [resolvable:$true] %s407
          %s409 = sshll.u32 [#allocation7], 4
          %s410 = int_to_ptr.vmem [resolvable:$true] %s409
          %415 = dma.hbm_to_vmem [thread:$0]  %s408, 256, %s410, [#allocation8], 64, 64, 4
        $region40: #{_lambda_.7} parent=11 // pred_fallthru
          _
        // Predicated region
        $region41: #{_lambda_.7} parent=11 // pred_check
          %p416 = pneg %p268
        $region42: #{_lambda_.7} parent=11 // pred_check_branch
          %418 = sbr.rel (%p416) target = $region44
        $region43: #{_lambda_.7} parent=11 // pred_region
          _
        $region44: #{_lambda_.7} parent=11 // pred_fallthru
          _
        // Predicated region
        $region45: #{_lambda_.7} parent=11 // pred_check
          %p419 = pneg %p289
        $region46: #{_lambda_.7} parent=11 // pred_check_branch
          %421 = sbr.rel (%p419) target = $region48
        $region47: #{_lambda_.7} parent=11 // pred_region
          _
        $region48: #{_lambda_.7} parent=11 // pred_fallthru
          _
        // Predicated region
        $region49: #{_lambda_.7} parent=11 // pred_check
          %p422 = pneg %p310
        $region50: #{_lambda_.7} parent=11 // pred_check_branch
          %424 = sbr.rel (%p422) target = $region52
        $region51: #{_lambda_.7} parent=11 // pred_region
          _
        $region52: #{_lambda_.7} parent=11 // pred_fallthru
          _
      $region12: #{_lambda_.7} parent=5 // pred_fallthru
        _
      %p425 = scmp.lt.s32.totalorder %s22, 2
      // Predicated region
      $region53: #{_lambda_.7} parent=5 // pred_check
        %p426 = pneg %p425
      $region54: #{_lambda_.7} parent=5 // pred_check_branch
        %428 = sbr.rel (%p426) target = $region56
      $region55: #{_lambda_.7} parent=5 // pred_region
        // Predicated region
        $region57: #{_lambda_.7} parent=55 // pred_check
          %p429 = pneg %p42
        $region58: #{_lambda_.7} parent=55 // pred_check_branch
          %431 = sbr.rel (%p429) target = $region60
        $region59: #{_lambda_.7} parent=55 // pred_region
          %p432 = scmp.lt.s32.totalorder %s22, 1
          %s433 = scalar_select %p432, %s22, 1
          %s434 = smul.addr %s433, 8
          %s435 = scalar_lea.vmem %s0, %s434
        $region60: #{_lambda_.7} parent=55 // pred_fallthru
          _
        // Predicated region
        $region61: #{_lambda_.7} parent=55 // pred_check
          %p436 = pneg %p68
        $region62: #{_lambda_.7} parent=55 // pred_check_branch
          %438 = sbr.rel (%p436) target = $region64
        $region63: #{_lambda_.7} parent=55 // pred_region
          %p439 = scmp.lt.s32.totalorder %s22, 1
          %s440 = scalar_select %p439, %s22, 1
          %s441 = smul.addr %s440, 8
          %s442 = scalar_lea.vmem %s1, %s441
        $region64: #{_lambda_.7} parent=55 // pred_fallthru
          _
        // Predicated region
        $region65: #{_lambda_.7} parent=55 // pred_check
          %p443 = pneg %p94
        $region66: #{_lambda_.7} parent=55 // pred_check_branch
          %445 = sbr.rel (%p443) target = $region68
        $region67: #{_lambda_.7} parent=55 // pred_region
          %p446 = scmp.lt.s32.totalorder %s22, 1
          %s447 = scalar_select %p446, %s22, 1
          %s448 = smul.addr %s447, 8
          %s449 = scalar_lea.vmem %s2, %s448
        $region68: #{_lambda_.7} parent=55 // pred_fallthru
          _
      $region56: #{_lambda_.7} parent=5 // pred_fallthru
        _
      %p450 = scmp.le.s32.totalorder 1, %s22
      %p451 = scmp.lt.s32.totalorder %s22, 3
      %p452 = pnand %p450, %p451
      %p453 = pneg %p452
      // Predicated region
      $region69: #{_lambda_.7} parent=5 // pred_check
        _
      $region70: #{_lambda_.7} parent=5 // pred_check_branch
        %455 = sbr.rel (%p452) target = $region72
      $region71: #{_lambda_.7} parent=5 // pred_region
        %s456 = ssub.s32 %s22, 1
        // Predicated region
        $region73: #{_lambda_.7} parent=71 // pred_check
          %p457 = pneg %p121
        $region74: #{_lambda_.7} parent=71 // pred_check_branch
          %459 = sbr.rel (%p457) target = $region76
        $region75: #{_lambda_.7} parent=71 // pred_region
          %461 = dma.done [#allocation3], 1024
        $region76: #{_lambda_.7} parent=71 // pred_fallthru
          _
        // Predicated region
        $region77: #{_lambda_.7} parent=71 // pred_check
          %p462 = pneg %p142
        $region78: #{_lambda_.7} parent=71 // pred_check_branch
          %464 = sbr.rel (%p462) target = $region80
        $region79: #{_lambda_.7} parent=71 // pred_region
          %466 = dma.done [#allocation5], 1024
        $region80: #{_lambda_.7} parent=71 // pred_fallthru
          _
        // Predicated region
        $region81: #{_lambda_.7} parent=71 // pred_check
          %p467 = pneg %p163
        $region82: #{_lambda_.7} parent=71 // pred_check_branch
          %469 = sbr.rel (%p467) target = $region84
        $region83: #{_lambda_.7} parent=71 // pred_region
          %471 = dma.done [#allocation5], 1024
        $region84: #{_lambda_.7} parent=71 // pred_fallthru
          _
        // Predicated region
        $region85: #{_lambda_.7} parent=71 // pred_check
          %p472 = pneg %p247
        $region86: #{_lambda_.7} parent=71 // pred_check_branch
          %474 = sbr.rel (%p472) target = $region88
        $region87: #{_lambda_.7} parent=71 // pred_region
          %476 = dma.done [#allocation8], 256
        $region88: #{_lambda_.7} parent=71 // pred_fallthru
          _
        %p477 = scmp.lt.s32.totalorder %s27, 1
        %s478 = scalar_select %p477, %s27, 1
        %s479 = smul.addr %s478, 8
        %s480 = scalar_lea.vmem %s0, %s479
        %p481 = pneg %p48
        %p482 = pneg %p45
        %p483 = scmp.lt.s32.totalorder %s27, 1
        %s484 = scalar_select %p483, %s27, 1
        %s485 = smul.addr %s484, 8
        %s486 = scalar_lea.vmem %s1, %s485
        %p487 = pneg %p74
        %p488 = pneg %p71
        %p489 = scmp.lt.s32.totalorder %s27, 1
        %s490 = scalar_select %p489, %s27, 1
        %s491 = smul.addr %s490, 8
        %s492 = scalar_lea.vmem %s2, %s491
        %p493 = pneg %p100
        %p494 = pneg %p97
        %p495 = pneg %p121
        %p496 = pneg %p118
        %p497 = pneg %p142
        %p498 = pneg %p139
        %p499 = pneg %p163
        %p500 = pneg %p160
        %p501 = pneg %p184
        %p502 = pneg %p181
        %p503 = pneg %p205
        %p504 = pneg %p202
        %p505 = pneg %p226
        %p506 = pneg %p223
        %p507 = pneg %p247
        %p508 = pneg %p244
        %p509 = pneg %p268
        %p510 = pneg %p265
        %p511 = pneg %p289
        %p512 = pneg %p286
        %p513 = pneg %p310
        %p514 = pneg %p307
        %p515 = pneg %p336
        %p516 = pneg %p333
        %p517 = scmp.lt.s32.totalorder %s27, 1
        %s518 = scalar_select %p517, %s27, 1
        %s519 = smul.addr %s518, 8
        %s520 = scalar_lea.vmem %s13, %s519
        %p521 = scmp.lt.s32.totalorder %s27, 1
        %s522 = scalar_select %p521, %s27, 1
        %s523 = smul.addr %s522, 8
        %s524 = scalar_lea.vmem %s0, %s523
        %p525 = scmp.lt.s32.totalorder %s27, 1
        %s526 = scalar_select %p525, %s27, 1
        %s527 = smul.addr %s526, 8
        %s528 = scalar_lea.vmem %s1, %s527
        %p529 = scmp.lt.s32.totalorder %s27, 1
        %s530 = scalar_select %p529, %s27, 1
        %s531 = smul.addr %s530, 8
        %s532 = scalar_lea.vmem %s2, %s531
        %p533 = scmp.lt.s32.totalorder %s27, 1
        %s534 = scalar_select %p533, %s27, 1
        %s535 = smul.addr %s534, 8
        %s536 = scalar_lea.vmem %s13, %s535
        %v538 = vld [vmem:[%s524] sm:$0xff]
        %v539 = vld [vmem:[%s528] sm:$0xff]
        %v540 = vld [vmem:[%s532] sm:$0xff]
        %v541 = vpack.c.bf16 %v538, %v538
        %v542 = vpack.c.bf16 %v539, %v539
        %v543 = vld [vmem:[#allocation2] sm:$0xf]
        %v544 = vld [vmem:[#allocation2 + $0x4] sm:$0xf]
        %v545 = vld [vmem:[#allocation2 + $0x8] sm:$0xf]
        %v546 = vld [vmem:[#allocation2 + $0xc] sm:$0xf]
        %v547 = vld [vmem:[%s6] sm:$0x1]
        %v549 = vperm.slane %v547, 0
        %v555 = vunpack.c.l.b16 %v543
        %v556 = vunpack.c.l.b16 %v544
        %v557 = vunpack.c.l.b16 %v545
        %v558 = vunpack.c.l.b16 %v546
        %v559 = vpack.c.b16 %v556, %v555
        %v560 = vpack.c.b16 %v558, %v557
        %vm563 = vcmask 261120
        %v565 = vsel %vm563, %v541, 0
        %567 = vmatpush.bf16.msra.mxu0 0
        %568 = vmatpush.bf16.msra.mxu0 0
        %569 = vmatpush.bf16.msra.mxu0 0
        %570 = vmatpush.bf16.msra.mxu0 0
        %571 = vmatpush.bf16.msra.mxu0 0
        %572 = vmatpush.bf16.msra.mxu0 0
        %573 = vmatpush.bf16.msra.mxu0 %v560
        %574 = vmatpush.bf16.msra.mxu0 %v559
        %575 = vmatmul.bf16.gmra.mxu0 %v565
        %v576 = vpop.f32.mrf.mxu0
        %v577 = vadd.f32 %v549, %v576
        %v578 = vpop.f32.mrf.mxu0
        %579 = vdwg.mxu0
        %v580 = vld [vmem:[#allocation4] sm:$0xf]
        %v581 = vld [vmem:[#allocation4 + $0x4] sm:$0xf]
        %v582 = vld [vmem:[#allocation4 + $0x8] sm:$0xf]
        %v583 = vld [vmem:[#allocation4 + $0xc] sm:$0xf]
        %v584 = vld [vmem:[%s7] sm:$0x1]
        %v586 = vperm.slane %v584, 0
        %v592 = vunpack.c.l.b16 %v580
        %v593 = vunpack.c.l.b16 %v581
        %v594 = vunpack.c.l.b16 %v582
        %v595 = vunpack.c.l.b16 %v583
        %v596 = vpack.c.b16 %v593, %v592
        %v597 = vpack.c.b16 %v595, %v594
        %v601 = vsel %vm563, %v542, 0
        %603 = vmatpush.bf16.msra.mxu0 0
        %604 = vmatpush.bf16.msra.mxu0 0
        %605 = vmatpush.bf16.msra.mxu0 0
        %606 = vmatpush.bf16.msra.mxu0 0
        %607 = vmatpush.bf16.msra.mxu0 0
        %608 = vmatpush.bf16.msra.mxu0 0
        %609 = vmatpush.bf16.msra.mxu0 %v597
        %610 = vmatpush.bf16.msra.mxu0 %v596
        %611 = vmatmul.bf16.gmra.mxu0 %v601
        %v612 = vpop.f32.mrf.mxu0
        %v613 = vadd.f32 %v586, %v612
        %v614 = vpop.f32.mrf.mxu0
        %615 = vdwg.mxu0
        %v616 = vld [vmem:[#allocation6] sm:$0xf]
        %v617 = vld [vmem:[#allocation6 + $0x4] sm:$0xf]
        %v618 = vld [vmem:[#allocation6 + $0x8] sm:$0xf]
        %v619 = vld [vmem:[#allocation6 + $0xc] sm:$0xf]
        %v620 = vld [vmem:[%s8] sm:$0x1]
        %v622 = vperm.slane %v620, 0
        %v628 = vunpack.c.l.b16 %v616
        %v629 = vunpack.c.l.b16 %v617
        %v630 = vunpack.c.l.b16 %v618
        %v631 = vunpack.c.l.b16 %v619
        %v632 = vpack.c.b16 %v629, %v628
        %v633 = vpack.c.b16 %v631, %v630
        %636 = vmatpush.bf16.msra.mxu0 0
        %637 = vmatpush.bf16.msra.mxu0 0
        %638 = vmatpush.bf16.msra.mxu0 0
        %639 = vmatpush.bf16.msra.mxu0 0
        %640 = vmatpush.bf16.msra.mxu0 0
        %641 = vmatpush.bf16.msra.mxu0 0
        %642 = vmatpush.bf16.msra.mxu0 %v633
        %643 = vmatpush.bf16.msra.mxu0 %v632
        %644 = vmatmul.bf16.gmra.mxu0 %v601
        %v645 = vpop.f32.mrf.mxu0
        %v646 = vadd.f32 %v622, %v645
        %v647 = vpop.f32.mrf.mxu0
        %648 = vdwg.mxu0
        %v649 = vmul.f32 %v577, 0.35355338
        %v650 = vpack.c.bf16 %v649, %v649
        %v651 = vpack.c.bf16 %v613, %v613
        %vm652 = vcmask 64512
        %v654 = vsel %vm652, %v650, 0
        %v657 = vsel %vm652, %v651, 0
        %659 = vmatpush.bf16.xpose.msra.mxu0 0
        %660 = vmatpush.bf16.xpose.msra.mxu0 0
        %661 = vmatpush.bf16.xpose.msra.mxu0 0
        %662 = vmatpush.bf16.xpose.msra.mxu0 0
        %663 = vmatpush.bf16.xpose.msra.mxu0 0
        %664 = vmatpush.bf16.xpose.msra.mxu0 0
        %665 = vmatpush.bf16.xpose.msra.mxu0 0
        %666 = vmatpush.bf16.xpose.msra.mxu0 %v657
        %667 = vmatmul.bf16.gmra.mxu0 %v654
        %v668 = vpop.f32.mrf.mxu0
        %v669 = vadd.f32 %v540, %v668
        %v670 = vpop.f32.mrf.mxu0
        %671 = vdwg.mxu0
        %v672 = vsel %vm652, %v669, -inf
        %673 = vmax.xlane.f32.xlu0 %v672
        %v674 = vpop.xlane.xlu0 %673
        %v675 = vsub.f32 %v669, %v674
        %v676 = vmul.f32 %v675, 1.442695
        %v677 = vpow.pop %v676
        %v678 = vsel %vm652, %v677, 0.0
        %679 = vadd.xlane.f32.xlu0 %v678
        %v680 = vpop.xlane.xlu0 %679
        %v681 = vrcp.pop %v680
        %v682 = vmul.f32 %v677, %v681
        %v683 = vpack.c.bf16 %v682, %v682
        %v684 = vpack.c.bf16 %v646, %v646
        %v686 = vsel %vm652, %v683, 0
        %vm688 = vcmask 1043456
        %v690 = vsel %vm688, %v684, 0
        %692 = vmatpush.bf16.msra.mxu0 0
        %693 = vmatpush.bf16.msra.mxu0 0
        %694 = vmatpush.bf16.msra.mxu0 0
        %695 = vmatpush.bf16.msra.mxu0 0
        %696 = vmatpush.bf16.msra.mxu0 0
        %697 = vmatpush.bf16.msra.mxu0 0
        %698 = vmatpush.bf16.msra.mxu0 0
        %699 = vmatpush.bf16.msra.mxu0 %v690
        %700 = vmatmul.bf16.gmra.mxu0 %v686
        %v701 = vpop.f32.mrf.mxu0
        %v702 = vadd.f32 0.0, %v701
        %v703 = vpop.f32.mrf.mxu0
        %704 = vdwg.mxu0
        %v705 = vpack.c.bf16 %v702, %v702
        %v706 = vld [vmem:[#allocation7] sm:$0xf]
        %s707 = scalar_lea.vmem [#allocation2], 16
        %v708 = vld [vmem:[%s707] sm:$0xf]
        %v709 = vld [vmem:[%s707 + $0x4] sm:$0xf]
        %v710 = vld [vmem:[%s707 + $0x8] sm:$0xf]
        %v711 = vld [vmem:[%s707 + $0xc] sm:$0xf]
        %s712 = scalar_lea.vmem %s6, 1
        %v713 = vld [vmem:[%s712] sm:$0x1]
        %v715 = vperm.slane %v713, 0
        %v721 = vunpack.c.l.b16 %v708
        %v722 = vunpack.c.l.b16 %v709
        %v723 = vunpack.c.l.b16 %v710
        %v724 = vunpack.c.l.b16 %v711
        %v725 = vpack.c.b16 %v722, %v721
        %v726 = vpack.c.b16 %v724, %v723
        %729 = vmatpush.bf16.msra.mxu0 0
        %730 = vmatpush.bf16.msra.mxu0 0
        %731 = vmatpush.bf16.msra.mxu0 0
        %732 = vmatpush.bf16.msra.mxu0 0
        %733 = vmatpush.bf16.msra.mxu0 0
        %734 = vmatpush.bf16.msra.mxu0 0
        %735 = vmatpush.bf16.msra.mxu0 %v726
        %736 = vmatpush.bf16.msra.mxu0 %v725
        %737 = vmatmul.bf16.gmra.mxu0 %v565
        %v738 = vpop.f32.mrf.mxu0
        %v739 = vadd.f32 %v715, %v738
        %v740 = vpop.f32.mrf.mxu0
        %741 = vdwg.mxu0
        %s742 = scalar_lea.vmem [#allocation4], 16
        %v743 = vld [vmem:[%s742] sm:$0xf]
        %v744 = vld [vmem:[%s742 + $0x4] sm:$0xf]
        %v745 = vld [vmem:[%s742 + $0x8] sm:$0xf]
        %v746 = vld [vmem:[%s742 + $0xc] sm:$0xf]
        %s747 = scalar_lea.vmem %s7, 1
        %v748 = vld [vmem:[%s747] sm:$0x1]
        %v750 = vperm.slane %v748, 0
        %v756 = vunpack.c.l.b16 %v743
        %v757 = vunpack.c.l.b16 %v744
        %v758 = vunpack.c.l.b16 %v745
        %v759 = vunpack.c.l.b16 %v746
        %v760 = vpack.c.b16 %v757, %v756
        %v761 = vpack.c.b16 %v759, %v758
        %764 = vmatpush.bf16.msra.mxu0 0
        %765 = vmatpush.bf16.msra.mxu0 0
        %766 = vmatpush.bf16.msra.mxu0 0
        %767 = vmatpush.bf16.msra.mxu0 0
        %768 = vmatpush.bf16.msra.mxu0 0
        %769 = vmatpush.bf16.msra.mxu0 0
        %770 = vmatpush.bf16.msra.mxu0 %v761
        %771 = vmatpush.bf16.msra.mxu0 %v760
        %772 = vmatmul.bf16.gmra.mxu0 %v601
        %v773 = vpop.f32.mrf.mxu0
        %v774 = vadd.f32 %v750, %v773
        %v775 = vpop.f32.mrf.mxu0
        %776 = vdwg.mxu0
        %s777 = scalar_lea.vmem [#allocation6], 16
        %v778 = vld [vmem:[%s777] sm:$0xf]
        %v779 = vld [vmem:[%s777 + $0x4] sm:$0xf]
        %v780 = vld [vmem:[%s777 + $0x8] sm:$0xf]
        %v781 = vld [vmem:[%s777 + $0xc] sm:$0xf]
        %s782 = scalar_lea.vmem %s8, 1
        %v783 = vld [vmem:[%s782] sm:$0x1]
        %v785 = vperm.slane %v783, 0
        %v791 = vunpack.c.l.b16 %v778
        %v792 = vunpack.c.l.b16 %v779
        %v793 = vunpack.c.l.b16 %v780
        %v794 = vunpack.c.l.b16 %v781
        %v795 = vpack.c.b16 %v792, %v791
        %v796 = vpack.c.b16 %v794, %v793
        %799 = vmatpush.bf16.msra.mxu0 0
        %800 = vmatpush.bf16.msra.mxu0 0
        %801 = vmatpush.bf16.msra.mxu0 0
        %802 = vmatpush.bf16.msra.mxu0 0
        %803 = vmatpush.bf16.msra.mxu0 0
        %804 = vmatpush.bf16.msra.mxu0 0
        %805 = vmatpush.bf16.msra.mxu0 %v796
        %806 = vmatpush.bf16.msra.mxu0 %v795
        %807 = vmatmul.bf16.gmra.mxu0 %v601
        %v808 = vpop.f32.mrf.mxu0
        %v809 = vadd.f32 %v785, %v808
        %v810 = vpop.f32.mrf.mxu0
        %811 = vdwg.mxu0
        %v812 = vmul.f32 %v739, 0.35355338
        %v813 = vpack.c.bf16 %v812, %v812
        %v814 = vpack.c.bf16 %v774, %v774
        %v816 = vsel %vm652, %v813, 0
        %v819 = vsel %vm652, %v814, 0
        %821 = vmatpush.bf16.xpose.msra.mxu0 0
        %822 = vmatpush.bf16.xpose.msra.mxu0 0
        %823 = vmatpush.bf16.xpose.msra.mxu0 0
        %824 = vmatpush.bf16.xpose.msra.mxu0 0
        %825 = vmatpush.bf16.xpose.msra.mxu0 0
        %826 = vmatpush.bf16.xpose.msra.mxu0 0
        %827 = vmatpush.bf16.xpose.msra.mxu0 0
        %828 = vmatpush.bf16.xpose.msra.mxu0 %v819
        %829 = vmatmul.bf16.gmra.mxu0 %v816
        %v830 = vpop.f32.mrf.mxu0
        %v831 = vadd.f32 %v540, %v830
        %v832 = vpop.f32.mrf.mxu0
        %833 = vdwg.mxu0
        %v834 = vsel %vm652, %v831, -inf
        %835 = vmax.xlane.f32.xlu0 %v834
        %v836 = vpop.xlane.xlu0 %835
        %v837 = vsub.f32 %v831, %v836
        %v838 = vmul.f32 %v837, 1.442695
        %v839 = vpow.pop %v838
        %v840 = vsel %vm652, %v839, 0.0
        %841 = vadd.xlane.f32.xlu0 %v840
        %v842 = vpop.xlane.xlu0 %841
        %v843 = vrcp.pop %v842
        %v844 = vmul.f32 %v839, %v843
        %v845 = vpack.c.bf16 %v844, %v844
        %v846 = vpack.c.bf16 %v809, %v809
        %v848 = vsel %vm652, %v845, 0
        %v851 = vsel %vm688, %v846, 0
        %853 = vmatpush.bf16.msra.mxu0 0
        %854 = vmatpush.bf16.msra.mxu0 0
        %855 = vmatpush.bf16.msra.mxu0 0
        %856 = vmatpush.bf16.msra.mxu0 0
        %857 = vmatpush.bf16.msra.mxu0 0
        %858 = vmatpush.bf16.msra.mxu0 0
        %859 = vmatpush.bf16.msra.mxu0 0
        %860 = vmatpush.bf16.msra.mxu0 %v851
        %861 = vmatmul.bf16.gmra.mxu0 %v848
        %v862 = vpop.f32.mrf.mxu0
        %v863 = vadd.f32 0.0, %v862
        %v864 = vpop.f32.mrf.mxu0
        %865 = vdwg.mxu0
        %v866 = vpack.c.bf16 %v863, %v863
        %s867 = scalar_lea.vmem [#allocation7], 4
        %v868 = vld [vmem:[%s867] sm:$0xf]
        %v870 = vsel %vm652, %v866, 0
        %v873 = vsel %vm688, %v868, 0
        %875 = vmatpush.bf16.msra.mxu0 0
        %876 = vmatpush.bf16.msra.mxu0 0
        %877 = vmatpush.bf16.msra.mxu0 0
        %878 = vmatpush.bf16.msra.mxu0 0
        %879 = vmatpush.bf16.msra.mxu0 0
        %880 = vmatpush.bf16.msra.mxu0 0
        %881 = vmatpush.bf16.msra.mxu0 0
        %882 = vmatpush.bf16.msra.mxu0 %v873
        %883 = vmatmul.bf16.gmra.mxu0 %v870
        %v884 = vpop.f32.mrf.mxu0
        %v885 = vadd.f32 0.0, %v884
        %v886 = vpop.f32.mrf.mxu0
        %887 = vdwg.mxu0
        %v889 = vsel %vm652, %v705, 0
        %v892 = vsel %vm688, %v706, 0
        %894 = vmatpush.bf16.msra.mxu0 0
        %895 = vmatpush.bf16.msra.mxu0 0
        %896 = vmatpush.bf16.msra.mxu0 0
        %897 = vmatpush.bf16.msra.mxu0 0
        %898 = vmatpush.bf16.msra.mxu0 0
        %899 = vmatpush.bf16.msra.mxu0 0
        %900 = vmatpush.bf16.msra.mxu0 0
        %901 = vmatpush.bf16.msra.mxu0 %v892
        %902 = vmatmul.bf16.gmra.mxu0 %v889
        %v903 = vpop.f32.mrf.mxu0
        %v904 = vadd.f32 %v885, %v903
        %v905 = vpop.f32.mrf.mxu0
        %906 = vdwg.mxu0
        %s907 = scalar_lea.vmem [#allocation2], 32
        %v908 = vld [vmem:[%s907] sm:$0xf]
        %v909 = vld [vmem:[%s907 + $0x4] sm:$0xf]
        %v910 = vld [vmem:[%s907 + $0x8] sm:$0xf]
        %v911 = vld [vmem:[%s907 + $0xc] sm:$0xf]
        %s912 = scalar_lea.vmem %s6, 2
        %v913 = vld [vmem:[%s912] sm:$0x1]
        %v915 = vperm.slane %v913, 0
        %v921 = vunpack.c.l.b16 %v908
        %v922 = vunpack.c.l.b16 %v909
        %v923 = vunpack.c.l.b16 %v910
        %v924 = vunpack.c.l.b16 %v911
        %v925 = vpack.c.b16 %v922, %v921
        %v926 = vpack.c.b16 %v924, %v923
        %929 = vmatpush.bf16.msra.mxu0 0
        %930 = vmatpush.bf16.msra.mxu0 0
        %931 = vmatpush.bf16.msra.mxu0 0
        %932 = vmatpush.bf16.msra.mxu0 0
        %933 = vmatpush.bf16.msra.mxu0 0
        %934 = vmatpush.bf16.msra.mxu0 0
        %935 = vmatpush.bf16.msra.mxu0 %v926
        %936 = vmatpush.bf16.msra.mxu0 %v925
        %937 = vmatmul.bf16.gmra.mxu0 %v565
        %v938 = vpop.f32.mrf.mxu0
        %v939 = vadd.f32 %v915, %v938
        %v940 = vpop.f32.mrf.mxu0
        %941 = vdwg.mxu0
        %s942 = scalar_lea.vmem [#allocation4], 32
        %v943 = vld [vmem:[%s942] sm:$0xf]
        %v944 = vld [vmem:[%s942 + $0x4] sm:$0xf]
        %v945 = vld [vmem:[%s942 + $0x8] sm:$0xf]
        %v946 = vld [vmem:[%s942 + $0xc] sm:$0xf]
        %s947 = scalar_lea.vmem %s7, 2
        %v948 = vld [vmem:[%s947] sm:$0x1]
        %v950 = vperm.slane %v948, 0
        %v956 = vunpack.c.l.b16 %v943
        %v957 = vunpack.c.l.b16 %v944
        %v958 = vunpack.c.l.b16 %v945
        %v959 = vunpack.c.l.b16 %v946
        %v960 = vpack.c.b16 %v957, %v956
        %v961 = vpack.c.b16 %v959, %v958
        %964 = vmatpush.bf16.msra.mxu0 0
        %965 = vmatpush.bf16.msra.mxu0 0
        %966 = vmatpush.bf16.msra.mxu0 0
        %967 = vmatpush.bf16.msra.mxu0 0
        %968 = vmatpush.bf16.msra.mxu0 0
        %969 = vmatpush.bf16.msra.mxu0 0
        %970 = vmatpush.bf16.msra.mxu0 %v961
        %971 = vmatpush.bf16.msra.mxu0 %v960
        %972 = vmatmul.bf16.gmra.mxu0 %v601
        %v973 = vpop.f32.mrf.mxu0
        %v974 = vadd.f32 %v950, %v973
        %v975 = vpop.f32.mrf.mxu0
        %976 = vdwg.mxu0
        %s977 = scalar_lea.vmem [#allocation6], 32
        %v978 = vld [vmem:[%s977] sm:$0xf]
        %v979 = vld [vmem:[%s977 + $0x4] sm:$0xf]
        %v980 = vld [vmem:[%s977 + $0x8] sm:$0xf]
        %v981 = vld [vmem:[%s977 + $0xc] sm:$0xf]
        %s982 = scalar_lea.vmem %s8, 2
        %v983 = vld [vmem:[%s982] sm:$0x1]
        %v985 = vperm.slane %v983, 0
        %v991 = vunpack.c.l.b16 %v978
        %v992 = vunpack.c.l.b16 %v979
        %v993 = vunpack.c.l.b16 %v980
        %v994 = vunpack.c.l.b16 %v981
        %v995 = vpack.c.b16 %v992, %v991
        %v996 = vpack.c.b16 %v994, %v993
        %999 = vmatpush.bf16.msra.mxu0 0
        %1000 = vmatpush.bf16.msra.mxu0 0
        %1001 = vmatpush.bf16.msra.mxu0 0
        %1002 = vmatpush.bf16.msra.mxu0 0
        %1003 = vmatpush.bf16.msra.mxu0 0
        %1004 = vmatpush.bf16.msra.mxu0 0
        %1005 = vmatpush.bf16.msra.mxu0 %v996
        %1006 = vmatpush.bf16.msra.mxu0 %v995
        %1007 = vmatmul.bf16.gmra.mxu0 %v601
        %v1008 = vpop.f32.mrf.mxu0
        %v1009 = vadd.f32 %v985, %v1008
        %v1010 = vpop.f32.mrf.mxu0
        %1011 = vdwg.mxu0
        %v1012 = vmul.f32 %v939, 0.35355338
        %v1013 = vpack.c.bf16 %v1012, %v1012
        %v1014 = vpack.c.bf16 %v974, %v974
        %v1016 = vsel %vm652, %v1013, 0
        %v1019 = vsel %vm652, %v1014, 0
        %1021 = vmatpush.bf16.xpose.msra.mxu0 0
        %1022 = vmatpush.bf16.xpose.msra.mxu0 0
        %1023 = vmatpush.bf16.xpose.msra.mxu0 0
        %1024 = vmatpush.bf16.xpose.msra.mxu0 0
        %1025 = vmatpush.bf16.xpose.msra.mxu0 0
        %1026 = vmatpush.bf16.xpose.msra.mxu0 0
        %1027 = vmatpush.bf16.xpose.msra.mxu0 0
        %1028 = vmatpush.bf16.xpose.msra.mxu0 %v1019
        %1029 = vmatmul.bf16.gmra.mxu0 %v1016
        %v1030 = vpop.f32.mrf.mxu0
        %v1031 = vadd.f32 %v540, %v1030
        %v1032 = vpop.f32.mrf.mxu0
        %1033 = vdwg.mxu0
        %v1034 = vsel %vm652, %v1031, -inf
        %1035 = vmax.xlane.f32.xlu0 %v1034
        %v1036 = vpop.xlane.xlu0 %1035
        %v1037 = vsub.f32 %v1031, %v1036
        %v1038 = vmul.f32 %v1037, 1.442695
        %v1039 = vpow.pop %v1038
        %v1040 = vsel %vm652, %v1039, 0.0
        %1041 = vadd.xlane.f32.xlu0 %v1040
        %v1042 = vpop.xlane.xlu0 %1041
        %v1043 = vrcp.pop %v1042
        %v1044 = vmul.f32 %v1039, %v1043
        %v1045 = vpack.c.bf16 %v1044, %v1044
        %v1046 = vpack.c.bf16 %v1009, %v1009
        %v1048 = vsel %vm652, %v1045, 0
        %v1051 = vsel %vm688, %v1046, 0
        %1053 = vmatpush.bf16.msra.mxu0 0
        %1054 = vmatpush.bf16.msra.mxu0 0
        %1055 = vmatpush.bf16.msra.mxu0 0
        %1056 = vmatpush.bf16.msra.mxu0 0
        %1057 = vmatpush.bf16.msra.mxu0 0
        %1058 = vmatpush.bf16.msra.mxu0 0
        %1059 = vmatpush.bf16.msra.mxu0 0
        %1060 = vmatpush.bf16.msra.mxu0 %v1051
        %1061 = vmatmul.bf16.gmra.mxu0 %v1048
        %v1062 = vpop.f32.mrf.mxu0
        %v1063 = vadd.f32 0.0, %v1062
        %v1064 = vpop.f32.mrf.mxu0
        %1065 = vdwg.mxu0
        %v1066 = vpack.c.bf16 %v1063, %v1063
        %s1067 = scalar_lea.vmem [#allocation7], 8
        %v1068 = vld [vmem:[%s1067] sm:$0xf]
        %v1070 = vsel %vm652, %v1066, 0
        %v1073 = vsel %vm688, %v1068, 0
        %1075 = vmatpush.bf16.msra.mxu0 0
        %1076 = vmatpush.bf16.msra.mxu0 0
        %1077 = vmatpush.bf16.msra.mxu0 0
        %1078 = vmatpush.bf16.msra.mxu0 0
        %1079 = vmatpush.bf16.msra.mxu0 0
        %1080 = vmatpush.bf16.msra.mxu0 0
        %1081 = vmatpush.bf16.msra.mxu0 0
        %1082 = vmatpush.bf16.msra.mxu0 %v1073
        %1083 = vmatmul.bf16.gmra.mxu0 %v1070
        %v1084 = vpop.f32.mrf.mxu0
        %v1085 = vadd.f32 0.0, %v1084
        %v1086 = vpop.f32.mrf.mxu0
        %1087 = vdwg.mxu0
        %v1088 = vadd.f32 %v904, %v1085
        %s1089 = scalar_lea.vmem [#allocation2], 48
        %v1090 = vld [vmem:[%s1089] sm:$0xf]
        %v1091 = vld [vmem:[%s1089 + $0x4] sm:$0xf]
        %v1092 = vld [vmem:[%s1089 + $0x8] sm:$0xf]
        %v1093 = vld [vmem:[%s1089 + $0xc] sm:$0xf]
        %s1094 = scalar_lea.vmem %s6, 3
        %v1095 = vld [vmem:[%s1094] sm:$0x1]
        %v1097 = vperm.slane %v1095, 0
        %v1103 = vunpack.c.l.b16 %v1090
        %v1104 = vunpack.c.l.b16 %v1091
        %v1105 = vunpack.c.l.b16 %v1092
        %v1106 = vunpack.c.l.b16 %v1093
        %v1107 = vpack.c.b16 %v1104, %v1103
        %v1108 = vpack.c.b16 %v1106, %v1105
        %1111 = vmatpush.bf16.msra.mxu0 0
        %1112 = vmatpush.bf16.msra.mxu0 0
        %1113 = vmatpush.bf16.msra.mxu0 0
        %1114 = vmatpush.bf16.msra.mxu0 0
        %1115 = vmatpush.bf16.msra.mxu0 0
        %1116 = vmatpush.bf16.msra.mxu0 0
        %1117 = vmatpush.bf16.msra.mxu0 %v1108
        %1118 = vmatpush.bf16.msra.mxu0 %v1107
        %1119 = vmatmul.bf16.gmra.mxu0 %v565
        %v1120 = vpop.f32.mrf.mxu0
        %v1121 = vadd.f32 %v1097, %v1120
        %v1122 = vpop.f32.mrf.mxu0
        %1123 = vdwg.mxu0
        %s1124 = scalar_lea.vmem [#allocation4], 48
        %v1125 = vld [vmem:[%s1124] sm:$0xf]
        %v1126 = vld [vmem:[%s1124 + $0x4] sm:$0xf]
        %v1127 = vld [vmem:[%s1124 + $0x8] sm:$0xf]
        %v1128 = vld [vmem:[%s1124 + $0xc] sm:$0xf]
        %s1129 = scalar_lea.vmem %s7, 3
        %v1130 = vld [vmem:[%s1129] sm:$0x1]
        %v1132 = vperm.slane %v1130, 0
        %v1138 = vunpack.c.l.b16 %v1125
        %v1139 = vunpack.c.l.b16 %v1126
        %v1140 = vunpack.c.l.b16 %v1127
        %v1141 = vunpack.c.l.b16 %v1128
        %v1142 = vpack.c.b16 %v1139, %v1138
        %v1143 = vpack.c.b16 %v1141, %v1140
        %1146 = vmatpush.bf16.msra.mxu0 0
        %1147 = vmatpush.bf16.msra.mxu0 0
        %1148 = vmatpush.bf16.msra.mxu0 0
        %1149 = vmatpush.bf16.msra.mxu0 0
        %1150 = vmatpush.bf16.msra.mxu0 0
        %1151 = vmatpush.bf16.msra.mxu0 0
        %1152 = vmatpush.bf16.msra.mxu0 %v1143
        %1153 = vmatpush.bf16.msra.mxu0 %v1142
        %1154 = vmatmul.bf16.gmra.mxu0 %v601
        %v1155 = vpop.f32.mrf.mxu0
        %v1156 = vadd.f32 %v1132, %v1155
        %v1157 = vpop.f32.mrf.mxu0
        %1158 = vdwg.mxu0
        %s1159 = scalar_lea.vmem [#allocation6], 48
        %v1160 = vld [vmem:[%s1159] sm:$0xf]
        %v1161 = vld [vmem:[%s1159 + $0x4] sm:$0xf]
        %v1162 = vld [vmem:[%s1159 + $0x8] sm:$0xf]
        %v1163 = vld [vmem:[%s1159 + $0xc] sm:$0xf]
        %s1164 = scalar_lea.vmem %s8, 3
        %v1165 = vld [vmem:[%s1164] sm:$0x1]
        %v1167 = vperm.slane %v1165, 0
        %v1173 = vunpack.c.l.b16 %v1160
        %v1174 = vunpack.c.l.b16 %v1161
        %v1175 = vunpack.c.l.b16 %v1162
        %v1176 = vunpack.c.l.b16 %v1163
        %v1177 = vpack.c.b16 %v1174, %v1173
        %v1178 = vpack.c.b16 %v1176, %v1175
        %1181 = vmatpush.bf16.msra.mxu0 0
        %1182 = vmatpush.bf16.msra.mxu0 0
        %1183 = vmatpush.bf16.msra.mxu0 0
        %1184 = vmatpush.bf16.msra.mxu0 0
        %1185 = vmatpush.bf16.msra.mxu0 0
        %1186 = vmatpush.bf16.msra.mxu0 0
        %1187 = vmatpush.bf16.msra.mxu0 %v1178
        %1188 = vmatpush.bf16.msra.mxu0 %v1177
        %1189 = vmatmul.bf16.gmra.mxu0 %v601
        %v1190 = vpop.f32.mrf.mxu0
        %v1191 = vadd.f32 %v1167, %v1190
        %v1192 = vpop.f32.mrf.mxu0
        %1193 = vdwg.mxu0
        %v1194 = vmul.f32 %v1121, 0.35355338
        %v1195 = vpack.c.bf16 %v1194, %v1194
        %v1196 = vpack.c.bf16 %v1156, %v1156
        %v1198 = vsel %vm652, %v1195, 0
        %v1201 = vsel %vm652, %v1196, 0
        %1203 = vmatpush.bf16.xpose.msra.mxu0 0
        %1204 = vmatpush.bf16.xpose.msra.mxu0 0
        %1205 = vmatpush.bf16.xpose.msra.mxu0 0
        %1206 = vmatpush.bf16.xpose.msra.mxu0 0
        %1207 = vmatpush.bf16.xpose.msra.mxu0 0
        %1208 = vmatpush.bf16.xpose.msra.mxu0 0
        %1209 = vmatpush.bf16.xpose.msra.mxu0 0
        %1210 = vmatpush.bf16.xpose.msra.mxu0 %v1201
        %1211 = vmatmul.bf16.gmra.mxu0 %v1198
        %v1212 = vpop.f32.mrf.mxu0
        %v1213 = vadd.f32 %v540, %v1212
        %v1214 = vpop.f32.mrf.mxu0
        %1215 = vdwg.mxu0
        %v1216 = vsel %vm652, %v1213, -inf
        %1217 = vmax.xlane.f32.xlu0 %v1216
        %v1218 = vpop.xlane.xlu0 %1217
        %v1219 = vsub.f32 %v1213, %v1218
        %v1220 = vmul.f32 %v1219, 1.442695
        %v1221 = vpow.pop %v1220
        %v1222 = vsel %vm652, %v1221, 0.0
        %1223 = vadd.xlane.f32.xlu0 %v1222
        %v1224 = vpop.xlane.xlu0 %1223
        %v1225 = vrcp.pop %v1224
        %v1226 = vmul.f32 %v1221, %v1225
        %v1227 = vpack.c.bf16 %v1226, %v1226
        %v1228 = vpack.c.bf16 %v1191, %v1191
        %v1230 = vsel %vm652, %v1227, 0
        %v1233 = vsel %vm688, %v1228, 0
        %1235 = vmatpush.bf16.msra.mxu0 0
        %1236 = vmatpush.bf16.msra.mxu0 0
        %1237 = vmatpush.bf16.msra.mxu0 0
        %1238 = vmatpush.bf16.msra.mxu0 0
        %1239 = vmatpush.bf16.msra.mxu0 0
        %1240 = vmatpush.bf16.msra.mxu0 0
        %1241 = vmatpush.bf16.msra.mxu0 0
        %1242 = vmatpush.bf16.msra.mxu0 %v1233
        %1243 = vmatmul.bf16.gmra.mxu0 %v1230
        %v1244 = vpop.f32.mrf.mxu0
        %v1245 = vadd.f32 0.0, %v1244
        %v1246 = vpop.f32.mrf.mxu0
        %1247 = vdwg.mxu0
        %v1248 = vpack.c.bf16 %v1245, %v1245
        %s1249 = scalar_lea.vmem [#allocation7], 12
        %v1250 = vld [vmem:[%s1249] sm:$0xf]
        %v1252 = vsel %vm652, %v1248, 0
        %v1255 = vsel %vm688, %v1250, 0
        %1257 = vmatpush.bf16.msra.mxu0 0
        %1258 = vmatpush.bf16.msra.mxu0 0
        %1259 = vmatpush.bf16.msra.mxu0 0
        %1260 = vmatpush.bf16.msra.mxu0 0
        %1261 = vmatpush.bf16.msra.mxu0 0
        %1262 = vmatpush.bf16.msra.mxu0 0
        %1263 = vmatpush.bf16.msra.mxu0 0
        %1264 = vmatpush.bf16.msra.mxu0 %v1255
        %1265 = vmatmul.bf16.gmra.mxu0 %v1252
        %v1266 = vpop.f32.mrf.mxu0
        %v1267 = vadd.f32 0.0, %v1266
        %v1268 = vpop.f32.mrf.mxu0
        %1269 = vdwg.mxu0
        %v1270 = vadd.f32 %v1088, %v1267
        %v1271 = vadd.f32 %v538, %v1270
        %v1272 = vld [vmem:[%s10] sm:$0x1]
        %v1274 = vperm.slane %v1272, 0
        %v1276 = vadd.f32 %v1271, %v1274
        %v1277 = vld [vmem:[%s11] sm:$0x1]
        %v1278 = vld [vmem:[%s12] sm:$0x1]
        %v1279 = vsel %vm563, %v1276, 0.0
        %1280 = vadd.xlane.f32.xlu0 %v1279
        %v1281 = vpop.xlane.xlu0 %1280
        %v1282 = vrcp.pop 32.0
        %v1283 = vmul.f32 32.0, %v1282
        %v1284 = vsub.f32 1.0, %v1283
        %v1285 = vmul.f32 %v1282, %v1284
        %v1286 = vadd.f32 %v1282, %v1285
        %vm1287 = vweird.f32 %v1282
        %v1288 = vsel %vm1287, %v1282, %v1286
        %v1289 = vmul.f32 %v1281, %v1288
        %v1290 = vsub.f32 %v1276, %v1289
        %v1291 = vmul.f32 %v1290, %v1290
        %v1292 = vsel %vm563, %v1291, 0.0
        %1293 = vadd.xlane.f32.xlu0 %v1292
        %v1294 = vpop.xlane.xlu0 %1293
        %v1295 = vmul.f32 %v1294, %v1288
        %v1296 = vadd.f32 %v1295, 1e-05
        %v1297 = vrsqrt.pop %v1296
        %v1298 = vmul.f32 %v1297, %v1296
        %v1299 = vmul.f32 %v1298, %v1297
        %v1300 = vmul.f32 0.5, %v1299
        %v1301 = vsub.f32 1.5, %v1300
        %v1302 = vmul.f32 %v1297, %v1301
        %vm1303 = vweird.f32 %v1296
        %vm1304 = vweird.f32 %v1297
        %vm1305 = vmor %vm1303, %vm1304
        %v1306 = vsel %vm1305, %v1297, %v1302
        %v1307 = vmul.f32 %v1290, %v1306
        %v1309 = vperm.slane %v1277, 0
        %v1311 = vmul.f32 %v1307, %v1309
        %v1313 = vperm.slane %v1278, 0
        %v1315 = vadd.f32 %v1311, %v1313
        %1316 = vst.msk [vmem:[%s536] sm:$0xff] %vm563, %v1315
        %p1317 = scmp.lt.s32.totalorder %s27, 1
        %s1318 = scalar_select %p1317, %s27, 1
        %s1319 = smul.addr %s1318, 8
        %s1320 = scalar_lea.vmem %s13, %s1319
        // Predicated region
        $region89: #{_lambda_.7} parent=71 // pred_check
          %p1321 = pneg %p333
        $region90: #{_lambda_.7} parent=71 // pred_check_branch
          %1323 = sbr.rel (%p1321) target = $region92
        $region91: #{_lambda_.7} parent=71 // pred_region
          _
        $region92: #{_lambda_.7} parent=71 // pred_fallthru
          _
      $region72: #{_lambda_.7} parent=5 // pred_fallthru
        _
      %p1324 = scmp.le.s32.totalorder 2, %s22
      // Predicated region
      $region93: #{_lambda_.7} parent=5 // pred_check
        %p1325 = pneg %p1324
      $region94: #{_lambda_.7} parent=5 // pred_check_branch
        %1327 = sbr.rel (%p1325) target = $region96
      $region95: #{_lambda_.7} parent=5 // pred_region
        %s1328 = ssub.s32 %s22, 2
        // Predicated region
        $region97: #{_lambda_.7} parent=95 // pred_check
          %p1329 = pneg %p339
        $region98: #{_lambda_.7} parent=95 // pred_check_branch
          %1331 = sbr.rel (%p1329) target = $region100
        $region99: #{_lambda_.7} parent=95 // pred_region
          %p1332 = scmp.lt.s32.totalorder %s28, 1
          %s1333 = scalar_select %p1332, %s28, 1
          %s1334 = smul.addr %s1333, 8
          %s1335 = scalar_lea.vmem %s13, %s1334
        $region100: #{_lambda_.7} parent=95 // pred_fallthru
          _
      $region96: #{_lambda_.7} parent=5 // pred_fallthru
        _
    $region6: #{_lambda_.7} parent=1 // loop_footer
      %s26 = sadd.s32 1, %s22
    $region7: #{_lambda_.7} parent=1 // loop_footer_branch
      %21 = sbr.rel target = $region3
    $region8: #{_lambda_.7} parent=1 // loop_exit
      _
    %1336 = vsyncpa [#allocation3], 1
    %s1337 = scalar_lea.sflag [#allocation3], 1
    %1338 = vsyncpa %s1337, 1
    %1339 = vsyncpa [#allocation5], 1
    %1340 = vsyncpa [#allocation8], 1

// kernel: _lambda_.8
$region0: #{_lambda_.8}
  #allocation0 [shape = 'u32[]', space=smem, size = 0x4, offset = 0x4, fixed_abs, tag = 'smem constant byte address 0x4 - core index']
  #allocation1 [shape = 'u32[72,128]{1,0:T(1,128)}', space=vmem, size = 0x9000, scoped, tag = 'internal scratch']
  %s0 = inlined_call_operand.vmem [shape: f32[2,8,32], index: 0, kind: input, shape index: {}]
  %s1 = inlined_call_operand.vmem [shape: f32[2,16,32], index: 1, kind: input, shape index: {}]
  %s2 = inlined_call_operand.vmem [shape: f32[2,8,16], index: 2, kind: input, shape index: {}]
  %s3 = inlined_call_operand.vmem [shape: bf16[4,32,8], index: 3, kind: input, shape index: {}]
  %s4 = inlined_call_operand.vmem [shape: bf16[4,32,8], index: 4, kind: input, shape index: {}]
  %s5 = inlined_call_operand.hbm [shape: bf16[4,32,8], index: 5, kind: input, shape index: {}]
  %s6 = inlined_call_operand.vmem [shape: f32[4,1,8], index: 6, kind: input, shape index: {}, may-alias: {6,7,8}]
  %s7 = inlined_call_operand.vmem [shape: f32[4,1,8], index: 7, kind: input, shape index: {}, may-alias: {6,7,8}]
  %s8 = inlined_call_operand.vmem [shape: f32[4,1,8], index: 8, kind: input, shape index: {}, may-alias: {6,7,8}]
  %s9 = inlined_call_operand.hbm [shape: bf16[4,8,32], index: 9, kind: input, shape index: {}]
  %s10 = inlined_call_operand.vmem [shape: f32[1,32], index: 10, kind: input, shape index: {}, may-alias: {10,12}]
  %s11 = inlined_call_operand.vmem [shape: f32[1,32], index: 11, kind: input, shape index: {}]
  %s12 = inlined_call_operand.vmem [shape: f32[1,32], index: 12, kind: input, shape index: {}, may-alias: {10,12}]
  %s13 = inlined_call_operand.vmem [shape: f32[2,8,32], index: 13, kind: output, shape index: {}]
  %s14 = sld [smem:[#allocation0]]
  $region93: #{_lambda_.8} parent=0
    _
  %s16 = ssub.s32 1, %s14
  %s17 = scalar_select 0, %s16, %s14
  $region1: #{_lambda_.8} parent=0
    #allocation2 [shape = 'u8[32768]{0}', space=vmem, size = 0x8000, scoped, tag = 'input window, operand 5, single buffered']
    #allocation3 [shape = 's32[2]{0}', space=sflag, size = 0x8, scoped, tag = 'scoped memory for _lambda_.8']
    #allocation4 [shape = 'u8[8192]{0}', space=vmem, size = 0x2000, scoped, tag = 'input window, operand 9, single buffered']
    #allocation5 [shape = 's32[1]{0}', space=sflag, size = 0x4, scoped, tag = 'scoped memory for _lambda_.8']
    %18 = vsyncpa [#allocation3], 0
    %19 = vsyncpa [#allocation5], 0
    loop: start=0, step=1, limit=4
    $region2: #{_lambda_.8} parent=1 // loop_pre_header
      _
    $region3: #{_lambda_.8} parent=1 // loop_header
      %s21 = sphi 0, %s25
      %p22 = scmp.ge.s32.totalorder %s21, 4
      %s31 = sphi 0, %s33
      %s34 = sphi 0, %s31
      %s35 = sphi 0, %s34
      %s51 = sphi 0, %s35
      %s57 = sphi 0, %s59
      %s60 = sphi 0, %s57
      %s61 = sphi 0, %s60
      %s77 = sphi 0, %s61
      %s83 = sphi 0, %s85
      %s86 = sphi 0, %s83
      %s87 = sphi 0, %s86
      %s103 = sphi 0, %s87
      %s107 = sphi 0, %s107
      %s109 = sphi 0, %s107
      %s110 = sphi 0, %s109
      %s124 = sphi 0, %s110
      %s128 = sphi 0, %s128
      %s130 = sphi 0, %s128
      %s131 = sphi 0, %s130
      %s145 = sphi 0, %s131
      %s149 = sphi 0, %s149
      %s151 = sphi 0, %s149
      %s152 = sphi 0, %s151
      %s166 = sphi 0, %s152
      %s170 = sphi 0, %s170
      %s172 = sphi 0, %s170
      %s173 = sphi 0, %s172
      %s187 = sphi 0, %s173
      %s191 = sphi 0, %s191
      %s193 = sphi 0, %s191
      %s194 = sphi 0, %s193
      %s208 = sphi 0, %s194
      %s212 = sphi 0, %s212
      %s214 = sphi 0, %s212
      %s215 = sphi 0, %s214
      %s229 = sphi 0, %s215
      %s233 = sphi 0, %s233
      %s235 = sphi 0, %s233
      %s236 = sphi 0, %s235
      %s250 = sphi 0, %s236
      %s254 = sphi 0, %s254
      %s256 = sphi 0, %s254
      %s257 = sphi 0, %s256
      %s271 = sphi 0, %s257
      %s275 = sphi 0, %s275
      %s277 = sphi 0, %s275
      %s278 = sphi 0, %s277
      %s292 = sphi 0, %s278
      %s296 = sphi 0, %s296
      %s298 = sphi 0, %s296
      %s299 = sphi 0, %s298
      %s313 = sphi 0, %s299
      %s319 = sphi 0, %s321
      %s322 = sphi 0, %s319
      %s323 = sphi 0, %s322
      %s339 = sphi 0, %s323
    $region4: #{_lambda_.8} parent=1 // loop_header_branch
      %24 = sbr.rel (%p22) target = $region8
    $region5: #{_lambda_.8} parent=1 // loop_body
      %s26 = ssub.s32 %s21, 1
      %s27 = ssub.s32 %s21, 2
      %s28 = sadd.s32 %s21, 1
      %s29 = ssub.s32 %s21, %s28
      %p30 = scmp.eq.s32.totalorder %s29, 0
      %s32 = sadd.s32 %s31, 1
      %s33 = scalar_select %p30, %s31, %s32
      %p36 = pneg %p30
      %p37 = scmp.eq.s32.totalorder %s21, 1
      %p38 = por %p36, %p37
      %p39 = scmp.ne.s32.totalorder %s31, %s34
      %p40 = scmp.eq.s32.totalorder %s21, 0
      %p41 = por %p39, %p40
      %p42 = scmp.ne.s32.totalorder %s31, %s34
      %p43 = scmp.eq.s32.totalorder %s26, 1
      %p44 = por %p42, %p43
      %p45 = scmp.ne.s32.totalorder %s34, %s35
      %p46 = scmp.eq.s32.totalorder %s26, 0
      %p47 = por %p45, %p46
      %p48 = scmp.ne.s32.totalorder %s34, %s35
      %p49 = scmp.eq.s32.totalorder %s27, 1
      %p50 = por %p48, %p49
      %p52 = scmp.ne.s32.totalorder %s35, %s51
      %p53 = scmp.eq.s32.totalorder %s27, 0
      %p54 = por %p52, %p53
      %s55 = ssub.s32 %s21, %s28
      %p56 = scmp.eq.s32.totalorder %s55, 0
      %s58 = sadd.s32 %s57, 1
      %s59 = scalar_select %p56, %s57, %s58
      %p62 = pneg %p56
      %p63 = scmp.eq.s32.totalorder %s21, 1
      %p64 = por %p62, %p63
      %p65 = scmp.ne.s32.totalorder %s57, %s60
      %p66 = scmp.eq.s32.totalorder %s21, 0
      %p67 = por %p65, %p66
      %p68 = scmp.ne.s32.totalorder %s57, %s60
      %p69 = scmp.eq.s32.totalorder %s26, 1
      %p70 = por %p68, %p69
      %p71 = scmp.ne.s32.totalorder %s60, %s61
      %p72 = scmp.eq.s32.totalorder %s26, 0
      %p73 = por %p71, %p72
      %p74 = scmp.ne.s32.totalorder %s60, %s61
      %p75 = scmp.eq.s32.totalorder %s27, 1
      %p76 = por %p74, %p75
      %p78 = scmp.ne.s32.totalorder %s61, %s77
      %p79 = scmp.eq.s32.totalorder %s27, 0
      %p80 = por %p78, %p79
      %s81 = ssub.s32 %s21, %s28
      %p82 = scmp.eq.s32.totalorder %s81, 0
      %s84 = sadd.s32 %s83, 1
      %s85 = scalar_select %p82, %s83, %s84
      %p88 = pneg %p82
      %p89 = scmp.eq.s32.totalorder %s21, 1
      %p90 = por %p88, %p89
      %p91 = scmp.ne.s32.totalorder %s83, %s86
      %p92 = scmp.eq.s32.totalorder %s21, 0
      %p93 = por %p91, %p92
      %p94 = scmp.ne.s32.totalorder %s83, %s86
      %p95 = scmp.eq.s32.totalorder %s26, 1
      %p96 = por %p94, %p95
      %p97 = scmp.ne.s32.totalorder %s86, %s87
      %p98 = scmp.eq.s32.totalorder %s26, 0
      %p99 = por %p97, %p98
      %p100 = scmp.ne.s32.totalorder %s86, %s87
      %p101 = scmp.eq.s32.totalorder %s27, 1
      %p102 = por %p100, %p101
      %p104 = scmp.ne.s32.totalorder %s87, %s103
      %p105 = scmp.eq.s32.totalorder %s27, 0
      %p106 = por %p104, %p105
      %s108 = sadd.s32 %s107, 1
      %p111 = scmp.eq.s32.totalorder %s21, 1
      %p112 = scmp.ne.s32.totalorder %s107, %s109
      %p113 = scmp.eq.s32.totalorder %s21, 0
      %p114 = por %p112, %p113
      %p115 = scmp.ne.s32.totalorder %s107, %s109
      %p116 = scmp.eq.s32.totalorder %s26, 1
      %p117 = por %p115, %p116
      %p118 = scmp.ne.s32.totalorder %s109, %s110
      %p119 = scmp.eq.s32.totalorder %s26, 0
      %p120 = por %p118, %p119
      %p121 = scmp.ne.s32.totalorder %s109, %s110
      %p122 = scmp.eq.s32.totalorder %s27, 1
      %p123 = por %p121, %p122
      %p125 = scmp.ne.s32.totalorder %s110, %s124
      %p126 = scmp.eq.s32.totalorder %s27, 0
      %p127 = por %p125, %p126
      %s129 = sadd.s32 %s128, 1
      %p132 = scmp.eq.s32.totalorder %s21, 1
      %p133 = scmp.ne.s32.totalorder %s128, %s130
      %p134 = scmp.eq.s32.totalorder %s21, 0
      %p135 = por %p133, %p134
      %p136 = scmp.ne.s32.totalorder %s128, %s130
      %p137 = scmp.eq.s32.totalorder %s26, 1
      %p138 = por %p136, %p137
      %p139 = scmp.ne.s32.totalorder %s130, %s131
      %p140 = scmp.eq.s32.totalorder %s26, 0
      %p141 = por %p139, %p140
      %p142 = scmp.ne.s32.totalorder %s130, %s131
      %p143 = scmp.eq.s32.totalorder %s27, 1
      %p144 = por %p142, %p143
      %p146 = scmp.ne.s32.totalorder %s131, %s145
      %p147 = scmp.eq.s32.totalorder %s27, 0
      %p148 = por %p146, %p147
      %s150 = sadd.s32 %s149, 1
      %p153 = scmp.eq.s32.totalorder %s21, 1
      %p154 = scmp.ne.s32.totalorder %s149, %s151
      %p155 = scmp.eq.s32.totalorder %s21, 0
      %p156 = por %p154, %p155
      %p157 = scmp.ne.s32.totalorder %s149, %s151
      %p158 = scmp.eq.s32.totalorder %s26, 1
      %p159 = por %p157, %p158
      %p160 = scmp.ne.s32.totalorder %s151, %s152
      %p161 = scmp.eq.s32.totalorder %s26, 0
      %p162 = por %p160, %p161
      %p163 = scmp.ne.s32.totalorder %s151, %s152
      %p164 = scmp.eq.s32.totalorder %s27, 1
      %p165 = por %p163, %p164
      %p167 = scmp.ne.s32.totalorder %s152, %s166
      %p168 = scmp.eq.s32.totalorder %s27, 0
      %p169 = por %p167, %p168
      %s171 = sadd.s32 %s170, 1
      %p174 = scmp.eq.s32.totalorder %s21, 1
      %p175 = scmp.ne.s32.totalorder %s170, %s172
      %p176 = scmp.eq.s32.totalorder %s21, 0
      %p177 = por %p175, %p176
      %p178 = scmp.ne.s32.totalorder %s170, %s172
      %p179 = scmp.eq.s32.totalorder %s26, 1
      %p180 = por %p178, %p179
      %p181 = scmp.ne.s32.totalorder %s172, %s173
      %p182 = scmp.eq.s32.totalorder %s26, 0
      %p183 = por %p181, %p182
      %p184 = scmp.ne.s32.totalorder %s172, %s173
      %p185 = scmp.eq.s32.totalorder %s27, 1
      %p186 = por %p184, %p185
      %p188 = scmp.ne.s32.totalorder %s173, %s187
      %p189 = scmp.eq.s32.totalorder %s27, 0
      %p190 = por %p188, %p189
      %s192 = sadd.s32 %s191, 1
      %p195 = scmp.eq.s32.totalorder %s21, 1
      %p196 = scmp.ne.s32.totalorder %s191, %s193
      %p197 = scmp.eq.s32.totalorder %s21, 0
      %p198 = por %p196, %p197
      %p199 = scmp.ne.s32.totalorder %s191, %s193
      %p200 = scmp.eq.s32.totalorder %s26, 1
      %p201 = por %p199, %p200
      %p202 = scmp.ne.s32.totalorder %s193, %s194
      %p203 = scmp.eq.s32.totalorder %s26, 0
      %p204 = por %p202, %p203
      %p205 = scmp.ne.s32.totalorder %s193, %s194
      %p206 = scmp.eq.s32.totalorder %s27, 1
      %p207 = por %p205, %p206
      %p209 = scmp.ne.s32.totalorder %s194, %s208
      %p210 = scmp.eq.s32.totalorder %s27, 0
      %p211 = por %p209, %p210
      %s213 = sadd.s32 %s212, 1
      %p216 = scmp.eq.s32.totalorder %s21, 1
      %p217 = scmp.ne.s32.totalorder %s212, %s214
      %p218 = scmp.eq.s32.totalorder %s21, 0
      %p219 = por %p217, %p218
      %p220 = scmp.ne.s32.totalorder %s212, %s214
      %p221 = scmp.eq.s32.totalorder %s26, 1
      %p222 = por %p220, %p221
      %p223 = scmp.ne.s32.totalorder %s214, %s215
      %p224 = scmp.eq.s32.totalorder %s26, 0
      %p225 = por %p223, %p224
      %p226 = scmp.ne.s32.totalorder %s214, %s215
      %p227 = scmp.eq.s32.totalorder %s27, 1
      %p228 = por %p226, %p227
      %p230 = scmp.ne.s32.totalorder %s215, %s229
      %p231 = scmp.eq.s32.totalorder %s27, 0
      %p232 = por %p230, %p231
      %s234 = sadd.s32 %s233, 1
      %p237 = scmp.eq.s32.totalorder %s21, 1
      %p238 = scmp.ne.s32.totalorder %s233, %s235
      %p239 = scmp.eq.s32.totalorder %s21, 0
      %p240 = por %p238, %p239
      %p241 = scmp.ne.s32.totalorder %s233, %s235
      %p242 = scmp.eq.s32.totalorder %s26, 1
      %p243 = por %p241, %p242
      %p244 = scmp.ne.s32.totalorder %s235, %s236
      %p245 = scmp.eq.s32.totalorder %s26, 0
      %p246 = por %p244, %p245
      %p247 = scmp.ne.s32.totalorder %s235, %s236
      %p248 = scmp.eq.s32.totalorder %s27, 1
      %p249 = por %p247, %p248
      %p251 = scmp.ne.s32.totalorder %s236, %s250
      %p252 = scmp.eq.s32.totalorder %s27, 0
      %p253 = por %p251, %p252
      %s255 = sadd.s32 %s254, 1
      %p258 = scmp.eq.s32.totalorder %s21, 1
      %p259 = scmp.ne.s32.totalorder %s254, %s256
      %p260 = scmp.eq.s32.totalorder %s21, 0
      %p261 = por %p259, %p260
      %p262 = scmp.ne.s32.totalorder %s254, %s256
      %p263 = scmp.eq.s32.totalorder %s26, 1
      %p264 = por %p262, %p263
      %p265 = scmp.ne.s32.totalorder %s256, %s257
      %p266 = scmp.eq.s32.totalorder %s26, 0
      %p267 = por %p265, %p266
      %p268 = scmp.ne.s32.totalorder %s256, %s257
      %p269 = scmp.eq.s32.totalorder %s27, 1
      %p270 = por %p268, %p269
      %p272 = scmp.ne.s32.totalorder %s257, %s271
      %p273 = scmp.eq.s32.totalorder %s27, 0
      %p274 = por %p272, %p273
      %s276 = sadd.s32 %s275, 1
      %p279 = scmp.eq.s32.totalorder %s21, 1
      %p280 = scmp.ne.s32.totalorder %s275, %s277
      %p281 = scmp.eq.s32.totalorder %s21, 0
      %p282 = por %p280, %p281
      %p283 = scmp.ne.s32.totalorder %s275, %s277
      %p284 = scmp.eq.s32.totalorder %s26, 1
      %p285 = por %p283, %p284
      %p286 = scmp.ne.s32.totalorder %s277, %s278
      %p287 = scmp.eq.s32.totalorder %s26, 0
      %p288 = por %p286, %p287
      %p289 = scmp.ne.s32.totalorder %s277, %s278
      %p290 = scmp.eq.s32.totalorder %s27, 1
      %p291 = por %p289, %p290
      %p293 = scmp.ne.s32.totalorder %s278, %s292
      %p294 = scmp.eq.s32.totalorder %s27, 0
      %p295 = por %p293, %p294
      %s297 = sadd.s32 %s296, 1
      %p300 = scmp.eq.s32.totalorder %s21, 1
      %p301 = scmp.ne.s32.totalorder %s296, %s298
      %p302 = scmp.eq.s32.totalorder %s21, 0
      %p303 = por %p301, %p302
      %p304 = scmp.ne.s32.totalorder %s296, %s298
      %p305 = scmp.eq.s32.totalorder %s26, 1
      %p306 = por %p304, %p305
      %p307 = scmp.ne.s32.totalorder %s298, %s299
      %p308 = scmp.eq.s32.totalorder %s26, 0
      %p309 = por %p307, %p308
      %p310 = scmp.ne.s32.totalorder %s298, %s299
      %p311 = scmp.eq.s32.totalorder %s27, 1
      %p312 = por %p310, %p311
      %p314 = scmp.ne.s32.totalorder %s299, %s313
      %p315 = scmp.eq.s32.totalorder %s27, 0
      %p316 = por %p314, %p315
      %s317 = ssub.s32 %s21, %s28
      %p318 = scmp.eq.s32.totalorder %s317, 0
      %s320 = sadd.s32 %s319, 1
      %s321 = scalar_select %p318, %s319, %s320
      %p324 = pneg %p318
      %p325 = scmp.eq.s32.totalorder %s21, 1
      %p326 = por %p324, %p325
      %p327 = scmp.ne.s32.totalorder %s319, %s322
      %p328 = scmp.eq.s32.totalorder %s21, 0
      %p329 = por %p327, %p328
      %p330 = scmp.ne.s32.totalorder %s319, %s322
      %p331 = scmp.eq.s32.totalorder %s26, 1
      %p332 = por %p330, %p331
      %p333 = scmp.ne.s32.totalorder %s322, %s323
      %p334 = scmp.eq.s32.totalorder %s26, 0
      %p335 = por %p333, %p334
      %p336 = scmp.ne.s32.totalorder %s322, %s323
      %p337 = scmp.eq.s32.totalorder %s27, 1
      %p338 = por %p336, %p337
      %p340 = scmp.ne.s32.totalorder %s323, %s339
      %p341 = scmp.eq.s32.totalorder %s27, 0
      %p342 = por %p340, %p341
      %p343 = scmp.le.s32.totalorder 1, %s21
      %p344 = scmp.lt.s32.totalorder %s21, 3
      %p345 = pnand %p343, %p344
      %p346 = pneg %p345
      // Predicated region
      $region9: #{_lambda_.8} parent=5 // pred_check
        _
      $region10: #{_lambda_.8} parent=5 // pred_check_branch
        %348 = sbr.rel (%p345) target = $region12
      $region11: #{_lambda_.8} parent=5 // pred_region
        %s349 = ssub.s32 %s21, 1
        // Predicated region
        $region13: #{_lambda_.8} parent=11 // pred_check
          %p350 = pneg %p120
        $region14: #{_lambda_.8} parent=11 // pred_check_branch
          %352 = sbr.rel (%p350) target = $region16
        $region15: #{_lambda_.8} parent=11 // pred_region
          _
        $region16: #{_lambda_.8} parent=11 // pred_fallthru
          _
        // Predicated region
        $region17: #{_lambda_.8} parent=11 // pred_check
          %p353 = pneg %p141
        $region18: #{_lambda_.8} parent=11 // pred_check_branch
          %355 = sbr.rel (%p353) target = $region20
        $region19: #{_lambda_.8} parent=11 // pred_region
          _
        $region20: #{_lambda_.8} parent=11 // pred_fallthru
          _
        // Predicated region
        $region21: #{_lambda_.8} parent=11 // pred_check
          %p356 = pneg %p162
        $region22: #{_lambda_.8} parent=11 // pred_check_branch
          %358 = sbr.rel (%p356) target = $region24
        $region23: #{_lambda_.8} parent=11 // pred_region
          %360 = vsyncadd [#allocation3], 0
          %s361 = sshll.u32 %s5, 4
          %s362 = int_to_ptr.hbm [resolvable:$true] %s361
          %s363 = sshll.u32 [#allocation2], 4
          %s364 = int_to_ptr.vmem [resolvable:$true] %s363
          %369 = dma.hbm_to_vmem [thread:$0]  %s362, 1024, %s364, [#allocation3], 64, 64, 4
        $region24: #{_lambda_.8} parent=11 // pred_fallthru
          _
        // Predicated region
        $region25: #{_lambda_.8} parent=11 // pred_check
          %p370 = pneg %p183
        $region26: #{_lambda_.8} parent=11 // pred_check_branch
          %372 = sbr.rel (%p370) target = $region28
        $region27: #{_lambda_.8} parent=11 // pred_region
          _
        $region28: #{_lambda_.8} parent=11 // pred_fallthru
          _
        // Predicated region
        $region29: #{_lambda_.8} parent=11 // pred_check
          %p373 = pneg %p204
        $region30: #{_lambda_.8} parent=11 // pred_check_branch
          %375 = sbr.rel (%p373) target = $region32
        $region31: #{_lambda_.8} parent=11 // pred_region
          _
        $region32: #{_lambda_.8} parent=11 // pred_fallthru
          _
        // Predicated region
        $region33: #{_lambda_.8} parent=11 // pred_check
          %p376 = pneg %p225
        $region34: #{_lambda_.8} parent=11 // pred_check_branch
          %378 = sbr.rel (%p376) target = $region36
        $region35: #{_lambda_.8} parent=11 // pred_region
          _
        $region36: #{_lambda_.8} parent=11 // pred_fallthru
          _
        // Predicated region
        $region37: #{_lambda_.8} parent=11 // pred_check
          %p379 = pneg %p246
        $region38: #{_lambda_.8} parent=11 // pred_check_branch
          %381 = sbr.rel (%p379) target = $region40
        $region39: #{_lambda_.8} parent=11 // pred_region
          %383 = vsyncadd [#allocation5], 0
          %s384 = sshll.u32 %s9, 4
          %s385 = int_to_ptr.hbm [resolvable:$true] %s384
          %s386 = sshll.u32 [#allocation4], 4
          %s387 = int_to_ptr.vmem [resolvable:$true] %s386
          %392 = dma.hbm_to_vmem [thread:$0]  %s385, 256, %s387, [#allocation5], 64, 64, 4
        $region40: #{_lambda_.8} parent=11 // pred_fallthru
          _
        // Predicated region
        $region41: #{_lambda_.8} parent=11 // pred_check
          %p393 = pneg %p267
        $region42: #{_lambda_.8} parent=11 // pred_check_branch
          %395 = sbr.rel (%p393) target = $region44
        $region43: #{_lambda_.8} parent=11 // pred_region
          _
        $region44: #{_lambda_.8} parent=11 // pred_fallthru
          _
        // Predicated region
        $region45: #{_lambda_.8} parent=11 // pred_check
          %p396 = pneg %p288
        $region46: #{_lambda_.8} parent=11 // pred_check_branch
          %398 = sbr.rel (%p396) target = $region48
        $region47: #{_lambda_.8} parent=11 // pred_region
          _
        $region48: #{_lambda_.8} parent=11 // pred_fallthru
          _
        // Predicated region
        $region49: #{_lambda_.8} parent=11 // pred_check
          %p399 = pneg %p309
        $region50: #{_lambda_.8} parent=11 // pred_check_branch
          %401 = sbr.rel (%p399) target = $region52
        $region51: #{_lambda_.8} parent=11 // pred_region
          _
        $region52: #{_lambda_.8} parent=11 // pred_fallthru
          _
      $region12: #{_lambda_.8} parent=5 // pred_fallthru
        _
      %p402 = scmp.lt.s32.totalorder %s21, 2
      // Predicated region
      $region53: #{_lambda_.8} parent=5 // pred_check
        %p403 = pneg %p402
      $region54: #{_lambda_.8} parent=5 // pred_check_branch
        %405 = sbr.rel (%p403) target = $region56
      $region55: #{_lambda_.8} parent=5 // pred_region
        // Predicated region
        $region57: #{_lambda_.8} parent=55 // pred_check
          %p406 = pneg %p41
        $region58: #{_lambda_.8} parent=55 // pred_check_branch
          %408 = sbr.rel (%p406) target = $region60
        $region59: #{_lambda_.8} parent=55 // pred_region
          %p409 = scmp.lt.s32.totalorder %s21, 1
          %s410 = scalar_select %p409, %s21, 1
          %s411 = smul.addr %s410, 8
          %s412 = scalar_lea.vmem %s0, %s411
        $region60: #{_lambda_.8} parent=55 // pred_fallthru
          _
        // Predicated region
        $region61: #{_lambda_.8} parent=55 // pred_check
          %p413 = pneg %p67
        $region62: #{_lambda_.8} parent=55 // pred_check_branch
          %415 = sbr.rel (%p413) target = $region64
        $region63: #{_lambda_.8} parent=55 // pred_region
          %p416 = scmp.lt.s32.totalorder %s21, 1
          %s417 = scalar_select %p416, %s21, 1
          %s418 = smul.addr %s417, 2
          %s419 = smul.addr %s418, 8
          %s420 = scalar_lea.vmem %s1, %s419
        $region64: #{_lambda_.8} parent=55 // pred_fallthru
          _
        // Predicated region
        $region65: #{_lambda_.8} parent=55 // pred_check
          %p421 = pneg %p93
        $region66: #{_lambda_.8} parent=55 // pred_check_branch
          %423 = sbr.rel (%p421) target = $region68
        $region67: #{_lambda_.8} parent=55 // pred_region
          %p424 = scmp.lt.s32.totalorder %s21, 1
          %s425 = scalar_select %p424, %s21, 1
          %s426 = smul.addr %s425, 8
          %s427 = scalar_lea.vmem %s2, %s426
        $region68: #{_lambda_.8} parent=55 // pred_fallthru
          _
      $region56: #{_lambda_.8} parent=5 // pred_fallthru
        _
      %p428 = scmp.le.s32.totalorder 1, %s21
      %p429 = scmp.lt.s32.totalorder %s21, 3
      %p430 = pnand %p428, %p429
      %p431 = pneg %p430
      // Predicated region
      $region69: #{_lambda_.8} parent=5 // pred_check
        _
      $region70: #{_lambda_.8} parent=5 // pred_check_branch
        %433 = sbr.rel (%p430) target = $region72
      $region71: #{_lambda_.8} parent=5 // pred_region
        %s434 = ssub.s32 %s21, 1
        // Predicated region
        $region73: #{_lambda_.8} parent=71 // pred_check
          %p435 = pneg %p162
        $region74: #{_lambda_.8} parent=71 // pred_check_branch
          %437 = sbr.rel (%p435) target = $region76
        $region75: #{_lambda_.8} parent=71 // pred_region
          %439 = dma.done [#allocation3], 1024
        $region76: #{_lambda_.8} parent=71 // pred_fallthru
          _
        // Predicated region
        $region77: #{_lambda_.8} parent=71 // pred_check
          %p440 = pneg %p246
        $region78: #{_lambda_.8} parent=71 // pred_check_branch
          %442 = sbr.rel (%p440) target = $region80
        $region79: #{_lambda_.8} parent=71 // pred_region
          %444 = dma.done [#allocation5], 256
        $region80: #{_lambda_.8} parent=71 // pred_fallthru
          _
        %p445 = scmp.lt.s32.totalorder %s26, 1
        %s446 = scalar_select %p445, %s26, 1
        %s447 = smul.addr %s446, 8
        %s448 = scalar_lea.vmem %s0, %s447
        %p449 = pneg %p47
        %p450 = pneg %p44
        %p451 = scmp.lt.s32.totalorder %s26, 1
        %s452 = scalar_select %p451, %s26, 1
        %s453 = smul.addr %s452, 2
        %s454 = smul.addr %s453, 8
        %s455 = scalar_lea.vmem %s1, %s454
        %p456 = pneg %p73
        %p457 = pneg %p70
        %p458 = scmp.lt.s32.totalorder %s26, 1
        %s459 = scalar_select %p458, %s26, 1
        %s460 = smul.addr %s459, 8
        %s461 = scalar_lea.vmem %s2, %s460
        %p462 = pneg %p99
        %p463 = pneg %p96
        %p464 = pneg %p120
        %p465 = pneg %p117
        %p466 = pneg %p141
        %p467 = pneg %p138
        %p468 = pneg %p162
        %p469 = pneg %p159
        %p470 = pneg %p183
        %p471 = pneg %p180
        %p472 = pneg %p204
        %p473 = pneg %p201
        %p474 = pneg %p225
        %p475 = pneg %p222
        %p476 = pneg %p246
        %p477 = pneg %p243
        %p478 = pneg %p267
        %p479 = pneg %p264
        %p480 = pneg %p288
        %p481 = pneg %p285
        %p482 = pneg %p309
        %p483 = pneg %p306
        %p484 = pneg %p335
        %p485 = pneg %p332
        %p486 = scmp.lt.s32.totalorder %s26, 1
        %s487 = scalar_select %p486, %s26, 1
        %s488 = smul.addr %s487, 8
        %s489 = scalar_lea.vmem %s13, %s488
        %p490 = scmp.lt.s32.totalorder %s26, 1
        %s491 = scalar_select %p490, %s26, 1
        %s492 = smul.addr %s491, 8
        %s493 = scalar_lea.vmem %s0, %s492
        %p494 = scmp.lt.s32.totalorder %s26, 1
        %s495 = scalar_select %p494, %s26, 1
        %s496 = smul.addr %s495, 2
        %s497 = smul.addr %s496, 8
        %s498 = scalar_lea.vmem %s1, %s497
        %p499 = scmp.lt.s32.totalorder %s26, 1
        %s500 = scalar_select %p499, %s26, 1
        %s501 = smul.addr %s500, 8
        %s502 = scalar_lea.vmem %s2, %s501
        %p503 = scmp.lt.s32.totalorder %s26, 1
        %s504 = scalar_select %p503, %s26, 1
        %s505 = smul.addr %s504, 8
        %s506 = scalar_lea.vmem %s13, %s505
        %v508 = vld [vmem:[%s493] sm:$0xff]
        %v509 = vld [vmem:[%s498] sm:$0xff]
        %v510 = vld [vmem:[%s498 + $0x8] sm:$0xff]
        %v511 = vld [vmem:[%s502] sm:$0xff]
        %v512 = vpack.c.bf16 %v508, %v508
        %v513 = vpack.c.bf16 %v510, %v509
        %v514 = vld [vmem:[%s3] sm:$0xf]
        %v515 = vld [vmem:[%s3 + $0x4] sm:$0xf]
        %v516 = vld [vmem:[%s3 + $0x8] sm:$0xf]
        %v517 = vld [vmem:[%s3 + $0xc] sm:$0xf]
        %v518 = vld [vmem:[%s6] sm:$0x1]
        %v520 = vperm.slane %v518, 0
        %v526 = vunpack.c.l.b16 %v514
        %v527 = vunpack.c.l.b16 %v515
        %v528 = vunpack.c.l.b16 %v516
        %v529 = vunpack.c.l.b16 %v517
        %v530 = vpack.c.b16 %v527, %v526
        %v531 = vpack.c.b16 %v529, %v528
        %vm534 = vcmask 261120
        %v536 = vsel %vm534, %v512, 0
        %538 = vmatpush.bf16.msra.mxu0 0
        %539 = vmatpush.bf16.msra.mxu0 0
        %540 = vmatpush.bf16.msra.mxu0 0
        %541 = vmatpush.bf16.msra.mxu0 0
        %542 = vmatpush.bf16.msra.mxu0 0
        %543 = vmatpush.bf16.msra.mxu0 0
        %544 = vmatpush.bf16.msra.mxu0 %v531
        %545 = vmatpush.bf16.msra.mxu0 %v530
        %546 = vmatmul.bf16.gmra.mxu0 %v536
        %v547 = vpop.f32.mrf.mxu0
        %v548 = vadd.f32 %v520, %v547
        %v549 = vpop.f32.mrf.mxu0
        %550 = vdwg.mxu0
        %v551 = vld [vmem:[%s4] sm:$0xf]
        %v552 = vld [vmem:[%s4 + $0x4] sm:$0xf]
        %v553 = vld [vmem:[%s4 + $0x8] sm:$0xf]
        %v554 = vld [vmem:[%s4 + $0xc] sm:$0xf]
        %v555 = vld [vmem:[%s7] sm:$0x1]
        %v557 = vperm.slane %v555, 0
        %v563 = vunpack.c.l.b16 %v551
        %v564 = vunpack.c.l.b16 %v552
        %v565 = vunpack.c.l.b16 %v553
        %v566 = vunpack.c.l.b16 %v554
        %v567 = vpack.c.b16 %v564, %v563
        %v568 = vpack.c.b16 %v566, %v565
        %v572 = vsel %vm534, %v513, 0
        %574 = vmatpush.bf16.msra.mxu0 0
        %575 = vmatpush.bf16.msra.mxu0 0
        %576 = vmatpush.bf16.msra.mxu0 0
        %577 = vmatpush.bf16.msra.mxu0 0
        %578 = vmatpush.bf16.msra.mxu0 0
        %579 = vmatpush.bf16.msra.mxu0 0
        %580 = vmatpush.bf16.msra.mxu0 %v568
        %581 = vmatpush.bf16.msra.mxu0 %v567
        %582 = vmatmul.bf16.gmra.mxu0 %v572
        %v583 = vpop.f32.mrf.mxu0
        %v584 = vadd.f32 %v557, %v583
        %v585 = vpop.f32.mrf.mxu0
        %v586 = vadd.f32 %v557, %v585
        %587 = vdwg.mxu0
        %v588 = vld [vmem:[#allocation2] sm:$0xf]
        %v589 = vld [vmem:[#allocation2 + $0x4] sm:$0xf]
        %v590 = vld [vmem:[#allocation2 + $0x8] sm:$0xf]
        %v591 = vld [vmem:[#allocation2 + $0xc] sm:$0xf]
        %v592 = vld [vmem:[%s8] sm:$0x1]
        %v594 = vperm.slane %v592, 0
        %v600 = vunpack.c.l.b16 %v588
        %v601 = vunpack.c.l.b16 %v589
        %v602 = vunpack.c.l.b16 %v590
        %v603 = vunpack.c.l.b16 %v591
        %v604 = vpack.c.b16 %v601, %v600
        %v605 = vpack.c.b16 %v603, %v602
        %608 = vmatpush.bf16.msra.mxu0 0
        %609 = vmatpush.bf16.msra.mxu0 0
        %610 = vmatpush.bf16.msra.mxu0 0
        %611 = vmatpush.bf16.msra.mxu0 0
        %612 = vmatpush.bf16.msra.mxu0 0
        %613 = vmatpush.bf16.msra.mxu0 0
        %614 = vmatpush.bf16.msra.mxu0 %v605
        %615 = vmatpush.bf16.msra.mxu0 %v604
        %616 = vmatmul.bf16.gmra.mxu0 %v572
        %v617 = vpop.f32.mrf.mxu0
        %v618 = vadd.f32 %v594, %v617
        %v619 = vpop.f32.mrf.mxu0
        %v620 = vadd.f32 %v594, %v619
        %621 = vdwg.mxu0
        %v622 = vmul.f32 %v548, 0.35355338
        %v623 = vpack.c.bf16 %v622, %v622
        %v624 = vpack.c.bf16 %v586, %v584
        %vm625 = vcmask 64512
        %v627 = vsel %vm625, %v623, 0
        %v630 = vsel %vm625, %v624, 0
        %632 = vmatpush.bf16.xpose.msra.mxu0 0
        %633 = vmatpush.bf16.xpose.msra.mxu0 0
        %634 = vmatpush.bf16.xpose.msra.mxu0 0
        %635 = vmatpush.bf16.xpose.msra.mxu0 0
        %636 = vmatpush.bf16.xpose.msra.mxu0 0
        %637 = vmatpush.bf16.xpose.msra.mxu0 0
        %638 = vmatpush.bf16.xpose.msra.mxu0 0
        %639 = vmatpush.bf16.xpose.msra.mxu0 %v630
        %640 = vmatmul.bf16.gmra.mxu0 %v627
        %v641 = vpop.f32.mrf.mxu0
        %v642 = vadd.f32 %v511, %v641
        %v643 = vpop.f32.mrf.mxu0
        %644 = vdwg.mxu0
        %vm645 = vcmask 130048
        %v646 = vsel %vm645, %v642, -inf
        %647 = vmax.xlane.f32.xlu0 %v646
        %v648 = vpop.xlane.xlu0 %647
        %v649 = vsub.f32 %v642, %v648
        %v650 = vmul.f32 %v649, 1.442695
        %v651 = vpow.pop %v650
        %v652 = vsel %vm645, %v651, 0.0
        %653 = vadd.xlane.f32.xlu0 %v652
        %v654 = vpop.xlane.xlu0 %653
        %v655 = vrcp.pop %v654
        %v656 = vmul.f32 %v651, %v655
        %v657 = vpack.c.bf16 %v656, %v656
        %v658 = vpack.c.bf16 %v620, %v618
        %v660 = vsel %vm645, %v657, 0
        %662 = vmatpush.bf16.msra.mxu0 0
        %663 = vmatpush.bf16.msra.mxu0 0
        %664 = vmatpush.bf16.msra.mxu0 0
        %665 = vmatpush.bf16.msra.mxu0 0
        %666 = vmatpush.bf16.msra.mxu0 0
        %667 = vmatpush.bf16.msra.mxu0 0
        %668 = vmatpush.bf16.msra.mxu0 0
        %669 = vmatpush.bf16.msra.mxu0 %v658
        %670 = vmatmul.bf16.gmra.mxu0 %v660
        %v671 = vpop.f32.mrf.mxu0
        %v672 = vadd.f32 0.0, %v671
        %v673 = vpop.f32.mrf.mxu0
        %674 = vdwg.mxu0
        %v675 = vpack.c.bf16 %v672, %v672
        %v676 = vld [vmem:[#allocation4] sm:$0xf]
        %s677 = scalar_lea.vmem %s3, 16
        %v678 = vld [vmem:[%s677] sm:$0xf]
        %v679 = vld [vmem:[%s677 + $0x4] sm:$0xf]
        %v680 = vld [vmem:[%s677 + $0x8] sm:$0xf]
        %v681 = vld [vmem:[%s677 + $0xc] sm:$0xf]
        %s682 = scalar_lea.vmem %s6, 1
        %v683 = vld [vmem:[%s682] sm:$0x1]
        %v685 = vperm.slane %v683, 0
        %v691 = vunpack.c.l.b16 %v678
        %v692 = vunpack.c.l.b16 %v679
        %v693 = vunpack.c.l.b16 %v680
        %v694 = vunpack.c.l.b16 %v681
        %v695 = vpack.c.b16 %v692, %v691
        %v696 = vpack.c.b16 %v694, %v693
        %699 = vmatpush.bf16.msra.mxu0 0
        %700 = vmatpush.bf16.msra.mxu0 0
        %701 = vmatpush.bf16.msra.mxu0 0
        %702 = vmatpush.bf16.msra.mxu0 0
        %703 = vmatpush.bf16.msra.mxu0 0
        %704 = vmatpush.bf16.msra.mxu0 0
        %705 = vmatpush.bf16.msra.mxu0 %v696
        %706 = vmatpush.bf16.msra.mxu0 %v695
        %707 = vmatmul.bf16.gmra.mxu0 %v536
        %v708 = vpop.f32.mrf.mxu0
        %v709 = vadd.f32 %v685, %v708
        %v710 = vpop.f32.mrf.mxu0
        %711 = vdwg.mxu0
        %s712 = scalar_lea.vmem %s4, 16
        %v713 = vld [vmem:[%s712] sm:$0xf]
        %v714 = vld [vmem:[%s712 + $0x4] sm:$0xf]
        %v715 = vld [vmem:[%s712 + $0x8] sm:$0xf]
        %v716 = vld [vmem:[%s712 + $0xc] sm:$0xf]
        %s717 = scalar_lea.vmem %s7, 1
        %v718 = vld [vmem:[%s717] sm:$0x1]
        %v720 = vperm.slane %v718, 0
        %v726 = vunpack.c.l.b16 %v713
        %v727 = vunpack.c.l.b16 %v714
        %v728 = vunpack.c.l.b16 %v715
        %v729 = vunpack.c.l.b16 %v716
        %v730 = vpack.c.b16 %v727, %v726
        %v731 = vpack.c.b16 %v729, %v728
        %734 = vmatpush.bf16.msra.mxu0 0
        %735 = vmatpush.bf16.msra.mxu0 0
        %736 = vmatpush.bf16.msra.mxu0 0
        %737 = vmatpush.bf16.msra.mxu0 0
        %738 = vmatpush.bf16.msra.mxu0 0
        %739 = vmatpush.bf16.msra.mxu0 0
        %740 = vmatpush.bf16.msra.mxu0 %v731
        %741 = vmatpush.bf16.msra.mxu0 %v730
        %742 = vmatmul.bf16.gmra.mxu0 %v572
        %v743 = vpop.f32.mrf.mxu0
        %v744 = vadd.f32 %v720, %v743
        %v745 = vpop.f32.mrf.mxu0
        %v746 = vadd.f32 %v720, %v745
        %747 = vdwg.mxu0
        %s748 = scalar_lea.vmem [#allocation2], 16
        %v749 = vld [vmem:[%s748] sm:$0xf]
        %v750 = vld [vmem:[%s748 + $0x4] sm:$0xf]
        %v751 = vld [vmem:[%s748 + $0x8] sm:$0xf]
        %v752 = vld [vmem:[%s748 + $0xc] sm:$0xf]
        %s753 = scalar_lea.vmem %s8, 1
        %v754 = vld [vmem:[%s753] sm:$0x1]
        %v756 = vperm.slane %v754, 0
        %v762 = vunpack.c.l.b16 %v749
        %v763 = vunpack.c.l.b16 %v750
        %v764 = vunpack.c.l.b16 %v751
        %v765 = vunpack.c.l.b16 %v752
        %v766 = vpack.c.b16 %v763, %v762
        %v767 = vpack.c.b16 %v765, %v764
        %770 = vmatpush.bf16.msra.mxu0 0
        %771 = vmatpush.bf16.msra.mxu0 0
        %772 = vmatpush.bf16.msra.mxu0 0
        %773 = vmatpush.bf16.msra.mxu0 0
        %774 = vmatpush.bf16.msra.mxu0 0
        %775 = vmatpush.bf16.msra.mxu0 0
        %776 = vmatpush.bf16.msra.mxu0 %v767
        %777 = vmatpush.bf16.msra.mxu0 %v766
        %778 = vmatmul.bf16.gmra.mxu0 %v572
        %v779 = vpop.f32.mrf.mxu0
        %v780 = vadd.f32 %v756, %v779
        %v781 = vpop.f32.mrf.mxu0
        %v782 = vadd.f32 %v756, %v781
        %783 = vdwg.mxu0
        %v784 = vmul.f32 %v709, 0.35355338
        %v785 = vpack.c.bf16 %v784, %v784
        %v786 = vpack.c.bf16 %v746, %v744
        %v788 = vsel %vm625, %v785, 0
        %v791 = vsel %vm625, %v786, 0
        %793 = vmatpush.bf16.xpose.msra.mxu0 0
        %794 = vmatpush.bf16.xpose.msra.mxu0 0
        %795 = vmatpush.bf16.xpose.msra.mxu0 0
        %796 = vmatpush.bf16.xpose.msra.mxu0 0
        %797 = vmatpush.bf16.xpose.msra.mxu0 0
        %798 = vmatpush.bf16.xpose.msra.mxu0 0
        %799 = vmatpush.bf16.xpose.msra.mxu0 0
        %800 = vmatpush.bf16.xpose.msra.mxu0 %v791
        %801 = vmatmul.bf16.gmra.mxu0 %v788
        %v802 = vpop.f32.mrf.mxu0
        %v803 = vadd.f32 %v511, %v802
        %v804 = vpop.f32.mrf.mxu0
        %805 = vdwg.mxu0
        %v806 = vsel %vm645, %v803, -inf
        %807 = vmax.xlane.f32.xlu0 %v806
        %v808 = vpop.xlane.xlu0 %807
        %v809 = vsub.f32 %v803, %v808
        %v810 = vmul.f32 %v809, 1.442695
        %v811 = vpow.pop %v810
        %v812 = vsel %vm645, %v811, 0.0
        %813 = vadd.xlane.f32.xlu0 %v812
        %v814 = vpop.xlane.xlu0 %813
        %v815 = vrcp.pop %v814
        %v816 = vmul.f32 %v811, %v815
        %v817 = vpack.c.bf16 %v816, %v816
        %v818 = vpack.c.bf16 %v782, %v780
        %v820 = vsel %vm645, %v817, 0
        %822 = vmatpush.bf16.msra.mxu0 0
        %823 = vmatpush.bf16.msra.mxu0 0
        %824 = vmatpush.bf16.msra.mxu0 0
        %825 = vmatpush.bf16.msra.mxu0 0
        %826 = vmatpush.bf16.msra.mxu0 0
        %827 = vmatpush.bf16.msra.mxu0 0
        %828 = vmatpush.bf16.msra.mxu0 0
        %829 = vmatpush.bf16.msra.mxu0 %v818
        %830 = vmatmul.bf16.gmra.mxu0 %v820
        %v831 = vpop.f32.mrf.mxu0
        %v832 = vadd.f32 0.0, %v831
        %v833 = vpop.f32.mrf.mxu0
        %834 = vdwg.mxu0
        %v835 = vpack.c.bf16 %v832, %v832
        %s836 = scalar_lea.vmem [#allocation4], 4
        %v837 = vld [vmem:[%s836] sm:$0xf]
        %v839 = vsel %vm625, %v835, 0
        %vm841 = vcmask 1043456
        %v843 = vsel %vm841, %v837, 0
        %845 = vmatpush.bf16.msra.mxu0 0
        %846 = vmatpush.bf16.msra.mxu0 0
        %847 = vmatpush.bf16.msra.mxu0 0
        %848 = vmatpush.bf16.msra.mxu0 0
        %849 = vmatpush.bf16.msra.mxu0 0
        %850 = vmatpush.bf16.msra.mxu0 0
        %851 = vmatpush.bf16.msra.mxu0 0
        %852 = vmatpush.bf16.msra.mxu0 %v843
        %853 = vmatmul.bf16.gmra.mxu0 %v839
        %v854 = vpop.f32.mrf.mxu0
        %v855 = vadd.f32 0.0, %v854
        %v856 = vpop.f32.mrf.mxu0
        %857 = vdwg.mxu0
        %v859 = vsel %vm625, %v675, 0
        %v862 = vsel %vm841, %v676, 0
        %864 = vmatpush.bf16.msra.mxu0 0
        %865 = vmatpush.bf16.msra.mxu0 0
        %866 = vmatpush.bf16.msra.mxu0 0
        %867 = vmatpush.bf16.msra.mxu0 0
        %868 = vmatpush.bf16.msra.mxu0 0
        %869 = vmatpush.bf16.msra.mxu0 0
        %870 = vmatpush.bf16.msra.mxu0 0
        %871 = vmatpush.bf16.msra.mxu0 %v862
        %872 = vmatmul.bf16.gmra.mxu0 %v859
        %v873 = vpop.f32.mrf.mxu0
        %v874 = vadd.f32 %v855, %v873
        %v875 = vpop.f32.mrf.mxu0
        %876 = vdwg.mxu0
        %s877 = scalar_lea.vmem %s3, 32
        %v878 = vld [vmem:[%s877] sm:$0xf]
        %v879 = vld [vmem:[%s877 + $0x4] sm:$0xf]
        %v880 = vld [vmem:[%s877 + $0x8] sm:$0xf]
        %v881 = vld [vmem:[%s877 + $0xc] sm:$0xf]
        %s882 = scalar_lea.vmem %s6, 2
        %v883 = vld [vmem:[%s882] sm:$0x1]
        %v885 = vperm.slane %v883, 0
        %v891 = vunpack.c.l.b16 %v878
        %v892 = vunpack.c.l.b16 %v879
        %v893 = vunpack.c.l.b16 %v880
        %v894 = vunpack.c.l.b16 %v881
        %v895 = vpack.c.b16 %v892, %v891
        %v896 = vpack.c.b16 %v894, %v893
        %899 = vmatpush.bf16.msra.mxu0 0
        %900 = vmatpush.bf16.msra.mxu0 0
        %901 = vmatpush.bf16.msra.mxu0 0
        %902 = vmatpush.bf16.msra.mxu0 0
        %903 = vmatpush.bf16.msra.mxu0 0
        %904 = vmatpush.bf16.msra.mxu0 0
        %905 = vmatpush.bf16.msra.mxu0 %v896
        %906 = vmatpush.bf16.msra.mxu0 %v895
        %907 = vmatmul.bf16.gmra.mxu0 %v536
        %v908 = vpop.f32.mrf.mxu0
        %v909 = vadd.f32 %v885, %v908
        %v910 = vpop.f32.mrf.mxu0
        %911 = vdwg.mxu0
        %s912 = scalar_lea.vmem %s4, 32
        %v913 = vld [vmem:[%s912] sm:$0xf]
        %v914 = vld [vmem:[%s912 + $0x4] sm:$0xf]
        %v915 = vld [vmem:[%s912 + $0x8] sm:$0xf]
        %v916 = vld [vmem:[%s912 + $0xc] sm:$0xf]
        %s917 = scalar_lea.vmem %s7, 2
        %v918 = vld [vmem:[%s917] sm:$0x1]
        %v920 = vperm.slane %v918, 0
        %v926 = vunpack.c.l.b16 %v913
        %v927 = vunpack.c.l.b16 %v914
        %v928 = vunpack.c.l.b16 %v915
        %v929 = vunpack.c.l.b16 %v916
        %v930 = vpack.c.b16 %v927, %v926
        %v931 = vpack.c.b16 %v929, %v928
        %934 = vmatpush.bf16.msra.mxu0 0
        %935 = vmatpush.bf16.msra.mxu0 0
        %936 = vmatpush.bf16.msra.mxu0 0
        %937 = vmatpush.bf16.msra.mxu0 0
        %938 = vmatpush.bf16.msra.mxu0 0
        %939 = vmatpush.bf16.msra.mxu0 0
        %940 = vmatpush.bf16.msra.mxu0 %v931
        %941 = vmatpush.bf16.msra.mxu0 %v930
        %942 = vmatmul.bf16.gmra.mxu0 %v572
        %v943 = vpop.f32.mrf.mxu0
        %v944 = vadd.f32 %v920, %v943
        %v945 = vpop.f32.mrf.mxu0
        %v946 = vadd.f32 %v920, %v945
        %947 = vdwg.mxu0
        %s948 = scalar_lea.vmem [#allocation2], 32
        %v949 = vld [vmem:[%s948] sm:$0xf]
        %v950 = vld [vmem:[%s948 + $0x4] sm:$0xf]
        %v951 = vld [vmem:[%s948 + $0x8] sm:$0xf]
        %v952 = vld [vmem:[%s948 + $0xc] sm:$0xf]
        %s953 = scalar_lea.vmem %s8, 2
        %v954 = vld [vmem:[%s953] sm:$0x1]
        %v956 = vperm.slane %v954, 0
        %v962 = vunpack.c.l.b16 %v949
        %v963 = vunpack.c.l.b16 %v950
        %v964 = vunpack.c.l.b16 %v951
        %v965 = vunpack.c.l.b16 %v952
        %v966 = vpack.c.b16 %v963, %v962
        %v967 = vpack.c.b16 %v965, %v964
        %970 = vmatpush.bf16.msra.mxu0 0
        %971 = vmatpush.bf16.msra.mxu0 0
        %972 = vmatpush.bf16.msra.mxu0 0
        %973 = vmatpush.bf16.msra.mxu0 0
        %974 = vmatpush.bf16.msra.mxu0 0
        %975 = vmatpush.bf16.msra.mxu0 0
        %976 = vmatpush.bf16.msra.mxu0 %v967
        %977 = vmatpush.bf16.msra.mxu0 %v966
        %978 = vmatmul.bf16.gmra.mxu0 %v572
        %v979 = vpop.f32.mrf.mxu0
        %v980 = vadd.f32 %v956, %v979
        %v981 = vpop.f32.mrf.mxu0
        %v982 = vadd.f32 %v956, %v981
        %983 = vdwg.mxu0
        %v984 = vmul.f32 %v909, 0.35355338
        %v985 = vpack.c.bf16 %v984, %v984
        %v986 = vpack.c.bf16 %v946, %v944
        %v988 = vsel %vm625, %v985, 0
        %v991 = vsel %vm625, %v986, 0
        %993 = vmatpush.bf16.xpose.msra.mxu0 0
        %994 = vmatpush.bf16.xpose.msra.mxu0 0
        %995 = vmatpush.bf16.xpose.msra.mxu0 0
        %996 = vmatpush.bf16.xpose.msra.mxu0 0
        %997 = vmatpush.bf16.xpose.msra.mxu0 0
        %998 = vmatpush.bf16.xpose.msra.mxu0 0
        %999 = vmatpush.bf16.xpose.msra.mxu0 0
        %1000 = vmatpush.bf16.xpose.msra.mxu0 %v991
        %1001 = vmatmul.bf16.gmra.mxu0 %v988
        %v1002 = vpop.f32.mrf.mxu0
        %v1003 = vadd.f32 %v511, %v1002
        %v1004 = vpop.f32.mrf.mxu0
        %1005 = vdwg.mxu0
        %v1006 = vsel %vm645, %v1003, -inf
        %1007 = vmax.xlane.f32.xlu0 %v1006
        %v1008 = vpop.xlane.xlu0 %1007
        %v1009 = vsub.f32 %v1003, %v1008
        %v1010 = vmul.f32 %v1009, 1.442695
        %v1011 = vpow.pop %v1010
        %v1012 = vsel %vm645, %v1011, 0.0
        %1013 = vadd.xlane.f32.xlu0 %v1012
        %v1014 = vpop.xlane.xlu0 %1013
        %v1015 = vrcp.pop %v1014
        %v1016 = vmul.f32 %v1011, %v1015
        %v1017 = vpack.c.bf16 %v1016, %v1016
        %v1018 = vpack.c.bf16 %v982, %v980
        %v1020 = vsel %vm645, %v1017, 0
        %1022 = vmatpush.bf16.msra.mxu0 0
        %1023 = vmatpush.bf16.msra.mxu0 0
        %1024 = vmatpush.bf16.msra.mxu0 0
        %1025 = vmatpush.bf16.msra.mxu0 0
        %1026 = vmatpush.bf16.msra.mxu0 0
        %1027 = vmatpush.bf16.msra.mxu0 0
        %1028 = vmatpush.bf16.msra.mxu0 0
        %1029 = vmatpush.bf16.msra.mxu0 %v1018
        %1030 = vmatmul.bf16.gmra.mxu0 %v1020
        %v1031 = vpop.f32.mrf.mxu0
        %v1032 = vadd.f32 0.0, %v1031
        %v1033 = vpop.f32.mrf.mxu0
        %1034 = vdwg.mxu0
        %v1035 = vpack.c.bf16 %v1032, %v1032
        %s1036 = scalar_lea.vmem [#allocation4], 8
        %v1037 = vld [vmem:[%s1036] sm:$0xf]
        %v1039 = vsel %vm625, %v1035, 0
        %v1042 = vsel %vm841, %v1037, 0
        %1044 = vmatpush.bf16.msra.mxu0 0
        %1045 = vmatpush.bf16.msra.mxu0 0
        %1046 = vmatpush.bf16.msra.mxu0 0
        %1047 = vmatpush.bf16.msra.mxu0 0
        %1048 = vmatpush.bf16.msra.mxu0 0
        %1049 = vmatpush.bf16.msra.mxu0 0
        %1050 = vmatpush.bf16.msra.mxu0 0
        %1051 = vmatpush.bf16.msra.mxu0 %v1042
        %1052 = vmatmul.bf16.gmra.mxu0 %v1039
        %v1053 = vpop.f32.mrf.mxu0
        %v1054 = vadd.f32 0.0, %v1053
        %v1055 = vpop.f32.mrf.mxu0
        %1056 = vdwg.mxu0
        %v1057 = vadd.f32 %v874, %v1054
        %s1058 = scalar_lea.vmem %s3, 48
        %v1059 = vld [vmem:[%s1058] sm:$0xf]
        %v1060 = vld [vmem:[%s1058 + $0x4] sm:$0xf]
        %v1061 = vld [vmem:[%s1058 + $0x8] sm:$0xf]
        %v1062 = vld [vmem:[%s1058 + $0xc] sm:$0xf]
        %s1063 = scalar_lea.vmem %s6, 3
        %v1064 = vld [vmem:[%s1063] sm:$0x1]
        %v1066 = vperm.slane %v1064, 0
        %v1072 = vunpack.c.l.b16 %v1059
        %v1073 = vunpack.c.l.b16 %v1060
        %v1074 = vunpack.c.l.b16 %v1061
        %v1075 = vunpack.c.l.b16 %v1062
        %v1076 = vpack.c.b16 %v1073, %v1072
        %v1077 = vpack.c.b16 %v1075, %v1074
        %1080 = vmatpush.bf16.msra.mxu0 0
        %1081 = vmatpush.bf16.msra.mxu0 0
        %1082 = vmatpush.bf16.msra.mxu0 0
        %1083 = vmatpush.bf16.msra.mxu0 0
        %1084 = vmatpush.bf16.msra.mxu0 0
        %1085 = vmatpush.bf16.msra.mxu0 0
        %1086 = vmatpush.bf16.msra.mxu0 %v1077
        %1087 = vmatpush.bf16.msra.mxu0 %v1076
        %1088 = vmatmul.bf16.gmra.mxu0 %v536
        %v1089 = vpop.f32.mrf.mxu0
        %v1090 = vadd.f32 %v1066, %v1089
        %v1091 = vpop.f32.mrf.mxu0
        %1092 = vdwg.mxu0
        %s1093 = scalar_lea.vmem %s4, 48
        %v1094 = vld [vmem:[%s1093] sm:$0xf]
        %v1095 = vld [vmem:[%s1093 + $0x4] sm:$0xf]
        %v1096 = vld [vmem:[%s1093 + $0x8] sm:$0xf]
        %v1097 = vld [vmem:[%s1093 + $0xc] sm:$0xf]
        %s1098 = scalar_lea.vmem %s7, 3
        %v1099 = vld [vmem:[%s1098] sm:$0x1]
        %v1101 = vperm.slane %v1099, 0
        %v1107 = vunpack.c.l.b16 %v1094
        %v1108 = vunpack.c.l.b16 %v1095
        %v1109 = vunpack.c.l.b16 %v1096
        %v1110 = vunpack.c.l.b16 %v1097
        %v1111 = vpack.c.b16 %v1108, %v1107
        %v1112 = vpack.c.b16 %v1110, %v1109
        %1115 = vmatpush.bf16.msra.mxu0 0
        %1116 = vmatpush.bf16.msra.mxu0 0
        %1117 = vmatpush.bf16.msra.mxu0 0
        %1118 = vmatpush.bf16.msra.mxu0 0
        %1119 = vmatpush.bf16.msra.mxu0 0
        %1120 = vmatpush.bf16.msra.mxu0 0
        %1121 = vmatpush.bf16.msra.mxu0 %v1112
        %1122 = vmatpush.bf16.msra.mxu0 %v1111
        %1123 = vmatmul.bf16.gmra.mxu0 %v572
        %v1124 = vpop.f32.mrf.mxu0
        %v1125 = vadd.f32 %v1101, %v1124
        %v1126 = vpop.f32.mrf.mxu0
        %v1127 = vadd.f32 %v1101, %v1126
        %1128 = vdwg.mxu0
        %s1129 = scalar_lea.vmem [#allocation2], 48
        %v1130 = vld [vmem:[%s1129] sm:$0xf]
        %v1131 = vld [vmem:[%s1129 + $0x4] sm:$0xf]
        %v1132 = vld [vmem:[%s1129 + $0x8] sm:$0xf]
        %v1133 = vld [vmem:[%s1129 + $0xc] sm:$0xf]
        %s1134 = scalar_lea.vmem %s8, 3
        %v1135 = vld [vmem:[%s1134] sm:$0x1]
        %v1137 = vperm.slane %v1135, 0
        %v1143 = vunpack.c.l.b16 %v1130
        %v1144 = vunpack.c.l.b16 %v1131
        %v1145 = vunpack.c.l.b16 %v1132
        %v1146 = vunpack.c.l.b16 %v1133
        %v1147 = vpack.c.b16 %v1144, %v1143
        %v1148 = vpack.c.b16 %v1146, %v1145
        %1151 = vmatpush.bf16.msra.mxu0 0
        %1152 = vmatpush.bf16.msra.mxu0 0
        %1153 = vmatpush.bf16.msra.mxu0 0
        %1154 = vmatpush.bf16.msra.mxu0 0
        %1155 = vmatpush.bf16.msra.mxu0 0
        %1156 = vmatpush.bf16.msra.mxu0 0
        %1157 = vmatpush.bf16.msra.mxu0 %v1148
        %1158 = vmatpush.bf16.msra.mxu0 %v1147
        %1159 = vmatmul.bf16.gmra.mxu0 %v572
        %v1160 = vpop.f32.mrf.mxu0
        %v1161 = vadd.f32 %v1137, %v1160
        %v1162 = vpop.f32.mrf.mxu0
        %v1163 = vadd.f32 %v1137, %v1162
        %1164 = vdwg.mxu0
        %v1165 = vmul.f32 %v1090, 0.35355338
        %v1166 = vpack.c.bf16 %v1165, %v1165
        %v1167 = vpack.c.bf16 %v1127, %v1125
        %v1169 = vsel %vm625, %v1166, 0
        %v1172 = vsel %vm625, %v1167, 0
        %1174 = vmatpush.bf16.xpose.msra.mxu0 0
        %1175 = vmatpush.bf16.xpose.msra.mxu0 0
        %1176 = vmatpush.bf16.xpose.msra.mxu0 0
        %1177 = vmatpush.bf16.xpose.msra.mxu0 0
        %1178 = vmatpush.bf16.xpose.msra.mxu0 0
        %1179 = vmatpush.bf16.xpose.msra.mxu0 0
        %1180 = vmatpush.bf16.xpose.msra.mxu0 0
        %1181 = vmatpush.bf16.xpose.msra.mxu0 %v1172
        %1182 = vmatmul.bf16.gmra.mxu0 %v1169
        %v1183 = vpop.f32.mrf.mxu0
        %v1184 = vadd.f32 %v511, %v1183
        %v1185 = vpop.f32.mrf.mxu0
        %1186 = vdwg.mxu0
        %v1187 = vsel %vm645, %v1184, -inf
        %1188 = vmax.xlane.f32.xlu0 %v1187
        %v1189 = vpop.xlane.xlu0 %1188
        %v1190 = vsub.f32 %v1184, %v1189
        %v1191 = vmul.f32 %v1190, 1.442695
        %v1192 = vpow.pop %v1191
        %v1193 = vsel %vm645, %v1192, 0.0
        %1194 = vadd.xlane.f32.xlu0 %v1193
        %v1195 = vpop.xlane.xlu0 %1194
        %v1196 = vrcp.pop %v1195
        %v1197 = vmul.f32 %v1192, %v1196
        %v1198 = vpack.c.bf16 %v1197, %v1197
        %v1199 = vpack.c.bf16 %v1163, %v1161
        %v1201 = vsel %vm645, %v1198, 0
        %1203 = vmatpush.bf16.msra.mxu0 0
        %1204 = vmatpush.bf16.msra.mxu0 0
        %1205 = vmatpush.bf16.msra.mxu0 0
        %1206 = vmatpush.bf16.msra.mxu0 0
        %1207 = vmatpush.bf16.msra.mxu0 0
        %1208 = vmatpush.bf16.msra.mxu0 0
        %1209 = vmatpush.bf16.msra.mxu0 0
        %1210 = vmatpush.bf16.msra.mxu0 %v1199
        %1211 = vmatmul.bf16.gmra.mxu0 %v1201
        %v1212 = vpop.f32.mrf.mxu0
        %v1213 = vadd.f32 0.0, %v1212
        %v1214 = vpop.f32.mrf.mxu0
        %1215 = vdwg.mxu0
        %v1216 = vpack.c.bf16 %v1213, %v1213
        %s1217 = scalar_lea.vmem [#allocation4], 12
        %v1218 = vld [vmem:[%s1217] sm:$0xf]
        %v1220 = vsel %vm625, %v1216, 0
        %v1223 = vsel %vm841, %v1218, 0
        %1225 = vmatpush.bf16.msra.mxu0 0
        %1226 = vmatpush.bf16.msra.mxu0 0
        %1227 = vmatpush.bf16.msra.mxu0 0
        %1228 = vmatpush.bf16.msra.mxu0 0
        %1229 = vmatpush.bf16.msra.mxu0 0
        %1230 = vmatpush.bf16.msra.mxu0 0
        %1231 = vmatpush.bf16.msra.mxu0 0
        %1232 = vmatpush.bf16.msra.mxu0 %v1223
        %1233 = vmatmul.bf16.gmra.mxu0 %v1220
        %v1234 = vpop.f32.mrf.mxu0
        %v1235 = vadd.f32 0.0, %v1234
        %v1236 = vpop.f32.mrf.mxu0
        %1237 = vdwg.mxu0
        %v1238 = vadd.f32 %v1057, %v1235
        %v1239 = vadd.f32 %v508, %v1238
        %v1240 = vld [vmem:[%s10] sm:$0x1]
        %v1242 = vperm.slane %v1240, 0
        %v1244 = vadd.f32 %v1239, %v1242
        %v1245 = vld [vmem:[%s11] sm:$0x1]
        %v1246 = vld [vmem:[%s12] sm:$0x1]
        %v1247 = vsel %vm534, %v1244, 0.0
        %1248 = vadd.xlane.f32.xlu0 %v1247
        %v1249 = vpop.xlane.xlu0 %1248
        %v1250 = vrcp.pop 32.0
        %v1251 = vmul.f32 32.0, %v1250
        %v1252 = vsub.f32 1.0, %v1251
        %v1253 = vmul.f32 %v1250, %v1252
        %v1254 = vadd.f32 %v1250, %v1253
        %vm1255 = vweird.f32 %v1250
        %v1256 = vsel %vm1255, %v1250, %v1254
        %v1257 = vmul.f32 %v1249, %v1256
        %v1258 = vsub.f32 %v1244, %v1257
        %v1259 = vmul.f32 %v1258, %v1258
        %v1260 = vsel %vm534, %v1259, 0.0
        %1261 = vadd.xlane.f32.xlu0 %v1260
        %v1262 = vpop.xlane.xlu0 %1261
        %v1263 = vmul.f32 %v1262, %v1256
        %v1264 = vadd.f32 %v1263, 1e-05
        %v1265 = vrsqrt.pop %v1264
        %v1266 = vmul.f32 %v1265, %v1264
        %v1267 = vmul.f32 %v1266, %v1265
        %v1268 = vmul.f32 0.5, %v1267
        %v1269 = vsub.f32 1.5, %v1268
        %v1270 = vmul.f32 %v1265, %v1269
        %vm1271 = vweird.f32 %v1264
        %vm1272 = vweird.f32 %v1265
        %vm1273 = vmor %vm1271, %vm1272
        %v1274 = vsel %vm1273, %v1265, %v1270
        %v1275 = vmul.f32 %v1258, %v1274
        %v1277 = vperm.slane %v1245, 0
        %v1279 = vmul.f32 %v1275, %v1277
        %v1281 = vperm.slane %v1246, 0
        %v1283 = vadd.f32 %v1279, %v1281
        %1284 = vst.msk [vmem:[%s506] sm:$0xff] %vm534, %v1283
        %p1285 = scmp.lt.s32.totalorder %s26, 1
        %s1286 = scalar_select %p1285, %s26, 1
        %s1287 = smul.addr %s1286, 8
        %s1288 = scalar_lea.vmem %s13, %s1287
        // Predicated region
        $region81: #{_lambda_.8} parent=71 // pred_check
          %p1289 = pneg %p332
        $region82: #{_lambda_.8} parent=71 // pred_check_branch
          %1291 = sbr.rel (%p1289) target = $region84
        $region83: #{_lambda_.8} parent=71 // pred_region
          _
        $region84: #{_lambda_.8} parent=71 // pred_fallthru
          _
      $region72: #{_lambda_.8} parent=5 // pred_fallthru
        _
      %p1292 = scmp.le.s32.totalorder 2, %s21
      // Predicated region
      $region85: #{_lambda_.8} parent=5 // pred_check
        %p1293 = pneg %p1292
      $region86: #{_lambda_.8} parent=5 // pred_check_branch
        %1295 = sbr.rel (%p1293) target = $region88
      $region87: #{_lambda_.8} parent=5 // pred_region
        %s1296 = ssub.s32 %s21, 2
        // Predicated region
        $region89: #{_lambda_.8} parent=87 // pred_check
          %p1297 = pneg %p338
        $region90: #{_lambda_.8} parent=87 // pred_check_branch
          %1299 = sbr.rel (%p1297) target = $region92
        $region91: #{_lambda_.8} parent=87 // pred_region
          %p1300 = scmp.lt.s32.totalorder %s27, 1
          %s1301 = scalar_select %p1300, %s27, 1
          %s1302 = smul.addr %s1301, 8
          %s1303 = scalar_lea.vmem %s13, %s1302
        $region92: #{_lambda_.8} parent=87 // pred_fallthru
          _
      $region88: #{_lambda_.8} parent=5 // pred_fallthru
        _
    $region6: #{_lambda_.8} parent=1 // loop_footer
      %s25 = sadd.s32 1, %s21
    $region7: #{_lambda_.8} parent=1 // loop_footer_branch
      %20 = sbr.rel target = $region3
    $region8: #{_lambda_.8} parent=1 // loop_exit
      _
    %1304 = vsyncpa [#allocation3], 1
    %s1305 = scalar_lea.sflag [#allocation3], 1
    %1306 = vsyncpa %s1305, 1
    %1307 = vsyncpa [#allocation5], 1

// kernel: _lambda_.12
$region0: #{_lambda_.12}
  #allocation0 [shape = 'u32[]', space=smem, size = 0x4, offset = 0x4, fixed_abs, tag = 'smem constant byte address 0x4 - core index']
  #allocation1 [shape = 'u32[72,128]{1,0:T(1,128)}', space=vmem, size = 0x9000, scoped, tag = 'internal scratch']
  %s0 = inlined_call_operand.vmem [shape: f32[16,32], index: 0, kind: input, shape index: {}]
  %s1 = inlined_call_operand.vmem [shape: bf16[32,64], index: 1, kind: input, shape index: {}]
  %s2 = inlined_call_operand.vmem [shape: f32[1,64], index: 2, kind: input, shape index: {}]
  %s3 = inlined_call_operand.vmem [shape: bf16[64,32], index: 3, kind: input, shape index: {}]
  %s4 = inlined_call_operand.vmem [shape: f32[1,32], index: 4, kind: input, shape index: {}, may-alias: {4,6}]
  %s5 = inlined_call_operand.vmem [shape: f32[1,32], index: 5, kind: input, shape index: {}]
  %s6 = inlined_call_operand.vmem [shape: f32[1,32], index: 6, kind: input, shape index: {}, may-alias: {4,6}]
  %s7 = inlined_call_operand.vmem [shape: f32[16,32], index: 7, kind: output, shape index: {}]
  %s8 = sld [smem:[#allocation0]]
  $region38: #{_lambda_.12} parent=0
    _
  %s10 = ssub.s32 1, %s8
  %s11 = scalar_select 0, %s10, %s8
  // Predicated region
  $region2: #{_lambda_.12} parent=0 // pred_check
    _
  $region3: #{_lambda_.12} parent=0 // pred_check_branch
    %13 = sbr.rel (0) target = $region5
  $region4: #{_lambda_.12} parent=0 // pred_region
    _
  $region5: #{_lambda_.12} parent=0 // pred_fallthru
    _
  // Predicated region
  $region6: #{_lambda_.12} parent=0 // pred_check
    _
  $region7: #{_lambda_.12} parent=0 // pred_check_branch
    %15 = sbr.rel (0) target = $region9
  $region8: #{_lambda_.12} parent=0 // pred_region
    _
  $region9: #{_lambda_.12} parent=0 // pred_fallthru
    _
  // Predicated region
  $region10: #{_lambda_.12} parent=0 // pred_check
    _
  $region11: #{_lambda_.12} parent=0 // pred_check_branch
    %17 = sbr.rel (0) target = $region13
  $region12: #{_lambda_.12} parent=0 // pred_region
    _
  $region13: #{_lambda_.12} parent=0 // pred_fallthru
    _
  // Predicated region
  $region14: #{_lambda_.12} parent=0 // pred_check
    _
  $region15: #{_lambda_.12} parent=0 // pred_check_branch
    %19 = sbr.rel (0) target = $region17
  $region16: #{_lambda_.12} parent=0 // pred_region
    _
  $region17: #{_lambda_.12} parent=0 // pred_fallthru
    _
  // Predicated region
  $region18: #{_lambda_.12} parent=0 // pred_check
    _
  $region19: #{_lambda_.12} parent=0 // pred_check_branch
    %21 = sbr.rel (0) target = $region21
  $region20: #{_lambda_.12} parent=0 // pred_region
    _
  $region21: #{_lambda_.12} parent=0 // pred_fallthru
    _
  // Predicated region
  $region22: #{_lambda_.12} parent=0 // pred_check
    _
  $region23: #{_lambda_.12} parent=0 // pred_check_branch
    %23 = sbr.rel (0) target = $region25
  $region24: #{_lambda_.12} parent=0 // pred_region
    _
  $region25: #{_lambda_.12} parent=0 // pred_fallthru
    _
  // Predicated region
  $region26: #{_lambda_.12} parent=0 // pred_check
    _
  $region27: #{_lambda_.12} parent=0 // pred_check_branch
    %25 = sbr.rel (0) target = $region29
  $region28: #{_lambda_.12} parent=0 // pred_region
    _
  $region29: #{_lambda_.12} parent=0 // pred_fallthru
    _
  %v27 = vld [vmem:[%s0] sm:$0xff]
  %v28 = vld [vmem:[%s0 + $0x8] sm:$0xff]
  %v29 = vpack.c.bf16 %v28, %v27
  %v30 = vld [vmem:[%s1] sm:$0xf]
  %v31 = vld [vmem:[%s1 + $0x4] sm:$0xf]
  %v32 = vld [vmem:[%s1 + $0x8] sm:$0xf]
  %v33 = vld [vmem:[%s1 + $0xc] sm:$0xf]
  %v34 = vld [vmem:[%s2] sm:$0x1]
  %v36 = vperm.slane %v34, 0
  %v42 = vunpack.c.l.b16 %v30
  %v43 = vunpack.c.l.b16 %v31
  %v44 = vunpack.c.l.b16 %v32
  %v45 = vunpack.c.l.b16 %v33
  %v46 = vpack.c.b16 %v43, %v42
  %v47 = vpack.c.b16 %v45, %v44
  %vm50 = vcmask 261120
  %v52 = vsel %vm50, %v29, 0
  %54 = vmatpush.bf16.msra.mxu0 0
  %55 = vmatpush.bf16.msra.mxu0 0
  %56 = vmatpush.bf16.msra.mxu0 0
  %57 = vmatpush.bf16.msra.mxu0 0
  %58 = vmatpush.bf16.msra.mxu0 0
  %59 = vmatpush.bf16.msra.mxu0 0
  %60 = vmatpush.bf16.msra.mxu0 %v47
  %61 = vmatpush.bf16.msra.mxu0 %v46
  %62 = vmatmul.bf16.gmra.mxu0 %v52
  %v63 = vpop.f32.mrf.mxu0
  %v64 = vadd.f32 %v36, %v63
  %v65 = vpop.f32.mrf.mxu0
  %v66 = vadd.f32 %v36, %v65
  %67 = vdwg.mxu0
  %v68 = vmax.f32 %v64, 0.0
  %v69 = vmax.f32 %v66, 0.0
  %v70 = vpack.c.bf16 %v69, %v68
  %v71 = vld [vmem:[%s3] sm:$0xf]
  %v72 = vld [vmem:[%s3 + $0x4] sm:$0xf]
  %v73 = vld [vmem:[%s3 + $0x8] sm:$0xf]
  %v74 = vld [vmem:[%s3 + $0xc] sm:$0xf]
  %v75 = vld [vmem:[%s3 + $0x10] sm:$0xf]
  %v76 = vld [vmem:[%s3 + $0x14] sm:$0xf]
  %v77 = vld [vmem:[%s3 + $0x18] sm:$0xf]
  %v78 = vld [vmem:[%s3 + $0x1c] sm:$0xf]
  %v79 = vld [vmem:[%s4] sm:$0x1]
  %v81 = vperm.slane %v79, 0
  %v91 = vunpack.c.l.b16 %v71
  %v92 = vunpack.c.l.b16 %v72
  %v93 = vunpack.c.l.b16 %v73
  %v94 = vunpack.c.l.b16 %v74
  %v95 = vunpack.c.l.b16 %v75
  %v96 = vunpack.c.l.b16 %v76
  %v97 = vunpack.c.l.b16 %v77
  %v98 = vunpack.c.l.b16 %v78
  %v99 = vpack.c.b16 %v92, %v91
  %v100 = vpack.c.b16 %v94, %v93
  %v101 = vpack.c.b16 %v96, %v95
  %v102 = vpack.c.b16 %v98, %v97
  %vm107 = vcmask 523264
  %v109 = vsel %vm107, %v70, 0
  %111 = vmatpush.bf16.msra.mxu0 0
  %112 = vmatpush.bf16.msra.mxu0 0
  %113 = vmatpush.bf16.msra.mxu0 0
  %114 = vmatpush.bf16.msra.mxu0 0
  %115 = vmatpush.bf16.msra.mxu0 %v102
  %116 = vmatpush.bf16.msra.mxu0 %v101
  %117 = vmatpush.bf16.msra.mxu0 %v100
  %118 = vmatpush.bf16.msra.mxu0 %v99
  %119 = vmatmul.bf16.gmra.mxu0 %v109
  %v120 = vpop.f32.mrf.mxu0
  %v121 = vadd.f32 %v81, %v120
  %v122 = vpop.f32.mrf.mxu0
  %v123 = vadd.f32 %v81, %v122
  %124 = vdwg.mxu0
  %v125 = vadd.f32 %v27, %v121
  %v126 = vadd.f32 %v28, %v123
  %v127 = vld [vmem:[%s5] sm:$0x1]
  %v128 = vld [vmem:[%s6] sm:$0x1]
  %v129 = vsel %vm50, %v125, 0.0
  %130 = vadd.xlane.f32.xlu0 %v129
  %v131 = vpop.xlane.xlu0 %130
  %v132 = vsel %vm50, %v126, 0.0
  %133 = vadd.xlane.f32.xlu0 %v132
  %v134 = vpop.xlane.xlu0 %133
  %v135 = vrcp.pop 32.0
  %v136 = vmul.f32 32.0, %v135
  %v137 = vsub.f32 1.0, %v136
  %v138 = vmul.f32 %v135, %v137
  %v139 = vadd.f32 %v135, %v138
  %vm140 = vweird.f32 %v135
  %v141 = vsel %vm140, %v135, %v139
  %v142 = vmul.f32 %v131, %v141
  %v143 = vmul.f32 %v134, %v141
  %v144 = vsub.f32 %v125, %v142
  %v145 = vsub.f32 %v126, %v143
  %v146 = vmul.f32 %v144, %v144
  %v147 = vmul.f32 %v145, %v145
  %v148 = vsel %vm50, %v146, 0.0
  %149 = vadd.xlane.f32.xlu0 %v148
  %v150 = vpop.xlane.xlu0 %149
  %v151 = vsel %vm50, %v147, 0.0
  %152 = vadd.xlane.f32.xlu0 %v151
  %v153 = vpop.xlane.xlu0 %152
  %v154 = vmul.f32 %v150, %v141
  %v155 = vmul.f32 %v153, %v141
  %v156 = vadd.f32 %v154, 1e-05
  %v157 = vadd.f32 %v155, 1e-05
  %v158 = vrsqrt.pop %v156
  %v159 = vmul.f32 %v158, %v156
  %v160 = vmul.f32 %v159, %v158
  %v161 = vmul.f32 0.5, %v160
  %v162 = vsub.f32 1.5, %v161
  %v163 = vmul.f32 %v158, %v162
  %vm164 = vweird.f32 %v156
  %vm165 = vweird.f32 %v158
  %vm166 = vmor %vm164, %vm165
  %v167 = vsel %vm166, %v158, %v163
  %v168 = vrsqrt.pop %v157
  %v169 = vmul.f32 %v168, %v157
  %v170 = vmul.f32 %v169, %v168
  %v171 = vmul.f32 0.5, %v170
  %v172 = vsub.f32 1.5, %v171
  %v173 = vmul.f32 %v168, %v172
  %vm174 = vweird.f32 %v157
  %vm175 = vweird.f32 %v168
  %vm176 = vmor %vm174, %vm175
  %v177 = vsel %vm176, %v168, %v173
  %v178 = vmul.f32 %v144, %v167
  %v179 = vmul.f32 %v145, %v177
  %v181 = vperm.slane %v127, 0
  %v183 = vmul.f32 %v178, %v181
  %v184 = vmul.f32 %v179, %v181
  %v186 = vperm.slane %v128, 0
  %v188 = vadd.f32 %v183, %v186
  %v189 = vadd.f32 %v184, %v186
  %190 = vst.msk [vmem:[%s7] sm:$0xff] %vm50, %v188
  %191 = vst.msk [vmem:[%s7 + $0x8] sm:$0xff] %vm50, %v189
  // Predicated region
  $region30: #{_lambda_.12} parent=0 // pred_check
    _
  $region31: #{_lambda_.12} parent=0 // pred_check_branch
    %193 = sbr.rel (0) target = $region33
  $region32: #{_lambda_.12} parent=0 // pred_region
    _
  $region33: #{_lambda_.12} parent=0 // pred_fallthru
    _
  // Predicated region
  $region34: #{_lambda_.12} parent=0 // pred_check
    _
  $region35: #{_lambda_.12} parent=0 // pred_check_branch
    %195 = sbr.rel (0) target = $region37
  $region36: #{_lambda_.12} parent=0 // pred_region
    _
  $region37: #{_lambda_.12} parent=0 // pred_fallthru
    _

// kernel: _lambda_.13
$region0: #{_lambda_.13}
  #allocation0 [shape = 'u32[]', space=smem, size = 0x4, offset = 0x4, fixed_abs, tag = 'smem constant byte address 0x4 - core index']
  #allocation1 [shape = 'u32[72,128]{1,0:T(1,128)}', space=vmem, size = 0x9000, scoped, tag = 'internal scratch']
  %s0 = inlined_call_operand.vmem [shape: f32[2,8,32], index: 0, kind: input, shape index: {}]
  %s1 = inlined_call_operand.vmem [shape: f32[1,32], index: 1, kind: input, shape index: {}]
  %s2 = inlined_call_operand.vmem [shape: f32[1,32], index: 2, kind: input, shape index: {}]
  %s3 = inlined_call_operand.vmem [shape: bf16[32,32], index: 3, kind: input, shape index: {}]
  %s4 = inlined_call_operand.vmem [shape: bf16[6,32], index: 4, kind: input, shape index: {}]
  %s5 = inlined_call_operand.vmem [shape: f32[2,4,32], index: 5, kind: input, shape index: {}]
  %s6 = inlined_call_operand.vmem [shape: f32[2,8,6], index: 6, kind: output, shape index: {0}]
  %s7 = inlined_call_operand.vmem [shape: f32[2,8,4], index: 7, kind: output, shape index: {1}]
  %8 = xla_tuple %s6, %s7
  %s9 = sld [smem:[#allocation0]]
  $region65: #{_lambda_.13} parent=0
    _
  %s11 = ssub.s32 1, %s9
  %s12 = scalar_select 0, %s11, %s9
  loop: start=0, step=1, limit=4
  $region2: #{_lambda_.13} parent=0 // loop_pre_header
    _
  $region3: #{_lambda_.13} parent=0 // loop_header
    %s14 = sphi 0, %s18
    %p15 = scmp.ge.s32.totalorder %s14, 4
    %s24 = sphi 0, %s26
    %s27 = sphi 0, %s24
    %s28 = sphi 0, %s27
    %s44 = sphi 0, %s28
    %s48 = sphi 0, %s48
    %s50 = sphi 0, %s48
    %s51 = sphi 0, %s50
    %s65 = sphi 0, %s51
    %s69 = sphi 0, %s69
    %s71 = sphi 0, %s69
    %s72 = sphi 0, %s71
    %s86 = sphi 0, %s72
    %s90 = sphi 0, %s90
    %s92 = sphi 0, %s90
    %s93 = sphi 0, %s92
    %s107 = sphi 0, %s93
    %s111 = sphi 0, %s111
    %s113 = sphi 0, %s111
    %s114 = sphi 0, %s113
    %s128 = sphi 0, %s114
    %s134 = sphi 0, %s136
    %s137 = sphi 0, %s134
    %s138 = sphi 0, %s137
    %s154 = sphi 0, %s138
    %s160 = sphi 0, %s162
    %s163 = sphi 0, %s160
    %s164 = sphi 0, %s163
    %s180 = sphi 0, %s164
    %s186 = sphi 0, %s188
    %s189 = sphi 0, %s186
    %s190 = sphi 0, %s189
    %s206 = sphi 0, %s190
  $region4: #{_lambda_.13} parent=0 // loop_header_branch
    %17 = sbr.rel (%p15) target = $region8
  $region5: #{_lambda_.13} parent=0 // loop_body
    %s19 = ssub.s32 %s14, 1
    %s20 = ssub.s32 %s14, 2
    %s21 = sadd.s32 %s14, 1
    %s22 = ssub.s32 %s14, %s21
    %p23 = scmp.eq.s32.totalorder %s22, 0
    %s25 = sadd.s32 %s24, 1
    %s26 = scalar_select %p23, %s24, %s25
    %p29 = pneg %p23
    %p30 = scmp.eq.s32.totalorder %s14, 1
    %p31 = por %p29, %p30
    %p32 = scmp.ne.s32.totalorder %s24, %s27
    %p33 = scmp.eq.s32.totalorder %s14, 0
    %p34 = por %p32, %p33
    %p35 = scmp.ne.s32.totalorder %s24, %s27
    %p36 = scmp.eq.s32.totalorder %s19, 1
    %p37 = por %p35, %p36
    %p38 = scmp.ne.s32.totalorder %s27, %s28
    %p39 = scmp.eq.s32.totalorder %s19, 0
    %p40 = por %p38, %p39
    %p41 = scmp.ne.s32.totalorder %s27, %s28
    %p42 = scmp.eq.s32.totalorder %s20, 1
    %p43 = por %p41, %p42
    %p45 = scmp.ne.s32.totalorder %s28, %s44
    %p46 = scmp.eq.s32.totalorder %s20, 0
    %p47 = por %p45, %p46
    %s49 = sadd.s32 %s48, 1
    %p52 = scmp.eq.s32.totalorder %s14, 1
    %p53 = scmp.ne.s32.totalorder %s48, %s50
    %p54 = scmp.eq.s32.totalorder %s14, 0
    %p55 = por %p53, %p54
    %p56 = scmp.ne.s32.totalorder %s48, %s50
    %p57 = scmp.eq.s32.totalorder %s19, 1
    %p58 = por %p56, %p57
    %p59 = scmp.ne.s32.totalorder %s50, %s51
    %p60 = scmp.eq.s32.totalorder %s19, 0
    %p61 = por %p59, %p60
    %p62 = scmp.ne.s32.totalorder %s50, %s51
    %p63 = scmp.eq.s32.totalorder %s20, 1
    %p64 = por %p62, %p63
    %p66 = scmp.ne.s32.totalorder %s51, %s65
    %p67 = scmp.eq.s32.totalorder %s20, 0
    %p68 = por %p66, %p67
    %s70 = sadd.s32 %s69, 1
    %p73 = scmp.eq.s32.totalorder %s14, 1
    %p74 = scmp.ne.s32.totalorder %s69, %s71
    %p75 = scmp.eq.s32.totalorder %s14, 0
    %p76 = por %p74, %p75
    %p77 = scmp.ne.s32.totalorder %s69, %s71
    %p78 = scmp.eq.s32.totalorder %s19, 1
    %p79 = por %p77, %p78
    %p80 = scmp.ne.s32.totalorder %s71, %s72
    %p81 = scmp.eq.s32.totalorder %s19, 0
    %p82 = por %p80, %p81
    %p83 = scmp.ne.s32.totalorder %s71, %s72
    %p84 = scmp.eq.s32.totalorder %s20, 1
    %p85 = por %p83, %p84
    %p87 = scmp.ne.s32.totalorder %s72, %s86
    %p88 = scmp.eq.s32.totalorder %s20, 0
    %p89 = por %p87, %p88
    %s91 = sadd.s32 %s90, 1
    %p94 = scmp.eq.s32.totalorder %s14, 1
    %p95 = scmp.ne.s32.totalorder %s90, %s92
    %p96 = scmp.eq.s32.totalorder %s14, 0
    %p97 = por %p95, %p96
    %p98 = scmp.ne.s32.totalorder %s90, %s92
    %p99 = scmp.eq.s32.totalorder %s19, 1
    %p100 = por %p98, %p99
    %p101 = scmp.ne.s32.totalorder %s92, %s93
    %p102 = scmp.eq.s32.totalorder %s19, 0
    %p103 = por %p101, %p102
    %p104 = scmp.ne.s32.totalorder %s92, %s93
    %p105 = scmp.eq.s32.totalorder %s20, 1
    %p106 = por %p104, %p105
    %p108 = scmp.ne.s32.totalorder %s93, %s107
    %p109 = scmp.eq.s32.totalorder %s20, 0
    %p110 = por %p108, %p109
    %s112 = sadd.s32 %s111, 1
    %p115 = scmp.eq.s32.totalorder %s14, 1
    %p116 = scmp.ne.s32.totalorder %s111, %s113
    %p117 = scmp.eq.s32.totalorder %s14, 0
    %p118 = por %p116, %p117
    %p119 = scmp.ne.s32.totalorder %s111, %s113
    %p120 = scmp.eq.s32.totalorder %s19, 1
    %p121 = por %p119, %p120
    %p122 = scmp.ne.s32.totalorder %s113, %s114
    %p123 = scmp.eq.s32.totalorder %s19, 0
    %p124 = por %p122, %p123
    %p125 = scmp.ne.s32.totalorder %s113, %s114
    %p126 = scmp.eq.s32.totalorder %s20, 1
    %p127 = por %p125, %p126
    %p129 = scmp.ne.s32.totalorder %s114, %s128
    %p130 = scmp.eq.s32.totalorder %s20, 0
    %p131 = por %p129, %p130
    %s132 = ssub.s32 %s14, %s21
    %p133 = scmp.eq.s32.totalorder %s132, 0
    %s135 = sadd.s32 %s134, 1
    %s136 = scalar_select %p133, %s134, %s135
    %p139 = pneg %p133
    %p140 = scmp.eq.s32.totalorder %s14, 1
    %p141 = por %p139, %p140
    %p142 = scmp.ne.s32.totalorder %s134, %s137
    %p143 = scmp.eq.s32.totalorder %s14, 0
    %p144 = por %p142, %p143
    %p145 = scmp.ne.s32.totalorder %s134, %s137
    %p146 = scmp.eq.s32.totalorder %s19, 1
    %p147 = por %p145, %p146
    %p148 = scmp.ne.s32.totalorder %s137, %s138
    %p149 = scmp.eq.s32.totalorder %s19, 0
    %p150 = por %p148, %p149
    %p151 = scmp.ne.s32.totalorder %s137, %s138
    %p152 = scmp.eq.s32.totalorder %s20, 1
    %p153 = por %p151, %p152
    %p155 = scmp.ne.s32.totalorder %s138, %s154
    %p156 = scmp.eq.s32.totalorder %s20, 0
    %p157 = por %p155, %p156
    %s158 = ssub.s32 %s14, %s21
    %p159 = scmp.eq.s32.totalorder %s158, 0
    %s161 = sadd.s32 %s160, 1
    %s162 = scalar_select %p159, %s160, %s161
    %p165 = pneg %p159
    %p166 = scmp.eq.s32.totalorder %s14, 1
    %p167 = por %p165, %p166
    %p168 = scmp.ne.s32.totalorder %s160, %s163
    %p169 = scmp.eq.s32.totalorder %s14, 0
    %p170 = por %p168, %p169
    %p171 = scmp.ne.s32.totalorder %s160, %s163
    %p172 = scmp.eq.s32.totalorder %s19, 1
    %p173 = por %p171, %p172
    %p174 = scmp.ne.s32.totalorder %s163, %s164
    %p175 = scmp.eq.s32.totalorder %s19, 0
    %p176 = por %p174, %p175
    %p177 = scmp.ne.s32.totalorder %s163, %s164
    %p178 = scmp.eq.s32.totalorder %s20, 1
    %p179 = por %p177, %p178
    %p181 = scmp.ne.s32.totalorder %s164, %s180
    %p182 = scmp.eq.s32.totalorder %s20, 0
    %p183 = por %p181, %p182
    %s184 = ssub.s32 %s14, %s21
    %p185 = scmp.eq.s32.totalorder %s184, 0
    %s187 = sadd.s32 %s186, 1
    %s188 = scalar_select %p185, %s186, %s187
    %p191 = pneg %p185
    %p192 = scmp.eq.s32.totalorder %s14, 1
    %p193 = por %p191, %p192
    %p194 = scmp.ne.s32.totalorder %s186, %s189
    %p195 = scmp.eq.s32.totalorder %s14, 0
    %p196 = por %p194, %p195
    %p197 = scmp.ne.s32.totalorder %s186, %s189
    %p198 = scmp.eq.s32.totalorder %s19, 1
    %p199 = por %p197, %p198
    %p200 = scmp.ne.s32.totalorder %s189, %s190
    %p201 = scmp.eq.s32.totalorder %s19, 0
    %p202 = por %p200, %p201
    %p203 = scmp.ne.s32.totalorder %s189, %s190
    %p204 = scmp.eq.s32.totalorder %s20, 1
    %p205 = por %p203, %p204
    %p207 = scmp.ne.s32.totalorder %s190, %s206
    %p208 = scmp.eq.s32.totalorder %s20, 0
    %p209 = por %p207, %p208
    %p210 = scmp.le.s32.totalorder 1, %s14
    %p211 = scmp.lt.s32.totalorder %s14, 3
    %p212 = pnand %p210, %p211
    %p213 = pneg %p212
    // Predicated region
    $region9: #{_lambda_.13} parent=5 // pred_check
      _
    $region10: #{_lambda_.13} parent=5 // pred_check_branch
      %215 = sbr.rel (%p212) target = $region12
    $region11: #{_lambda_.13} parent=5 // pred_region
      %s216 = ssub.s32 %s14, 1
      // Predicated region
      $region13: #{_lambda_.13} parent=11 // pred_check
        %p217 = pneg %p61
      $region14: #{_lambda_.13} parent=11 // pred_check_branch
        %219 = sbr.rel (%p217) target = $region16
      $region15: #{_lambda_.13} parent=11 // pred_region
        _
      $region16: #{_lambda_.13} parent=11 // pred_fallthru
        _
      // Predicated region
      $region17: #{_lambda_.13} parent=11 // pred_check
        %p220 = pneg %p82
      $region18: #{_lambda_.13} parent=11 // pred_check_branch
        %222 = sbr.rel (%p220) target = $region20
      $region19: #{_lambda_.13} parent=11 // pred_region
        _
      $region20: #{_lambda_.13} parent=11 // pred_fallthru
        _
      // Predicated region
      $region21: #{_lambda_.13} parent=11 // pred_check
        %p223 = pneg %p103
      $region22: #{_lambda_.13} parent=11 // pred_check_branch
        %225 = sbr.rel (%p223) target = $region24
      $region23: #{_lambda_.13} parent=11 // pred_region
        _
      $region24: #{_lambda_.13} parent=11 // pred_fallthru
        _
      // Predicated region
      $region25: #{_lambda_.13} parent=11 // pred_check
        %p226 = pneg %p124
      $region26: #{_lambda_.13} parent=11 // pred_check_branch
        %228 = sbr.rel (%p226) target = $region28
      $region27: #{_lambda_.13} parent=11 // pred_region
        _
      $region28: #{_lambda_.13} parent=11 // pred_fallthru
        _
    $region12: #{_lambda_.13} parent=5 // pred_fallthru
      _
    %p229 = scmp.lt.s32.totalorder %s14, 2
    // Predicated region
    $region29: #{_lambda_.13} parent=5 // pred_check
      %p230 = pneg %p229
    $region30: #{_lambda_.13} parent=5 // pred_check_branch
      %232 = sbr.rel (%p230) target = $region32
    $region31: #{_lambda_.13} parent=5 // pred_region
      // Predicated region
      $region33: #{_lambda_.13} parent=31 // pred_check
        %p233 = pneg %p34
      $region34: #{_lambda_.13} parent=31 // pred_check_branch
        %235 = sbr.rel (%p233) target = $region36
      $region35: #{_lambda_.13} parent=31 // pred_region
        %p236 = scmp.lt.s32.totalorder %s14, 1
        %s237 = scalar_select %p236, %s14, 1
        %s238 = smul.addr %s237, 8
        %s239 = scalar_lea.vmem %s0, %s238
      $region36: #{_lambda_.13} parent=31 // pred_fallthru
        _
      // Predicated region
      $region37: #{_lambda_.13} parent=31 // pred_check
        %p240 = pneg %p144
      $region38: #{_lambda_.13} parent=31 // pred_check_branch
        %242 = sbr.rel (%p240) target = $region40
      $region39: #{_lambda_.13} parent=31 // pred_region
        %p243 = scmp.lt.s32.totalorder %s14, 1
        %s244 = scalar_select %p243, %s14, 1
        %s245 = smul.addr %s244, 4
        %s246 = scalar_lea.vmem %s5, %s245
      $region40: #{_lambda_.13} parent=31 // pred_fallthru
        _
    $region32: #{_lambda_.13} parent=5 // pred_fallthru
      _
    %p247 = scmp.le.s32.totalorder 1, %s14
    %p248 = scmp.lt.s32.totalorder %s14, 3
    %p249 = pnand %p247, %p248
    %p250 = pneg %p249
    // Predicated region
    $region41: #{_lambda_.13} parent=5 // pred_check
      _
    $region42: #{_lambda_.13} parent=5 // pred_check_branch
      %252 = sbr.rel (%p249) target = $region44
    $region43: #{_lambda_.13} parent=5 // pred_region
      %s253 = ssub.s32 %s14, 1
      %p254 = scmp.lt.s32.totalorder %s19, 1
      %s255 = scalar_select %p254, %s19, 1
      %s256 = smul.addr %s255, 8
      %s257 = scalar_lea.vmem %s0, %s256
      %p258 = pneg %p40
      %p259 = pneg %p37
      %p260 = pneg %p61
      %p261 = pneg %p58
      %p262 = pneg %p82
      %p263 = pneg %p79
      %p264 = pneg %p103
      %p265 = pneg %p100
      %p266 = pneg %p124
      %p267 = pneg %p121
      %p268 = scmp.lt.s32.totalorder %s19, 1
      %s269 = scalar_select %p268, %s19, 1
      %s270 = smul.addr %s269, 4
      %s271 = scalar_lea.vmem %s5, %s270
      %p272 = pneg %p150
      %p273 = pneg %p147
      %p274 = pneg %p176
      %p275 = pneg %p173
      %p276 = scmp.lt.s32.totalorder %s19, 1
      %s277 = scalar_select %p276, %s19, 1
      %s278 = smul.addr %s277, 8
      %s279 = scalar_lea.vmem %s6, %s278
      %p280 = pneg %p202
      %p281 = pneg %p199
      %p282 = scmp.lt.s32.totalorder %s19, 1
      %s283 = scalar_select %p282, %s19, 1
      %s284 = smul.addr %s283, 8
      %s285 = scalar_lea.vmem %s7, %s284
      %p286 = scmp.lt.s32.totalorder %s19, 1
      %s287 = scalar_select %p286, %s19, 1
      %s288 = smul.addr %s287, 8
      %s289 = scalar_lea.vmem %s0, %s288
      %p290 = scmp.lt.s32.totalorder %s19, 1
      %s291 = scalar_select %p290, %s19, 1
      %s292 = smul.addr %s291, 4
      %s293 = scalar_lea.vmem %s5, %s292
      %p294 = scmp.lt.s32.totalorder %s19, 1
      %s295 = scalar_select %p294, %s19, 1
      %s296 = smul.addr %s295, 8
      %s297 = scalar_lea.vmem %s6, %s296
      %p298 = scmp.lt.s32.totalorder %s19, 1
      %s299 = scalar_select %p298, %s19, 1
      %s300 = smul.addr %s299, 8
      %s301 = scalar_lea.vmem %s7, %s300
      %v303 = vld [vmem:[%s289] sm:$0xff]
      %v304 = vld [vmem:[%s1] sm:$0x1]
      %v305 = vld [vmem:[%s2] sm:$0x1]
      %vm306 = vcmask 261120
      %v307 = vsel %vm306, %v303, 0.0
      %308 = vadd.xlane.f32.xlu0 %v307
      %v309 = vpop.xlane.xlu0 %308
      %v310 = vrcp.pop 32.0
      %v311 = vmul.f32 32.0, %v310
      %v312 = vsub.f32 1.0, %v311
      %v313 = vmul.f32 %v310, %v312
      %v314 = vadd.f32 %v310, %v313
      %vm315 = vweird.f32 %v310
      %v316 = vsel %vm315, %v310, %v314
      %v317 = vmul.f32 %v309, %v316
      %v318 = vsub.f32 %v303, %v317
      %v319 = vmul.f32 %v318, %v318
      %v320 = vsel %vm306, %v319, 0.0
      %321 = vadd.xlane.f32.xlu0 %v320
      %v322 = vpop.xlane.xlu0 %321
      %v323 = vmul.f32 %v322, %v316
      %v324 = vadd.f32 %v323, 1e-05
      %v325 = vrsqrt.pop %v324
      %v326 = vmul.f32 %v325, %v324
      %v327 = vmul.f32 %v326, %v325
      %v328 = vmul.f32 0.5, %v327
      %v329 = vsub.f32 1.5, %v328
      %v330 = vmul.f32 %v325, %v329
      %vm331 = vweird.f32 %v324
      %vm332 = vweird.f32 %v325
      %vm333 = vmor %vm331, %vm332
      %v334 = vsel %vm333, %v325, %v330
      %v335 = vmul.f32 %v318, %v334
      %v337 = vperm.slane %v304, 0
      %v339 = vmul.f32 %v335, %v337
      %v341 = vperm.slane %v305, 0
      %v343 = vadd.f32 %v339, %v341
      %v344 = vpack.c.bf16 %v343, %v343
      %v345 = vld [vmem:[%s3] sm:$0xf]
      %v346 = vld [vmem:[%s3 + $0x4] sm:$0xf]
      %v347 = vld [vmem:[%s3 + $0x8] sm:$0xf]
      %v348 = vld [vmem:[%s3 + $0xc] sm:$0xf]
      %v353 = vunpack.c.l.b16 %v345
      %v354 = vunpack.c.l.b16 %v346
      %v355 = vunpack.c.l.b16 %v347
      %v356 = vunpack.c.l.b16 %v348
      %v357 = vpack.c.b16 %v354, %v353
      %v358 = vpack.c.b16 %v356, %v355
      %v362 = vsel %vm306, %v344, 0
      %364 = vmatpush.bf16.msra.mxu0 0
      %365 = vmatpush.bf16.msra.mxu0 0
      %366 = vmatpush.bf16.msra.mxu0 0
      %367 = vmatpush.bf16.msra.mxu0 0
      %368 = vmatpush.bf16.msra.mxu0 0
      %369 = vmatpush.bf16.msra.mxu0 0
      %370 = vmatpush.bf16.msra.mxu0 %v358
      %371 = vmatpush.bf16.msra.mxu0 %v357
      %372 = vmatmul.bf16.gmra.mxu0 %v362
      %v373 = vpop.f32.mrf.mxu0
      %v374 = vadd.f32 0.0, %v373
      %v375 = vpop.f32.mrf.mxu0
      %376 = vdwg.mxu0
      %v377 = vpack.c.bf16 %v374, %v374
      %v378 = vld [vmem:[%s4] sm:$0x7]
      %v380 = vsel %vm306, %v377, 0
      %v383 = vsel %vm306, %v378, 0
      %385 = vmatpush.bf16.xpose.msra.mxu0 0
      %386 = vmatpush.bf16.xpose.msra.mxu0 0
      %387 = vmatpush.bf16.xpose.msra.mxu0 0
      %388 = vmatpush.bf16.xpose.msra.mxu0 0
      %389 = vmatpush.bf16.xpose.msra.mxu0 0
      %390 = vmatpush.bf16.xpose.msra.mxu0 0
      %391 = vmatpush.bf16.xpose.msra.mxu0 0
      %392 = vmatpush.bf16.xpose.msra.mxu0 %v383
      %393 = vmatmul.bf16.gmra.mxu0 %v380
      %v394 = vpop.f32.mrf.mxu0
      %v395 = vadd.f32 0.0, %v394
      %v396 = vpop.f32.mrf.mxu0
      %397 = vdwg.mxu0
      %vm398 = vcmask 48128
      %399 = vst.msk [vmem:[%s297] sm:$0xff] %vm398, %v395
      %v400 = vld [vmem:[%s293] sm:$0xf]
      %v401 = vpack.c.bf16 %v400, %v400
      %v403 = vsel %vm306, %v401, 0
      %405 = vmatpush.bf16.xpose.msra.mxu0 0
      %406 = vmatpush.bf16.xpose.msra.mxu0 0
      %407 = vmatpush.bf16.xpose.msra.mxu0 0
      %408 = vmatpush.bf16.xpose.msra.mxu0 0
      %409 = vmatpush.bf16.xpose.msra.mxu0 0
      %410 = vmatpush.bf16.xpose.msra.mxu0 0
      %411 = vmatpush.bf16.xpose.msra.mxu0 0
      %412 = vmatpush.bf16.xpose.msra.mxu0 %v403
      %413 = vmatmul.bf16.gmra.mxu0 %v380
      %v414 = vpop.f32.mrf.mxu0
      %v415 = vadd.f32 0.0, %v414
      %v416 = vpop.f32.mrf.mxu0
      %417 = vdwg.mxu0
      %vm418 = vcmask 31744
      %419 = vst.msk [vmem:[%s301] sm:$0xff] %vm418, %v415
      %p420 = scmp.lt.s32.totalorder %s19, 1
      %s421 = scalar_select %p420, %s19, 1
      %s422 = smul.addr %s421, 8
      %s423 = scalar_lea.vmem %s6, %s422
      %p424 = scmp.lt.s32.totalorder %s19, 1
      %s425 = scalar_select %p424, %s19, 1
      %s426 = smul.addr %s425, 8
      %s427 = scalar_lea.vmem %s7, %s426
      // Predicated region
      $region45: #{_lambda_.13} parent=43 // pred_check
        %p428 = pneg %p173
      $region46: #{_lambda_.13} parent=43 // pred_check_branch
        %430 = sbr.rel (%p428) target = $region48
      $region47: #{_lambda_.13} parent=43 // pred_region
        _
      $region48: #{_lambda_.13} parent=43 // pred_fallthru
        _
      // Predicated region
      $region49: #{_lambda_.13} parent=43 // pred_check
        %p431 = pneg %p199
      $region50: #{_lambda_.13} parent=43 // pred_check_branch
        %433 = sbr.rel (%p431) target = $region52
      $region51: #{_lambda_.13} parent=43 // pred_region
        _
      $region52: #{_lambda_.13} parent=43 // pred_fallthru
        _
    $region44: #{_lambda_.13} parent=5 // pred_fallthru
      _
    %p434 = scmp.le.s32.totalorder 2, %s14
    // Predicated region
    $region53: #{_lambda_.13} parent=5 // pred_check
      %p435 = pneg %p434
    $region54: #{_lambda_.13} parent=5 // pred_check_branch
      %437 = sbr.rel (%p435) target = $region56
    $region55: #{_lambda_.13} parent=5 // pred_region
      %s438 = ssub.s32 %s14, 2
      // Predicated region
      $region57: #{_lambda_.13} parent=55 // pred_check
        %p439 = pneg %p179
      $region58: #{_lambda_.13} parent=55 // pred_check_branch
        %441 = sbr.rel (%p439) target = $region60
      $region59: #{_lambda_.13} parent=55 // pred_region
        %p442 = scmp.lt.s32.totalorder %s20, 1
        %s443 = scalar_select %p442, %s20, 1
        %s444 = smul.addr %s443, 8
        %s445 = scalar_lea.vmem %s6, %s444
      $region60: #{_lambda_.13} parent=55 // pred_fallthru
        _
      // Predicated region
      $region61: #{_lambda_.13} parent=55 // pred_check
        %p446 = pneg %p205
      $region62: #{_lambda_.13} parent=55 // pred_check_branch
        %448 = sbr.rel (%p446) target = $region64
      $region63: #{_lambda_.13} parent=55 // pred_region
        %p449 = scmp.lt.s32.totalorder %s20, 1
        %s450 = scalar_select %p449, %s20, 1
        %s451 = smul.addr %s450, 8
        %s452 = scalar_lea.vmem %s7, %s451
      $region64: #{_lambda_.13} parent=55 // pred_fallthru
        _
    $region56: #{_lambda_.13} parent=5 // pred_fallthru
      _
  $region6: #{_lambda_.13} parent=0 // loop_footer
    %s18 = sadd.s32 1, %s14
  $region7: #{_lambda_.13} parent=0 // loop_footer_branch
    %13 = sbr.rel target = $region3
  $region8: #{_lambda_.13} parent=0 // loop_exit
    _

// kernel: _lambda_.11
$region0: #{_lambda_.11}
  #allocation0 [shape = 'u32[]', space=smem, size = 0x4, offset = 0x4, fixed_abs, tag = 'smem constant byte address 0x4 - core index']
  #allocation1 [shape = 'u32[72,128]{1,0:T(1,128)}', space=vmem, size = 0x9000, scoped, tag = 'internal scratch']
  %s0 = inlined_call_operand.vmem [shape: f32[2,8,32], index: 0, kind: input, shape index: {}]
  %s1 = inlined_call_operand.vmem [shape: f32[2,16,32], index: 1, kind: input, shape index: {}]
  %s2 = inlined_call_operand.vmem [shape: f32[2,8,16], index: 2, kind: input, shape index: {}]
  %s3 = inlined_call_operand.vmem [shape: bf16[4,32,8], index: 3, kind: input, shape index: {}]
  %s4 = inlined_call_operand.vmem [shape: bf16[4,32,8], index: 4, kind: input, shape index: {}]
  %s5 = inlined_call_operand.vmem [shape: bf16[4,32,8], index: 5, kind: input, shape index: {}]
  %s6 = inlined_call_operand.vmem [shape: f32[4,1,8], index: 6, kind: input, shape index: {}, may-alias: {6,7,8}]
  %s7 = inlined_call_operand.vmem [shape: f32[4,1,8], index: 7, kind: input, shape index: {}, may-alias: {6,7,8}]
  %s8 = inlined_call_operand.vmem [shape: f32[4,1,8], index: 8, kind: input, shape index: {}, may-alias: {6,7,8}]
  %s9 = inlined_call_operand.vmem [shape: bf16[4,8,32], index: 9, kind: input, shape index: {}]
  %s10 = inlined_call_operand.vmem [shape: f32[1,32], index: 10, kind: input, shape index: {}, may-alias: {10,12}]
  %s11 = inlined_call_operand.vmem [shape: f32[1,32], index: 11, kind: input, shape index: {}]
  %s12 = inlined_call_operand.vmem [shape: f32[1,32], index: 12, kind: input, shape index: {}, may-alias: {10,12}]
  %s13 = inlined_call_operand.vmem [shape: f32[2,8,32], index: 13, kind: output, shape index: {}]
  %s14 = sld [smem:[#allocation0]]
  $region85: #{_lambda_.11} parent=0
    _
  %s16 = ssub.s32 1, %s14
  %s17 = scalar_select 0, %s16, %s14
  loop: start=0, step=1, limit=4
  $region2: #{_lambda_.11} parent=0 // loop_pre_header
    _
  $region3: #{_lambda_.11} parent=0 // loop_header
    %s19 = sphi 0, %s23
    %p20 = scmp.ge.s32.totalorder %s19, 4
    %s29 = sphi 0, %s31
    %s32 = sphi 0, %s29
    %s33 = sphi 0, %s32
    %s49 = sphi 0, %s33
    %s55 = sphi 0, %s57
    %s58 = sphi 0, %s55
    %s59 = sphi 0, %s58
    %s75 = sphi 0, %s59
    %s81 = sphi 0, %s83
    %s84 = sphi 0, %s81
    %s85 = sphi 0, %s84
    %s101 = sphi 0, %s85
    %s105 = sphi 0, %s105
    %s107 = sphi 0, %s105
    %s108 = sphi 0, %s107
    %s122 = sphi 0, %s108
    %s126 = sphi 0, %s126
    %s128 = sphi 0, %s126
    %s129 = sphi 0, %s128
    %s143 = sphi 0, %s129
    %s147 = sphi 0, %s147
    %s149 = sphi 0, %s147
    %s150 = sphi 0, %s149
    %s164 = sphi 0, %s150
    %s168 = sphi 0, %s168
    %s170 = sphi 0, %s168
    %s171 = sphi 0, %s170
    %s185 = sphi 0, %s171
    %s189 = sphi 0, %s189
    %s191 = sphi 0, %s189
    %s192 = sphi 0, %s191
    %s206 = sphi 0, %s192
    %s210 = sphi 0, %s210
    %s212 = sphi 0, %s210
    %s213 = sphi 0, %s212
    %s227 = sphi 0, %s213
    %s231 = sphi 0, %s231
    %s233 = sphi 0, %s231
    %s234 = sphi 0, %s233
    %s248 = sphi 0, %s234
    %s252 = sphi 0, %s252
    %s254 = sphi 0, %s252
    %s255 = sphi 0, %s254
    %s269 = sphi 0, %s255
    %s273 = sphi 0, %s273
    %s275 = sphi 0, %s273
    %s276 = sphi 0, %s275
    %s290 = sphi 0, %s276
    %s294 = sphi 0, %s294
    %s296 = sphi 0, %s294
    %s297 = sphi 0, %s296
    %s311 = sphi 0, %s297
    %s317 = sphi 0, %s319
    %s320 = sphi 0, %s317
    %s321 = sphi 0, %s320
    %s337 = sphi 0, %s321
  $region4: #{_lambda_.11} parent=0 // loop_header_branch
    %22 = sbr.rel (%p20) target = $region8
  $region5: #{_lambda_.11} parent=0 // loop_body
    %s24 = ssub.s32 %s19, 1
    %s25 = ssub.s32 %s19, 2
    %s26 = sadd.s32 %s19, 1
    %s27 = ssub.s32 %s19, %s26
    %p28 = scmp.eq.s32.totalorder %s27, 0
    %s30 = sadd.s32 %s29, 1
    %s31 = scalar_select %p28, %s29, %s30
    %p34 = pneg %p28
    %p35 = scmp.eq.s32.totalorder %s19, 1
    %p36 = por %p34, %p35
    %p37 = scmp.ne.s32.totalorder %s29, %s32
    %p38 = scmp.eq.s32.totalorder %s19, 0
    %p39 = por %p37, %p38
    %p40 = scmp.ne.s32.totalorder %s29, %s32
    %p41 = scmp.eq.s32.totalorder %s24, 1
    %p42 = por %p40, %p41
    %p43 = scmp.ne.s32.totalorder %s32, %s33
    %p44 = scmp.eq.s32.totalorder %s24, 0
    %p45 = por %p43, %p44
    %p46 = scmp.ne.s32.totalorder %s32, %s33
    %p47 = scmp.eq.s32.totalorder %s25, 1
    %p48 = por %p46, %p47
    %p50 = scmp.ne.s32.totalorder %s33, %s49
    %p51 = scmp.eq.s32.totalorder %s25, 0
    %p52 = por %p50, %p51
    %s53 = ssub.s32 %s19, %s26
    %p54 = scmp.eq.s32.totalorder %s53, 0
    %s56 = sadd.s32 %s55, 1
    %s57 = scalar_select %p54, %s55, %s56
    %p60 = pneg %p54
    %p61 = scmp.eq.s32.totalorder %s19, 1
    %p62 = por %p60, %p61
    %p63 = scmp.ne.s32.totalorder %s55, %s58
    %p64 = scmp.eq.s32.totalorder %s19, 0
    %p65 = por %p63, %p64
    %p66 = scmp.ne.s32.totalorder %s55, %s58
    %p67 = scmp.eq.s32.totalorder %s24, 1
    %p68 = por %p66, %p67
    %p69 = scmp.ne.s32.totalorder %s58, %s59
    %p70 = scmp.eq.s32.totalorder %s24, 0
    %p71 = por %p69, %p70
    %p72 = scmp.ne.s32.totalorder %s58, %s59
    %p73 = scmp.eq.s32.totalorder %s25, 1
    %p74 = por %p72, %p73
    %p76 = scmp.ne.s32.totalorder %s59, %s75
    %p77 = scmp.eq.s32.totalorder %s25, 0
    %p78 = por %p76, %p77
    %s79 = ssub.s32 %s19, %s26
    %p80 = scmp.eq.s32.totalorder %s79, 0
    %s82 = sadd.s32 %s81, 1
    %s83 = scalar_select %p80, %s81, %s82
    %p86 = pneg %p80
    %p87 = scmp.eq.s32.totalorder %s19, 1
    %p88 = por %p86, %p87
    %p89 = scmp.ne.s32.totalorder %s81, %s84
    %p90 = scmp.eq.s32.totalorder %s19, 0
    %p91 = por %p89, %p90
    %p92 = scmp.ne.s32.totalorder %s81, %s84
    %p93 = scmp.eq.s32.totalorder %s24, 1
    %p94 = por %p92, %p93
    %p95 = scmp.ne.s32.totalorder %s84, %s85
    %p96 = scmp.eq.s32.totalorder %s24, 0
    %p97 = por %p95, %p96
    %p98 = scmp.ne.s32.totalorder %s84, %s85
    %p99 = scmp.eq.s32.totalorder %s25, 1
    %p100 = por %p98, %p99
    %p102 = scmp.ne.s32.totalorder %s85, %s101
    %p103 = scmp.eq.s32.totalorder %s25, 0
    %p104 = por %p102, %p103
    %s106 = sadd.s32 %s105, 1
    %p109 = scmp.eq.s32.totalorder %s19, 1
    %p110 = scmp.ne.s32.totalorder %s105, %s107
    %p111 = scmp.eq.s32.totalorder %s19, 0
    %p112 = por %p110, %p111
    %p113 = scmp.ne.s32.totalorder %s105, %s107
    %p114 = scmp.eq.s32.totalorder %s24, 1
    %p115 = por %p113, %p114
    %p116 = scmp.ne.s32.totalorder %s107, %s108
    %p117 = scmp.eq.s32.totalorder %s24, 0
    %p118 = por %p116, %p117
    %p119 = scmp.ne.s32.totalorder %s107, %s108
    %p120 = scmp.eq.s32.totalorder %s25, 1
    %p121 = por %p119, %p120
    %p123 = scmp.ne.s32.totalorder %s108, %s122
    %p124 = scmp.eq.s32.totalorder %s25, 0
    %p125 = por %p123, %p124
    %s127 = sadd.s32 %s126, 1
    %p130 = scmp.eq.s32.totalorder %s19, 1
    %p131 = scmp.ne.s32.totalorder %s126, %s128
    %p132 = scmp.eq.s32.totalorder %s19, 0
    %p133 = por %p131, %p132
    %p134 = scmp.ne.s32.totalorder %s126, %s128
    %p135 = scmp.eq.s32.totalorder %s24, 1
    %p136 = por %p134, %p135
    %p137 = scmp.ne.s32.totalorder %s128, %s129
    %p138 = scmp.eq.s32.totalorder %s24, 0
    %p139 = por %p137, %p138
    %p140 = scmp.ne.s32.totalorder %s128, %s129
    %p141 = scmp.eq.s32.totalorder %s25, 1
    %p142 = por %p140, %p141
    %p144 = scmp.ne.s32.totalorder %s129, %s143
    %p145 = scmp.eq.s32.totalorder %s25, 0
    %p146 = por %p144, %p145
    %s148 = sadd.s32 %s147, 1
    %p151 = scmp.eq.s32.totalorder %s19, 1
    %p152 = scmp.ne.s32.totalorder %s147, %s149
    %p153 = scmp.eq.s32.totalorder %s19, 0
    %p154 = por %p152, %p153
    %p155 = scmp.ne.s32.totalorder %s147, %s149
    %p156 = scmp.eq.s32.totalorder %s24, 1
    %p157 = por %p155, %p156
    %p158 = scmp.ne.s32.totalorder %s149, %s150
    %p159 = scmp.eq.s32.totalorder %s24, 0
    %p160 = por %p158, %p159
    %p161 = scmp.ne.s32.totalorder %s149, %s150
    %p162 = scmp.eq.s32.totalorder %s25, 1
    %p163 = por %p161, %p162
    %p165 = scmp.ne.s32.totalorder %s150, %s164
    %p166 = scmp.eq.s32.totalorder %s25, 0
    %p167 = por %p165, %p166
    %s169 = sadd.s32 %s168, 1
    %p172 = scmp.eq.s32.totalorder %s19, 1
    %p173 = scmp.ne.s32.totalorder %s168, %s170
    %p174 = scmp.eq.s32.totalorder %s19, 0
    %p175 = por %p173, %p174
    %p176 = scmp.ne.s32.totalorder %s168, %s170
    %p177 = scmp.eq.s32.totalorder %s24, 1
    %p178 = por %p176, %p177
    %p179 = scmp.ne.s32.totalorder %s170, %s171
    %p180 = scmp.eq.s32.totalorder %s24, 0
    %p181 = por %p179, %p180
    %p182 = scmp.ne.s32.totalorder %s170, %s171
    %p183 = scmp.eq.s32.totalorder %s25, 1
    %p184 = por %p182, %p183
    %p186 = scmp.ne.s32.totalorder %s171, %s185
    %p187 = scmp.eq.s32.totalorder %s25, 0
    %p188 = por %p186, %p187
    %s190 = sadd.s32 %s189, 1
    %p193 = scmp.eq.s32.totalorder %s19, 1
    %p194 = scmp.ne.s32.totalorder %s189, %s191
    %p195 = scmp.eq.s32.totalorder %s19, 0
    %p196 = por %p194, %p195
    %p197 = scmp.ne.s32.totalorder %s189, %s191
    %p198 = scmp.eq.s32.totalorder %s24, 1
    %p199 = por %p197, %p198
    %p200 = scmp.ne.s32.totalorder %s191, %s192
    %p201 = scmp.eq.s32.totalorder %s24, 0
    %p202 = por %p200, %p201
    %p203 = scmp.ne.s32.totalorder %s191, %s192
    %p204 = scmp.eq.s32.totalorder %s25, 1
    %p205 = por %p203, %p204
    %p207 = scmp.ne.s32.totalorder %s192, %s206
    %p208 = scmp.eq.s32.totalorder %s25, 0
    %p209 = por %p207, %p208
    %s211 = sadd.s32 %s210, 1
    %p214 = scmp.eq.s32.totalorder %s19, 1
    %p215 = scmp.ne.s32.totalorder %s210, %s212
    %p216 = scmp.eq.s32.totalorder %s19, 0
    %p217 = por %p215, %p216
    %p218 = scmp.ne.s32.totalorder %s210, %s212
    %p219 = scmp.eq.s32.totalorder %s24, 1
    %p220 = por %p218, %p219
    %p221 = scmp.ne.s32.totalorder %s212, %s213
    %p222 = scmp.eq.s32.totalorder %s24, 0
    %p223 = por %p221, %p222
    %p224 = scmp.ne.s32.totalorder %s212, %s213
    %p225 = scmp.eq.s32.totalorder %s25, 1
    %p226 = por %p224, %p225
    %p228 = scmp.ne.s32.totalorder %s213, %s227
    %p229 = scmp.eq.s32.totalorder %s25, 0
    %p230 = por %p228, %p229
    %s232 = sadd.s32 %s231, 1
    %p235 = scmp.eq.s32.totalorder %s19, 1
    %p236 = scmp.ne.s32.totalorder %s231, %s233
    %p237 = scmp.eq.s32.totalorder %s19, 0
    %p238 = por %p236, %p237
    %p239 = scmp.ne.s32.totalorder %s231, %s233
    %p240 = scmp.eq.s32.totalorder %s24, 1
    %p241 = por %p239, %p240
    %p242 = scmp.ne.s32.totalorder %s233, %s234
    %p243 = scmp.eq.s32.totalorder %s24, 0
    %p244 = por %p242, %p243
    %p245 = scmp.ne.s32.totalorder %s233, %s234
    %p246 = scmp.eq.s32.totalorder %s25, 1
    %p247 = por %p245, %p246
    %p249 = scmp.ne.s32.totalorder %s234, %s248
    %p250 = scmp.eq.s32.totalorder %s25, 0
    %p251 = por %p249, %p250
    %s253 = sadd.s32 %s252, 1
    %p256 = scmp.eq.s32.totalorder %s19, 1
    %p257 = scmp.ne.s32.totalorder %s252, %s254
    %p258 = scmp.eq.s32.totalorder %s19, 0
    %p259 = por %p257, %p258
    %p260 = scmp.ne.s32.totalorder %s252, %s254
    %p261 = scmp.eq.s32.totalorder %s24, 1
    %p262 = por %p260, %p261
    %p263 = scmp.ne.s32.totalorder %s254, %s255
    %p264 = scmp.eq.s32.totalorder %s24, 0
    %p265 = por %p263, %p264
    %p266 = scmp.ne.s32.totalorder %s254, %s255
    %p267 = scmp.eq.s32.totalorder %s25, 1
    %p268 = por %p266, %p267
    %p270 = scmp.ne.s32.totalorder %s255, %s269
    %p271 = scmp.eq.s32.totalorder %s25, 0
    %p272 = por %p270, %p271
    %s274 = sadd.s32 %s273, 1
    %p277 = scmp.eq.s32.totalorder %s19, 1
    %p278 = scmp.ne.s32.totalorder %s273, %s275
    %p279 = scmp.eq.s32.totalorder %s19, 0
    %p280 = por %p278, %p279
    %p281 = scmp.ne.s32.totalorder %s273, %s275
    %p282 = scmp.eq.s32.totalorder %s24, 1
    %p283 = por %p281, %p282
    %p284 = scmp.ne.s32.totalorder %s275, %s276
    %p285 = scmp.eq.s32.totalorder %s24, 0
    %p286 = por %p284, %p285
    %p287 = scmp.ne.s32.totalorder %s275, %s276
    %p288 = scmp.eq.s32.totalorder %s25, 1
    %p289 = por %p287, %p288
    %p291 = scmp.ne.s32.totalorder %s276, %s290
    %p292 = scmp.eq.s32.totalorder %s25, 0
    %p293 = por %p291, %p292
    %s295 = sadd.s32 %s294, 1
    %p298 = scmp.eq.s32.totalorder %s19, 1
    %p299 = scmp.ne.s32.totalorder %s294, %s296
    %p300 = scmp.eq.s32.totalorder %s19, 0
    %p301 = por %p299, %p300
    %p302 = scmp.ne.s32.totalorder %s294, %s296
    %p303 = scmp.eq.s32.totalorder %s24, 1
    %p304 = por %p302, %p303
    %p305 = scmp.ne.s32.totalorder %s296, %s297
    %p306 = scmp.eq.s32.totalorder %s24, 0
    %p307 = por %p305, %p306
    %p308 = scmp.ne.s32.totalorder %s296, %s297
    %p309 = scmp.eq.s32.totalorder %s25, 1
    %p310 = por %p308, %p309
    %p312 = scmp.ne.s32.totalorder %s297, %s311
    %p313 = scmp.eq.s32.totalorder %s25, 0
    %p314 = por %p312, %p313
    %s315 = ssub.s32 %s19, %s26
    %p316 = scmp.eq.s32.totalorder %s315, 0
    %s318 = sadd.s32 %s317, 1
    %s319 = scalar_select %p316, %s317, %s318
    %p322 = pneg %p316
    %p323 = scmp.eq.s32.totalorder %s19, 1
    %p324 = por %p322, %p323
    %p325 = scmp.ne.s32.totalorder %s317, %s320
    %p326 = scmp.eq.s32.totalorder %s19, 0
    %p327 = por %p325, %p326
    %p328 = scmp.ne.s32.totalorder %s317, %s320
    %p329 = scmp.eq.s32.totalorder %s24, 1
    %p330 = por %p328, %p329
    %p331 = scmp.ne.s32.totalorder %s320, %s321
    %p332 = scmp.eq.s32.totalorder %s24, 0
    %p333 = por %p331, %p332
    %p334 = scmp.ne.s32.totalorder %s320, %s321
    %p335 = scmp.eq.s32.totalorder %s25, 1
    %p336 = por %p334, %p335
    %p338 = scmp.ne.s32.totalorder %s321, %s337
    %p339 = scmp.eq.s32.totalorder %s25, 0
    %p340 = por %p338, %p339
    %p341 = scmp.le.s32.totalorder 1, %s19
    %p342 = scmp.lt.s32.totalorder %s19, 3
    %p343 = pnand %p341, %p342
    %p344 = pneg %p343
    // Predicated region
    $region9: #{_lambda_.11} parent=5 // pred_check
      _
    $region10: #{_lambda_.11} parent=5 // pred_check_branch
      %346 = sbr.rel (%p343) target = $region12
    $region11: #{_lambda_.11} parent=5 // pred_region
      %s347 = ssub.s32 %s19, 1
      // Predicated region
      $region13: #{_lambda_.11} parent=11 // pred_check
        %p348 = pneg %p118
      $region14: #{_lambda_.11} parent=11 // pred_check_branch
        %350 = sbr.rel (%p348) target = $region16
      $region15: #{_lambda_.11} parent=11 // pred_region
        _
      $region16: #{_lambda_.11} parent=11 // pred_fallthru
        _
      // Predicated region
      $region17: #{_lambda_.11} parent=11 // pred_check
        %p351 = pneg %p139
      $region18: #{_lambda_.11} parent=11 // pred_check_branch
        %353 = sbr.rel (%p351) target = $region20
      $region19: #{_lambda_.11} parent=11 // pred_region
        _
      $region20: #{_lambda_.11} parent=11 // pred_fallthru
        _
      // Predicated region
      $region21: #{_lambda_.11} parent=11 // pred_check
        %p354 = pneg %p160
      $region22: #{_lambda_.11} parent=11 // pred_check_branch
        %356 = sbr.rel (%p354) target = $region24
      $region23: #{_lambda_.11} parent=11 // pred_region
        _
      $region24: #{_lambda_.11} parent=11 // pred_fallthru
        _
      // Predicated region
      $region25: #{_lambda_.11} parent=11 // pred_check
        %p357 = pneg %p181
      $region26: #{_lambda_.11} parent=11 // pred_check_branch
        %359 = sbr.rel (%p357) target = $region28
      $region27: #{_lambda_.11} parent=11 // pred_region
        _
      $region28: #{_lambda_.11} parent=11 // pred_fallthru
        _
      // Predicated region
      $region29: #{_lambda_.11} parent=11 // pred_check
        %p360 = pneg %p202
      $region30: #{_lambda_.11} parent=11 // pred_check_branch
        %362 = sbr.rel (%p360) target = $region32
      $region31: #{_lambda_.11} parent=11 // pred_region
        _
      $region32: #{_lambda_.11} parent=11 // pred_fallthru
        _
      // Predicated region
      $region33: #{_lambda_.11} parent=11 // pred_check
        %p363 = pneg %p223
      $region34: #{_lambda_.11} parent=11 // pred_check_branch
        %365 = sbr.rel (%p363) target = $region36
      $region35: #{_lambda_.11} parent=11 // pred_region
        _
      $region36: #{_lambda_.11} parent=11 // pred_fallthru
        _
      // Predicated region
      $region37: #{_lambda_.11} parent=11 // pred_check
        %p366 = pneg %p244
      $region38: #{_lambda_.11} parent=11 // pred_check_branch
        %368 = sbr.rel (%p366) target = $region40
      $region39: #{_lambda_.11} parent=11 // pred_region
        _
      $region40: #{_lambda_.11} parent=11 // pred_fallthru
        _
      // Predicated region
      $region41: #{_lambda_.11} parent=11 // pred_check
        %p369 = pneg %p265
      $region42: #{_lambda_.11} parent=11 // pred_check_branch
        %371 = sbr.rel (%p369) target = $region44
      $region43: #{_lambda_.11} parent=11 // pred_region
        _
      $region44: #{_lambda_.11} parent=11 // pred_fallthru
        _
      // Predicated region
      $region45: #{_lambda_.11} parent=11 // pred_check
        %p372 = pneg %p286
      $region46: #{_lambda_.11} parent=11 // pred_check_branch
        %374 = sbr.rel (%p372) target = $region48
      $region47: #{_lambda_.11} parent=11 // pred_region
        _
      $region48: #{_lambda_.11} parent=11 // pred_fallthru
        _
      // Predicated region
      $region49: #{_lambda_.11} parent=11 // pred_check
        %p375 = pneg %p307
      $region50: #{_lambda_.11} parent=11 // pred_check_branch
        %377 = sbr.rel (%p375) target = $region52
      $region51: #{_lambda_.11} parent=11 // pred_region
        _
      $region52: #{_lambda_.11} parent=11 // pred_fallthru
        _
    $region12: #{_lambda_.11} parent=5 // pred_fallthru
      _
    %p378 = scmp.lt.s32.totalorder %s19, 2
    // Predicated region
    $region53: #{_lambda_.11} parent=5 // pred_check
      %p379 = pneg %p378
    $region54: #{_lambda_.11} parent=5 // pred_check_branch
      %381 = sbr.rel (%p379) target = $region56
    $region55: #{_lambda_.11} parent=5 // pred_region
      // Predicated region
      $region57: #{_lambda_.11} parent=55 // pred_check
        %p382 = pneg %p39
      $region58: #{_lambda_.11} parent=55 // pred_check_branch
        %384 = sbr.rel (%p382) target = $region60
      $region59: #{_lambda_.11} parent=55 // pred_region
        %p385 = scmp.lt.s32.totalorder %s19, 1
        %s386 = scalar_select %p385, %s19, 1
        %s387 = smul.addr %s386, 8
        %s388 = scalar_lea.vmem %s0, %s387
      $region60: #{_lambda_.11} parent=55 // pred_fallthru
        _
      // Predicated region
      $region61: #{_lambda_.11} parent=55 // pred_check
        %p389 = pneg %p65
      $region62: #{_lambda_.11} parent=55 // pred_check_branch
        %391 = sbr.rel (%p389) target = $region64
      $region63: #{_lambda_.11} parent=55 // pred_region
        %p392 = scmp.lt.s32.totalorder %s19, 1
        %s393 = scalar_select %p392, %s19, 1
        %s394 = smul.addr %s393, 2
        %s395 = smul.addr %s394, 8
        %s396 = scalar_lea.vmem %s1, %s395
      $region64: #{_lambda_.11} parent=55 // pred_fallthru
        _
      // Predicated region
      $region65: #{_lambda_.11} parent=55 // pred_check
        %p397 = pneg %p91
      $region66: #{_lambda_.11} parent=55 // pred_check_branch
        %399 = sbr.rel (%p397) target = $region68
      $region67: #{_lambda_.11} parent=55 // pred_region
        %p400 = scmp.lt.s32.totalorder %s19, 1
        %s401 = scalar_select %p400, %s19, 1
        %s402 = smul.addr %s401, 8
        %s403 = scalar_lea.vmem %s2, %s402
      $region68: #{_lambda_.11} parent=55 // pred_fallthru
        _
    $region56: #{_lambda_.11} parent=5 // pred_fallthru
      _
    %p404 = scmp.le.s32.totalorder 1, %s19
    %p405 = scmp.lt.s32.totalorder %s19, 3
    %p406 = pnand %p404, %p405
    %p407 = pneg %p406
    // Predicated region
    $region69: #{_lambda_.11} parent=5 // pred_check
      _
    $region70: #{_lambda_.11} parent=5 // pred_check_branch
      %409 = sbr.rel (%p406) target = $region72
    $region71: #{_lambda_.11} parent=5 // pred_region
      %s410 = ssub.s32 %s19, 1
      %p411 = scmp.lt.s32.totalorder %s24, 1
      %s412 = scalar_select %p411, %s24, 1
      %s413 = smul.addr %s412, 8
      %s414 = scalar_lea.vmem %s0, %s413
      %p415 = pneg %p45
      %p416 = pneg %p42
      %p417 = scmp.lt.s32.totalorder %s24, 1
      %s418 = scalar_select %p417, %s24, 1
      %s419 = smul.addr %s418, 2
      %s420 = smul.addr %s419, 8
      %s421 = scalar_lea.vmem %s1, %s420
      %p422 = pneg %p71
      %p423 = pneg %p68
      %p424 = scmp.lt.s32.totalorder %s24, 1
      %s425 = scalar_select %p424, %s24, 1
      %s426 = smul.addr %s425, 8
      %s427 = scalar_lea.vmem %s2, %s426
      %p428 = pneg %p97
      %p429 = pneg %p94
      %p430 = pneg %p118
      %p431 = pneg %p115
      %p432 = pneg %p139
      %p433 = pneg %p136
      %p434 = pneg %p160
      %p435 = pneg %p157
      %p436 = pneg %p181
      %p437 = pneg %p178
      %p438 = pneg %p202
      %p439 = pneg %p199
      %p440 = pneg %p223
      %p441 = pneg %p220
      %p442 = pneg %p244
      %p443 = pneg %p241
      %p444 = pneg %p265
      %p445 = pneg %p262
      %p446 = pneg %p286
      %p447 = pneg %p283
      %p448 = pneg %p307
      %p449 = pneg %p304
      %p450 = pneg %p333
      %p451 = pneg %p330
      %p452 = scmp.lt.s32.totalorder %s24, 1
      %s453 = scalar_select %p452, %s24, 1
      %s454 = smul.addr %s453, 8
      %s455 = scalar_lea.vmem %s13, %s454
      %p456 = scmp.lt.s32.totalorder %s24, 1
      %s457 = scalar_select %p456, %s24, 1
      %s458 = smul.addr %s457, 8
      %s459 = scalar_lea.vmem %s0, %s458
      %p460 = scmp.lt.s32.totalorder %s24, 1
      %s461 = scalar_select %p460, %s24, 1
      %s462 = smul.addr %s461, 2
      %s463 = smul.addr %s462, 8
      %s464 = scalar_lea.vmem %s1, %s463
      %p465 = scmp.lt.s32.totalorder %s24, 1
      %s466 = scalar_select %p465, %s24, 1
      %s467 = smul.addr %s466, 8
      %s468 = scalar_lea.vmem %s2, %s467
      %p469 = scmp.lt.s32.totalorder %s24, 1
      %s470 = scalar_select %p469, %s24, 1
      %s471 = smul.addr %s470, 8
      %s472 = scalar_lea.vmem %s13, %s471
      %v474 = vld [vmem:[%s459] sm:$0xff]
      %v475 = vld [vmem:[%s464] sm:$0xff]
      %v476 = vld [vmem:[%s464 + $0x8] sm:$0xff]
      %v477 = vld [vmem:[%s468] sm:$0xff]
      %v478 = vpack.c.bf16 %v474, %v474
      %v479 = vpack.c.bf16 %v476, %v475
      %v480 = vld [vmem:[%s3] sm:$0xf]
      %v481 = vld [vmem:[%s3 + $0x4] sm:$0xf]
      %v482 = vld [vmem:[%s3 + $0x8] sm:$0xf]
      %v483 = vld [vmem:[%s3 + $0xc] sm:$0xf]
      %v484 = vld [vmem:[%s6] sm:$0x1]
      %v486 = vperm.slane %v484, 0
      %v492 = vunpack.c.l.b16 %v480
      %v493 = vunpack.c.l.b16 %v481
      %v494 = vunpack.c.l.b16 %v482
      %v495 = vunpack.c.l.b16 %v483
      %v496 = vpack.c.b16 %v493, %v492
      %v497 = vpack.c.b16 %v495, %v494
      %vm500 = vcmask 261120
      %v502 = vsel %vm500, %v478, 0
      %504 = vmatpush.bf16.msra.mxu0 0
      %505 = vmatpush.bf16.msra.mxu0 0
      %506 = vmatpush.bf16.msra.mxu0 0
      %507 = vmatpush.bf16.msra.mxu0 0
      %508 = vmatpush.bf16.msra.mxu0 0
      %509 = vmatpush.bf16.msra.mxu0 0
      %510 = vmatpush.bf16.msra.mxu0 %v497
      %511 = vmatpush.bf16.msra.mxu0 %v496
      %512 = vmatmul.bf16.gmra.mxu0 %v502
      %v513 = vpop.f32.mrf.mxu0
      %v514 = vadd.f32 %v486, %v513
      %v515 = vpop.f32.mrf.mxu0
      %516 = vdwg.mxu0
      %v517 = vld [vmem:[%s4] sm:$0xf]
      %v518 = vld [vmem:[%s4 + $0x4] sm:$0xf]
      %v519 = vld [vmem:[%s4 + $0x8] sm:$0xf]
      %v520 = vld [vmem:[%s4 + $0xc] sm:$0xf]
      %v521 = vld [vmem:[%s7] sm:$0x1]
      %v523 = vperm.slane %v521, 0
      %v529 = vunpack.c.l.b16 %v517
      %v530 = vunpack.c.l.b16 %v518
      %v531 = vunpack.c.l.b16 %v519
      %v532 = vunpack.c.l.b16 %v520
      %v533 = vpack.c.b16 %v530, %v529
      %v534 = vpack.c.b16 %v532, %v531
      %v538 = vsel %vm500, %v479, 0
      %540 = vmatpush.bf16.msra.mxu0 0
      %541 = vmatpush.bf16.msra.mxu0 0
      %542 = vmatpush.bf16.msra.mxu0 0
      %543 = vmatpush.bf16.msra.mxu0 0
      %544 = vmatpush.bf16.msra.mxu0 0
      %545 = vmatpush.bf16.msra.mxu0 0
      %546 = vmatpush.bf16.msra.mxu0 %v534
      %547 = vmatpush.bf16.msra.mxu0 %v533
      %548 = vmatmul.bf16.gmra.mxu0 %v538
      %v549 = vpop.f32.mrf.mxu0
      %v550 = vadd.f32 %v523, %v549
      %v551 = vpop.f32.mrf.mxu0
      %v552 = vadd.f32 %v523, %v551
      %553 = vdwg.mxu0
      %v554 = vld [vmem:[%s5] sm:$0xf]
      %v555 = vld [vmem:[%s5 + $0x4] sm:$0xf]
      %v556 = vld [vmem:[%s5 + $0x8] sm:$0xf]
      %v557 = vld [vmem:[%s5 + $0xc] sm:$0xf]
      %v558 = vld [vmem:[%s8] sm:$0x1]
      %v560 = vperm.slane %v558, 0
      %v566 = vunpack.c.l.b16 %v554
      %v567 = vunpack.c.l.b16 %v555
      %v568 = vunpack.c.l.b16 %v556
      %v569 = vunpack.c.l.b16 %v557
      %v570 = vpack.c.b16 %v567, %v566
      %v571 = vpack.c.b16 %v569, %v568
      %574 = vmatpush.bf16.msra.mxu0 0
      %575 = vmatpush.bf16.msra.mxu0 0
      %576 = vmatpush.bf16.msra.mxu0 0
      %577 = vmatpush.bf16.msra.mxu0 0
      %578 = vmatpush.bf16.msra.mxu0 0
      %579 = vmatpush.bf16.msra.mxu0 0
      %580 = vmatpush.bf16.msra.mxu0 %v571
      %581 = vmatpush.bf16.msra.mxu0 %v570
      %582 = vmatmul.bf16.gmra.mxu0 %v538
      %v583 = vpop.f32.mrf.mxu0
      %v584 = vadd.f32 %v560, %v583
      %v585 = vpop.f32.mrf.mxu0
      %v586 = vadd.f32 %v560, %v585
      %587 = vdwg.mxu0
      %v588 = vmul.f32 %v514, 0.35355338
      %v589 = vpack.c.bf16 %v588, %v588
      %v590 = vpack.c.bf16 %v552, %v550
      %vm591 = vcmask 64512
      %v593 = vsel %vm591, %v589, 0
      %v596 = vsel %vm591, %v590, 0
      %598 = vmatpush.bf16.xpose.msra.mxu0 0
      %599 = vmatpush.bf16.xpose.msra.mxu0 0
      %600 = vmatpush.bf16.xpose.msra.mxu0 0
      %601 = vmatpush.bf16.xpose.msra.mxu0 0
      %602 = vmatpush.bf16.xpose.msra.mxu0 0
      %603 = vmatpush.bf16.xpose.msra.mxu0 0
      %604 = vmatpush.bf16.xpose.msra.mxu0 0
      %605 = vmatpush.bf16.xpose.msra.mxu0 %v596
      %606 = vmatmul.bf16.gmra.mxu0 %v593
      %v607 = vpop.f32.mrf.mxu0
      %v608 = vadd.f32 %v477, %v607
      %v609 = vpop.f32.mrf.mxu0
      %610 = vdwg.mxu0
      %vm611 = vcmask 130048
      %v612 = vsel %vm611, %v608, -inf
      %613 = vmax.xlane.f32.xlu0 %v612
      %v614 = vpop.xlane.xlu0 %613
      %v615 = vsub.f32 %v608, %v614
      %v616 = vmul.f32 %v615, 1.442695
      %v617 = vpow.pop %v616
      %v618 = vsel %vm611, %v617, 0.0
      %619 = vadd.xlane.f32.xlu0 %v618
      %v620 = vpop.xlane.xlu0 %619
      %v621 = vrcp.pop %v620
      %v622 = vmul.f32 %v617, %v621
      %v623 = vpack.c.bf16 %v622, %v622
      %v624 = vpack.c.bf16 %v586, %v584
      %v626 = vsel %vm611, %v623, 0
      %628 = vmatpush.bf16.msra.mxu0 0
      %629 = vmatpush.bf16.msra.mxu0 0
      %630 = vmatpush.bf16.msra.mxu0 0
      %631 = vmatpush.bf16.msra.mxu0 0
      %632 = vmatpush.bf16.msra.mxu0 0
      %633 = vmatpush.bf16.msra.mxu0 0
      %634 = vmatpush.bf16.msra.mxu0 0
      %635 = vmatpush.bf16.msra.mxu0 %v624
      %636 = vmatmul.bf16.gmra.mxu0 %v626
      %v637 = vpop.f32.mrf.mxu0
      %v638 = vadd.f32 0.0, %v637
      %v639 = vpop.f32.mrf.mxu0
      %640 = vdwg.mxu0
      %v641 = vpack.c.bf16 %v638, %v638
      %v642 = vld [vmem:[%s9] sm:$0xf]
      %s643 = scalar_lea.vmem %s3, 16
      %v644 = vld [vmem:[%s643] sm:$0xf]
      %v645 = vld [vmem:[%s643 + $0x4] sm:$0xf]
      %v646 = vld [vmem:[%s643 + $0x8] sm:$0xf]
      %v647 = vld [vmem:[%s643 + $0xc] sm:$0xf]
      %s648 = scalar_lea.vmem %s6, 1
      %v649 = vld [vmem:[%s648] sm:$0x1]
      %v651 = vperm.slane %v649, 0
      %v657 = vunpack.c.l.b16 %v644
      %v658 = vunpack.c.l.b16 %v645
      %v659 = vunpack.c.l.b16 %v646
      %v660 = vunpack.c.l.b16 %v647
      %v661 = vpack.c.b16 %v658, %v657
      %v662 = vpack.c.b16 %v660, %v659
      %665 = vmatpush.bf16.msra.mxu0 0
      %666 = vmatpush.bf16.msra.mxu0 0
      %667 = vmatpush.bf16.msra.mxu0 0
      %668 = vmatpush.bf16.msra.mxu0 0
      %669 = vmatpush.bf16.msra.mxu0 0
      %670 = vmatpush.bf16.msra.mxu0 0
      %671 = vmatpush.bf16.msra.mxu0 %v662
      %672 = vmatpush.bf16.msra.mxu0 %v661
      %673 = vmatmul.bf16.gmra.mxu0 %v502
      %v674 = vpop.f32.mrf.mxu0
      %v675 = vadd.f32 %v651, %v674
      %v676 = vpop.f32.mrf.mxu0
      %677 = vdwg.mxu0
      %s678 = scalar_lea.vmem %s4, 16
      %v679 = vld [vmem:[%s678] sm:$0xf]
      %v680 = vld [vmem:[%s678 + $0x4] sm:$0xf]
      %v681 = vld [vmem:[%s678 + $0x8] sm:$0xf]
      %v682 = vld [vmem:[%s678 + $0xc] sm:$0xf]
      %s683 = scalar_lea.vmem %s7, 1
      %v684 = vld [vmem:[%s683] sm:$0x1]
      %v686 = vperm.slane %v684, 0
      %v692 = vunpack.c.l.b16 %v679
      %v693 = vunpack.c.l.b16 %v680
      %v694 = vunpack.c.l.b16 %v681
      %v695 = vunpack.c.l.b16 %v682
      %v696 = vpack.c.b16 %v693, %v692
      %v697 = vpack.c.b16 %v695, %v694
      %700 = vmatpush.bf16.msra.mxu0 0
      %701 = vmatpush.bf16.msra.mxu0 0
      %702 = vmatpush.bf16.msra.mxu0 0
      %703 = vmatpush.bf16.msra.mxu0 0
      %704 = vmatpush.bf16.msra.mxu0 0
      %705 = vmatpush.bf16.msra.mxu0 0
      %706 = vmatpush.bf16.msra.mxu0 %v697
      %707 = vmatpush.bf16.msra.mxu0 %v696
      %708 = vmatmul.bf16.gmra.mxu0 %v538
      %v709 = vpop.f32.mrf.mxu0
      %v710 = vadd.f32 %v686, %v709
      %v711 = vpop.f32.mrf.mxu0
      %v712 = vadd.f32 %v686, %v711
      %713 = vdwg.mxu0
      %s714 = scalar_lea.vmem %s5, 16
      %v715 = vld [vmem:[%s714] sm:$0xf]
      %v716 = vld [vmem:[%s714 + $0x4] sm:$0xf]
      %v717 = vld [vmem:[%s714 + $0x8] sm:$0xf]
      %v718 = vld [vmem:[%s714 + $0xc] sm:$0xf]
      %s719 = scalar_lea.vmem %s8, 1
      %v720 = vld [vmem:[%s719] sm:$0x1]
      %v722 = vperm.slane %v720, 0
      %v728 = vunpack.c.l.b16 %v715
      %v729 = vunpack.c.l.b16 %v716
      %v730 = vunpack.c.l.b16 %v717
      %v731 = vunpack.c.l.b16 %v718
      %v732 = vpack.c.b16 %v729, %v728
      %v733 = vpack.c.b16 %v731, %v730
      %736 = vmatpush.bf16.msra.mxu0 0
      %737 = vmatpush.bf16.msra.mxu0 0
      %738 = vmatpush.bf16.msra.mxu0 0
      %739 = vmatpush.bf16.msra.mxu0 0
      %740 = vmatpush.bf16.msra.mxu0 0
      %741 = vmatpush.bf16.msra.mxu0 0
      %742 = vmatpush.bf16.msra.mxu0 %v733
      %743 = vmatpush.bf16.msra.mxu0 %v732
      %744 = vmatmul.bf16.gmra.mxu0 %v538
      %v745 = vpop.f32.mrf.mxu0
      %v746 = vadd.f32 %v722, %v745
      %v747 = vpop.f32.mrf.mxu0
      %v748 = vadd.f32 %v722, %v747
      %749 = vdwg.mxu0
      %v750 = vmul.f32 %v675, 0.35355338
      %v751 = vpack.c.bf16 %v750, %v750
      %v752 = vpack.c.bf16 %v712, %v710
      %v754 = vsel %vm591, %v751, 0
      %v757 = vsel %vm591, %v752, 0
      %759 = vmatpush.bf16.xpose.msra.mxu0 0
      %760 = vmatpush.bf16.xpose.msra.mxu0 0
      %761 = vmatpush.bf16.xpose.msra.mxu0 0
      %762 = vmatpush.bf16.xpose.msra.mxu0 0
      %763 = vmatpush.bf16.xpose.msra.mxu0 0
      %764 = vmatpush.bf16.xpose.msra.mxu0 0
      %765 = vmatpush.bf16.xpose.msra.mxu0 0
      %766 = vmatpush.bf16.xpose.msra.mxu0 %v757
      %767 = vmatmul.bf16.gmra.mxu0 %v754
      %v768 = vpop.f32.mrf.mxu0
      %v769 = vadd.f32 %v477, %v768
      %v770 = vpop.f32.mrf.mxu0
      %771 = vdwg.mxu0
      %v772 = vsel %vm611, %v769, -inf
      %773 = vmax.xlane.f32.xlu0 %v772
      %v774 = vpop.xlane.xlu0 %773
      %v775 = vsub.f32 %v769, %v774
      %v776 = vmul.f32 %v775, 1.442695
      %v777 = vpow.pop %v776
      %v778 = vsel %vm611, %v777, 0.0
      %779 = vadd.xlane.f32.xlu0 %v778
      %v780 = vpop.xlane.xlu0 %779
      %v781 = vrcp.pop %v780
      %v782 = vmul.f32 %v777, %v781
      %v783 = vpack.c.bf16 %v782, %v782
      %v784 = vpack.c.bf16 %v748, %v746
      %v786 = vsel %vm611, %v783, 0
      %788 = vmatpush.bf16.msra.mxu0 0
      %789 = vmatpush.bf16.msra.mxu0 0
      %790 = vmatpush.bf16.msra.mxu0 0
      %791 = vmatpush.bf16.msra.mxu0 0
      %792 = vmatpush.bf16.msra.mxu0 0
      %793 = vmatpush.bf16.msra.mxu0 0
      %794 = vmatpush.bf16.msra.mxu0 0
      %795 = vmatpush.bf16.msra.mxu0 %v784
      %796 = vmatmul.bf16.gmra.mxu0 %v786
      %v797 = vpop.f32.mrf.mxu0
      %v798 = vadd.f32 0.0, %v797
      %v799 = vpop.f32.mrf.mxu0
      %800 = vdwg.mxu0
      %v801 = vpack.c.bf16 %v798, %v798
      %s802 = scalar_lea.vmem %s9, 4
      %v803 = vld [vmem:[%s802] sm:$0xf]
      %v805 = vsel %vm591, %v801, 0
      %vm807 = vcmask 1043456
      %v809 = vsel %vm807, %v803, 0
      %811 = vmatpush.bf16.msra.mxu0 0
      %812 = vmatpush.bf16.msra.mxu0 0
      %813 = vmatpush.bf16.msra.mxu0 0
      %814 = vmatpush.bf16.msra.mxu0 0
      %815 = vmatpush.bf16.msra.mxu0 0
      %816 = vmatpush.bf16.msra.mxu0 0
      %817 = vmatpush.bf16.msra.mxu0 0
      %818 = vmatpush.bf16.msra.mxu0 %v809
      %819 = vmatmul.bf16.gmra.mxu0 %v805
      %v820 = vpop.f32.mrf.mxu0
      %v821 = vadd.f32 0.0, %v820
      %v822 = vpop.f32.mrf.mxu0
      %823 = vdwg.mxu0
      %v825 = vsel %vm591, %v641, 0
      %v828 = vsel %vm807, %v642, 0
      %830 = vmatpush.bf16.msra.mxu0 0
      %831 = vmatpush.bf16.msra.mxu0 0
      %832 = vmatpush.bf16.msra.mxu0 0
      %833 = vmatpush.bf16.msra.mxu0 0
      %834 = vmatpush.bf16.msra.mxu0 0
      %835 = vmatpush.bf16.msra.mxu0 0
      %836 = vmatpush.bf16.msra.mxu0 0
      %837 = vmatpush.bf16.msra.mxu0 %v828
      %838 = vmatmul.bf16.gmra.mxu0 %v825
      %v839 = vpop.f32.mrf.mxu0
      %v840 = vadd.f32 %v821, %v839
      %v841 = vpop.f32.mrf.mxu0
      %842 = vdwg.mxu0
      %s843 = scalar_lea.vmem %s3, 32
      %v844 = vld [vmem:[%s843] sm:$0xf]
      %v845 = vld [vmem:[%s843 + $0x4] sm:$0xf]
      %v846 = vld [vmem:[%s843 + $0x8] sm:$0xf]
      %v847 = vld [vmem:[%s843 + $0xc] sm:$0xf]
      %s848 = scalar_lea.vmem %s6, 2
      %v849 = vld [vmem:[%s848] sm:$0x1]
      %v851 = vperm.slane %v849, 0
      %v857 = vunpack.c.l.b16 %v844
      %v858 = vunpack.c.l.b16 %v845
      %v859 = vunpack.c.l.b16 %v846
      %v860 = vunpack.c.l.b16 %v847
      %v861 = vpack.c.b16 %v858, %v857
      %v862 = vpack.c.b16 %v860, %v859
      %865 = vmatpush.bf16.msra.mxu0 0
      %866 = vmatpush.bf16.msra.mxu0 0
      %867 = vmatpush.bf16.msra.mxu0 0
      %868 = vmatpush.bf16.msra.mxu0 0
      %869 = vmatpush.bf16.msra.mxu0 0
      %870 = vmatpush.bf16.msra.mxu0 0
      %871 = vmatpush.bf16.msra.mxu0 %v862
      %872 = vmatpush.bf16.msra.mxu0 %v861
      %873 = vmatmul.bf16.gmra.mxu0 %v502
      %v874 = vpop.f32.mrf.mxu0
      %v875 = vadd.f32 %v851, %v874
      %v876 = vpop.f32.mrf.mxu0
      %877 = vdwg.mxu0
      %s878 = scalar_lea.vmem %s4, 32
      %v879 = vld [vmem:[%s878] sm:$0xf]
      %v880 = vld [vmem:[%s878 + $0x4] sm:$0xf]
      %v881 = vld [vmem:[%s878 + $0x8] sm:$0xf]
      %v882 = vld [vmem:[%s878 + $0xc] sm:$0xf]
      %s883 = scalar_lea.vmem %s7, 2
      %v884 = vld [vmem:[%s883] sm:$0x1]
      %v886 = vperm.slane %v884, 0
      %v892 = vunpack.c.l.b16 %v879
      %v893 = vunpack.c.l.b16 %v880
      %v894 = vunpack.c.l.b16 %v881
      %v895 = vunpack.c.l.b16 %v882
      %v896 = vpack.c.b16 %v893, %v892
      %v897 = vpack.c.b16 %v895, %v894
      %900 = vmatpush.bf16.msra.mxu0 0
      %901 = vmatpush.bf16.msra.mxu0 0
      %902 = vmatpush.bf16.msra.mxu0 0
      %903 = vmatpush.bf16.msra.mxu0 0
      %904 = vmatpush.bf16.msra.mxu0 0
      %905 = vmatpush.bf16.msra.mxu0 0
      %906 = vmatpush.bf16.msra.mxu0 %v897
      %907 = vmatpush.bf16.msra.mxu0 %v896
      %908 = vmatmul.bf16.gmra.mxu0 %v538
      %v909 = vpop.f32.mrf.mxu0
      %v910 = vadd.f32 %v886, %v909
      %v911 = vpop.f32.mrf.mxu0
      %v912 = vadd.f32 %v886, %v911
      %913 = vdwg.mxu0
      %s914 = scalar_lea.vmem %s5, 32
      %v915 = vld [vmem:[%s914] sm:$0xf]
      %v916 = vld [vmem:[%s914 + $0x4] sm:$0xf]
      %v917 = vld [vmem:[%s914 + $0x8] sm:$0xf]
      %v918 = vld [vmem:[%s914 + $0xc] sm:$0xf]
      %s919 = scalar_lea.vmem %s8, 2
      %v920 = vld [vmem:[%s919] sm:$0x1]
      %v922 = vperm.slane %v920, 0
      %v928 = vunpack.c.l.b16 %v915
      %v929 = vunpack.c.l.b16 %v916
      %v930 = vunpack.c.l.b16 %v917
      %v931 = vunpack.c.l.b16 %v918
      %v932 = vpack.c.b16 %v929, %v928
      %v933 = vpack.c.b16 %v931, %v930
      %936 = vmatpush.bf16.msra.mxu0 0
      %937 = vmatpush.bf16.msra.mxu0 0
      %938 = vmatpush.bf16.msra.mxu0 0
      %939 = vmatpush.bf16.msra.mxu0 0
      %940 = vmatpush.bf16.msra.mxu0 0
      %941 = vmatpush.bf16.msra.mxu0 0
      %942 = vmatpush.bf16.msra.mxu0 %v933
      %943 = vmatpush.bf16.msra.mxu0 %v932
      %944 = vmatmul.bf16.gmra.mxu0 %v538
      %v945 = vpop.f32.mrf.mxu0
      %v946 = vadd.f32 %v922, %v945
      %v947 = vpop.f32.mrf.mxu0
      %v948 = vadd.f32 %v922, %v947
      %949 = vdwg.mxu0
      %v950 = vmul.f32 %v875, 0.35355338
      %v951 = vpack.c.bf16 %v950, %v950
      %v952 = vpack.c.bf16 %v912, %v910
      %v954 = vsel %vm591, %v951, 0
      %v957 = vsel %vm591, %v952, 0
      %959 = vmatpush.bf16.xpose.msra.mxu0 0
      %960 = vmatpush.bf16.xpose.msra.mxu0 0
      %961 = vmatpush.bf16.xpose.msra.mxu0 0
      %962 = vmatpush.bf16.xpose.msra.mxu0 0
      %963 = vmatpush.bf16.xpose.msra.mxu0 0
      %964 = vmatpush.bf16.xpose.msra.mxu0 0
      %965 = vmatpush.bf16.xpose.msra.mxu0 0
      %966 = vmatpush.bf16.xpose.msra.mxu0 %v957
      %967 = vmatmul.bf16.gmra.mxu0 %v954
      %v968 = vpop.f32.mrf.mxu0
      %v969 = vadd.f32 %v477, %v968
      %v970 = vpop.f32.mrf.mxu0
      %971 = vdwg.mxu0
      %v972 = vsel %vm611, %v969, -inf
      %973 = vmax.xlane.f32.xlu0 %v972
      %v974 = vpop.xlane.xlu0 %973
      %v975 = vsub.f32 %v969, %v974
      %v976 = vmul.f32 %v975, 1.442695
      %v977 = vpow.pop %v976
      %v978 = vsel %vm611, %v977, 0.0
      %979 = vadd.xlane.f32.xlu0 %v978
      %v980 = vpop.xlane.xlu0 %979
      %v981 = vrcp.pop %v980
      %v982 = vmul.f32 %v977, %v981
      %v983 = vpack.c.bf16 %v982, %v982
      %v984 = vpack.c.bf16 %v948, %v946
      %v986 = vsel %vm611, %v983, 0
      %988 = vmatpush.bf16.msra.mxu0 0
      %989 = vmatpush.bf16.msra.mxu0 0
      %990 = vmatpush.bf16.msra.mxu0 0
      %991 = vmatpush.bf16.msra.mxu0 0
      %992 = vmatpush.bf16.msra.mxu0 0
      %993 = vmatpush.bf16.msra.mxu0 0
      %994 = vmatpush.bf16.msra.mxu0 0
      %995 = vmatpush.bf16.msra.mxu0 %v984
      %996 = vmatmul.bf16.gmra.mxu0 %v986
      %v997 = vpop.f32.mrf.mxu0
      %v998 = vadd.f32 0.0, %v997
      %v999 = vpop.f32.mrf.mxu0
      %1000 = vdwg.mxu0
      %v1001 = vpack.c.bf16 %v998, %v998
      %s1002 = scalar_lea.vmem %s9, 8
      %v1003 = vld [vmem:[%s1002] sm:$0xf]
      %v1005 = vsel %vm591, %v1001, 0
      %v1008 = vsel %vm807, %v1003, 0
      %1010 = vmatpush.bf16.msra.mxu0 0
      %1011 = vmatpush.bf16.msra.mxu0 0
      %1012 = vmatpush.bf16.msra.mxu0 0
      %1013 = vmatpush.bf16.msra.mxu0 0
      %1014 = vmatpush.bf16.msra.mxu0 0
      %1015 = vmatpush.bf16.msra.mxu0 0
      %1016 = vmatpush.bf16.msra.mxu0 0
      %1017 = vmatpush.bf16.msra.mxu0 %v1008
      %1018 = vmatmul.bf16.gmra.mxu0 %v1005
      %v1019 = vpop.f32.mrf.mxu0
      %v1020 = vadd.f32 0.0, %v1019
      %v1021 = vpop.f32.mrf.mxu0
      %1022 = vdwg.mxu0
      %v1023 = vadd.f32 %v840, %v1020
      %s1024 = scalar_lea.vmem %s3, 48
      %v1025 = vld [vmem:[%s1024] sm:$0xf]
      %v1026 = vld [vmem:[%s1024 + $0x4] sm:$0xf]
      %v1027 = vld [vmem:[%s1024 + $0x8] sm:$0xf]
      %v1028 = vld [vmem:[%s1024 + $0xc] sm:$0xf]
      %s1029 = scalar_lea.vmem %s6, 3
      %v1030 = vld [vmem:[%s1029] sm:$0x1]
      %v1032 = vperm.slane %v1030, 0
      %v1038 = vunpack.c.l.b16 %v1025
      %v1039 = vunpack.c.l.b16 %v1026
      %v1040 = vunpack.c.l.b16 %v1027
      %v1041 = vunpack.c.l.b16 %v1028
      %v1042 = vpack.c.b16 %v1039, %v1038
      %v1043 = vpack.c.b16 %v1041, %v1040
      %1046 = vmatpush.bf16.msra.mxu0 0
      %1047 = vmatpush.bf16.msra.mxu0 0
      %1048 = vmatpush.bf16.msra.mxu0 0
      %1049 = vmatpush.bf16.msra.mxu0 0
      %1050 = vmatpush.bf16.msra.mxu0 0
      %1051 = vmatpush.bf16.msra.mxu0 0
      %1052 = vmatpush.bf16.msra.mxu0 %v1043
      %1053 = vmatpush.bf16.msra.mxu0 %v1042
      %1054 = vmatmul.bf16.gmra.mxu0 %v502
      %v1055 = vpop.f32.mrf.mxu0
      %v1056 = vadd.f32 %v1032, %v1055
      %v1057 = vpop.f32.mrf.mxu0
      %1058 = vdwg.mxu0
      %s1059 = scalar_lea.vmem %s4, 48
      %v1060 = vld [vmem:[%s1059] sm:$0xf]
      %v1061 = vld [vmem:[%s1059 + $0x4] sm:$0xf]
      %v1062 = vld [vmem:[%s1059 + $0x8] sm:$0xf]
      %v1063 = vld [vmem:[%s1059 + $0xc] sm:$0xf]
      %s1064 = scalar_lea.vmem %s7, 3
      %v1065 = vld [vmem:[%s1064] sm:$0x1]
      %v1067 = vperm.slane %v1065, 0
      %v1073 = vunpack.c.l.b16 %v1060
      %v1074 = vunpack.c.l.b16 %v1061
      %v1075 = vunpack.c.l.b16 %v1062
      %v1076 = vunpack.c.l.b16 %v1063
      %v1077 = vpack.c.b16 %v1074, %v1073
      %v1078 = vpack.c.b16 %v1076, %v1075
      %1081 = vmatpush.bf16.msra.mxu0 0
      %1082 = vmatpush.bf16.msra.mxu0 0
      %1083 = vmatpush.bf16.msra.mxu0 0
      %1084 = vmatpush.bf16.msra.mxu0 0
      %1085 = vmatpush.bf16.msra.mxu0 0
      %1086 = vmatpush.bf16.msra.mxu0 0
      %1087 = vmatpush.bf16.msra.mxu0 %v1078
      %1088 = vmatpush.bf16.msra.mxu0 %v1077
      %1089 = vmatmul.bf16.gmra.mxu0 %v538
      %v1090 = vpop.f32.mrf.mxu0
      %v1091 = vadd.f32 %v1067, %v1090
      %v1092 = vpop.f32.mrf.mxu0
      %v1093 = vadd.f32 %v1067, %v1092
      %1094 = vdwg.mxu0
      %s1095 = scalar_lea.vmem %s5, 48
      %v1096 = vld [vmem:[%s1095] sm:$0xf]
      %v1097 = vld [vmem:[%s1095 + $0x4] sm:$0xf]
      %v1098 = vld [vmem:[%s1095 + $0x8] sm:$0xf]
      %v1099 = vld [vmem:[%s1095 + $0xc] sm:$0xf]
      %s1100 = scalar_lea.vmem %s8, 3
      %v1101 = vld [vmem:[%s1100] sm:$0x1]
      %v1103 = vperm.slane %v1101, 0
      %v1109 = vunpack.c.l.b16 %v1096
      %v1110 = vunpack.c.l.b16 %v1097
      %v1111 = vunpack.c.l.b16 %v1098
      %v1112 = vunpack.c.l.b16 %v1099
      %v1113 = vpack.c.b16 %v1110, %v1109
      %v1114 = vpack.c.b16 %v1112, %v1111
      %1117 = vmatpush.bf16.msra.mxu0 0
      %1118 = vmatpush.bf16.msra.mxu0 0
      %1119 = vmatpush.bf16.msra.mxu0 0
      %1120 = vmatpush.bf16.msra.mxu0 0
      %1121 = vmatpush.bf16.msra.mxu0 0
      %1122 = vmatpush.bf16.msra.mxu0 0
      %1123 = vmatpush.bf16.msra.mxu0 %v1114
      %1124 = vmatpush.bf16.msra.mxu0 %v1113
      %1125 = vmatmul.bf16.gmra.mxu0 %v538
      %v1126 = vpop.f32.mrf.mxu0
      %v1127 = vadd.f32 %v1103, %v1126
      %v1128 = vpop.f32.mrf.mxu0
      %v1129 = vadd.f32 %v1103, %v1128
      %1130 = vdwg.mxu0
      %v1131 = vmul.f32 %v1056, 0.35355338
      %v1132 = vpack.c.bf16 %v1131, %v1131
      %v1133 = vpack.c.bf16 %v1093, %v1091
      %v1135 = vsel %vm591, %v1132, 0
      %v1138 = vsel %vm591, %v1133, 0
      %1140 = vmatpush.bf16.xpose.msra.mxu0 0
      %1141 = vmatpush.bf16.xpose.msra.mxu0 0
      %1142 = vmatpush.bf16.xpose.msra.mxu0 0
      %1143 = vmatpush.bf16.xpose.msra.mxu0 0
      %1144 = vmatpush.bf16.xpose.msra.mxu0 0
      %1145 = vmatpush.bf16.xpose.msra.mxu0 0
      %1146 = vmatpush.bf16.xpose.msra.mxu0 0
      %1147 = vmatpush.bf16.xpose.msra.mxu0 %v1138
      %1148 = vmatmul.bf16.gmra.mxu0 %v1135
      %v1149 = vpop.f32.mrf.mxu0
      %v1150 = vadd.f32 %v477, %v1149
      %v1151 = vpop.f32.mrf.mxu0
      %1152 = vdwg.mxu0
      %v1153 = vsel %vm611, %v1150, -inf
      %1154 = vmax.xlane.f32.xlu0 %v1153
      %v1155 = vpop.xlane.xlu0 %1154
      %v1156 = vsub.f32 %v1150, %v1155
      %v1157 = vmul.f32 %v1156, 1.442695
      %v1158 = vpow.pop %v1157
      %v1159 = vsel %vm611, %v1158, 0.0
      %1160 = vadd.xlane.f32.xlu0 %v1159
      %v1161 = vpop.xlane.xlu0 %1160
      %v1162 = vrcp.pop %v1161
      %v1163 = vmul.f32 %v1158, %v1162
      %v1164 = vpack.c.bf16 %v1163, %v1163
      %v1165 = vpack.c.bf16 %v1129, %v1127
      %v1167 = vsel %vm611, %v1164, 0
      %1169 = vmatpush.bf16.msra.mxu0 0
      %1170 = vmatpush.bf16.msra.mxu0 0
      %1171 = vmatpush.bf16.msra.mxu0 0
      %1172 = vmatpush.bf16.msra.mxu0 0
      %1173 = vmatpush.bf16.msra.mxu0 0
      %1174 = vmatpush.bf16.msra.mxu0 0
      %1175 = vmatpush.bf16.msra.mxu0 0
      %1176 = vmatpush.bf16.msra.mxu0 %v1165
      %1177 = vmatmul.bf16.gmra.mxu0 %v1167
      %v1178 = vpop.f32.mrf.mxu0
      %v1179 = vadd.f32 0.0, %v1178
      %v1180 = vpop.f32.mrf.mxu0
      %1181 = vdwg.mxu0
      %v1182 = vpack.c.bf16 %v1179, %v1179
      %s1183 = scalar_lea.vmem %s9, 12
      %v1184 = vld [vmem:[%s1183] sm:$0xf]
      %v1186 = vsel %vm591, %v1182, 0
      %v1189 = vsel %vm807, %v1184, 0
      %1191 = vmatpush.bf16.msra.mxu0 0
      %1192 = vmatpush.bf16.msra.mxu0 0
      %1193 = vmatpush.bf16.msra.mxu0 0
      %1194 = vmatpush.bf16.msra.mxu0 0
      %1195 = vmatpush.bf16.msra.mxu0 0
      %1196 = vmatpush.bf16.msra.mxu0 0
      %1197 = vmatpush.bf16.msra.mxu0 0
      %1198 = vmatpush.bf16.msra.mxu0 %v1189
      %1199 = vmatmul.bf16.gmra.mxu0 %v1186
      %v1200 = vpop.f32.mrf.mxu0
      %v1201 = vadd.f32 0.0, %v1200
      %v1202 = vpop.f32.mrf.mxu0
      %1203 = vdwg.mxu0
      %v1204 = vadd.f32 %v1023, %v1201
      %v1205 = vadd.f32 %v474, %v1204
      %v1206 = vld [vmem:[%s10] sm:$0x1]
      %v1208 = vperm.slane %v1206, 0
      %v1210 = vadd.f32 %v1205, %v1208
      %v1211 = vld [vmem:[%s11] sm:$0x1]
      %v1212 = vld [vmem:[%s12] sm:$0x1]
      %v1213 = vsel %vm500, %v1210, 0.0
      %1214 = vadd.xlane.f32.xlu0 %v1213
      %v1215 = vpop.xlane.xlu0 %1214
      %v1216 = vrcp.pop 32.0
      %v1217 = vmul.f32 32.0, %v1216
      %v1218 = vsub.f32 1.0, %v1217
      %v1219 = vmul.f32 %v1216, %v1218
      %v1220 = vadd.f32 %v1216, %v1219
      %vm1221 = vweird.f32 %v1216
      %v1222 = vsel %vm1221, %v1216, %v1220
      %v1223 = vmul.f32 %v1215, %v1222
      %v1224 = vsub.f32 %v1210, %v1223
      %v1225 = vmul.f32 %v1224, %v1224
      %v1226 = vsel %vm500, %v1225, 0.0
      %1227 = vadd.xlane.f32.xlu0 %v1226
      %v1228 = vpop.xlane.xlu0 %1227
      %v1229 = vmul.f32 %v1228, %v1222
      %v1230 = vadd.f32 %v1229, 1e-05
      %v1231 = vrsqrt.pop %v1230
      %v1232 = vmul.f32 %v1231, %v1230
      %v1233 = vmul.f32 %v1232, %v1231
      %v1234 = vmul.f32 0.5, %v1233
      %v1235 = vsub.f32 1.5, %v1234
      %v1236 = vmul.f32 %v1231, %v1235
      %vm1237 = vweird.f32 %v1230
      %vm1238 = vweird.f32 %v1231
      %vm1239 = vmor %vm1237, %vm1238
      %v1240 = vsel %vm1239, %v1231, %v1236
      %v1241 = vmul.f32 %v1224, %v1240
      %v1243 = vperm.slane %v1211, 0
      %v1245 = vmul.f32 %v1241, %v1243
      %v1247 = vperm.slane %v1212, 0
      %v1249 = vadd.f32 %v1245, %v1247
      %1250 = vst.msk [vmem:[%s472] sm:$0xff] %vm500, %v1249
      %p1251 = scmp.lt.s32.totalorder %s24, 1
      %s1252 = scalar_select %p1251, %s24, 1
      %s1253 = smul.addr %s1252, 8
      %s1254 = scalar_lea.vmem %s13, %s1253
      // Predicated region
      $region73: #{_lambda_.11} parent=71 // pred_check
        %p1255 = pneg %p330
      $region74: #{_lambda_.11} parent=71 // pred_check_branch
        %1257 = sbr.rel (%p1255) target = $region76
      $region75: #{_lambda_.11} parent=71 // pred_region
        _
      $region76: #{_lambda_.11} parent=71 // pred_fallthru
        _
    $region72: #{_lambda_.11} parent=5 // pred_fallthru
      _
    %p1258 = scmp.le.s32.totalorder 2, %s19
    // Predicated region
    $region77: #{_lambda_.11} parent=5 // pred_check
      %p1259 = pneg %p1258
    $region78: #{_lambda_.11} parent=5 // pred_check_branch
      %1261 = sbr.rel (%p1259) target = $region80
    $region79: #{_lambda_.11} parent=5 // pred_region
      %s1262 = ssub.s32 %s19, 2
      // Predicated region
      $region81: #{_lambda_.11} parent=79 // pred_check
        %p1263 = pneg %p336
      $region82: #{_lambda_.11} parent=79 // pred_check_branch
        %1265 = sbr.rel (%p1263) target = $region84
      $region83: #{_lambda_.11} parent=79 // pred_region
        %p1266 = scmp.lt.s32.totalorder %s25, 1
        %s1267 = scalar_select %p1266, %s25, 1
        %s1268 = smul.addr %s1267, 8
        %s1269 = scalar_lea.vmem %s13, %s1268
      $region84: #{_lambda_.11} parent=79 // pred_fallthru
        _
    $region80: #{_lambda_.11} parent=5 // pred_fallthru
      _
  $region6: #{_lambda_.11} parent=0 // loop_footer
    %s23 = sadd.s32 1, %s19
  $region7: #{_lambda_.11} parent=0 // loop_footer_branch
    %18 = sbr.rel target = $region3
  $region8: #{_lambda_.11} parent=0 // loop_exit
    _

</llo_original>
